<compile_context>
chip_gen: v7x
topology: tpu7x:2x2x1
jax: 0.10.0
libtpu: 0.0.40
codegen_flags: <defaults>
</compile_context>

<pallas_src>
import functools

import jax
import jax.numpy as jnp
from jax.experimental import pallas as pl
from jax.experimental.pallas import tpu as pltpu

# Module hyperparameters (defaults of the PyTorch NeRF module).
D = 8
W = 256
INPUT_CH = 3
INPUT_CH_VIEWS = 3
OUTPUT_CH = 4
SKIPS = (4,)
PAD = 128  # lane padding for the small feature dims


# ---------------------------------------------------------------------------
# Pallas kernel
# ---------------------------------------------------------------------------
def nerf_kernel(use_viewdirs, skips, *refs):
    if use_viewdirs:
        (x_ref, wx_ref, ws_ref, bpts_ref,
         wfa_ref, bviews_ref, wrgb_ref, bout_ref, o_ref) = refs
    else:
        (x_ref, wx_ref, ws_ref, bpts_ref, wout_ref, bout_ref, o_ref) = refs

    # Packed input: pts in lanes 0..2, views in lanes 3..5, rest zero. bf16.
    x = x_ref[...]                      # [TM, 128] bf16

    # One fused x-side matmul: x @ [w0 | wskip | wvv]  (K=128, N=640/512).
    # w0 rows 3..127 are zero (views don't leak into layer 0); wskip rows
    # 3..127 are zero; wvv rows other than 3..5 are zero.
    xprod = jnp.dot(x, wx_ref[...], preferred_element_type=jnp.float32)

    # Layer 0: Linear(input_ch, W) + ReLU.
    h = jnp.maximum(xprod[:, :W] + bpts_ref[0:1, :], 0.0)
    # Skip-concat contribution (consumed by the layer after the skip).
    skip_term = xprod[:, W:2 * W]       # [TM, W] f32

    # Layers 1..D-1 of pts_linears.  The skip-concat after layer i (i in
    # skips) is folded into layer i+1 as the precomputed skip_term add.
    for li in range(1, D):
        z = (jnp.dot(h.astype(jnp.bfloat16), ws_ref[li - 1],
                     preferred_element_type=jnp.float32)
             + bpts_ref[li:li + 1, :])
        if (li - 1) in skips:
            z = z + skip_term
        h = jnp.maximum(z, 0.0)

    hb = h.astype(jnp.bfloat16)
    if use_viewdirs:
        # Fused [feature->views | alpha] matmul on the full 256-wide MXU:
        #   lanes 0..127   = (feature_linear folded into views_linears[0])
        #   lanes 128..255 = alpha column at lane 131 (block lane 3)
        fa = jnp.dot(hb, wfa_ref[...], preferred_element_type=jnp.float32)
        vv_term = xprod[:, 2 * W:2 * W + PAD]        # views @ wv[W:], [TM,128]
        hv = jnp.maximum(fa[:, :PAD] + vv_term + bviews_ref[...], 0.0)
        alpha_blk = fa[:, PAD:2 * PAD]               # alpha at lane 3
        # cat([rgb, alpha]): rgb weights occupy output lanes 0:3, alpha lane 3.
        out = (jnp.dot(hv.astype(jnp.bfloat16), wrgb_ref[...],
                       preferred_element_type=jnp.float32)
               + alpha_blk + bout_ref[...])
    else:
        out = (jnp.dot(hb, wout_ref[...], preferred_element_type=jnp.float32)
               + bout_ref[...])

    o_ref[...] = out.astype(o_ref.dtype)


# ---------------------------------------------------------------------------
# Parameter init (PyTorch nn.Linear-style uniform init, deterministic)
# ---------------------------------------------------------------------------
def _linear(key, fan_in, fan_out):
    kw, kb = jax.random.split(key)
    bound = 1.0 / (fan_in ** 0.5)
    w = jax.random.uniform(kw, (fan_in, fan_out), jnp.float32, -bound, bound)
    b = jax.random.uniform(kb, (fan_out,), jnp.float32, -bound, bound)
    return w, b


def init_params(key, use_viewdirs):
    keys = jax.random.split(key, D + 6)
    params = {"pts": []}
    params["pts"].append(_linear(keys[0], INPUT_CH, W))
    for i in range(D - 1):
        fan_in = W + INPUT_CH if i in SKIPS else W
        params["pts"].append(_linear(keys[i + 1], fan_in, W))
    if use_viewdirs:
        params["feature"] = _linear(keys[D], W, W)
        params["alpha"] = _linear(keys[D + 1], W, 1)
        params["views"] = _linear(keys[D + 2], INPUT_CH_VIEWS + W, W // 2)
        params["rgb"] = _linear(keys[D + 3], W // 2, 3)
    else:
        params["out"] = _linear(keys[D + 4], W, OUTPUT_CH)
    return params


# ---------------------------------------------------------------------------
# Pure-JAX reference (mirrors the PyTorch forward exactly, f32)
# ---------------------------------------------------------------------------
def nerf_reference(x, params, use_viewdirs):
    pts = x[:, :INPUT_CH]
    views = x[:, INPUT_CH:INPUT_CH + INPUT_CH_VIEWS]
    h = pts
    for i in range(D):
        w, b = params["pts"][i]
        h = jnp.maximum(h @ w + b, 0.0)
        if i in SKIPS:
            h = jnp.concatenate([pts, h], -1)
    if use_viewdirs:
        alpha = h @ params["alpha"][0] + params["alpha"][1]
        feature = h @ params["feature"][0] + params["feature"][1]
        hv = jnp.concatenate([feature, views], -1)
        wv, bv = params["views"]
        hv = jnp.maximum(hv @ wv + bv, 0.0)
        rgb = hv @ params["rgb"][0] + params["rgb"][1]
        return jnp.concatenate([rgb, alpha], -1)
    return h @ params["out"][0] + params["out"][1]


# ---------------------------------------------------------------------------
# Build padded kernel weights (matmul weights bf16, biases f32)
# ---------------------------------------------------------------------------
def _build_kernel_weights(params, use_viewdirs):
    f32, bf16 = jnp.float32, jnp.bfloat16

    # Layer 0 weight: (3, W) in rows 0..2 of a (128, W) block.
    w0 = jnp.zeros((PAD, W), f32).at[:INPUT_CH].set(params["pts"][0][0])
    bpts = jnp.stack([params["pts"][i][1] for i in range(D)])  # (D, W) f32

    wskip = jnp.zeros((PAD, W), f32)
    ws = []
    for i in range(1, D):
        w = params["pts"][i][0]
        if (i - 1) in SKIPS:   # this layer consumes cat([pts, h])
            wskip = wskip.at[:INPUT_CH].set(w[:INPUT_CH])
            ws.append(w[INPUT_CH:])
        else:
            ws.append(w)
    ws = jnp.stack(ws)  # (D-1, W, W)

    if use_viewdirs:
        wfeat, bfeat = params["feature"]
        wa, ba = params["alpha"]

        wv, bv = params["views"]
        wvf = wv[:W]                                   # (W, W//2) feature rows
        # Fold feature_linear into views_linears[0] (no nonlinearity between).
        wfv = wfeat @ wvf                              # (W, W//2)
        bviews = (bv + bfeat @ wvf).reshape(1, W // 2)  # f32
        # alpha_linear fused alongside: lanes 128..255, alpha at block lane 3.
        walpha_blk = jnp.zeros((W, PAD), f32).at[:, 3:4].set(wa)
        wfa = jnp.concatenate([wfv, walpha_blk], axis=1)   # (W, 2*PAD)

        # Views weights land on packed-input lanes 3..5.
        wvv = (jnp.zeros((PAD, W // 2), f32)
               .at[INPUT_CH:INPUT_CH + INPUT_CH_VIEWS].set(wv[W:]))
        # One fused x-side weight: [w0 | wskip | wvv]  -> (128, 640)
        wx = jnp.concatenate([w0, wskip, wvv], axis=1)

        wr, br = params["rgb"]
        wrgb = jnp.zeros((W // 2, PAD), f32).at[:, :3].set(wr)
        bout = (jnp.zeros((1, PAD), f32)
                .at[0, :3].set(br).at[0, 3:4].set(ba))
        return (wx.astype(bf16), ws.astype(bf16), bpts,
                wfa.astype(bf16), bviews, wrgb.astype(bf16), bout)
    else:
        wx = jnp.concatenate([w0, wskip], axis=1)           # (128, 512)
        wo, bo = params["out"]
        wout = jnp.zeros((W, PAD), f32).at[:, :OUTPUT_CH].set(wo)
        bout = jnp.zeros((1, PAD), f32).at[0, :OUTPUT_CH].set(bo)
        return (wx.astype(bf16), ws.astype(bf16), bpts,
                wout.astype(bf16), bout)


def _full_spec(a):
    nd = a.ndim
    return pl.BlockSpec(a.shape, lambda i, _nd=nd: (0,) * _nd)


# ---------------------------------------------------------------------------
# Wrapper calling pallas_call
# ---------------------------------------------------------------------------
def nerf_pallas(x, params, use_viewdirs, tm=None, out_dtype=jnp.bfloat16,
                return_padded=False):
    n = x.shape[0]
    if tm is None:
        # Big tile to amortize the ~0.35us per-grid-step overhead, but shrink
        # so the grid has >= 2 steps whenever n > 512 (v7x megacore sharding).
        tm = max(512, min(2048, 512 * pl.cdiv(n, 2 * 512)))
    n_pad = tm * pl.cdiv(n, tm)

    # Packed, lane-dense input: [pts | views | zeros] in 128 lanes, bf16.
    xf = x[:, :INPUT_CH + INPUT_CH_VIEWS].astype(jnp.bfloat16)
    x_pad = jnp.pad(xf, ((0, n_pad - n), (0, PAD - xf.shape[1])))

    weights = _build_kernel_weights(params, use_viewdirs)

    in_specs = [pl.BlockSpec((tm, PAD), lambda i: (i, 0))]
    in_specs += [_full_spec(w) for w in weights]

    # Advisory cost estimate for XLA's scheduler (bf16 matmul weights only).
    if use_viewdirs:
        matmul_w = (weights[0], weights[1], weights[3], weights[5])
    else:
        matmul_w = (weights[0], weights[1], weights[3])
    flops = 2 * int(n_pad) * sum(int(w.size) for w in matmul_w)
    out_itemsize = jnp.dtype(out_dtype).itemsize
    bytes_accessed = (int(x_pad.nbytes) + int(n_pad) * PAD * out_itemsize
                      + sum(int(w.nbytes) for w in weights))

    out = pl.pallas_call(
        functools.partial(nerf_kernel, use_viewdirs, SKIPS),
        out_shape=jax.ShapeDtypeStruct((n_pad, PAD), out_dtype),
        grid=(n_pad // tm,),
        in_specs=in_specs,
        out_specs=pl.BlockSpec((tm, PAD), lambda i: (i, 0)),
        compiler_params=pltpu.CompilerParams(
            dimension_semantics=("parallel",),
            vmem_limit_bytes=48 * 1024 * 1024),
        cost_estimate=pl.CostEstimate(
            flops=flops, transcendentals=0, bytes_accessed=bytes_accessed),
    )(x_pad, *weights)

    if return_padded:
        # Lane-dense [n, 128] result (rgb/alpha in lanes 0..3); lets the
        # consumer slice lazily instead of forcing a strided copy here.
        return out[:n]
    return out[:n, :OUTPUT_CH]


# ---------------------------------------------------------------------------
if __name__ == "__main__":
    key = jax.random.PRNGKey(0)
    kx, kp_false, kp_true = jax.random.split(key, 3)

    N = 600  # not a multiple of the tile -> exercises padding / cdiv grid
    x = jax.random.normal(kx, (N, INPUT_CH + INPUT_CH_VIEWS), jnp.float32)

    ok = True
    for use_viewdirs, kp in ((False, kp_false), (True, kp_true)):
        params = init_params(kp, use_viewdirs)
        out_kernel = jax.block_until_ready(nerf_pallas(x, params, use_viewdirs))
        out_ref = jax.block_until_ready(nerf_reference(x, params, use_viewdirs))
        if out_kernel.shape != (N, OUTPUT_CH):
            ok = False
        # bf16 matmul operands / bf16 output (f32 accumulation) -> loose tol.
        if not jnp.allclose(out_kernel.astype(jnp.float32), out_ref,
                            atol=5e-2, rtol=5e-2):
            ok = False

    if ok:
        print("KERNEL_OK")
    else:
        print("KERNEL_MISMATCH")
</pallas_src>

<mosaic_0001>
module attributes {stable_mosaic.version = 11 : i64} {
  func.func @nerf_kernel(%arg0: i32, %arg1: memref<512x128xbf16, #tpu.memory_space<vmem>>, %arg2: memref<128x512xbf16, #tpu.memory_space<vmem>>, %arg3: memref<7x256x256xbf16, #tpu.memory_space<vmem>>, %arg4: memref<8x256xf32, #tpu.memory_space<vmem>>, %arg5: memref<256x128xbf16, #tpu.memory_space<vmem>>, %arg6: memref<1x128xf32, #tpu.memory_space<vmem>>, %arg7: memref<512x128xbf16, #tpu.memory_space<vmem>>) attributes {dimension_semantics = [#tpu.dimension_semantics<parallel>], iteration_bounds = array<i64: 2>, scalar_prefetch = 0 : i64, scratch_operands = 0 : i64, tpu.core_type = #tpu.core_type<tc>, window_params = [{transform_indices = @transform_0, window_bounds = array<i64: 512, 128>}, {pipeline_mode = #tpu.pipeline_mode<synchronous>, transform_indices = @transform_1, window_bounds = array<i64: 128, 512>}, {pipeline_mode = #tpu.pipeline_mode<synchronous>, transform_indices = @transform_2, window_bounds = array<i64: 7, 256, 256>}, {pipeline_mode = #tpu.pipeline_mode<synchronous>, transform_indices = @transform_3, window_bounds = array<i64: 8, 256>}, {pipeline_mode = #tpu.pipeline_mode<synchronous>, transform_indices = @transform_4, window_bounds = array<i64: 256, 128>}, {pipeline_mode = #tpu.pipeline_mode<synchronous>, transform_indices = @transform_5, window_bounds = array<i64: 1, 128>}, {transform_indices = @transform_6, window_bounds = array<i64: 512, 128>}]} {
    %c0 = arith.constant 0 : index
    %c0_0 = arith.constant 0 : index
    %0 = vector.load %arg1[%c0, %c0_0] : memref<512x128xbf16, #tpu.memory_space<vmem>>, vector<512x128xbf16>
    %c0_1 = arith.constant 0 : index
    %c0_2 = arith.constant 0 : index
    %1 = vector.load %arg2[%c0_1, %c0_2] : memref<128x512xbf16, #tpu.memory_space<vmem>>, vector<128x512xbf16>
    %cst = arith.constant dense<0.000000e+00> : vector<512x512xf32>
    %2 = tpu.matmul %0, %1, %cst {dimension_numbers = #tpu.dot_dimension_numbers<[1], [0], [0], [1], [0, 0, 1, 1], [], []>} : vector<512x128xbf16>, vector<128x512xbf16>, vector<512x512xf32> -> vector<512x512xf32>
    %3 = vector.extract_strided_slice %2 {offsets = [0, 0], sizes = [512, 256], strides = [1, 1]} : vector<512x512xf32> to vector<512x256xf32>
    %c0_3 = arith.constant 0 : index
    %c0_4 = arith.constant 0 : index
    %4 = vector.load %arg4[%c0_3, %c0_4] : memref<8x256xf32, #tpu.memory_space<vmem>>, vector<1x256xf32>
    %5 = vector.broadcast %4 : vector<1x256xf32> to vector<512x256xf32>
    %6 = arith.addf %3, %5 : vector<512x256xf32>
    %cst_5 = arith.constant 0.000000e+00 : f32
    %7 = vector.broadcast %cst_5 : f32 to vector<512x256xf32>
    %8 = arith.maximumf %6, %7 : vector<512x256xf32>
    %9 = vector.extract_strided_slice %2 {offsets = [0, 256], sizes = [512, 256], strides = [1, 1]} : vector<512x512xf32> to vector<512x256xf32>
    %10 = arith.truncf %8 : vector<512x256xf32> to vector<512x256xbf16>
    %c0_6 = arith.constant 0 : index
    %c0_7 = arith.constant 0 : index
    %c0_8 = arith.constant 0 : index
    %11 = vector.load %arg3[%c0_6, %c0_7, %c0_8] : memref<7x256x256xbf16, #tpu.memory_space<vmem>>, vector<1x256x256xbf16>
    %12 = vector.shape_cast %11 : vector<1x256x256xbf16> to vector<256x256xbf16>
    %cst_9 = arith.constant dense<0.000000e+00> : vector<512x256xf32>
    %13 = tpu.matmul %10, %12, %cst_9 {dimension_numbers = #tpu.dot_dimension_numbers<[1], [0], [0], [1], [0, 0, 1, 1], [], []>} : vector<512x256xbf16>, vector<256x256xbf16>, vector<512x256xf32> -> vector<512x256xf32>
    %c1 = arith.constant 1 : index
    %c0_10 = arith.constant 0 : index
    %14 = vector.load %arg4[%c1, %c0_10] : memref<8x256xf32, #tpu.memory_space<vmem>>, vector<1x256xf32>
    %15 = vector.broadcast %14 : vector<1x256xf32> to vector<512x256xf32>
    %16 = arith.addf %13, %15 : vector<512x256xf32>
    %cst_11 = arith.constant 0.000000e+00 : f32
    %17 = vector.broadcast %cst_11 : f32 to vector<512x256xf32>
    %18 = arith.maximumf %16, %17 : vector<512x256xf32>
    %19 = arith.truncf %18 : vector<512x256xf32> to vector<512x256xbf16>
    %c1_12 = arith.constant 1 : index
    %c0_13 = arith.constant 0 : index
    %c0_14 = arith.constant 0 : index
    %20 = vector.load %arg3[%c1_12, %c0_13, %c0_14] : memref<7x256x256xbf16, #tpu.memory_space<vmem>>, vector<1x256x256xbf16>
    %21 = vector.shape_cast %20 : vector<1x256x256xbf16> to vector<256x256xbf16>
    %cst_15 = arith.constant dense<0.000000e+00> : vector<512x256xf32>
    %22 = tpu.matmul %19, %21, %cst_15 {dimension_numbers = #tpu.dot_dimension_numbers<[1], [0], [0], [1], [0, 0, 1, 1], [], []>} : vector<512x256xbf16>, vector<256x256xbf16>, vector<512x256xf32> -> vector<512x256xf32>
    %c2 = arith.constant 2 : index
    %c0_16 = arith.constant 0 : index
    %23 = vector.load %arg4[%c2, %c0_16] : memref<8x256xf32, #tpu.memory_space<vmem>>, vector<1x256xf32>
    %24 = vector.broadcast %23 : vector<1x256xf32> to vector<512x256xf32>
    %25 = arith.addf %22, %24 : vector<512x256xf32>
    %cst_17 = arith.constant 0.000000e+00 : f32
    %26 = vector.broadcast %cst_17 : f32 to vector<512x256xf32>
    %27 = arith.maximumf %25, %26 : vector<512x256xf32>
    %28 = arith.truncf %27 : vector<512x256xf32> to vector<512x256xbf16>
    %c2_18 = arith.constant 2 : index
    %c0_19 = arith.constant 0 : index
    %c0_20 = arith.constant 0 : index
    %29 = vector.load %arg3[%c2_18, %c0_19, %c0_20] : memref<7x256x256xbf16, #tpu.memory_space<vmem>>, vector<1x256x256xbf16>
    %30 = vector.shape_cast %29 : vector<1x256x256xbf16> to vector<256x256xbf16>
    %cst_21 = arith.constant dense<0.000000e+00> : vector<512x256xf32>
    %31 = tpu.matmul %28, %30, %cst_21 {dimension_numbers = #tpu.dot_dimension_numbers<[1], [0], [0], [1], [0, 0, 1, 1], [], []>} : vector<512x256xbf16>, vector<256x256xbf16>, vector<512x256xf32> -> vector<512x256xf32>
    %c3 = arith.constant 3 : index
    %c0_22 = arith.constant 0 : index
    %32 = vector.load %arg4[%c3, %c0_22] : memref<8x256xf32, #tpu.memory_space<vmem>>, vector<1x256xf32>
    %33 = vector.broadcast %32 : vector<1x256xf32> to vector<512x256xf32>
    %34 = arith.addf %31, %33 : vector<512x256xf32>
    %cst_23 = arith.constant 0.000000e+00 : f32
    %35 = vector.broadcast %cst_23 : f32 to vector<512x256xf32>
    %36 = arith.maximumf %34, %35 : vector<512x256xf32>
    %37 = arith.truncf %36 : vector<512x256xf32> to vector<512x256xbf16>
    %c3_24 = arith.constant 3 : index
    %c0_25 = arith.constant 0 : index
    %c0_26 = arith.constant 0 : index
    %38 = vector.load %arg3[%c3_24, %c0_25, %c0_26] : memref<7x256x256xbf16, #tpu.memory_space<vmem>>, vector<1x256x256xbf16>
    %39 = vector.shape_cast %38 : vector<1x256x256xbf16> to vector<256x256xbf16>
    %cst_27 = arith.constant dense<0.000000e+00> : vector<512x256xf32>
    %40 = tpu.matmul %37, %39, %cst_27 {dimension_numbers = #tpu.dot_dimension_numbers<[1], [0], [0], [1], [0, 0, 1, 1], [], []>} : vector<512x256xbf16>, vector<256x256xbf16>, vector<512x256xf32> -> vector<512x256xf32>
    %c4 = arith.constant 4 : index
    %c0_28 = arith.constant 0 : index
    %41 = vector.load %arg4[%c4, %c0_28] : memref<8x256xf32, #tpu.memory_space<vmem>>, vector<1x256xf32>
    %42 = vector.broadcast %41 : vector<1x256xf32> to vector<512x256xf32>
    %43 = arith.addf %40, %42 : vector<512x256xf32>
    %cst_29 = arith.constant 0.000000e+00 : f32
    %44 = vector.broadcast %cst_29 : f32 to vector<512x256xf32>
    %45 = arith.maximumf %43, %44 : vector<512x256xf32>
    %46 = arith.truncf %45 : vector<512x256xf32> to vector<512x256xbf16>
    %c4_30 = arith.constant 4 : index
    %c0_31 = arith.constant 0 : index
    %c0_32 = arith.constant 0 : index
    %47 = vector.load %arg3[%c4_30, %c0_31, %c0_32] : memref<7x256x256xbf16, #tpu.memory_space<vmem>>, vector<1x256x256xbf16>
    %48 = vector.shape_cast %47 : vector<1x256x256xbf16> to vector<256x256xbf16>
    %cst_33 = arith.constant dense<0.000000e+00> : vector<512x256xf32>
    %49 = tpu.matmul %46, %48, %cst_33 {dimension_numbers = #tpu.dot_dimension_numbers<[1], [0], [0], [1], [0, 0, 1, 1], [], []>} : vector<512x256xbf16>, vector<256x256xbf16>, vector<512x256xf32> -> vector<512x256xf32>
    %c5 = arith.constant 5 : index
    %c0_34 = arith.constant 0 : index
    %50 = vector.load %arg4[%c5, %c0_34] : memref<8x256xf32, #tpu.memory_space<vmem>>, vector<1x256xf32>
    %51 = vector.broadcast %50 : vector<1x256xf32> to vector<512x256xf32>
    %52 = arith.addf %49, %51 : vector<512x256xf32>
    %53 = arith.addf %52, %9 : vector<512x256xf32>
    %cst_35 = arith.constant 0.000000e+00 : f32
    %54 = vector.broadcast %cst_35 : f32 to vector<512x256xf32>
    %55 = arith.maximumf %53, %54 : vector<512x256xf32>
    %56 = arith.truncf %55 : vector<512x256xf32> to vector<512x256xbf16>
    %c5_36 = arith.constant 5 : index
    %c0_37 = arith.constant 0 : index
    %c0_38 = arith.constant 0 : index
    %57 = vector.load %arg3[%c5_36, %c0_37, %c0_38] : memref<7x256x256xbf16, #tpu.memory_space<vmem>>, vector<1x256x256xbf16>
    %58 = vector.shape_cast %57 : vector<1x256x256xbf16> to vector<256x256xbf16>
    %cst_39 = arith.constant dense<0.000000e+00> : vector<512x256xf32>
    %59 = tpu.matmul %56, %58, %cst_39 {dimension_numbers = #tpu.dot_dimension_numbers<[1], [0], [0], [1], [0, 0, 1, 1], [], []>} : vector<512x256xbf16>, vector<256x256xbf16>, vector<512x256xf32> -> vector<512x256xf32>
    %c6 = arith.constant 6 : index
    %c0_40 = arith.constant 0 : index
    %60 = vector.load %arg4[%c6, %c0_40] : memref<8x256xf32, #tpu.memory_space<vmem>>, vector<1x256xf32>
    %61 = vector.broadcast %60 : vector<1x256xf32> to vector<512x256xf32>
    %62 = arith.addf %59, %61 : vector<512x256xf32>
    %cst_41 = arith.constant 0.000000e+00 : f32
    %63 = vector.broadcast %cst_41 : f32 to vector<512x256xf32>
    %64 = arith.maximumf %62, %63 : vector<512x256xf32>
    %65 = arith.truncf %64 : vector<512x256xf32> to vector<512x256xbf16>
    %c6_42 = arith.constant 6 : index
    %c0_43 = arith.constant 0 : index
    %c0_44 = arith.constant 0 : index
    %66 = vector.load %arg3[%c6_42, %c0_43, %c0_44] : memref<7x256x256xbf16, #tpu.memory_space<vmem>>, vector<1x256x256xbf16>
    %67 = vector.shape_cast %66 : vector<1x256x256xbf16> to vector<256x256xbf16>
    %cst_45 = arith.constant dense<0.000000e+00> : vector<512x256xf32>
    %68 = tpu.matmul %65, %67, %cst_45 {dimension_numbers = #tpu.dot_dimension_numbers<[1], [0], [0], [1], [0, 0, 1, 1], [], []>} : vector<512x256xbf16>, vector<256x256xbf16>, vector<512x256xf32> -> vector<512x256xf32>
    %c7 = arith.constant 7 : index
    %c0_46 = arith.constant 0 : index
    %69 = vector.load %arg4[%c7, %c0_46] : memref<8x256xf32, #tpu.memory_space<vmem>>, vector<1x256xf32>
    %70 = vector.broadcast %69 : vector<1x256xf32> to vector<512x256xf32>
    %71 = arith.addf %68, %70 : vector<512x256xf32>
    %cst_47 = arith.constant 0.000000e+00 : f32
    %72 = vector.broadcast %cst_47 : f32 to vector<512x256xf32>
    %73 = arith.maximumf %71, %72 : vector<512x256xf32>
    %74 = arith.truncf %73 : vector<512x256xf32> to vector<512x256xbf16>
    %c0_48 = arith.constant 0 : index
    %c0_49 = arith.constant 0 : index
    %75 = vector.load %arg5[%c0_48, %c0_49] : memref<256x128xbf16, #tpu.memory_space<vmem>>, vector<256x128xbf16>
    %cst_50 = arith.constant dense<0.000000e+00> : vector<512x128xf32>
    %76 = tpu.matmul %74, %75, %cst_50 {dimension_numbers = #tpu.dot_dimension_numbers<[1], [0], [0], [1], [0, 0, 1, 1], [], []>} : vector<512x256xbf16>, vector<256x128xbf16>, vector<512x128xf32> -> vector<512x128xf32>
    %c0_51 = arith.constant 0 : index
    %c0_52 = arith.constant 0 : index
    %77 = vector.load %arg6[%c0_51, %c0_52] : memref<1x128xf32, #tpu.memory_space<vmem>>, vector<1x128xf32>
    %78 = vector.broadcast %77 : vector<1x128xf32> to vector<512x128xf32>
    %79 = arith.addf %76, %78 : vector<512x128xf32>
    %80 = arith.truncf %79 : vector<512x128xf32> to vector<512x128xbf16>
    %c0_53 = arith.constant 0 : index
    %c0_54 = arith.constant 0 : index
    %81 = vector.load %arg7[%c0_53, %c0_54] : memref<512x128xbf16, #tpu.memory_space<vmem>>, vector<512x128xbf16>
    tpu.vector_store %arg7[%c0_53, %c0_54], %80 {strides = array<i32>} : memref<512x128xbf16, #tpu.memory_space<vmem>>, vector<512x128xbf16>,
    return
  }
  func.func @transform_0(%arg0: i32) -> (i32, i32) {
    %c0_i32 = arith.constant 0 : i32
    %c0_i32_0 = arith.constant 0 : i32
    return %arg0, %c0_i32 : i32, i32
  }
  func.func @transform_1(%arg0: i32) -> (i32, i32) {
    %c0_i32 = arith.constant 0 : i32
    %c0_i32_0 = arith.constant 0 : i32
    %c0_i32_1 = arith.constant 0 : i32
    return %c0_i32, %c0_i32_0 : i32, i32
  }
  func.func @transform_2(%arg0: i32) -> (i32, i32, i32) {
    %c0_i32 = arith.constant 0 : i32
    %c0_i32_0 = arith.constant 0 : i32
    %c0_i32_1 = arith.constant 0 : i32
    %c0_i32_2 = arith.constant 0 : i32
    return %c0_i32, %c0_i32_0, %c0_i32_1 : i32, i32, i32
  }
  func.func @transform_3(%arg0: i32) -> (i32, i32) {
    %c0_i32 = arith.constant 0 : i32
    %c0_i32_0 = arith.constant 0 : i32
    %c0_i32_1 = arith.constant 0 : i32
    return %c0_i32, %c0_i32_0 : i32, i32
  }
  func.func @transform_4(%arg0: i32) -> (i32, i32) {
    %c0_i32 = arith.constant 0 : i32
    %c0_i32_0 = arith.constant 0 : i32
    %c0_i32_1 = arith.constant 0 : i32
    return %c0_i32, %c0_i32_0 : i32, i32
  }
  func.func @transform_5(%arg0: i32) -> (i32, i32) {
    %c0_i32 = arith.constant 0 : i32
    %c0_i32_0 = arith.constant 0 : i32
    %c0_i32_1 = arith.constant 0 : i32
    return %c0_i32, %c0_i32_0 : i32, i32
  }
  func.func @transform_6(%arg0: i32) -> (i32, i32) {
    %c0_i32 = arith.constant 0 : i32
    %c0_i32_0 = arith.constant 0 : i32
    return %arg0, %c0_i32 : i32, i32
  }
}

</mosaic_0001>

<llo_original>
// kernel: tpu_custom_call.1
$region0: #{tpu_custom_call.1}
  #allocation0 [shape = 'u32[]', space=smem, size = 0x4, offset = 0x4, fixed_abs, tag = 'smem constant byte address 0x4 - core index']
  #allocation1 [shape = 'u32[144,128]{1,0:T(1,128)}', space=vmem, size = 0x12000, scoped, tag = 'internal scratch']
  %s0 = inlined_call_operand.hbm [shape: bf16[1024,128], index: 0, kind: input, shape index: {}]
  %s1 = inlined_call_operand.hbm [shape: bf16[128,512], index: 1, kind: input, shape index: {}]
  %s2 = inlined_call_operand.hbm [shape: bf16[7,256,256], index: 2, kind: input, shape index: {}]
  %s3 = inlined_call_operand.hbm [shape: f32[8,256], index: 3, kind: input, shape index: {}]
  %s4 = inlined_call_operand.hbm [shape: bf16[256,128], index: 4, kind: input, shape index: {}]
  %s5 = inlined_call_operand.vmem [shape: f32[1,128], index: 5, kind: input, shape index: {}]
  %s6 = inlined_call_operand.hbm [shape: bf16[1024,128], index: 6, kind: output, shape index: {}]
  %s7 = sld [smem:[#allocation0]]
  $region77: #{tpu_custom_call.1} parent=0
    _
  %s9 = ssub.s32 1, %s7
  %s10 = scalar_select 0, %s9, %s7
  $region1: #{tpu_custom_call.1} parent=0
    #allocation2 [shape = 'u8[262144]{0}', space=vmem, size = 0x40000, scoped, tag = 'input window, operand 0']
    #allocation3 [shape = 's32[2]{0}', space=sflag, size = 0x8, scoped, tag = 'scoped memory for tpu_custom_call.1']
    #allocation4 [shape = 's32[2]{0}', space=sflag, size = 0x8, scoped, tag = 'scoped memory for tpu_custom_call.1']
    #allocation5 [shape = 'u8[131072]{0}', space=vmem, size = 0x20000, scoped, tag = 'input window, operand 1, single buffered']
    #allocation6 [shape = 's32[1]{0}', space=sflag, size = 0x4, scoped, tag = 'scoped memory for tpu_custom_call.1']
    #allocation7 [shape = 'u8[917504]{0}', space=vmem, size = 0xe0000, scoped, tag = 'input window, operand 2, single buffered']
    #allocation8 [shape = 'u8[8192]{0}', space=vmem, size = 0x2000, scoped, tag = 'input window, operand 3, single buffered']
    #allocation9 [shape = 's32[1]{0}', space=sflag, size = 0x4, scoped, tag = 'scoped memory for tpu_custom_call.1']
    #allocation10 [shape = 'u8[65536]{0}', space=vmem, size = 0x10000, scoped, tag = 'input window, operand 4, single buffered']
    #allocation11 [shape = 'u8[262144]{0}', space=vmem, size = 0x40000, scoped, tag = 'output window, operand 0']
    %11 = vsyncpa [#allocation3], 0
    %s12 = scalar_lea.sflag [#allocation3], 1
    %13 = vsyncpa %s12, 0
    %14 = vsyncpa [#allocation6], 0
    %15 = vsyncpa [#allocation9], 0
    %16 = vsyncpa [#allocation4], 0
    %s17 = scalar_lea.sflag [#allocation4], 1
    %18 = vsyncpa %s17, 0
    loop: start=0, step=1, limit=4
    $region2: #{tpu_custom_call.1} parent=1 // loop_pre_header
      _
    $region3: #{tpu_custom_call.1} parent=1 // loop_header
      %s20 = sphi 0, %s24
      %p21 = scmp.ge.s32.totalorder %s20, 4
      %s30 = sphi 0, %s32
      %s33 = sphi 0, %s30
      %s34 = sphi 0, %s33
      %s50 = sphi 0, %s34
      %s54 = sphi 0, %s54
      %s56 = sphi 0, %s54
      %s57 = sphi 0, %s56
      %s71 = sphi 0, %s57
      %s75 = sphi 0, %s75
      %s77 = sphi 0, %s75
      %s78 = sphi 0, %s77
      %s92 = sphi 0, %s78
      %s96 = sphi 0, %s96
      %s98 = sphi 0, %s96
      %s99 = sphi 0, %s98
      %s113 = sphi 0, %s99
      %s117 = sphi 0, %s117
      %s119 = sphi 0, %s117
      %s120 = sphi 0, %s119
      %s134 = sphi 0, %s120
      %s138 = sphi 0, %s138
      %s140 = sphi 0, %s138
      %s141 = sphi 0, %s140
      %s155 = sphi 0, %s141
      %s161 = sphi 0, %s163
      %s164 = sphi 0, %s161
      %s165 = sphi 0, %s164
      %s181 = sphi 0, %s165
    $region4: #{tpu_custom_call.1} parent=1 // loop_header_branch
      %23 = sbr.rel (%p21) target = $region8
    $region5: #{tpu_custom_call.1} parent=1 // loop_body
      %s25 = ssub.s32 %s20, 1
      %s26 = ssub.s32 %s20, 2
      %s27 = sadd.s32 %s20, 1
      %s28 = ssub.s32 %s20, %s27
      %p29 = scmp.eq.s32.totalorder %s28, 0
      %s31 = sadd.s32 %s30, 1
      %s32 = scalar_select %p29, %s30, %s31
      %p35 = pneg %p29
      %p36 = scmp.eq.s32.totalorder %s20, 1
      %p37 = por %p35, %p36
      %p38 = scmp.ne.s32.totalorder %s30, %s33
      %p39 = scmp.eq.s32.totalorder %s20, 0
      %p40 = por %p38, %p39
      %p41 = scmp.ne.s32.totalorder %s30, %s33
      %p42 = scmp.eq.s32.totalorder %s25, 1
      %p43 = por %p41, %p42
      %p44 = scmp.ne.s32.totalorder %s33, %s34
      %p45 = scmp.eq.s32.totalorder %s25, 0
      %p46 = por %p44, %p45
      %p47 = scmp.ne.s32.totalorder %s33, %s34
      %p48 = scmp.eq.s32.totalorder %s26, 1
      %p49 = por %p47, %p48
      %p51 = scmp.ne.s32.totalorder %s34, %s50
      %p52 = scmp.eq.s32.totalorder %s26, 0
      %p53 = por %p51, %p52
      %s55 = sadd.s32 %s54, 1
      %p58 = scmp.eq.s32.totalorder %s20, 1
      %p59 = scmp.ne.s32.totalorder %s54, %s56
      %p60 = scmp.eq.s32.totalorder %s20, 0
      %p61 = por %p59, %p60
      %p62 = scmp.ne.s32.totalorder %s54, %s56
      %p63 = scmp.eq.s32.totalorder %s25, 1
      %p64 = por %p62, %p63
      %p65 = scmp.ne.s32.totalorder %s56, %s57
      %p66 = scmp.eq.s32.totalorder %s25, 0
      %p67 = por %p65, %p66
      %p68 = scmp.ne.s32.totalorder %s56, %s57
      %p69 = scmp.eq.s32.totalorder %s26, 1
      %p70 = por %p68, %p69
      %p72 = scmp.ne.s32.totalorder %s57, %s71
      %p73 = scmp.eq.s32.totalorder %s26, 0
      %p74 = por %p72, %p73
      %s76 = sadd.s32 %s75, 1
      %p79 = scmp.eq.s32.totalorder %s20, 1
      %p80 = scmp.ne.s32.totalorder %s75, %s77
      %p81 = scmp.eq.s32.totalorder %s20, 0
      %p82 = por %p80, %p81
      %p83 = scmp.ne.s32.totalorder %s75, %s77
      %p84 = scmp.eq.s32.totalorder %s25, 1
      %p85 = por %p83, %p84
      %p86 = scmp.ne.s32.totalorder %s77, %s78
      %p87 = scmp.eq.s32.totalorder %s25, 0
      %p88 = por %p86, %p87
      %p89 = scmp.ne.s32.totalorder %s77, %s78
      %p90 = scmp.eq.s32.totalorder %s26, 1
      %p91 = por %p89, %p90
      %p93 = scmp.ne.s32.totalorder %s78, %s92
      %p94 = scmp.eq.s32.totalorder %s26, 0
      %p95 = por %p93, %p94
      %s97 = sadd.s32 %s96, 1
      %p100 = scmp.eq.s32.totalorder %s20, 1
      %p101 = scmp.ne.s32.totalorder %s96, %s98
      %p102 = scmp.eq.s32.totalorder %s20, 0
      %p103 = por %p101, %p102
      %p104 = scmp.ne.s32.totalorder %s96, %s98
      %p105 = scmp.eq.s32.totalorder %s25, 1
      %p106 = por %p104, %p105
      %p107 = scmp.ne.s32.totalorder %s98, %s99
      %p108 = scmp.eq.s32.totalorder %s25, 0
      %p109 = por %p107, %p108
      %p110 = scmp.ne.s32.totalorder %s98, %s99
      %p111 = scmp.eq.s32.totalorder %s26, 1
      %p112 = por %p110, %p111
      %p114 = scmp.ne.s32.totalorder %s99, %s113
      %p115 = scmp.eq.s32.totalorder %s26, 0
      %p116 = por %p114, %p115
      %s118 = sadd.s32 %s117, 1
      %p121 = scmp.eq.s32.totalorder %s20, 1
      %p122 = scmp.ne.s32.totalorder %s117, %s119
      %p123 = scmp.eq.s32.totalorder %s20, 0
      %p124 = por %p122, %p123
      %p125 = scmp.ne.s32.totalorder %s117, %s119
      %p126 = scmp.eq.s32.totalorder %s25, 1
      %p127 = por %p125, %p126
      %p128 = scmp.ne.s32.totalorder %s119, %s120
      %p129 = scmp.eq.s32.totalorder %s25, 0
      %p130 = por %p128, %p129
      %p131 = scmp.ne.s32.totalorder %s119, %s120
      %p132 = scmp.eq.s32.totalorder %s26, 1
      %p133 = por %p131, %p132
      %p135 = scmp.ne.s32.totalorder %s120, %s134
      %p136 = scmp.eq.s32.totalorder %s26, 0
      %p137 = por %p135, %p136
      %s139 = sadd.s32 %s138, 1
      %p142 = scmp.eq.s32.totalorder %s20, 1
      %p143 = scmp.ne.s32.totalorder %s138, %s140
      %p144 = scmp.eq.s32.totalorder %s20, 0
      %p145 = por %p143, %p144
      %p146 = scmp.ne.s32.totalorder %s138, %s140
      %p147 = scmp.eq.s32.totalorder %s25, 1
      %p148 = por %p146, %p147
      %p149 = scmp.ne.s32.totalorder %s140, %s141
      %p150 = scmp.eq.s32.totalorder %s25, 0
      %p151 = por %p149, %p150
      %p152 = scmp.ne.s32.totalorder %s140, %s141
      %p153 = scmp.eq.s32.totalorder %s26, 1
      %p154 = por %p152, %p153
      %p156 = scmp.ne.s32.totalorder %s141, %s155
      %p157 = scmp.eq.s32.totalorder %s26, 0
      %p158 = por %p156, %p157
      %s159 = ssub.s32 %s20, %s27
      %p160 = scmp.eq.s32.totalorder %s159, 0
      %s162 = sadd.s32 %s161, 1
      %s163 = scalar_select %p160, %s161, %s162
      %p166 = pneg %p160
      %p167 = scmp.eq.s32.totalorder %s20, 1
      %p168 = por %p166, %p167
      %p169 = scmp.ne.s32.totalorder %s161, %s164
      %p170 = scmp.eq.s32.totalorder %s20, 0
      %p171 = por %p169, %p170
      %p172 = scmp.ne.s32.totalorder %s161, %s164
      %p173 = scmp.eq.s32.totalorder %s25, 1
      %p174 = por %p172, %p173
      %p175 = scmp.ne.s32.totalorder %s164, %s165
      %p176 = scmp.eq.s32.totalorder %s25, 0
      %p177 = por %p175, %p176
      %p178 = scmp.ne.s32.totalorder %s164, %s165
      %p179 = scmp.eq.s32.totalorder %s26, 1
      %p180 = por %p178, %p179
      %p182 = scmp.ne.s32.totalorder %s165, %s181
      %p183 = scmp.eq.s32.totalorder %s26, 0
      %p184 = por %p182, %p183
      %p185 = scmp.le.s32.totalorder 1, %s20
      %p186 = scmp.lt.s32.totalorder %s20, 3
      %p187 = pnand %p185, %p186
      %p188 = pneg %p187
      // Predicated region
      $region9: #{tpu_custom_call.1} parent=5 // pred_check
        _
      $region10: #{tpu_custom_call.1} parent=5 // pred_check_branch
        %190 = sbr.rel (%p187) target = $region12
      $region11: #{tpu_custom_call.1} parent=5 // pred_region
        %s191 = ssub.s32 %s20, 1
        // Predicated region
        $region13: #{tpu_custom_call.1} parent=11 // pred_check
          %p192 = pneg %p67
        $region14: #{tpu_custom_call.1} parent=11 // pred_check_branch
          %194 = sbr.rel (%p192) target = $region16
        $region15: #{tpu_custom_call.1} parent=11 // pred_region
          %s196 = ssub.s32 4096, 4096
          %197 = vsyncadd [#allocation6], %s196
          %s198 = sshll.u32 [#allocation5], 4
          %s199 = int_to_ptr.vmem [resolvable:$true] %s198
          %204 = dma.hbm_to_vmem [thread:$0]  %s1, 4096, %s199, [#allocation6], 256, 256, 16
        $region16: #{tpu_custom_call.1} parent=11 // pred_fallthru
          _
        // Predicated region
        $region17: #{tpu_custom_call.1} parent=11 // pred_check
          %p205 = pneg %p88
        $region18: #{tpu_custom_call.1} parent=11 // pred_check_branch
          %207 = sbr.rel (%p205) target = $region20
        $region19: #{tpu_custom_call.1} parent=11 // pred_region
          %s209 = ssub.s32 28672, 28672
          %210 = vsyncadd [#allocation6], %s209
          %s211 = sshll.u32 [#allocation7], 4
          %s212 = int_to_ptr.vmem [resolvable:$true] %s211
          %217 = dma.hbm_to_vmem [thread:$0]  %s2, 28672, %s212, [#allocation6], 128, 128, 8
        $region20: #{tpu_custom_call.1} parent=11 // pred_fallthru
          _
        // Predicated region
        $region21: #{tpu_custom_call.1} parent=11 // pred_check
          %p218 = pneg %p109
        $region22: #{tpu_custom_call.1} parent=11 // pred_check_branch
          %220 = sbr.rel (%p218) target = $region24
        $region23: #{tpu_custom_call.1} parent=11 // pred_region
          %s222 = ssub.s32 256, 256
          %223 = vsyncadd [#allocation9], %s222
          %s225 = sshll.u32 [#allocation8], 4
          %s226 = int_to_ptr.vmem [resolvable:$true] %s225
          %228 = dma.hbm_to_vmem [thread:$0]  %s3, 256, %s226, [#allocation9]
        $region24: #{tpu_custom_call.1} parent=11 // pred_fallthru
          _
        // Predicated region
        $region25: #{tpu_custom_call.1} parent=11 // pred_check
          %p229 = pneg %p130
        $region26: #{tpu_custom_call.1} parent=11 // pred_check_branch
          %231 = sbr.rel (%p229) target = $region28
        $region27: #{tpu_custom_call.1} parent=11 // pred_region
          %s233 = ssub.s32 2048, 2048
          %234 = vsyncadd [#allocation9], %s233
          %s235 = sshll.u32 [#allocation10], 4
          %s236 = int_to_ptr.vmem [resolvable:$true] %s235
          %241 = dma.hbm_to_vmem [thread:$0]  %s4, 2048, %s236, [#allocation9], 64, 64, 4
        $region28: #{tpu_custom_call.1} parent=11 // pred_fallthru
          _
        // Predicated region
        $region29: #{tpu_custom_call.1} parent=11 // pred_check
          %p242 = pneg %p151
        $region30: #{tpu_custom_call.1} parent=11 // pred_check_branch
          %244 = sbr.rel (%p242) target = $region32
        $region31: #{tpu_custom_call.1} parent=11 // pred_region
          _
        $region32: #{tpu_custom_call.1} parent=11 // pred_fallthru
          _
      $region12: #{tpu_custom_call.1} parent=5 // pred_fallthru
        _
      %p245 = scmp.lt.s32.totalorder %s20, 2
      // Predicated region
      $region33: #{tpu_custom_call.1} parent=5 // pred_check
        %p246 = pneg %p245
      $region34: #{tpu_custom_call.1} parent=5 // pred_check_branch
        %248 = sbr.rel (%p246) target = $region36
      $region35: #{tpu_custom_call.1} parent=5 // pred_region
        // Predicated region
        $region37: #{tpu_custom_call.1} parent=35 // pred_check
          %p249 = pneg %p40
        $region38: #{tpu_custom_call.1} parent=35 // pred_check_branch
          %251 = sbr.rel (%p249) target = $region40
        $region39: #{tpu_custom_call.1} parent=35 // pred_region
          %s252 = sand.u32 %s30, 1
          %s253 = scalar_lea.sflag [#allocation3], %s252
          %s254 = sand.u32 %s30, 1
          %s255 = smul.addr %s254, 256
          %s256 = scalar_lea.vmem [#allocation2], %s255
          %s257 = smul.u32 64, %s20
          %s259 = ssub.s32 4096, 4096
          %260 = vsyncadd %s253, %s259
          %s261 = smul.addr %s257, 64
          %s262 = scalar_lea.hbm %s0, %s261
          %s263 = sshll.u32 %s256, 4
          %s264 = int_to_ptr.vmem [resolvable:$true] %s263
          %269 = dma.hbm_to_vmem [thread:$0]  %s262, 4096, %s264, %s253, 64, 64, 4
        $region40: #{tpu_custom_call.1} parent=35 // pred_fallthru
          _
      $region36: #{tpu_custom_call.1} parent=5 // pred_fallthru
        _
      %p270 = scmp.le.s32.totalorder 1, %s20
      %p271 = scmp.lt.s32.totalorder %s20, 3
      %p272 = pnand %p270, %p271
      %p273 = pneg %p272
      // Predicated region
      $region41: #{tpu_custom_call.1} parent=5 // pred_check
        _
      $region42: #{tpu_custom_call.1} parent=5 // pred_check_branch
        %275 = sbr.rel (%p272) target = $region44
      $region43: #{tpu_custom_call.1} parent=5 // pred_region
        %s276 = ssub.s32 %s20, 1
        %s277 = sand.u32 %s33, 1
        %s278 = scalar_lea.sflag [#allocation3], %s277
        %s279 = sand.u32 %s33, 1
        %s280 = smul.addr %s279, 256
        %s281 = scalar_lea.vmem [#allocation2], %s280
        // Predicated region
        $region45: #{tpu_custom_call.1} parent=43 // pred_check
          %p282 = pneg %p46
        $region46: #{tpu_custom_call.1} parent=43 // pred_check_branch
          %284 = sbr.rel (%p282) target = $region48
        $region47: #{tpu_custom_call.1} parent=43 // pred_region
          %285 = dma.done %s278, 4096
        $region48: #{tpu_custom_call.1} parent=43 // pred_fallthru
          _
        // Predicated region
        $region49: #{tpu_custom_call.1} parent=43 // pred_check
          %p286 = pneg %p67
        $region50: #{tpu_custom_call.1} parent=43 // pred_check_branch
          %288 = sbr.rel (%p286) target = $region52
        $region51: #{tpu_custom_call.1} parent=43 // pred_region
          %289 = dma.done [#allocation6], 4096
        $region52: #{tpu_custom_call.1} parent=43 // pred_fallthru
          _
        // Predicated region
        $region53: #{tpu_custom_call.1} parent=43 // pred_check
          %p290 = pneg %p88
        $region54: #{tpu_custom_call.1} parent=43 // pred_check_branch
          %292 = sbr.rel (%p290) target = $region56
        $region55: #{tpu_custom_call.1} parent=43 // pred_region
          %293 = dma.done [#allocation6], 28672
        $region56: #{tpu_custom_call.1} parent=43 // pred_fallthru
          _
        // Predicated region
        $region57: #{tpu_custom_call.1} parent=43 // pred_check
          %p294 = pneg %p109
        $region58: #{tpu_custom_call.1} parent=43 // pred_check_branch
          %296 = sbr.rel (%p294) target = $region60
        $region59: #{tpu_custom_call.1} parent=43 // pred_region
          %297 = dma.done [#allocation9], 256
        $region60: #{tpu_custom_call.1} parent=43 // pred_fallthru
          _
        // Predicated region
        $region61: #{tpu_custom_call.1} parent=43 // pred_check
          %p298 = pneg %p130
        $region62: #{tpu_custom_call.1} parent=43 // pred_check_branch
          %300 = sbr.rel (%p298) target = $region64
        $region63: #{tpu_custom_call.1} parent=43 // pred_region
          %301 = dma.done [#allocation9], 2048
        $region64: #{tpu_custom_call.1} parent=43 // pred_fallthru
          _
        %s302 = sand.u32 %s33, 1
        %s303 = scalar_lea.sflag [#allocation3], %s302
        %s304 = sand.u32 %s33, 1
        %s305 = smul.addr %s304, 256
        %s306 = scalar_lea.vmem [#allocation2], %s305
        %p307 = pneg %p46
        %p308 = pneg %p43
        %p309 = pneg %p67
        %p310 = pneg %p64
        %p311 = pneg %p88
        %p312 = pneg %p85
        %p313 = pneg %p109
        %p314 = pneg %p106
        %p315 = pneg %p130
        %p316 = pneg %p127
        %p317 = pneg %p151
        %p318 = pneg %p148
        %p319 = pneg %p177
        %p320 = pneg %p174
        %s321 = sand.u32 %s164, 1
        %s322 = scalar_lea.sflag [#allocation4], %s321
        %s323 = sand.u32 %s164, 1
        %s324 = smul.addr %s323, 256
        %s325 = scalar_lea.vmem [#allocation11], %s324
        %s326 = smul.u32 64, %s25
        %s327 = smul.u32 64, %s25
        %v329 = vld [vmem:[%s281] sm:$0xf]
        %v330 = vld [vmem:[%s281 + $0x4] sm:$0xf]
        %v331 = vld [vmem:[%s281 + $0x8] sm:$0xf]
        %v332 = vld [vmem:[%s281 + $0xc] sm:$0xf]
        %v333 = vld [vmem:[%s281 + $0x10] sm:$0xf]
        %v334 = vld [vmem:[%s281 + $0x14] sm:$0xf]
        %v335 = vld [vmem:[%s281 + $0x18] sm:$0xf]
        %v336 = vld [vmem:[%s281 + $0x1c] sm:$0xf]
        %v337 = vld [vmem:[%s281 + $0x20] sm:$0xf]
        %v338 = vld [vmem:[%s281 + $0x24] sm:$0xf]
        %v339 = vld [vmem:[%s281 + $0x28] sm:$0xf]
        %v340 = vld [vmem:[%s281 + $0x2c] sm:$0xf]
        %v341 = vld [vmem:[%s281 + $0x30] sm:$0xf]
        %v342 = vld [vmem:[%s281 + $0x34] sm:$0xf]
        %v343 = vld [vmem:[%s281 + $0x38] sm:$0xf]
        %v344 = vld [vmem:[%s281 + $0x3c] sm:$0xf]
        %v345 = vld [vmem:[%s281 + $0x40] sm:$0xf]
        %v346 = vld [vmem:[%s281 + $0x44] sm:$0xf]
        %v347 = vld [vmem:[%s281 + $0x48] sm:$0xf]
        %v348 = vld [vmem:[%s281 + $0x4c] sm:$0xf]
        %v349 = vld [vmem:[%s281 + $0x50] sm:$0xf]
        %v350 = vld [vmem:[%s281 + $0x54] sm:$0xf]
        %v351 = vld [vmem:[%s281 + $0x58] sm:$0xf]
        %v352 = vld [vmem:[%s281 + $0x5c] sm:$0xf]
        %v353 = vld [vmem:[%s281 + $0x60] sm:$0xf]
        %v354 = vld [vmem:[%s281 + $0x64] sm:$0xf]
        %v355 = vld [vmem:[%s281 + $0x68] sm:$0xf]
        %v356 = vld [vmem:[%s281 + $0x6c] sm:$0xf]
        %v357 = vld [vmem:[%s281 + $0x70] sm:$0xf]
        %v358 = vld [vmem:[%s281 + $0x74] sm:$0xf]
        %v359 = vld [vmem:[%s281 + $0x78] sm:$0xf]
        %v360 = vld [vmem:[%s281 + $0x7c] sm:$0xf]
        %v361 = vld [vmem:[%s281 + $0x80] sm:$0xf]
        %v362 = vld [vmem:[%s281 + $0x84] sm:$0xf]
        %v363 = vld [vmem:[%s281 + $0x88] sm:$0xf]
        %v364 = vld [vmem:[%s281 + $0x8c] sm:$0xf]
        %v365 = vld [vmem:[%s281 + $0x90] sm:$0xf]
        %v366 = vld [vmem:[%s281 + $0x94] sm:$0xf]
        %v367 = vld [vmem:[%s281 + $0x98] sm:$0xf]
        %v368 = vld [vmem:[%s281 + $0x9c] sm:$0xf]
        %v369 = vld [vmem:[%s281 + $0xa0] sm:$0xf]
        %v370 = vld [vmem:[%s281 + $0xa4] sm:$0xf]
        %v371 = vld [vmem:[%s281 + $0xa8] sm:$0xf]
        %v372 = vld [vmem:[%s281 + $0xac] sm:$0xf]
        %v373 = vld [vmem:[%s281 + $0xb0] sm:$0xf]
        %v374 = vld [vmem:[%s281 + $0xb4] sm:$0xf]
        %v375 = vld [vmem:[%s281 + $0xb8] sm:$0xf]
        %v376 = vld [vmem:[%s281 + $0xbc] sm:$0xf]
        %v377 = vld [vmem:[%s281 + $0xc0] sm:$0xf]
        %v378 = vld [vmem:[%s281 + $0xc4] sm:$0xf]
        %v379 = vld [vmem:[%s281 + $0xc8] sm:$0xf]
        %v380 = vld [vmem:[%s281 + $0xcc] sm:$0xf]
        %v381 = vld [vmem:[%s281 + $0xd0] sm:$0xf]
        %v382 = vld [vmem:[%s281 + $0xd4] sm:$0xf]
        %v383 = vld [vmem:[%s281 + $0xd8] sm:$0xf]
        %v384 = vld [vmem:[%s281 + $0xdc] sm:$0xf]
        %v385 = vld [vmem:[%s281 + $0xe0] sm:$0xf]
        %v386 = vld [vmem:[%s281 + $0xe4] sm:$0xf]
        %v387 = vld [vmem:[%s281 + $0xe8] sm:$0xf]
        %v388 = vld [vmem:[%s281 + $0xec] sm:$0xf]
        %v389 = vld [vmem:[%s281 + $0xf0] sm:$0xf]
        %v390 = vld [vmem:[%s281 + $0xf4] sm:$0xf]
        %v391 = vld [vmem:[%s281 + $0xf8] sm:$0xf]
        %v392 = vld [vmem:[%s281 + $0xfc] sm:$0xf]
        %v393 = vld [vmem:[#allocation5] sm:$0xff]
        %v394 = vld [vmem:[#allocation5 + $0x8] sm:$0xff]
        %v395 = vld [vmem:[#allocation5 + $0x10] sm:$0xff]
        %v396 = vld [vmem:[#allocation5 + $0x18] sm:$0xff]
        %v397 = vld [vmem:[#allocation5 + $0x20] sm:$0xff]
        %v398 = vld [vmem:[#allocation5 + $0x28] sm:$0xff]
        %v399 = vld [vmem:[#allocation5 + $0x30] sm:$0xff]
        %v400 = vld [vmem:[#allocation5 + $0x38] sm:$0xff]
        %v401 = vld [vmem:[#allocation5 + $0x40] sm:$0xff]
        %v402 = vld [vmem:[#allocation5 + $0x48] sm:$0xff]
        %v403 = vld [vmem:[#allocation5 + $0x50] sm:$0xff]
        %v404 = vld [vmem:[#allocation5 + $0x58] sm:$0xff]
        %v405 = vld [vmem:[#allocation5 + $0x60] sm:$0xff]
        %v406 = vld [vmem:[#allocation5 + $0x68] sm:$0xff]
        %v407 = vld [vmem:[#allocation5 + $0x70] sm:$0xff]
        %v408 = vld [vmem:[#allocation5 + $0x78] sm:$0xff]
        %v409 = vld [vmem:[#allocation5 + $0x80] sm:$0xff]
        %v410 = vld [vmem:[#allocation5 + $0x88] sm:$0xff]
        %v411 = vld [vmem:[#allocation5 + $0x90] sm:$0xff]
        %v412 = vld [vmem:[#allocation5 + $0x98] sm:$0xff]
        %v413 = vld [vmem:[#allocation5 + $0xa0] sm:$0xff]
        %v414 = vld [vmem:[#allocation5 + $0xa8] sm:$0xff]
        %v415 = vld [vmem:[#allocation5 + $0xb0] sm:$0xff]
        %v416 = vld [vmem:[#allocation5 + $0xb8] sm:$0xff]
        %v417 = vld [vmem:[#allocation5 + $0xc0] sm:$0xff]
        %v418 = vld [vmem:[#allocation5 + $0xc8] sm:$0xff]
        %v419 = vld [vmem:[#allocation5 + $0xd0] sm:$0xff]
        %v420 = vld [vmem:[#allocation5 + $0xd8] sm:$0xff]
        %v421 = vld [vmem:[#allocation5 + $0xe0] sm:$0xff]
        %v422 = vld [vmem:[#allocation5 + $0xe8] sm:$0xff]
        %v423 = vld [vmem:[#allocation5 + $0xf0] sm:$0xff]
        %v424 = vld [vmem:[#allocation5 + $0xf8] sm:$0xff]
        %v489 = vunpack.c.l.b16 %v329
        %v490 = vunpack.c.l.b16 %v330
        %v491 = vunpack.c.l.b16 %v331
        %v492 = vunpack.c.l.b16 %v332
        %v493 = vunpack.c.l.b16 %v333
        %v494 = vunpack.c.l.b16 %v334
        %v495 = vunpack.c.l.b16 %v335
        %v496 = vunpack.c.l.b16 %v336
        %v497 = vunpack.c.l.b16 %v337
        %v498 = vunpack.c.l.b16 %v338
        %v499 = vunpack.c.l.b16 %v339
        %v500 = vunpack.c.l.b16 %v340
        %v501 = vunpack.c.l.b16 %v341
        %v502 = vunpack.c.l.b16 %v342
        %v503 = vunpack.c.l.b16 %v343
        %v504 = vunpack.c.l.b16 %v344
        %v505 = vunpack.c.l.b16 %v345
        %v506 = vunpack.c.l.b16 %v346
        %v507 = vunpack.c.l.b16 %v347
        %v508 = vunpack.c.l.b16 %v348
        %v509 = vunpack.c.l.b16 %v349
        %v510 = vunpack.c.l.b16 %v350
        %v511 = vunpack.c.l.b16 %v351
        %v512 = vunpack.c.l.b16 %v352
        %v513 = vunpack.c.l.b16 %v353
        %v514 = vunpack.c.l.b16 %v354
        %v515 = vunpack.c.l.b16 %v355
        %v516 = vunpack.c.l.b16 %v356
        %v517 = vunpack.c.l.b16 %v357
        %v518 = vunpack.c.l.b16 %v358
        %v519 = vunpack.c.l.b16 %v359
        %v520 = vunpack.c.l.b16 %v360
        %v521 = vunpack.c.l.b16 %v361
        %v522 = vunpack.c.l.b16 %v362
        %v523 = vunpack.c.l.b16 %v363
        %v524 = vunpack.c.l.b16 %v364
        %v525 = vunpack.c.l.b16 %v365
        %v526 = vunpack.c.l.b16 %v366
        %v527 = vunpack.c.l.b16 %v367
        %v528 = vunpack.c.l.b16 %v368
        %v529 = vunpack.c.l.b16 %v369
        %v530 = vunpack.c.l.b16 %v370
        %v531 = vunpack.c.l.b16 %v371
        %v532 = vunpack.c.l.b16 %v372
        %v533 = vunpack.c.l.b16 %v373
        %v534 = vunpack.c.l.b16 %v374
        %v535 = vunpack.c.l.b16 %v375
        %v536 = vunpack.c.l.b16 %v376
        %v537 = vunpack.c.l.b16 %v377
        %v538 = vunpack.c.l.b16 %v378
        %v539 = vunpack.c.l.b16 %v379
        %v540 = vunpack.c.l.b16 %v380
        %v541 = vunpack.c.l.b16 %v381
        %v542 = vunpack.c.l.b16 %v382
        %v543 = vunpack.c.l.b16 %v383
        %v544 = vunpack.c.l.b16 %v384
        %v545 = vunpack.c.l.b16 %v385
        %v546 = vunpack.c.l.b16 %v386
        %v547 = vunpack.c.l.b16 %v387
        %v548 = vunpack.c.l.b16 %v388
        %v549 = vunpack.c.l.b16 %v389
        %v550 = vunpack.c.l.b16 %v390
        %v551 = vunpack.c.l.b16 %v391
        %v552 = vunpack.c.l.b16 %v392
        %v553 = vpack.c.b16 %v490, %v489
        %v554 = vpack.c.b16 %v492, %v491
        %v555 = vpack.c.b16 %v494, %v493
        %v556 = vpack.c.b16 %v496, %v495
        %v557 = vpack.c.b16 %v498, %v497
        %v558 = vpack.c.b16 %v500, %v499
        %v559 = vpack.c.b16 %v502, %v501
        %v560 = vpack.c.b16 %v504, %v503
        %v561 = vpack.c.b16 %v506, %v505
        %v562 = vpack.c.b16 %v508, %v507
        %v563 = vpack.c.b16 %v510, %v509
        %v564 = vpack.c.b16 %v512, %v511
        %v565 = vpack.c.b16 %v514, %v513
        %v566 = vpack.c.b16 %v516, %v515
        %v567 = vpack.c.b16 %v518, %v517
        %v568 = vpack.c.b16 %v520, %v519
        %v569 = vpack.c.b16 %v522, %v521
        %v570 = vpack.c.b16 %v524, %v523
        %v571 = vpack.c.b16 %v526, %v525
        %v572 = vpack.c.b16 %v528, %v527
        %v573 = vpack.c.b16 %v530, %v529
        %v574 = vpack.c.b16 %v532, %v531
        %v575 = vpack.c.b16 %v534, %v533
        %v576 = vpack.c.b16 %v536, %v535
        %v577 = vpack.c.b16 %v538, %v537
        %v578 = vpack.c.b16 %v540, %v539
        %v579 = vpack.c.b16 %v542, %v541
        %v580 = vpack.c.b16 %v544, %v543
        %v581 = vpack.c.b16 %v546, %v545
        %v582 = vpack.c.b16 %v548, %v547
        %v583 = vpack.c.b16 %v550, %v549
        %v584 = vpack.c.b16 %v552, %v551
        %v649 = vunpack.c.l.b16 %v393
        %v650 = vunpack.c.h.b16 %v393
        %v651 = vunpack.c.l.b16 %v394
        %v652 = vunpack.c.h.b16 %v394
        %v653 = vunpack.c.l.b16 %v395
        %v654 = vunpack.c.h.b16 %v395
        %v655 = vunpack.c.l.b16 %v396
        %v656 = vunpack.c.h.b16 %v396
        %v657 = vunpack.c.l.b16 %v397
        %v658 = vunpack.c.h.b16 %v397
        %v659 = vunpack.c.l.b16 %v398
        %v660 = vunpack.c.h.b16 %v398
        %v661 = vunpack.c.l.b16 %v399
        %v662 = vunpack.c.h.b16 %v399
        %v663 = vunpack.c.l.b16 %v400
        %v664 = vunpack.c.h.b16 %v400
        %v665 = vunpack.c.l.b16 %v401
        %v666 = vunpack.c.h.b16 %v401
        %v667 = vunpack.c.l.b16 %v402
        %v668 = vunpack.c.h.b16 %v402
        %v669 = vunpack.c.l.b16 %v403
        %v670 = vunpack.c.h.b16 %v403
        %v671 = vunpack.c.l.b16 %v404
        %v672 = vunpack.c.h.b16 %v404
        %v673 = vunpack.c.l.b16 %v405
        %v674 = vunpack.c.h.b16 %v405
        %v675 = vunpack.c.l.b16 %v406
        %v676 = vunpack.c.h.b16 %v406
        %v677 = vunpack.c.l.b16 %v407
        %v678 = vunpack.c.h.b16 %v407
        %v679 = vunpack.c.l.b16 %v408
        %v680 = vunpack.c.h.b16 %v408
        %v681 = vunpack.c.l.b16 %v409
        %v682 = vunpack.c.h.b16 %v409
        %v683 = vunpack.c.l.b16 %v410
        %v684 = vunpack.c.h.b16 %v410
        %v685 = vunpack.c.l.b16 %v411
        %v686 = vunpack.c.h.b16 %v411
        %v687 = vunpack.c.l.b16 %v412
        %v688 = vunpack.c.h.b16 %v412
        %v689 = vunpack.c.l.b16 %v413
        %v690 = vunpack.c.h.b16 %v413
        %v691 = vunpack.c.l.b16 %v414
        %v692 = vunpack.c.h.b16 %v414
        %v693 = vunpack.c.l.b16 %v415
        %v694 = vunpack.c.h.b16 %v415
        %v695 = vunpack.c.l.b16 %v416
        %v696 = vunpack.c.h.b16 %v416
        %v697 = vunpack.c.l.b16 %v417
        %v698 = vunpack.c.h.b16 %v417
        %v699 = vunpack.c.l.b16 %v418
        %v700 = vunpack.c.h.b16 %v418
        %v701 = vunpack.c.l.b16 %v419
        %v702 = vunpack.c.h.b16 %v419
        %v703 = vunpack.c.l.b16 %v420
        %v704 = vunpack.c.h.b16 %v420
        %v705 = vunpack.c.l.b16 %v421
        %v706 = vunpack.c.h.b16 %v421
        %v707 = vunpack.c.l.b16 %v422
        %v708 = vunpack.c.h.b16 %v422
        %v709 = vunpack.c.l.b16 %v423
        %v710 = vunpack.c.h.b16 %v423
        %v711 = vunpack.c.l.b16 %v424
        %v712 = vunpack.c.h.b16 %v424
        %v713 = vpack.c.b16 %v653, %v649
        %v714 = vpack.c.b16 %v654, %v650
        %v715 = vpack.c.b16 %v655, %v651
        %v716 = vpack.c.b16 %v656, %v652
        %v717 = vpack.c.b16 %v661, %v657
        %v718 = vpack.c.b16 %v662, %v658
        %v719 = vpack.c.b16 %v663, %v659
        %v720 = vpack.c.b16 %v664, %v660
        %v721 = vpack.c.b16 %v669, %v665
        %v722 = vpack.c.b16 %v670, %v666
        %v723 = vpack.c.b16 %v671, %v667
        %v724 = vpack.c.b16 %v672, %v668
        %v725 = vpack.c.b16 %v677, %v673
        %v726 = vpack.c.b16 %v678, %v674
        %v727 = vpack.c.b16 %v679, %v675
        %v728 = vpack.c.b16 %v680, %v676
        %v729 = vpack.c.b16 %v685, %v681
        %v730 = vpack.c.b16 %v686, %v682
        %v731 = vpack.c.b16 %v687, %v683
        %v732 = vpack.c.b16 %v688, %v684
        %v733 = vpack.c.b16 %v693, %v689
        %v734 = vpack.c.b16 %v694, %v690
        %v735 = vpack.c.b16 %v695, %v691
        %v736 = vpack.c.b16 %v696, %v692
        %v737 = vpack.c.b16 %v701, %v697
        %v738 = vpack.c.b16 %v702, %v698
        %v739 = vpack.c.b16 %v703, %v699
        %v740 = vpack.c.b16 %v704, %v700
        %v741 = vpack.c.b16 %v709, %v705
        %v742 = vpack.c.b16 %v710, %v706
        %v743 = vpack.c.b16 %v711, %v707
        %v744 = vpack.c.b16 %v712, %v708
        %777 = vmatprep.subr.bf16.mxu0 %v714
        %778 = vmatpush1.bf16.msra.mxu0 %v713
        %779 = vmatprep.subr.bf16.mxu0 %v718
        %780 = vmatpush1.bf16.msra.mxu0 %v717
        %781 = vmatprep.subr.bf16.mxu0 %v722
        %782 = vmatpush1.bf16.msra.mxu0 %v721
        %783 = vmatprep.subr.bf16.mxu0 %v726
        %784 = vmatpush1.bf16.msra.mxu0 %v725
        %785 = vmatprep.subr.bf16.mxu0 %v730
        %786 = vmatpush1.bf16.msra.mxu0 %v729
        %787 = vmatprep.subr.bf16.mxu0 %v734
        %788 = vmatpush1.bf16.msra.mxu0 %v733
        %789 = vmatprep.subr.bf16.mxu0 %v738
        %790 = vmatpush1.bf16.msra.mxu0 %v737
        %791 = vmatprep.subr.bf16.mxu0 %v742
        %792 = vmatpush1.bf16.msra.mxu0 %v741
        %793 = vmatprep.subr.bf16.mxu0 0
        %794 = vmatpush1.bf16.msra.mxu0 0
        %795 = vmatprep.subr.bf16.mxu0 0
        %796 = vmatpush1.bf16.msra.mxu0 0
        %797 = vmatprep.subr.bf16.mxu0 0
        %798 = vmatpush1.bf16.msra.mxu0 0
        %799 = vmatprep.subr.bf16.mxu0 0
        %800 = vmatpush1.bf16.msra.mxu0 0
        %801 = vmatprep.subr.bf16.mxu0 0
        %802 = vmatpush1.bf16.msra.mxu0 0
        %803 = vmatprep.subr.bf16.mxu0 0
        %804 = vmatpush1.bf16.msra.mxu0 0
        %805 = vmatprep.subr.bf16.mxu0 0
        %806 = vmatpush1.bf16.msra.mxu0 0
        %807 = vmatprep.subr.bf16.mxu0 0
        %808 = vmatpush1.bf16.msra.mxu0 0
        %809 = vmatprep.mubr.bf16.mxu0 0
        %810 = vmatmul.mubr.bf16.gmra.mrb[0].mxu0 %v553
        %v811 = vpop.f32.mrb[0].mxu0
        %v812 = vadd.f32 0.0, %v811
        %v813 = vpop.f32.mrb[0].mxu0
        %v814 = vadd.f32 0.0, %v813
        %v815 = vpop.f32.mrb[0].mxu0
        %v816 = vadd.f32 0.0, %v815
        %v817 = vpop.f32.mrb[0].mxu0
        %v818 = vadd.f32 0.0, %v817
        %819 = vmatprep.mubr.bf16.mxu0 0
        %820 = vmatmul.mubr.bf16.gmra.mrb[0].mxu0 %v554
        %v821 = vpop.f32.mrb[0].mxu0
        %v822 = vadd.f32 0.0, %v821
        %v823 = vpop.f32.mrb[0].mxu0
        %v824 = vadd.f32 0.0, %v823
        %v825 = vpop.f32.mrb[0].mxu0
        %v826 = vadd.f32 0.0, %v825
        %v827 = vpop.f32.mrb[0].mxu0
        %v828 = vadd.f32 0.0, %v827
        %829 = vmatprep.mubr.bf16.mxu0 0
        %830 = vmatmul.mubr.bf16.gmra.mrb[0].mxu0 %v555
        %v831 = vpop.f32.mrb[0].mxu0
        %v832 = vadd.f32 0.0, %v831
        %v833 = vpop.f32.mrb[0].mxu0
        %v834 = vadd.f32 0.0, %v833
        %v835 = vpop.f32.mrb[0].mxu0
        %v836 = vadd.f32 0.0, %v835
        %v837 = vpop.f32.mrb[0].mxu0
        %v838 = vadd.f32 0.0, %v837
        %839 = vmatprep.mubr.bf16.mxu0 0
        %840 = vmatmul.mubr.bf16.gmra.mrb[0].mxu0 %v556
        %v841 = vpop.f32.mrb[0].mxu0
        %v842 = vadd.f32 0.0, %v841
        %v843 = vpop.f32.mrb[0].mxu0
        %v844 = vadd.f32 0.0, %v843
        %v845 = vpop.f32.mrb[0].mxu0
        %v846 = vadd.f32 0.0, %v845
        %v847 = vpop.f32.mrb[0].mxu0
        %v848 = vadd.f32 0.0, %v847
        %849 = vmatprep.mubr.bf16.mxu0 0
        %850 = vmatmul.mubr.bf16.gmra.mrb[0].mxu0 %v557
        %v851 = vpop.f32.mrb[0].mxu0
        %v852 = vadd.f32 0.0, %v851
        %v853 = vpop.f32.mrb[0].mxu0
        %v854 = vadd.f32 0.0, %v853
        %v855 = vpop.f32.mrb[0].mxu0
        %v856 = vadd.f32 0.0, %v855
        %v857 = vpop.f32.mrb[0].mxu0
        %v858 = vadd.f32 0.0, %v857
        %859 = vmatprep.mubr.bf16.mxu0 0
        %860 = vmatmul.mubr.bf16.gmra.mrb[0].mxu0 %v558
        %v861 = vpop.f32.mrb[0].mxu0
        %v862 = vadd.f32 0.0, %v861
        %v863 = vpop.f32.mrb[0].mxu0
        %v864 = vadd.f32 0.0, %v863
        %v865 = vpop.f32.mrb[0].mxu0
        %v866 = vadd.f32 0.0, %v865
        %v867 = vpop.f32.mrb[0].mxu0
        %v868 = vadd.f32 0.0, %v867
        %869 = vmatprep.mubr.bf16.mxu0 0
        %870 = vmatmul.mubr.bf16.gmra.mrb[0].mxu0 %v559
        %v871 = vpop.f32.mrb[0].mxu0
        %v872 = vadd.f32 0.0, %v871
        %v873 = vpop.f32.mrb[0].mxu0
        %v874 = vadd.f32 0.0, %v873
        %v875 = vpop.f32.mrb[0].mxu0
        %v876 = vadd.f32 0.0, %v875
        %v877 = vpop.f32.mrb[0].mxu0
        %v878 = vadd.f32 0.0, %v877
        %879 = vmatprep.mubr.bf16.mxu0 0
        %880 = vmatmul.mubr.bf16.gmra.mrb[0].mxu0 %v560
        %v881 = vpop.f32.mrb[0].mxu0
        %v882 = vadd.f32 0.0, %v881
        %v883 = vpop.f32.mrb[0].mxu0
        %v884 = vadd.f32 0.0, %v883
        %v885 = vpop.f32.mrb[0].mxu0
        %v886 = vadd.f32 0.0, %v885
        %v887 = vpop.f32.mrb[0].mxu0
        %v888 = vadd.f32 0.0, %v887
        %889 = vmatprep.mubr.bf16.mxu0 0
        %890 = vmatmul.mubr.bf16.gmra.mrb[0].mxu0 %v561
        %v891 = vpop.f32.mrb[0].mxu0
        %v892 = vadd.f32 0.0, %v891
        %v893 = vpop.f32.mrb[0].mxu0
        %v894 = vadd.f32 0.0, %v893
        %v895 = vpop.f32.mrb[0].mxu0
        %v896 = vadd.f32 0.0, %v895
        %v897 = vpop.f32.mrb[0].mxu0
        %v898 = vadd.f32 0.0, %v897
        %899 = vmatprep.mubr.bf16.mxu0 0
        %900 = vmatmul.mubr.bf16.gmra.mrb[0].mxu0 %v562
        %v901 = vpop.f32.mrb[0].mxu0
        %v902 = vadd.f32 0.0, %v901
        %v903 = vpop.f32.mrb[0].mxu0
        %v904 = vadd.f32 0.0, %v903
        %v905 = vpop.f32.mrb[0].mxu0
        %v906 = vadd.f32 0.0, %v905
        %v907 = vpop.f32.mrb[0].mxu0
        %v908 = vadd.f32 0.0, %v907
        %909 = vmatprep.mubr.bf16.mxu0 0
        %910 = vmatmul.mubr.bf16.gmra.mrb[0].mxu0 %v563
        %v911 = vpop.f32.mrb[0].mxu0
        %v912 = vadd.f32 0.0, %v911
        %v913 = vpop.f32.mrb[0].mxu0
        %v914 = vadd.f32 0.0, %v913
        %v915 = vpop.f32.mrb[0].mxu0
        %v916 = vadd.f32 0.0, %v915
        %v917 = vpop.f32.mrb[0].mxu0
        %v918 = vadd.f32 0.0, %v917
        %919 = vmatprep.mubr.bf16.mxu0 0
        %920 = vmatmul.mubr.bf16.gmra.mrb[0].mxu0 %v564
        %v921 = vpop.f32.mrb[0].mxu0
        %v922 = vadd.f32 0.0, %v921
        %v923 = vpop.f32.mrb[0].mxu0
        %v924 = vadd.f32 0.0, %v923
        %v925 = vpop.f32.mrb[0].mxu0
        %v926 = vadd.f32 0.0, %v925
        %v927 = vpop.f32.mrb[0].mxu0
        %v928 = vadd.f32 0.0, %v927
        %929 = vmatprep.mubr.bf16.mxu0 0
        %930 = vmatmul.mubr.bf16.gmra.mrb[0].mxu0 %v565
        %v931 = vpop.f32.mrb[0].mxu0
        %v932 = vadd.f32 0.0, %v931
        %v933 = vpop.f32.mrb[0].mxu0
        %v934 = vadd.f32 0.0, %v933
        %v935 = vpop.f32.mrb[0].mxu0
        %v936 = vadd.f32 0.0, %v935
        %v937 = vpop.f32.mrb[0].mxu0
        %v938 = vadd.f32 0.0, %v937
        %939 = vmatprep.mubr.bf16.mxu0 0
        %940 = vmatmul.mubr.bf16.gmra.mrb[0].mxu0 %v566
        %v941 = vpop.f32.mrb[0].mxu0
        %v942 = vadd.f32 0.0, %v941
        %v943 = vpop.f32.mrb[0].mxu0
        %v944 = vadd.f32 0.0, %v943
        %v945 = vpop.f32.mrb[0].mxu0
        %v946 = vadd.f32 0.0, %v945
        %v947 = vpop.f32.mrb[0].mxu0
        %v948 = vadd.f32 0.0, %v947
        %949 = vmatprep.mubr.bf16.mxu0 0
        %950 = vmatmul.mubr.bf16.gmra.mrb[0].mxu0 %v567
        %v951 = vpop.f32.mrb[0].mxu0
        %v952 = vadd.f32 0.0, %v951
        %v953 = vpop.f32.mrb[0].mxu0
        %v954 = vadd.f32 0.0, %v953
        %v955 = vpop.f32.mrb[0].mxu0
        %v956 = vadd.f32 0.0, %v955
        %v957 = vpop.f32.mrb[0].mxu0
        %v958 = vadd.f32 0.0, %v957
        %959 = vmatprep.mubr.bf16.mxu0 0
        %960 = vmatmul.mubr.bf16.gmra.mrb[0].mxu0 %v568
        %v961 = vpop.f32.mrb[0].mxu0
        %v962 = vadd.f32 0.0, %v961
        %v963 = vpop.f32.mrb[0].mxu0
        %v964 = vadd.f32 0.0, %v963
        %v965 = vpop.f32.mrb[0].mxu0
        %v966 = vadd.f32 0.0, %v965
        %v967 = vpop.f32.mrb[0].mxu0
        %v968 = vadd.f32 0.0, %v967
        %969 = vmatprep.mubr.bf16.mxu0 0
        %970 = vmatmul.mubr.bf16.gmra.mrb[0].mxu0 %v569
        %v971 = vpop.f32.mrb[0].mxu0
        %v972 = vadd.f32 0.0, %v971
        %v973 = vpop.f32.mrb[0].mxu0
        %v974 = vadd.f32 0.0, %v973
        %v975 = vpop.f32.mrb[0].mxu0
        %v976 = vadd.f32 0.0, %v975
        %v977 = vpop.f32.mrb[0].mxu0
        %v978 = vadd.f32 0.0, %v977
        %979 = vmatprep.mubr.bf16.mxu0 0
        %980 = vmatmul.mubr.bf16.gmra.mrb[0].mxu0 %v570
        %v981 = vpop.f32.mrb[0].mxu0
        %v982 = vadd.f32 0.0, %v981
        %v983 = vpop.f32.mrb[0].mxu0
        %v984 = vadd.f32 0.0, %v983
        %v985 = vpop.f32.mrb[0].mxu0
        %v986 = vadd.f32 0.0, %v985
        %v987 = vpop.f32.mrb[0].mxu0
        %v988 = vadd.f32 0.0, %v987
        %989 = vmatprep.mubr.bf16.mxu0 0
        %990 = vmatmul.mubr.bf16.gmra.mrb[0].mxu0 %v571
        %v991 = vpop.f32.mrb[0].mxu0
        %v992 = vadd.f32 0.0, %v991
        %v993 = vpop.f32.mrb[0].mxu0
        %v994 = vadd.f32 0.0, %v993
        %v995 = vpop.f32.mrb[0].mxu0
        %v996 = vadd.f32 0.0, %v995
        %v997 = vpop.f32.mrb[0].mxu0
        %v998 = vadd.f32 0.0, %v997
        %999 = vmatprep.mubr.bf16.mxu0 0
        %1000 = vmatmul.mubr.bf16.gmra.mrb[0].mxu0 %v572
        %v1001 = vpop.f32.mrb[0].mxu0
        %v1002 = vadd.f32 0.0, %v1001
        %v1003 = vpop.f32.mrb[0].mxu0
        %v1004 = vadd.f32 0.0, %v1003
        %v1005 = vpop.f32.mrb[0].mxu0
        %v1006 = vadd.f32 0.0, %v1005
        %v1007 = vpop.f32.mrb[0].mxu0
        %v1008 = vadd.f32 0.0, %v1007
        %1009 = vmatprep.mubr.bf16.mxu0 0
        %1010 = vmatmul.mubr.bf16.gmra.mrb[0].mxu0 %v573
        %v1011 = vpop.f32.mrb[0].mxu0
        %v1012 = vadd.f32 0.0, %v1011
        %v1013 = vpop.f32.mrb[0].mxu0
        %v1014 = vadd.f32 0.0, %v1013
        %v1015 = vpop.f32.mrb[0].mxu0
        %v1016 = vadd.f32 0.0, %v1015
        %v1017 = vpop.f32.mrb[0].mxu0
        %v1018 = vadd.f32 0.0, %v1017
        %1019 = vmatprep.mubr.bf16.mxu0 0
        %1020 = vmatmul.mubr.bf16.gmra.mrb[0].mxu0 %v574
        %v1021 = vpop.f32.mrb[0].mxu0
        %v1022 = vadd.f32 0.0, %v1021
        %v1023 = vpop.f32.mrb[0].mxu0
        %v1024 = vadd.f32 0.0, %v1023
        %v1025 = vpop.f32.mrb[0].mxu0
        %v1026 = vadd.f32 0.0, %v1025
        %v1027 = vpop.f32.mrb[0].mxu0
        %v1028 = vadd.f32 0.0, %v1027
        %1029 = vmatprep.mubr.bf16.mxu0 0
        %1030 = vmatmul.mubr.bf16.gmra.mrb[0].mxu0 %v575
        %v1031 = vpop.f32.mrb[0].mxu0
        %v1032 = vadd.f32 0.0, %v1031
        %v1033 = vpop.f32.mrb[0].mxu0
        %v1034 = vadd.f32 0.0, %v1033
        %v1035 = vpop.f32.mrb[0].mxu0
        %v1036 = vadd.f32 0.0, %v1035
        %v1037 = vpop.f32.mrb[0].mxu0
        %v1038 = vadd.f32 0.0, %v1037
        %1039 = vmatprep.mubr.bf16.mxu0 0
        %1040 = vmatmul.mubr.bf16.gmra.mrb[0].mxu0 %v576
        %v1041 = vpop.f32.mrb[0].mxu0
        %v1042 = vadd.f32 0.0, %v1041
        %v1043 = vpop.f32.mrb[0].mxu0
        %v1044 = vadd.f32 0.0, %v1043
        %v1045 = vpop.f32.mrb[0].mxu0
        %v1046 = vadd.f32 0.0, %v1045
        %v1047 = vpop.f32.mrb[0].mxu0
        %v1048 = vadd.f32 0.0, %v1047
        %1049 = vmatprep.mubr.bf16.mxu0 0
        %1050 = vmatmul.mubr.bf16.gmra.mrb[0].mxu0 %v577
        %v1051 = vpop.f32.mrb[0].mxu0
        %v1052 = vadd.f32 0.0, %v1051
        %v1053 = vpop.f32.mrb[0].mxu0
        %v1054 = vadd.f32 0.0, %v1053
        %v1055 = vpop.f32.mrb[0].mxu0
        %v1056 = vadd.f32 0.0, %v1055
        %v1057 = vpop.f32.mrb[0].mxu0
        %v1058 = vadd.f32 0.0, %v1057
        %1059 = vmatprep.mubr.bf16.mxu0 0
        %1060 = vmatmul.mubr.bf16.gmra.mrb[0].mxu0 %v578
        %v1061 = vpop.f32.mrb[0].mxu0
        %v1062 = vadd.f32 0.0, %v1061
        %v1063 = vpop.f32.mrb[0].mxu0
        %v1064 = vadd.f32 0.0, %v1063
        %v1065 = vpop.f32.mrb[0].mxu0
        %v1066 = vadd.f32 0.0, %v1065
        %v1067 = vpop.f32.mrb[0].mxu0
        %v1068 = vadd.f32 0.0, %v1067
        %1069 = vmatprep.mubr.bf16.mxu0 0
        %1070 = vmatmul.mubr.bf16.gmra.mrb[0].mxu0 %v579
        %v1071 = vpop.f32.mrb[0].mxu0
        %v1072 = vadd.f32 0.0, %v1071
        %v1073 = vpop.f32.mrb[0].mxu0
        %v1074 = vadd.f32 0.0, %v1073
        %v1075 = vpop.f32.mrb[0].mxu0
        %v1076 = vadd.f32 0.0, %v1075
        %v1077 = vpop.f32.mrb[0].mxu0
        %v1078 = vadd.f32 0.0, %v1077
        %1079 = vmatprep.mubr.bf16.mxu0 0
        %1080 = vmatmul.mubr.bf16.gmra.mrb[0].mxu0 %v580
        %v1081 = vpop.f32.mrb[0].mxu0
        %v1082 = vadd.f32 0.0, %v1081
        %v1083 = vpop.f32.mrb[0].mxu0
        %v1084 = vadd.f32 0.0, %v1083
        %v1085 = vpop.f32.mrb[0].mxu0
        %v1086 = vadd.f32 0.0, %v1085
        %v1087 = vpop.f32.mrb[0].mxu0
        %v1088 = vadd.f32 0.0, %v1087
        %1089 = vmatprep.mubr.bf16.mxu0 0
        %1090 = vmatmul.mubr.bf16.gmra.mrb[0].mxu0 %v581
        %v1091 = vpop.f32.mrb[0].mxu0
        %v1092 = vadd.f32 0.0, %v1091
        %v1093 = vpop.f32.mrb[0].mxu0
        %v1094 = vadd.f32 0.0, %v1093
        %v1095 = vpop.f32.mrb[0].mxu0
        %v1096 = vadd.f32 0.0, %v1095
        %v1097 = vpop.f32.mrb[0].mxu0
        %v1098 = vadd.f32 0.0, %v1097
        %1099 = vmatprep.mubr.bf16.mxu0 0
        %1100 = vmatmul.mubr.bf16.gmra.mrb[0].mxu0 %v582
        %v1101 = vpop.f32.mrb[0].mxu0
        %v1102 = vadd.f32 0.0, %v1101
        %v1103 = vpop.f32.mrb[0].mxu0
        %v1104 = vadd.f32 0.0, %v1103
        %v1105 = vpop.f32.mrb[0].mxu0
        %v1106 = vadd.f32 0.0, %v1105
        %v1107 = vpop.f32.mrb[0].mxu0
        %v1108 = vadd.f32 0.0, %v1107
        %1109 = vmatprep.mubr.bf16.mxu0 0
        %1110 = vmatmul.mubr.bf16.gmra.mrb[0].mxu0 %v583
        %v1111 = vpop.f32.mrb[0].mxu0
        %v1112 = vadd.f32 0.0, %v1111
        %v1113 = vpop.f32.mrb[0].mxu0
        %v1114 = vadd.f32 0.0, %v1113
        %v1115 = vpop.f32.mrb[0].mxu0
        %v1116 = vadd.f32 0.0, %v1115
        %v1117 = vpop.f32.mrb[0].mxu0
        %v1118 = vadd.f32 0.0, %v1117
        %1119 = vmatprep.mubr.bf16.mxu0 0
        %1120 = vmatmul.mubr.bf16.gmra.mrb[0].mxu0 %v584
        %v1121 = vpop.f32.mrb[0].mxu0
        %v1122 = vadd.f32 0.0, %v1121
        %v1123 = vpop.f32.mrb[0].mxu0
        %v1124 = vadd.f32 0.0, %v1123
        %v1125 = vpop.f32.mrb[0].mxu0
        %v1126 = vadd.f32 0.0, %v1125
        %v1127 = vpop.f32.mrb[0].mxu0
        %v1128 = vadd.f32 0.0, %v1127
        %1129 = vdwg.mxu0
        %1130 = vmatprep.subr.bf16.mxu0 %v716
        %1131 = vmatpush1.bf16.msra.mxu0 %v715
        %1132 = vmatprep.subr.bf16.mxu0 %v720
        %1133 = vmatpush1.bf16.msra.mxu0 %v719
        %1134 = vmatprep.subr.bf16.mxu0 %v724
        %1135 = vmatpush1.bf16.msra.mxu0 %v723
        %1136 = vmatprep.subr.bf16.mxu0 %v728
        %1137 = vmatpush1.bf16.msra.mxu0 %v727
        %1138 = vmatprep.subr.bf16.mxu0 %v732
        %1139 = vmatpush1.bf16.msra.mxu0 %v731
        %1140 = vmatprep.subr.bf16.mxu0 %v736
        %1141 = vmatpush1.bf16.msra.mxu0 %v735
        %1142 = vmatprep.subr.bf16.mxu0 %v740
        %1143 = vmatpush1.bf16.msra.mxu0 %v739
        %1144 = vmatprep.subr.bf16.mxu0 %v744
        %1145 = vmatpush1.bf16.msra.mxu0 %v743
        %1146 = vmatprep.subr.bf16.mxu0 0
        %1147 = vmatpush1.bf16.msra.mxu0 0
        %1148 = vmatprep.subr.bf16.mxu0 0
        %1149 = vmatpush1.bf16.msra.mxu0 0
        %1150 = vmatprep.subr.bf16.mxu0 0
        %1151 = vmatpush1.bf16.msra.mxu0 0
        %1152 = vmatprep.subr.bf16.mxu0 0
        %1153 = vmatpush1.bf16.msra.mxu0 0
        %1154 = vmatprep.subr.bf16.mxu0 0
        %1155 = vmatpush1.bf16.msra.mxu0 0
        %1156 = vmatprep.subr.bf16.mxu0 0
        %1157 = vmatpush1.bf16.msra.mxu0 0
        %1158 = vmatprep.subr.bf16.mxu0 0
        %1159 = vmatpush1.bf16.msra.mxu0 0
        %1160 = vmatprep.subr.bf16.mxu0 0
        %1161 = vmatpush1.bf16.msra.mxu0 0
        %1162 = vmatprep.mubr.bf16.mxu0 0
        %1163 = vmatmul.mubr.bf16.gmra.mrb[0].mxu0 %v553
        %v1164 = vpop.f32.mrb[0].mxu0
        %v1165 = vadd.f32 0.0, %v1164
        %v1166 = vpop.f32.mrb[0].mxu0
        %v1167 = vadd.f32 0.0, %v1166
        %v1168 = vpop.f32.mrb[0].mxu0
        %v1169 = vadd.f32 0.0, %v1168
        %v1170 = vpop.f32.mrb[0].mxu0
        %v1171 = vadd.f32 0.0, %v1170
        %1172 = vmatprep.mubr.bf16.mxu0 0
        %1173 = vmatmul.mubr.bf16.gmra.mrb[0].mxu0 %v554
        %v1174 = vpop.f32.mrb[0].mxu0
        %v1175 = vadd.f32 0.0, %v1174
        %v1176 = vpop.f32.mrb[0].mxu0
        %v1177 = vadd.f32 0.0, %v1176
        %v1178 = vpop.f32.mrb[0].mxu0
        %v1179 = vadd.f32 0.0, %v1178
        %v1180 = vpop.f32.mrb[0].mxu0
        %v1181 = vadd.f32 0.0, %v1180
        %1182 = vmatprep.mubr.bf16.mxu0 0
        %1183 = vmatmul.mubr.bf16.gmra.mrb[0].mxu0 %v555
        %v1184 = vpop.f32.mrb[0].mxu0
        %v1185 = vadd.f32 0.0, %v1184
        %v1186 = vpop.f32.mrb[0].mxu0
        %v1187 = vadd.f32 0.0, %v1186
        %v1188 = vpop.f32.mrb[0].mxu0
        %v1189 = vadd.f32 0.0, %v1188
        %v1190 = vpop.f32.mrb[0].mxu0
        %v1191 = vadd.f32 0.0, %v1190
        %1192 = vmatprep.mubr.bf16.mxu0 0
        %1193 = vmatmul.mubr.bf16.gmra.mrb[0].mxu0 %v556
        %v1194 = vpop.f32.mrb[0].mxu0
        %v1195 = vadd.f32 0.0, %v1194
        %v1196 = vpop.f32.mrb[0].mxu0
        %v1197 = vadd.f32 0.0, %v1196
        %v1198 = vpop.f32.mrb[0].mxu0
        %v1199 = vadd.f32 0.0, %v1198
        %v1200 = vpop.f32.mrb[0].mxu0
        %v1201 = vadd.f32 0.0, %v1200
        %1202 = vmatprep.mubr.bf16.mxu0 0
        %1203 = vmatmul.mubr.bf16.gmra.mrb[0].mxu0 %v557
        %v1204 = vpop.f32.mrb[0].mxu0
        %v1205 = vadd.f32 0.0, %v1204
        %v1206 = vpop.f32.mrb[0].mxu0
        %v1207 = vadd.f32 0.0, %v1206
        %v1208 = vpop.f32.mrb[0].mxu0
        %v1209 = vadd.f32 0.0, %v1208
        %v1210 = vpop.f32.mrb[0].mxu0
        %v1211 = vadd.f32 0.0, %v1210
        %1212 = vmatprep.mubr.bf16.mxu0 0
        %1213 = vmatmul.mubr.bf16.gmra.mrb[0].mxu0 %v558
        %v1214 = vpop.f32.mrb[0].mxu0
        %v1215 = vadd.f32 0.0, %v1214
        %v1216 = vpop.f32.mrb[0].mxu0
        %v1217 = vadd.f32 0.0, %v1216
        %v1218 = vpop.f32.mrb[0].mxu0
        %v1219 = vadd.f32 0.0, %v1218
        %v1220 = vpop.f32.mrb[0].mxu0
        %v1221 = vadd.f32 0.0, %v1220
        %1222 = vmatprep.mubr.bf16.mxu0 0
        %1223 = vmatmul.mubr.bf16.gmra.mrb[0].mxu0 %v559
        %v1224 = vpop.f32.mrb[0].mxu0
        %v1225 = vadd.f32 0.0, %v1224
        %v1226 = vpop.f32.mrb[0].mxu0
        %v1227 = vadd.f32 0.0, %v1226
        %v1228 = vpop.f32.mrb[0].mxu0
        %v1229 = vadd.f32 0.0, %v1228
        %v1230 = vpop.f32.mrb[0].mxu0
        %v1231 = vadd.f32 0.0, %v1230
        %1232 = vmatprep.mubr.bf16.mxu0 0
        %1233 = vmatmul.mubr.bf16.gmra.mrb[0].mxu0 %v560
        %v1234 = vpop.f32.mrb[0].mxu0
        %v1235 = vadd.f32 0.0, %v1234
        %v1236 = vpop.f32.mrb[0].mxu0
        %v1237 = vadd.f32 0.0, %v1236
        %v1238 = vpop.f32.mrb[0].mxu0
        %v1239 = vadd.f32 0.0, %v1238
        %v1240 = vpop.f32.mrb[0].mxu0
        %v1241 = vadd.f32 0.0, %v1240
        %1242 = vmatprep.mubr.bf16.mxu0 0
        %1243 = vmatmul.mubr.bf16.gmra.mrb[0].mxu0 %v561
        %v1244 = vpop.f32.mrb[0].mxu0
        %v1245 = vadd.f32 0.0, %v1244
        %v1246 = vpop.f32.mrb[0].mxu0
        %v1247 = vadd.f32 0.0, %v1246
        %v1248 = vpop.f32.mrb[0].mxu0
        %v1249 = vadd.f32 0.0, %v1248
        %v1250 = vpop.f32.mrb[0].mxu0
        %v1251 = vadd.f32 0.0, %v1250
        %1252 = vmatprep.mubr.bf16.mxu0 0
        %1253 = vmatmul.mubr.bf16.gmra.mrb[0].mxu0 %v562
        %v1254 = vpop.f32.mrb[0].mxu0
        %v1255 = vadd.f32 0.0, %v1254
        %v1256 = vpop.f32.mrb[0].mxu0
        %v1257 = vadd.f32 0.0, %v1256
        %v1258 = vpop.f32.mrb[0].mxu0
        %v1259 = vadd.f32 0.0, %v1258
        %v1260 = vpop.f32.mrb[0].mxu0
        %v1261 = vadd.f32 0.0, %v1260
        %1262 = vmatprep.mubr.bf16.mxu0 0
        %1263 = vmatmul.mubr.bf16.gmra.mrb[0].mxu0 %v563
        %v1264 = vpop.f32.mrb[0].mxu0
        %v1265 = vadd.f32 0.0, %v1264
        %v1266 = vpop.f32.mrb[0].mxu0
        %v1267 = vadd.f32 0.0, %v1266
        %v1268 = vpop.f32.mrb[0].mxu0
        %v1269 = vadd.f32 0.0, %v1268
        %v1270 = vpop.f32.mrb[0].mxu0
        %v1271 = vadd.f32 0.0, %v1270
        %1272 = vmatprep.mubr.bf16.mxu0 0
        %1273 = vmatmul.mubr.bf16.gmra.mrb[0].mxu0 %v564
        %v1274 = vpop.f32.mrb[0].mxu0
        %v1275 = vadd.f32 0.0, %v1274
        %v1276 = vpop.f32.mrb[0].mxu0
        %v1277 = vadd.f32 0.0, %v1276
        %v1278 = vpop.f32.mrb[0].mxu0
        %v1279 = vadd.f32 0.0, %v1278
        %v1280 = vpop.f32.mrb[0].mxu0
        %v1281 = vadd.f32 0.0, %v1280
        %1282 = vmatprep.mubr.bf16.mxu0 0
        %1283 = vmatmul.mubr.bf16.gmra.mrb[0].mxu0 %v565
        %v1284 = vpop.f32.mrb[0].mxu0
        %v1285 = vadd.f32 0.0, %v1284
        %v1286 = vpop.f32.mrb[0].mxu0
        %v1287 = vadd.f32 0.0, %v1286
        %v1288 = vpop.f32.mrb[0].mxu0
        %v1289 = vadd.f32 0.0, %v1288
        %v1290 = vpop.f32.mrb[0].mxu0
        %v1291 = vadd.f32 0.0, %v1290
        %1292 = vmatprep.mubr.bf16.mxu0 0
        %1293 = vmatmul.mubr.bf16.gmra.mrb[0].mxu0 %v566
        %v1294 = vpop.f32.mrb[0].mxu0
        %v1295 = vadd.f32 0.0, %v1294
        %v1296 = vpop.f32.mrb[0].mxu0
        %v1297 = vadd.f32 0.0, %v1296
        %v1298 = vpop.f32.mrb[0].mxu0
        %v1299 = vadd.f32 0.0, %v1298
        %v1300 = vpop.f32.mrb[0].mxu0
        %v1301 = vadd.f32 0.0, %v1300
        %1302 = vmatprep.mubr.bf16.mxu0 0
        %1303 = vmatmul.mubr.bf16.gmra.mrb[0].mxu0 %v567
        %v1304 = vpop.f32.mrb[0].mxu0
        %v1305 = vadd.f32 0.0, %v1304
        %v1306 = vpop.f32.mrb[0].mxu0
        %v1307 = vadd.f32 0.0, %v1306
        %v1308 = vpop.f32.mrb[0].mxu0
        %v1309 = vadd.f32 0.0, %v1308
        %v1310 = vpop.f32.mrb[0].mxu0
        %v1311 = vadd.f32 0.0, %v1310
        %1312 = vmatprep.mubr.bf16.mxu0 0
        %1313 = vmatmul.mubr.bf16.gmra.mrb[0].mxu0 %v568
        %v1314 = vpop.f32.mrb[0].mxu0
        %v1315 = vadd.f32 0.0, %v1314
        %v1316 = vpop.f32.mrb[0].mxu0
        %v1317 = vadd.f32 0.0, %v1316
        %v1318 = vpop.f32.mrb[0].mxu0
        %v1319 = vadd.f32 0.0, %v1318
        %v1320 = vpop.f32.mrb[0].mxu0
        %v1321 = vadd.f32 0.0, %v1320
        %1322 = vmatprep.mubr.bf16.mxu0 0
        %1323 = vmatmul.mubr.bf16.gmra.mrb[0].mxu0 %v569
        %v1324 = vpop.f32.mrb[0].mxu0
        %v1325 = vadd.f32 0.0, %v1324
        %v1326 = vpop.f32.mrb[0].mxu0
        %v1327 = vadd.f32 0.0, %v1326
        %v1328 = vpop.f32.mrb[0].mxu0
        %v1329 = vadd.f32 0.0, %v1328
        %v1330 = vpop.f32.mrb[0].mxu0
        %v1331 = vadd.f32 0.0, %v1330
        %1332 = vmatprep.mubr.bf16.mxu0 0
        %1333 = vmatmul.mubr.bf16.gmra.mrb[0].mxu0 %v570
        %v1334 = vpop.f32.mrb[0].mxu0
        %v1335 = vadd.f32 0.0, %v1334
        %v1336 = vpop.f32.mrb[0].mxu0
        %v1337 = vadd.f32 0.0, %v1336
        %v1338 = vpop.f32.mrb[0].mxu0
        %v1339 = vadd.f32 0.0, %v1338
        %v1340 = vpop.f32.mrb[0].mxu0
        %v1341 = vadd.f32 0.0, %v1340
        %1342 = vmatprep.mubr.bf16.mxu0 0
        %1343 = vmatmul.mubr.bf16.gmra.mrb[0].mxu0 %v571
        %v1344 = vpop.f32.mrb[0].mxu0
        %v1345 = vadd.f32 0.0, %v1344
        %v1346 = vpop.f32.mrb[0].mxu0
        %v1347 = vadd.f32 0.0, %v1346
        %v1348 = vpop.f32.mrb[0].mxu0
        %v1349 = vadd.f32 0.0, %v1348
        %v1350 = vpop.f32.mrb[0].mxu0
        %v1351 = vadd.f32 0.0, %v1350
        %1352 = vmatprep.mubr.bf16.mxu0 0
        %1353 = vmatmul.mubr.bf16.gmra.mrb[0].mxu0 %v572
        %v1354 = vpop.f32.mrb[0].mxu0
        %v1355 = vadd.f32 0.0, %v1354
        %v1356 = vpop.f32.mrb[0].mxu0
        %v1357 = vadd.f32 0.0, %v1356
        %v1358 = vpop.f32.mrb[0].mxu0
        %v1359 = vadd.f32 0.0, %v1358
        %v1360 = vpop.f32.mrb[0].mxu0
        %v1361 = vadd.f32 0.0, %v1360
        %1362 = vmatprep.mubr.bf16.mxu0 0
        %1363 = vmatmul.mubr.bf16.gmra.mrb[0].mxu0 %v573
        %v1364 = vpop.f32.mrb[0].mxu0
        %v1365 = vadd.f32 0.0, %v1364
        %v1366 = vpop.f32.mrb[0].mxu0
        %v1367 = vadd.f32 0.0, %v1366
        %v1368 = vpop.f32.mrb[0].mxu0
        %v1369 = vadd.f32 0.0, %v1368
        %v1370 = vpop.f32.mrb[0].mxu0
        %v1371 = vadd.f32 0.0, %v1370
        %1372 = vmatprep.mubr.bf16.mxu0 0
        %1373 = vmatmul.mubr.bf16.gmra.mrb[0].mxu0 %v574
        %v1374 = vpop.f32.mrb[0].mxu0
        %v1375 = vadd.f32 0.0, %v1374
        %v1376 = vpop.f32.mrb[0].mxu0
        %v1377 = vadd.f32 0.0, %v1376
        %v1378 = vpop.f32.mrb[0].mxu0
        %v1379 = vadd.f32 0.0, %v1378
        %v1380 = vpop.f32.mrb[0].mxu0
        %v1381 = vadd.f32 0.0, %v1380
        %1382 = vmatprep.mubr.bf16.mxu0 0
        %1383 = vmatmul.mubr.bf16.gmra.mrb[0].mxu0 %v575
        %v1384 = vpop.f32.mrb[0].mxu0
        %v1385 = vadd.f32 0.0, %v1384
        %v1386 = vpop.f32.mrb[0].mxu0
        %v1387 = vadd.f32 0.0, %v1386
        %v1388 = vpop.f32.mrb[0].mxu0
        %v1389 = vadd.f32 0.0, %v1388
        %v1390 = vpop.f32.mrb[0].mxu0
        %v1391 = vadd.f32 0.0, %v1390
        %1392 = vmatprep.mubr.bf16.mxu0 0
        %1393 = vmatmul.mubr.bf16.gmra.mrb[0].mxu0 %v576
        %v1394 = vpop.f32.mrb[0].mxu0
        %v1395 = vadd.f32 0.0, %v1394
        %v1396 = vpop.f32.mrb[0].mxu0
        %v1397 = vadd.f32 0.0, %v1396
        %v1398 = vpop.f32.mrb[0].mxu0
        %v1399 = vadd.f32 0.0, %v1398
        %v1400 = vpop.f32.mrb[0].mxu0
        %v1401 = vadd.f32 0.0, %v1400
        %1402 = vmatprep.mubr.bf16.mxu0 0
        %1403 = vmatmul.mubr.bf16.gmra.mrb[0].mxu0 %v577
        %v1404 = vpop.f32.mrb[0].mxu0
        %v1405 = vadd.f32 0.0, %v1404
        %v1406 = vpop.f32.mrb[0].mxu0
        %v1407 = vadd.f32 0.0, %v1406
        %v1408 = vpop.f32.mrb[0].mxu0
        %v1409 = vadd.f32 0.0, %v1408
        %v1410 = vpop.f32.mrb[0].mxu0
        %v1411 = vadd.f32 0.0, %v1410
        %1412 = vmatprep.mubr.bf16.mxu0 0
        %1413 = vmatmul.mubr.bf16.gmra.mrb[0].mxu0 %v578
        %v1414 = vpop.f32.mrb[0].mxu0
        %v1415 = vadd.f32 0.0, %v1414
        %v1416 = vpop.f32.mrb[0].mxu0
        %v1417 = vadd.f32 0.0, %v1416
        %v1418 = vpop.f32.mrb[0].mxu0
        %v1419 = vadd.f32 0.0, %v1418
        %v1420 = vpop.f32.mrb[0].mxu0
        %v1421 = vadd.f32 0.0, %v1420
        %1422 = vmatprep.mubr.bf16.mxu0 0
        %1423 = vmatmul.mubr.bf16.gmra.mrb[0].mxu0 %v579
        %v1424 = vpop.f32.mrb[0].mxu0
        %v1425 = vadd.f32 0.0, %v1424
        %v1426 = vpop.f32.mrb[0].mxu0
        %v1427 = vadd.f32 0.0, %v1426
        %v1428 = vpop.f32.mrb[0].mxu0
        %v1429 = vadd.f32 0.0, %v1428
        %v1430 = vpop.f32.mrb[0].mxu0
        %v1431 = vadd.f32 0.0, %v1430
        %1432 = vmatprep.mubr.bf16.mxu0 0
        %1433 = vmatmul.mubr.bf16.gmra.mrb[0].mxu0 %v580
        %v1434 = vpop.f32.mrb[0].mxu0
        %v1435 = vadd.f32 0.0, %v1434
        %v1436 = vpop.f32.mrb[0].mxu0
        %v1437 = vadd.f32 0.0, %v1436
        %v1438 = vpop.f32.mrb[0].mxu0
        %v1439 = vadd.f32 0.0, %v1438
        %v1440 = vpop.f32.mrb[0].mxu0
        %v1441 = vadd.f32 0.0, %v1440
        %1442 = vmatprep.mubr.bf16.mxu0 0
        %1443 = vmatmul.mubr.bf16.gmra.mrb[0].mxu0 %v581
        %v1444 = vpop.f32.mrb[0].mxu0
        %v1445 = vadd.f32 0.0, %v1444
        %v1446 = vpop.f32.mrb[0].mxu0
        %v1447 = vadd.f32 0.0, %v1446
        %v1448 = vpop.f32.mrb[0].mxu0
        %v1449 = vadd.f32 0.0, %v1448
        %v1450 = vpop.f32.mrb[0].mxu0
        %v1451 = vadd.f32 0.0, %v1450
        %1452 = vmatprep.mubr.bf16.mxu0 0
        %1453 = vmatmul.mubr.bf16.gmra.mrb[0].mxu0 %v582
        %v1454 = vpop.f32.mrb[0].mxu0
        %v1455 = vadd.f32 0.0, %v1454
        %v1456 = vpop.f32.mrb[0].mxu0
        %v1457 = vadd.f32 0.0, %v1456
        %v1458 = vpop.f32.mrb[0].mxu0
        %v1459 = vadd.f32 0.0, %v1458
        %v1460 = vpop.f32.mrb[0].mxu0
        %v1461 = vadd.f32 0.0, %v1460
        %1462 = vmatprep.mubr.bf16.mxu0 0
        %1463 = vmatmul.mubr.bf16.gmra.mrb[0].mxu0 %v583
        %v1464 = vpop.f32.mrb[0].mxu0
        %v1465 = vadd.f32 0.0, %v1464
        %v1466 = vpop.f32.mrb[0].mxu0
        %v1467 = vadd.f32 0.0, %v1466
        %v1468 = vpop.f32.mrb[0].mxu0
        %v1469 = vadd.f32 0.0, %v1468
        %v1470 = vpop.f32.mrb[0].mxu0
        %v1471 = vadd.f32 0.0, %v1470
        %1472 = vmatprep.mubr.bf16.mxu0 0
        %1473 = vmatmul.mubr.bf16.gmra.mrb[0].mxu0 %v584
        %v1474 = vpop.f32.mrb[0].mxu0
        %v1475 = vadd.f32 0.0, %v1474
        %v1476 = vpop.f32.mrb[0].mxu0
        %v1477 = vadd.f32 0.0, %v1476
        %v1478 = vpop.f32.mrb[0].mxu0
        %v1479 = vadd.f32 0.0, %v1478
        %v1480 = vpop.f32.mrb[0].mxu0
        %v1481 = vadd.f32 0.0, %v1480
        %1482 = vdwg.mxu0
        %v1483 = vld [vmem:[#allocation8] ss:$8 sm:$0x3]
        %v1485 = vlaneseq
        %v1486 = vshrl.u32 %v1485, 7
        %v1487 = vsub.s32 0, %v1486
        %v1488 = vrot.slane %v1483, %v1487
        %v1489 = vlaneseq
        %v1490 = vshrl.u32 %v1489, 7
        %v1491 = vsub.s32 1, %v1490
        %v1492 = vrot.slane %v1483, %v1491
        %v1495 = vadd.f32 %v812, %v1488
        %v1496 = vadd.f32 %v814, %v1492
        %v1497 = vadd.f32 %v816, %v1488
        %v1498 = vadd.f32 %v818, %v1492
        %v1499 = vadd.f32 %v822, %v1488
        %v1500 = vadd.f32 %v824, %v1492
        %v1501 = vadd.f32 %v826, %v1488
        %v1502 = vadd.f32 %v828, %v1492
        %v1503 = vadd.f32 %v832, %v1488
        %v1504 = vadd.f32 %v834, %v1492
        %v1505 = vadd.f32 %v836, %v1488
        %v1506 = vadd.f32 %v838, %v1492
        %v1507 = vadd.f32 %v842, %v1488
        %v1508 = vadd.f32 %v844, %v1492
        %v1509 = vadd.f32 %v846, %v1488
        %v1510 = vadd.f32 %v848, %v1492
        %v1511 = vadd.f32 %v852, %v1488
        %v1512 = vadd.f32 %v854, %v1492
        %v1513 = vadd.f32 %v856, %v1488
        %v1514 = vadd.f32 %v858, %v1492
        %v1515 = vadd.f32 %v862, %v1488
        %v1516 = vadd.f32 %v864, %v1492
        %v1517 = vadd.f32 %v866, %v1488
        %v1518 = vadd.f32 %v868, %v1492
        %v1519 = vadd.f32 %v872, %v1488
        %v1520 = vadd.f32 %v874, %v1492
        %v1521 = vadd.f32 %v876, %v1488
        %v1522 = vadd.f32 %v878, %v1492
        %v1523 = vadd.f32 %v882, %v1488
        %v1524 = vadd.f32 %v884, %v1492
        %v1525 = vadd.f32 %v886, %v1488
        %v1526 = vadd.f32 %v888, %v1492
        %v1527 = vadd.f32 %v892, %v1488
        %v1528 = vadd.f32 %v894, %v1492
        %v1529 = vadd.f32 %v896, %v1488
        %v1530 = vadd.f32 %v898, %v1492
        %v1531 = vadd.f32 %v902, %v1488
        %v1532 = vadd.f32 %v904, %v1492
        %v1533 = vadd.f32 %v906, %v1488
        %v1534 = vadd.f32 %v908, %v1492
        %v1535 = vadd.f32 %v912, %v1488
        %v1536 = vadd.f32 %v914, %v1492
        %v1537 = vadd.f32 %v916, %v1488
        %v1538 = vadd.f32 %v918, %v1492
        %v1539 = vadd.f32 %v922, %v1488
        %v1540 = vadd.f32 %v924, %v1492
        %v1541 = vadd.f32 %v926, %v1488
        %v1542 = vadd.f32 %v928, %v1492
        %v1543 = vadd.f32 %v932, %v1488
        %v1544 = vadd.f32 %v934, %v1492
        %v1545 = vadd.f32 %v936, %v1488
        %v1546 = vadd.f32 %v938, %v1492
        %v1547 = vadd.f32 %v942, %v1488
        %v1548 = vadd.f32 %v944, %v1492
        %v1549 = vadd.f32 %v946, %v1488
        %v1550 = vadd.f32 %v948, %v1492
        %v1551 = vadd.f32 %v952, %v1488
        %v1552 = vadd.f32 %v954, %v1492
        %v1553 = vadd.f32 %v956, %v1488
        %v1554 = vadd.f32 %v958, %v1492
        %v1555 = vadd.f32 %v962, %v1488
        %v1556 = vadd.f32 %v964, %v1492
        %v1557 = vadd.f32 %v966, %v1488
        %v1558 = vadd.f32 %v968, %v1492
        %v1559 = vadd.f32 %v972, %v1488
        %v1560 = vadd.f32 %v974, %v1492
        %v1561 = vadd.f32 %v976, %v1488
        %v1562 = vadd.f32 %v978, %v1492
        %v1563 = vadd.f32 %v982, %v1488
        %v1564 = vadd.f32 %v984, %v1492
        %v1565 = vadd.f32 %v986, %v1488
        %v1566 = vadd.f32 %v988, %v1492
        %v1567 = vadd.f32 %v992, %v1488
        %v1568 = vadd.f32 %v994, %v1492
        %v1569 = vadd.f32 %v996, %v1488
        %v1570 = vadd.f32 %v998, %v1492
        %v1571 = vadd.f32 %v1002, %v1488
        %v1572 = vadd.f32 %v1004, %v1492
        %v1573 = vadd.f32 %v1006, %v1488
        %v1574 = vadd.f32 %v1008, %v1492
        %v1575 = vadd.f32 %v1012, %v1488
        %v1576 = vadd.f32 %v1014, %v1492
        %v1577 = vadd.f32 %v1016, %v1488
        %v1578 = vadd.f32 %v1018, %v1492
        %v1579 = vadd.f32 %v1022, %v1488
        %v1580 = vadd.f32 %v1024, %v1492
        %v1581 = vadd.f32 %v1026, %v1488
        %v1582 = vadd.f32 %v1028, %v1492
        %v1583 = vadd.f32 %v1032, %v1488
        %v1584 = vadd.f32 %v1034, %v1492
        %v1585 = vadd.f32 %v1036, %v1488
        %v1586 = vadd.f32 %v1038, %v1492
        %v1587 = vadd.f32 %v1042, %v1488
        %v1588 = vadd.f32 %v1044, %v1492
        %v1589 = vadd.f32 %v1046, %v1488
        %v1590 = vadd.f32 %v1048, %v1492
        %v1591 = vadd.f32 %v1052, %v1488
        %v1592 = vadd.f32 %v1054, %v1492
        %v1593 = vadd.f32 %v1056, %v1488
        %v1594 = vadd.f32 %v1058, %v1492
        %v1595 = vadd.f32 %v1062, %v1488
        %v1596 = vadd.f32 %v1064, %v1492
        %v1597 = vadd.f32 %v1066, %v1488
        %v1598 = vadd.f32 %v1068, %v1492
        %v1599 = vadd.f32 %v1072, %v1488
        %v1600 = vadd.f32 %v1074, %v1492
        %v1601 = vadd.f32 %v1076, %v1488
        %v1602 = vadd.f32 %v1078, %v1492
        %v1603 = vadd.f32 %v1082, %v1488
        %v1604 = vadd.f32 %v1084, %v1492
        %v1605 = vadd.f32 %v1086, %v1488
        %v1606 = vadd.f32 %v1088, %v1492
        %v1607 = vadd.f32 %v1092, %v1488
        %v1608 = vadd.f32 %v1094, %v1492
        %v1609 = vadd.f32 %v1096, %v1488
        %v1610 = vadd.f32 %v1098, %v1492
        %v1611 = vadd.f32 %v1102, %v1488
        %v1612 = vadd.f32 %v1104, %v1492
        %v1613 = vadd.f32 %v1106, %v1488
        %v1614 = vadd.f32 %v1108, %v1492
        %v1615 = vadd.f32 %v1112, %v1488
        %v1616 = vadd.f32 %v1114, %v1492
        %v1617 = vadd.f32 %v1116, %v1488
        %v1618 = vadd.f32 %v1118, %v1492
        %v1619 = vadd.f32 %v1122, %v1488
        %v1620 = vadd.f32 %v1124, %v1492
        %v1621 = vadd.f32 %v1126, %v1488
        %v1622 = vadd.f32 %v1128, %v1492
        %v1623 = vmax.f32 %v1495, 0.0
        %v1624 = vmax.f32 %v1496, 0.0
        %v1625 = vmax.f32 %v1497, 0.0
        %v1626 = vmax.f32 %v1498, 0.0
        %v1627 = vmax.f32 %v1499, 0.0
        %v1628 = vmax.f32 %v1500, 0.0
        %v1629 = vmax.f32 %v1501, 0.0
        %v1630 = vmax.f32 %v1502, 0.0
        %v1631 = vmax.f32 %v1503, 0.0
        %v1632 = vmax.f32 %v1504, 0.0
        %v1633 = vmax.f32 %v1505, 0.0
        %v1634 = vmax.f32 %v1506, 0.0
        %v1635 = vmax.f32 %v1507, 0.0
        %v1636 = vmax.f32 %v1508, 0.0
        %v1637 = vmax.f32 %v1509, 0.0
        %v1638 = vmax.f32 %v1510, 0.0
        %v1639 = vmax.f32 %v1511, 0.0
        %v1640 = vmax.f32 %v1512, 0.0
        %v1641 = vmax.f32 %v1513, 0.0
        %v1642 = vmax.f32 %v1514, 0.0
        %v1643 = vmax.f32 %v1515, 0.0
        %v1644 = vmax.f32 %v1516, 0.0
        %v1645 = vmax.f32 %v1517, 0.0
        %v1646 = vmax.f32 %v1518, 0.0
        %v1647 = vmax.f32 %v1519, 0.0
        %v1648 = vmax.f32 %v1520, 0.0
        %v1649 = vmax.f32 %v1521, 0.0
        %v1650 = vmax.f32 %v1522, 0.0
        %v1651 = vmax.f32 %v1523, 0.0
        %v1652 = vmax.f32 %v1524, 0.0
        %v1653 = vmax.f32 %v1525, 0.0
        %v1654 = vmax.f32 %v1526, 0.0
        %v1655 = vmax.f32 %v1527, 0.0
        %v1656 = vmax.f32 %v1528, 0.0
        %v1657 = vmax.f32 %v1529, 0.0
        %v1658 = vmax.f32 %v1530, 0.0
        %v1659 = vmax.f32 %v1531, 0.0
        %v1660 = vmax.f32 %v1532, 0.0
        %v1661 = vmax.f32 %v1533, 0.0
        %v1662 = vmax.f32 %v1534, 0.0
        %v1663 = vmax.f32 %v1535, 0.0
        %v1664 = vmax.f32 %v1536, 0.0
        %v1665 = vmax.f32 %v1537, 0.0
        %v1666 = vmax.f32 %v1538, 0.0
        %v1667 = vmax.f32 %v1539, 0.0
        %v1668 = vmax.f32 %v1540, 0.0
        %v1669 = vmax.f32 %v1541, 0.0
        %v1670 = vmax.f32 %v1542, 0.0
        %v1671 = vmax.f32 %v1543, 0.0
        %v1672 = vmax.f32 %v1544, 0.0
        %v1673 = vmax.f32 %v1545, 0.0
        %v1674 = vmax.f32 %v1546, 0.0
        %v1675 = vmax.f32 %v1547, 0.0
        %v1676 = vmax.f32 %v1548, 0.0
        %v1677 = vmax.f32 %v1549, 0.0
        %v1678 = vmax.f32 %v1550, 0.0
        %v1679 = vmax.f32 %v1551, 0.0
        %v1680 = vmax.f32 %v1552, 0.0
        %v1681 = vmax.f32 %v1553, 0.0
        %v1682 = vmax.f32 %v1554, 0.0
        %v1683 = vmax.f32 %v1555, 0.0
        %v1684 = vmax.f32 %v1556, 0.0
        %v1685 = vmax.f32 %v1557, 0.0
        %v1686 = vmax.f32 %v1558, 0.0
        %v1687 = vmax.f32 %v1559, 0.0
        %v1688 = vmax.f32 %v1560, 0.0
        %v1689 = vmax.f32 %v1561, 0.0
        %v1690 = vmax.f32 %v1562, 0.0
        %v1691 = vmax.f32 %v1563, 0.0
        %v1692 = vmax.f32 %v1564, 0.0
        %v1693 = vmax.f32 %v1565, 0.0
        %v1694 = vmax.f32 %v1566, 0.0
        %v1695 = vmax.f32 %v1567, 0.0
        %v1696 = vmax.f32 %v1568, 0.0
        %v1697 = vmax.f32 %v1569, 0.0
        %v1698 = vmax.f32 %v1570, 0.0
        %v1699 = vmax.f32 %v1571, 0.0
        %v1700 = vmax.f32 %v1572, 0.0
        %v1701 = vmax.f32 %v1573, 0.0
        %v1702 = vmax.f32 %v1574, 0.0
        %v1703 = vmax.f32 %v1575, 0.0
        %v1704 = vmax.f32 %v1576, 0.0
        %v1705 = vmax.f32 %v1577, 0.0
        %v1706 = vmax.f32 %v1578, 0.0
        %v1707 = vmax.f32 %v1579, 0.0
        %v1708 = vmax.f32 %v1580, 0.0
        %v1709 = vmax.f32 %v1581, 0.0
        %v1710 = vmax.f32 %v1582, 0.0
        %v1711 = vmax.f32 %v1583, 0.0
        %v1712 = vmax.f32 %v1584, 0.0
        %v1713 = vmax.f32 %v1585, 0.0
        %v1714 = vmax.f32 %v1586, 0.0
        %v1715 = vmax.f32 %v1587, 0.0
        %v1716 = vmax.f32 %v1588, 0.0
        %v1717 = vmax.f32 %v1589, 0.0
        %v1718 = vmax.f32 %v1590, 0.0
        %v1719 = vmax.f32 %v1591, 0.0
        %v1720 = vmax.f32 %v1592, 0.0
        %v1721 = vmax.f32 %v1593, 0.0
        %v1722 = vmax.f32 %v1594, 0.0
        %v1723 = vmax.f32 %v1595, 0.0
        %v1724 = vmax.f32 %v1596, 0.0
        %v1725 = vmax.f32 %v1597, 0.0
        %v1726 = vmax.f32 %v1598, 0.0
        %v1727 = vmax.f32 %v1599, 0.0
        %v1728 = vmax.f32 %v1600, 0.0
        %v1729 = vmax.f32 %v1601, 0.0
        %v1730 = vmax.f32 %v1602, 0.0
        %v1731 = vmax.f32 %v1603, 0.0
        %v1732 = vmax.f32 %v1604, 0.0
        %v1733 = vmax.f32 %v1605, 0.0
        %v1734 = vmax.f32 %v1606, 0.0
        %v1735 = vmax.f32 %v1607, 0.0
        %v1736 = vmax.f32 %v1608, 0.0
        %v1737 = vmax.f32 %v1609, 0.0
        %v1738 = vmax.f32 %v1610, 0.0
        %v1739 = vmax.f32 %v1611, 0.0
        %v1740 = vmax.f32 %v1612, 0.0
        %v1741 = vmax.f32 %v1613, 0.0
        %v1742 = vmax.f32 %v1614, 0.0
        %v1743 = vmax.f32 %v1615, 0.0
        %v1744 = vmax.f32 %v1616, 0.0
        %v1745 = vmax.f32 %v1617, 0.0
        %v1746 = vmax.f32 %v1618, 0.0
        %v1747 = vmax.f32 %v1619, 0.0
        %v1748 = vmax.f32 %v1620, 0.0
        %v1749 = vmax.f32 %v1621, 0.0
        %v1750 = vmax.f32 %v1622, 0.0
        %v1751 = vpack.c.bf16 %v1625, %v1623
        %v1752 = vpack.c.bf16 %v1626, %v1624
        %v1753 = vpack.c.bf16 %v1629, %v1627
        %v1754 = vpack.c.bf16 %v1630, %v1628
        %v1755 = vpack.c.bf16 %v1633, %v1631
        %v1756 = vpack.c.bf16 %v1634, %v1632
        %v1757 = vpack.c.bf16 %v1637, %v1635
        %v1758 = vpack.c.bf16 %v1638, %v1636
        %v1759 = vpack.c.bf16 %v1641, %v1639
        %v1760 = vpack.c.bf16 %v1642, %v1640
        %v1761 = vpack.c.bf16 %v1645, %v1643
        %v1762 = vpack.c.bf16 %v1646, %v1644
        %v1763 = vpack.c.bf16 %v1649, %v1647
        %v1764 = vpack.c.bf16 %v1650, %v1648
        %v1765 = vpack.c.bf16 %v1653, %v1651
        %v1766 = vpack.c.bf16 %v1654, %v1652
        %v1767 = vpack.c.bf16 %v1657, %v1655
        %v1768 = vpack.c.bf16 %v1658, %v1656
        %v1769 = vpack.c.bf16 %v1661, %v1659
        %v1770 = vpack.c.bf16 %v1662, %v1660
        %v1771 = vpack.c.bf16 %v1665, %v1663
        %v1772 = vpack.c.bf16 %v1666, %v1664
        %v1773 = vpack.c.bf16 %v1669, %v1667
        %v1774 = vpack.c.bf16 %v1670, %v1668
        %v1775 = vpack.c.bf16 %v1673, %v1671
        %v1776 = vpack.c.bf16 %v1674, %v1672
        %v1777 = vpack.c.bf16 %v1677, %v1675
        %v1778 = vpack.c.bf16 %v1678, %v1676
        %v1779 = vpack.c.bf16 %v1681, %v1679
        %v1780 = vpack.c.bf16 %v1682, %v1680
        %v1781 = vpack.c.bf16 %v1685, %v1683
        %v1782 = vpack.c.bf16 %v1686, %v1684
        %v1783 = vpack.c.bf16 %v1689, %v1687
        %v1784 = vpack.c.bf16 %v1690, %v1688
        %v1785 = vpack.c.bf16 %v1693, %v1691
        %v1786 = vpack.c.bf16 %v1694, %v1692
        %v1787 = vpack.c.bf16 %v1697, %v1695
        %v1788 = vpack.c.bf16 %v1698, %v1696
        %v1789 = vpack.c.bf16 %v1701, %v1699
        %v1790 = vpack.c.bf16 %v1702, %v1700
        %v1791 = vpack.c.bf16 %v1705, %v1703
        %v1792 = vpack.c.bf16 %v1706, %v1704
        %v1793 = vpack.c.bf16 %v1709, %v1707
        %v1794 = vpack.c.bf16 %v1710, %v1708
        %v1795 = vpack.c.bf16 %v1713, %v1711
        %v1796 = vpack.c.bf16 %v1714, %v1712
        %v1797 = vpack.c.bf16 %v1717, %v1715
        %v1798 = vpack.c.bf16 %v1718, %v1716
        %v1799 = vpack.c.bf16 %v1721, %v1719
        %v1800 = vpack.c.bf16 %v1722, %v1720
        %v1801 = vpack.c.bf16 %v1725, %v1723
        %v1802 = vpack.c.bf16 %v1726, %v1724
        %v1803 = vpack.c.bf16 %v1729, %v1727
        %v1804 = vpack.c.bf16 %v1730, %v1728
        %v1805 = vpack.c.bf16 %v1733, %v1731
        %v1806 = vpack.c.bf16 %v1734, %v1732
        %v1807 = vpack.c.bf16 %v1737, %v1735
        %v1808 = vpack.c.bf16 %v1738, %v1736
        %v1809 = vpack.c.bf16 %v1741, %v1739
        %v1810 = vpack.c.bf16 %v1742, %v1740
        %v1811 = vpack.c.bf16 %v1745, %v1743
        %v1812 = vpack.c.bf16 %v1746, %v1744
        %v1813 = vpack.c.bf16 %v1749, %v1747
        %v1814 = vpack.c.bf16 %v1750, %v1748
        %v1815 = vld [vmem:[#allocation7] sm:$0xff]
        %v1816 = vld [vmem:[#allocation7 + $0x8] sm:$0xff]
        %v1817 = vld [vmem:[#allocation7 + $0x10] sm:$0xff]
        %v1818 = vld [vmem:[#allocation7 + $0x18] sm:$0xff]
        %v1819 = vld [vmem:[#allocation7 + $0x20] sm:$0xff]
        %v1820 = vld [vmem:[#allocation7 + $0x28] sm:$0xff]
        %v1821 = vld [vmem:[#allocation7 + $0x30] sm:$0xff]
        %v1822 = vld [vmem:[#allocation7 + $0x38] sm:$0xff]
        %v1823 = vld [vmem:[#allocation7 + $0x40] sm:$0xff]
        %v1824 = vld [vmem:[#allocation7 + $0x48] sm:$0xff]
        %v1825 = vld [vmem:[#allocation7 + $0x50] sm:$0xff]
        %v1826 = vld [vmem:[#allocation7 + $0x58] sm:$0xff]
        %v1827 = vld [vmem:[#allocation7 + $0x60] sm:$0xff]
        %v1828 = vld [vmem:[#allocation7 + $0x68] sm:$0xff]
        %v1829 = vld [vmem:[#allocation7 + $0x70] sm:$0xff]
        %v1830 = vld [vmem:[#allocation7 + $0x78] sm:$0xff]
        %v1831 = vld [vmem:[#allocation7 + $0x80] sm:$0xff]
        %v1832 = vld [vmem:[#allocation7 + $0x88] sm:$0xff]
        %v1833 = vld [vmem:[#allocation7 + $0x90] sm:$0xff]
        %v1834 = vld [vmem:[#allocation7 + $0x98] sm:$0xff]
        %v1835 = vld [vmem:[#allocation7 + $0xa0] sm:$0xff]
        %v1836 = vld [vmem:[#allocation7 + $0xa8] sm:$0xff]
        %v1837 = vld [vmem:[#allocation7 + $0xb0] sm:$0xff]
        %v1838 = vld [vmem:[#allocation7 + $0xb8] sm:$0xff]
        %v1839 = vld [vmem:[#allocation7 + $0xc0] sm:$0xff]
        %v1840 = vld [vmem:[#allocation7 + $0xc8] sm:$0xff]
        %v1841 = vld [vmem:[#allocation7 + $0xd0] sm:$0xff]
        %v1842 = vld [vmem:[#allocation7 + $0xd8] sm:$0xff]
        %v1843 = vld [vmem:[#allocation7 + $0xe0] sm:$0xff]
        %v1844 = vld [vmem:[#allocation7 + $0xe8] sm:$0xff]
        %v1845 = vld [vmem:[#allocation7 + $0xf0] sm:$0xff]
        %v1846 = vld [vmem:[#allocation7 + $0xf8] sm:$0xff]
        %s1847 = scalar_lea.vmem [#allocation8], 1
        %v1848 = vld [vmem:[%s1847] ss:$8 sm:$0x3]
        %v1850 = vlaneseq
        %v1851 = vshrl.u32 %v1850, 7
        %v1852 = vsub.s32 0, %v1851
        %v1853 = vrot.slane %v1848, %v1852
        %v1854 = vlaneseq
        %v1855 = vshrl.u32 %v1854, 7
        %v1856 = vsub.s32 1, %v1855
        %v1857 = vrot.slane %v1848, %v1856
        %v1892 = vunpack.c.l.b16 %v1815
        %v1893 = vunpack.c.h.b16 %v1815
        %v1894 = vunpack.c.l.b16 %v1816
        %v1895 = vunpack.c.h.b16 %v1816
        %v1896 = vunpack.c.l.b16 %v1817
        %v1897 = vunpack.c.h.b16 %v1817
        %v1898 = vunpack.c.l.b16 %v1818
        %v1899 = vunpack.c.h.b16 %v1818
        %v1900 = vunpack.c.l.b16 %v1819
        %v1901 = vunpack.c.h.b16 %v1819
        %v1902 = vunpack.c.l.b16 %v1820
        %v1903 = vunpack.c.h.b16 %v1820
        %v1904 = vunpack.c.l.b16 %v1821
        %v1905 = vunpack.c.h.b16 %v1821
        %v1906 = vunpack.c.l.b16 %v1822
        %v1907 = vunpack.c.h.b16 %v1822
        %v1908 = vunpack.c.l.b16 %v1823
        %v1909 = vunpack.c.h.b16 %v1823
        %v1910 = vunpack.c.l.b16 %v1824
        %v1911 = vunpack.c.h.b16 %v1824
        %v1912 = vunpack.c.l.b16 %v1825
        %v1913 = vunpack.c.h.b16 %v1825
        %v1914 = vunpack.c.l.b16 %v1826
        %v1915 = vunpack.c.h.b16 %v1826
        %v1916 = vunpack.c.l.b16 %v1827
        %v1917 = vunpack.c.h.b16 %v1827
        %v1918 = vunpack.c.l.b16 %v1828
        %v1919 = vunpack.c.h.b16 %v1828
        %v1920 = vunpack.c.l.b16 %v1829
        %v1921 = vunpack.c.h.b16 %v1829
        %v1922 = vunpack.c.l.b16 %v1830
        %v1923 = vunpack.c.h.b16 %v1830
        %v1924 = vunpack.c.l.b16 %v1831
        %v1925 = vunpack.c.h.b16 %v1831
        %v1926 = vunpack.c.l.b16 %v1832
        %v1927 = vunpack.c.h.b16 %v1832
        %v1928 = vunpack.c.l.b16 %v1833
        %v1929 = vunpack.c.h.b16 %v1833
        %v1930 = vunpack.c.l.b16 %v1834
        %v1931 = vunpack.c.h.b16 %v1834
        %v1932 = vunpack.c.l.b16 %v1835
        %v1933 = vunpack.c.h.b16 %v1835
        %v1934 = vunpack.c.l.b16 %v1836
        %v1935 = vunpack.c.h.b16 %v1836
        %v1936 = vunpack.c.l.b16 %v1837
        %v1937 = vunpack.c.h.b16 %v1837
        %v1938 = vunpack.c.l.b16 %v1838
        %v1939 = vunpack.c.h.b16 %v1838
        %v1940 = vunpack.c.l.b16 %v1839
        %v1941 = vunpack.c.h.b16 %v1839
        %v1942 = vunpack.c.l.b16 %v1840
        %v1943 = vunpack.c.h.b16 %v1840
        %v1944 = vunpack.c.l.b16 %v1841
        %v1945 = vunpack.c.h.b16 %v1841
        %v1946 = vunpack.c.l.b16 %v1842
        %v1947 = vunpack.c.h.b16 %v1842
        %v1948 = vunpack.c.l.b16 %v1843
        %v1949 = vunpack.c.h.b16 %v1843
        %v1950 = vunpack.c.l.b16 %v1844
        %v1951 = vunpack.c.h.b16 %v1844
        %v1952 = vunpack.c.l.b16 %v1845
        %v1953 = vunpack.c.h.b16 %v1845
        %v1954 = vunpack.c.l.b16 %v1846
        %v1955 = vunpack.c.h.b16 %v1846
        %v1956 = vpack.c.b16 %v1894, %v1892
        %v1957 = vpack.c.b16 %v1895, %v1893
        %v1958 = vpack.c.b16 %v1898, %v1896
        %v1959 = vpack.c.b16 %v1899, %v1897
        %v1960 = vpack.c.b16 %v1902, %v1900
        %v1961 = vpack.c.b16 %v1903, %v1901
        %v1962 = vpack.c.b16 %v1906, %v1904
        %v1963 = vpack.c.b16 %v1907, %v1905
        %v1964 = vpack.c.b16 %v1910, %v1908
        %v1965 = vpack.c.b16 %v1911, %v1909
        %v1966 = vpack.c.b16 %v1914, %v1912
        %v1967 = vpack.c.b16 %v1915, %v1913
        %v1968 = vpack.c.b16 %v1918, %v1916
        %v1969 = vpack.c.b16 %v1919, %v1917
        %v1970 = vpack.c.b16 %v1922, %v1920
        %v1971 = vpack.c.b16 %v1923, %v1921
        %v1972 = vpack.c.b16 %v1926, %v1924
        %v1973 = vpack.c.b16 %v1927, %v1925
        %v1974 = vpack.c.b16 %v1930, %v1928
        %v1975 = vpack.c.b16 %v1931, %v1929
        %v1976 = vpack.c.b16 %v1934, %v1932
        %v1977 = vpack.c.b16 %v1935, %v1933
        %v1978 = vpack.c.b16 %v1938, %v1936
        %v1979 = vpack.c.b16 %v1939, %v1937
        %v1980 = vpack.c.b16 %v1942, %v1940
        %v1981 = vpack.c.b16 %v1943, %v1941
        %v1982 = vpack.c.b16 %v1946, %v1944
        %v1983 = vpack.c.b16 %v1947, %v1945
        %v1984 = vpack.c.b16 %v1950, %v1948
        %v1985 = vpack.c.b16 %v1951, %v1949
        %v1986 = vpack.c.b16 %v1954, %v1952
        %v1987 = vpack.c.b16 %v1955, %v1953
        %2020 = vmatprep.subr.bf16.mxu0 %v1957
        %2021 = vmatpush1.bf16.msra.mxu0 %v1956
        %2022 = vmatprep.subr.bf16.mxu0 %v1959
        %2023 = vmatpush1.bf16.msra.mxu0 %v1958
        %2024 = vmatprep.subr.bf16.mxu0 %v1961
        %2025 = vmatpush1.bf16.msra.mxu0 %v1960
        %2026 = vmatprep.subr.bf16.mxu0 %v1963
        %2027 = vmatpush1.bf16.msra.mxu0 %v1962
        %2028 = vmatprep.subr.bf16.mxu0 %v1965
        %2029 = vmatpush1.bf16.msra.mxu0 %v1964
        %2030 = vmatprep.subr.bf16.mxu0 %v1967
        %2031 = vmatpush1.bf16.msra.mxu0 %v1966
        %2032 = vmatprep.subr.bf16.mxu0 %v1969
        %2033 = vmatpush1.bf16.msra.mxu0 %v1968
        %2034 = vmatprep.subr.bf16.mxu0 %v1971
        %2035 = vmatpush1.bf16.msra.mxu0 %v1970
        %2036 = vmatprep.subr.bf16.mxu0 %v1973
        %2037 = vmatpush1.bf16.msra.mxu0 %v1972
        %2038 = vmatprep.subr.bf16.mxu0 %v1975
        %2039 = vmatpush1.bf16.msra.mxu0 %v1974
        %2040 = vmatprep.subr.bf16.mxu0 %v1977
        %2041 = vmatpush1.bf16.msra.mxu0 %v1976
        %2042 = vmatprep.subr.bf16.mxu0 %v1979
        %2043 = vmatpush1.bf16.msra.mxu0 %v1978
        %2044 = vmatprep.subr.bf16.mxu0 %v1981
        %2045 = vmatpush1.bf16.msra.mxu0 %v1980
        %2046 = vmatprep.subr.bf16.mxu0 %v1983
        %2047 = vmatpush1.bf16.msra.mxu0 %v1982
        %2048 = vmatprep.subr.bf16.mxu0 %v1985
        %2049 = vmatpush1.bf16.msra.mxu0 %v1984
        %2050 = vmatprep.subr.bf16.mxu0 %v1987
        %2051 = vmatpush1.bf16.msra.mxu0 %v1986
        %2052 = vmatprep.mubr.bf16.mxu0 %v1752
        %2053 = vmatmul.mubr.bf16.gmra.mrb[0].mxu0 %v1751
        %v2054 = vpop.f32.mrb[0].mxu0
        %v2055 = vadd.f32 %v1853, %v2054
        %v2056 = vpop.f32.mrb[0].mxu0
        %v2057 = vadd.f32 %v1857, %v2056
        %v2058 = vpop.f32.mrb[0].mxu0
        %v2059 = vadd.f32 %v1853, %v2058
        %v2060 = vpop.f32.mrb[0].mxu0
        %v2061 = vadd.f32 %v1857, %v2060
        %2062 = vmatprep.mubr.bf16.mxu0 %v1754
        %2063 = vmatmul.mubr.bf16.gmra.mrb[0].mxu0 %v1753
        %v2064 = vpop.f32.mrb[0].mxu0
        %v2065 = vadd.f32 %v1853, %v2064
        %v2066 = vpop.f32.mrb[0].mxu0
        %v2067 = vadd.f32 %v1857, %v2066
        %v2068 = vpop.f32.mrb[0].mxu0
        %v2069 = vadd.f32 %v1853, %v2068
        %v2070 = vpop.f32.mrb[0].mxu0
        %v2071 = vadd.f32 %v1857, %v2070
        %2072 = vmatprep.mubr.bf16.mxu0 %v1756
        %2073 = vmatmul.mubr.bf16.gmra.mrb[0].mxu0 %v1755
        %v2074 = vpop.f32.mrb[0].mxu0
        %v2075 = vadd.f32 %v1853, %v2074
        %v2076 = vpop.f32.mrb[0].mxu0
        %v2077 = vadd.f32 %v1857, %v2076
        %v2078 = vpop.f32.mrb[0].mxu0
        %v2079 = vadd.f32 %v1853, %v2078
        %v2080 = vpop.f32.mrb[0].mxu0
        %v2081 = vadd.f32 %v1857, %v2080
        %2082 = vmatprep.mubr.bf16.mxu0 %v1758
        %2083 = vmatmul.mubr.bf16.gmra.mrb[0].mxu0 %v1757
        %v2084 = vpop.f32.mrb[0].mxu0
        %v2085 = vadd.f32 %v1853, %v2084
        %v2086 = vpop.f32.mrb[0].mxu0
        %v2087 = vadd.f32 %v1857, %v2086
        %v2088 = vpop.f32.mrb[0].mxu0
        %v2089 = vadd.f32 %v1853, %v2088
        %v2090 = vpop.f32.mrb[0].mxu0
        %v2091 = vadd.f32 %v1857, %v2090
        %2092 = vmatprep.mubr.bf16.mxu0 %v1760
        %2093 = vmatmul.mubr.bf16.gmra.mrb[0].mxu0 %v1759
        %v2094 = vpop.f32.mrb[0].mxu0
        %v2095 = vadd.f32 %v1853, %v2094
        %v2096 = vpop.f32.mrb[0].mxu0
        %v2097 = vadd.f32 %v1857, %v2096
        %v2098 = vpop.f32.mrb[0].mxu0
        %v2099 = vadd.f32 %v1853, %v2098
        %v2100 = vpop.f32.mrb[0].mxu0
        %v2101 = vadd.f32 %v1857, %v2100
        %2102 = vmatprep.mubr.bf16.mxu0 %v1762
        %2103 = vmatmul.mubr.bf16.gmra.mrb[0].mxu0 %v1761
        %v2104 = vpop.f32.mrb[0].mxu0
        %v2105 = vadd.f32 %v1853, %v2104
        %v2106 = vpop.f32.mrb[0].mxu0
        %v2107 = vadd.f32 %v1857, %v2106
        %v2108 = vpop.f32.mrb[0].mxu0
        %v2109 = vadd.f32 %v1853, %v2108
        %v2110 = vpop.f32.mrb[0].mxu0
        %v2111 = vadd.f32 %v1857, %v2110
        %2112 = vmatprep.mubr.bf16.mxu0 %v1764
        %2113 = vmatmul.mubr.bf16.gmra.mrb[0].mxu0 %v1763
        %v2114 = vpop.f32.mrb[0].mxu0
        %v2115 = vadd.f32 %v1853, %v2114
        %v2116 = vpop.f32.mrb[0].mxu0
        %v2117 = vadd.f32 %v1857, %v2116
        %v2118 = vpop.f32.mrb[0].mxu0
        %v2119 = vadd.f32 %v1853, %v2118
        %v2120 = vpop.f32.mrb[0].mxu0
        %v2121 = vadd.f32 %v1857, %v2120
        %2122 = vmatprep.mubr.bf16.mxu0 %v1766
        %2123 = vmatmul.mubr.bf16.gmra.mrb[0].mxu0 %v1765
        %v2124 = vpop.f32.mrb[0].mxu0
        %v2125 = vadd.f32 %v1853, %v2124
        %v2126 = vpop.f32.mrb[0].mxu0
        %v2127 = vadd.f32 %v1857, %v2126
        %v2128 = vpop.f32.mrb[0].mxu0
        %v2129 = vadd.f32 %v1853, %v2128
        %v2130 = vpop.f32.mrb[0].mxu0
        %v2131 = vadd.f32 %v1857, %v2130
        %2132 = vmatprep.mubr.bf16.mxu0 %v1768
        %2133 = vmatmul.mubr.bf16.gmra.mrb[0].mxu0 %v1767
        %v2134 = vpop.f32.mrb[0].mxu0
        %v2135 = vadd.f32 %v1853, %v2134
        %v2136 = vpop.f32.mrb[0].mxu0
        %v2137 = vadd.f32 %v1857, %v2136
        %v2138 = vpop.f32.mrb[0].mxu0
        %v2139 = vadd.f32 %v1853, %v2138
        %v2140 = vpop.f32.mrb[0].mxu0
        %v2141 = vadd.f32 %v1857, %v2140
        %2142 = vmatprep.mubr.bf16.mxu0 %v1770
        %2143 = vmatmul.mubr.bf16.gmra.mrb[0].mxu0 %v1769
        %v2144 = vpop.f32.mrb[0].mxu0
        %v2145 = vadd.f32 %v1853, %v2144
        %v2146 = vpop.f32.mrb[0].mxu0
        %v2147 = vadd.f32 %v1857, %v2146
        %v2148 = vpop.f32.mrb[0].mxu0
        %v2149 = vadd.f32 %v1853, %v2148
        %v2150 = vpop.f32.mrb[0].mxu0
        %v2151 = vadd.f32 %v1857, %v2150
        %2152 = vmatprep.mubr.bf16.mxu0 %v1772
        %2153 = vmatmul.mubr.bf16.gmra.mrb[0].mxu0 %v1771
        %v2154 = vpop.f32.mrb[0].mxu0
        %v2155 = vadd.f32 %v1853, %v2154
        %v2156 = vpop.f32.mrb[0].mxu0
        %v2157 = vadd.f32 %v1857, %v2156
        %v2158 = vpop.f32.mrb[0].mxu0
        %v2159 = vadd.f32 %v1853, %v2158
        %v2160 = vpop.f32.mrb[0].mxu0
        %v2161 = vadd.f32 %v1857, %v2160
        %2162 = vmatprep.mubr.bf16.mxu0 %v1774
        %2163 = vmatmul.mubr.bf16.gmra.mrb[0].mxu0 %v1773
        %v2164 = vpop.f32.mrb[0].mxu0
        %v2165 = vadd.f32 %v1853, %v2164
        %v2166 = vpop.f32.mrb[0].mxu0
        %v2167 = vadd.f32 %v1857, %v2166
        %v2168 = vpop.f32.mrb[0].mxu0
        %v2169 = vadd.f32 %v1853, %v2168
        %v2170 = vpop.f32.mrb[0].mxu0
        %v2171 = vadd.f32 %v1857, %v2170
        %2172 = vmatprep.mubr.bf16.mxu0 %v1776
        %2173 = vmatmul.mubr.bf16.gmra.mrb[0].mxu0 %v1775
        %v2174 = vpop.f32.mrb[0].mxu0
        %v2175 = vadd.f32 %v1853, %v2174
        %v2176 = vpop.f32.mrb[0].mxu0
        %v2177 = vadd.f32 %v1857, %v2176
        %v2178 = vpop.f32.mrb[0].mxu0
        %v2179 = vadd.f32 %v1853, %v2178
        %v2180 = vpop.f32.mrb[0].mxu0
        %v2181 = vadd.f32 %v1857, %v2180
        %2182 = vmatprep.mubr.bf16.mxu0 %v1778
        %2183 = vmatmul.mubr.bf16.gmra.mrb[0].mxu0 %v1777
        %v2184 = vpop.f32.mrb[0].mxu0
        %v2185 = vadd.f32 %v1853, %v2184
        %v2186 = vpop.f32.mrb[0].mxu0
        %v2187 = vadd.f32 %v1857, %v2186
        %v2188 = vpop.f32.mrb[0].mxu0
        %v2189 = vadd.f32 %v1853, %v2188
        %v2190 = vpop.f32.mrb[0].mxu0
        %v2191 = vadd.f32 %v1857, %v2190
        %2192 = vmatprep.mubr.bf16.mxu0 %v1780
        %2193 = vmatmul.mubr.bf16.gmra.mrb[0].mxu0 %v1779
        %v2194 = vpop.f32.mrb[0].mxu0
        %v2195 = vadd.f32 %v1853, %v2194
        %v2196 = vpop.f32.mrb[0].mxu0
        %v2197 = vadd.f32 %v1857, %v2196
        %v2198 = vpop.f32.mrb[0].mxu0
        %v2199 = vadd.f32 %v1853, %v2198
        %v2200 = vpop.f32.mrb[0].mxu0
        %v2201 = vadd.f32 %v1857, %v2200
        %2202 = vmatprep.mubr.bf16.mxu0 %v1782
        %2203 = vmatmul.mubr.bf16.gmra.mrb[0].mxu0 %v1781
        %v2204 = vpop.f32.mrb[0].mxu0
        %v2205 = vadd.f32 %v1853, %v2204
        %v2206 = vpop.f32.mrb[0].mxu0
        %v2207 = vadd.f32 %v1857, %v2206
        %v2208 = vpop.f32.mrb[0].mxu0
        %v2209 = vadd.f32 %v1853, %v2208
        %v2210 = vpop.f32.mrb[0].mxu0
        %v2211 = vadd.f32 %v1857, %v2210
        %2212 = vmatprep.mubr.bf16.mxu0 %v1784
        %2213 = vmatmul.mubr.bf16.gmra.mrb[0].mxu0 %v1783
        %v2214 = vpop.f32.mrb[0].mxu0
        %v2215 = vadd.f32 %v1853, %v2214
        %v2216 = vpop.f32.mrb[0].mxu0
        %v2217 = vadd.f32 %v1857, %v2216
        %v2218 = vpop.f32.mrb[0].mxu0
        %v2219 = vadd.f32 %v1853, %v2218
        %v2220 = vpop.f32.mrb[0].mxu0
        %v2221 = vadd.f32 %v1857, %v2220
        %2222 = vmatprep.mubr.bf16.mxu0 %v1786
        %2223 = vmatmul.mubr.bf16.gmra.mrb[0].mxu0 %v1785
        %v2224 = vpop.f32.mrb[0].mxu0
        %v2225 = vadd.f32 %v1853, %v2224
        %v2226 = vpop.f32.mrb[0].mxu0
        %v2227 = vadd.f32 %v1857, %v2226
        %v2228 = vpop.f32.mrb[0].mxu0
        %v2229 = vadd.f32 %v1853, %v2228
        %v2230 = vpop.f32.mrb[0].mxu0
        %v2231 = vadd.f32 %v1857, %v2230
        %2232 = vmatprep.mubr.bf16.mxu0 %v1788
        %2233 = vmatmul.mubr.bf16.gmra.mrb[0].mxu0 %v1787
        %v2234 = vpop.f32.mrb[0].mxu0
        %v2235 = vadd.f32 %v1853, %v2234
        %v2236 = vpop.f32.mrb[0].mxu0
        %v2237 = vadd.f32 %v1857, %v2236
        %v2238 = vpop.f32.mrb[0].mxu0
        %v2239 = vadd.f32 %v1853, %v2238
        %v2240 = vpop.f32.mrb[0].mxu0
        %v2241 = vadd.f32 %v1857, %v2240
        %2242 = vmatprep.mubr.bf16.mxu0 %v1790
        %2243 = vmatmul.mubr.bf16.gmra.mrb[0].mxu0 %v1789
        %v2244 = vpop.f32.mrb[0].mxu0
        %v2245 = vadd.f32 %v1853, %v2244
        %v2246 = vpop.f32.mrb[0].mxu0
        %v2247 = vadd.f32 %v1857, %v2246
        %v2248 = vpop.f32.mrb[0].mxu0
        %v2249 = vadd.f32 %v1853, %v2248
        %v2250 = vpop.f32.mrb[0].mxu0
        %v2251 = vadd.f32 %v1857, %v2250
        %2252 = vmatprep.mubr.bf16.mxu0 %v1792
        %2253 = vmatmul.mubr.bf16.gmra.mrb[0].mxu0 %v1791
        %v2254 = vpop.f32.mrb[0].mxu0
        %v2255 = vadd.f32 %v1853, %v2254
        %v2256 = vpop.f32.mrb[0].mxu0
        %v2257 = vadd.f32 %v1857, %v2256
        %v2258 = vpop.f32.mrb[0].mxu0
        %v2259 = vadd.f32 %v1853, %v2258
        %v2260 = vpop.f32.mrb[0].mxu0
        %v2261 = vadd.f32 %v1857, %v2260
        %2262 = vmatprep.mubr.bf16.mxu0 %v1794
        %2263 = vmatmul.mubr.bf16.gmra.mrb[0].mxu0 %v1793
        %v2264 = vpop.f32.mrb[0].mxu0
        %v2265 = vadd.f32 %v1853, %v2264
        %v2266 = vpop.f32.mrb[0].mxu0
        %v2267 = vadd.f32 %v1857, %v2266
        %v2268 = vpop.f32.mrb[0].mxu0
        %v2269 = vadd.f32 %v1853, %v2268
        %v2270 = vpop.f32.mrb[0].mxu0
        %v2271 = vadd.f32 %v1857, %v2270
        %2272 = vmatprep.mubr.bf16.mxu0 %v1796
        %2273 = vmatmul.mubr.bf16.gmra.mrb[0].mxu0 %v1795
        %v2274 = vpop.f32.mrb[0].mxu0
        %v2275 = vadd.f32 %v1853, %v2274
        %v2276 = vpop.f32.mrb[0].mxu0
        %v2277 = vadd.f32 %v1857, %v2276
        %v2278 = vpop.f32.mrb[0].mxu0
        %v2279 = vadd.f32 %v1853, %v2278
        %v2280 = vpop.f32.mrb[0].mxu0
        %v2281 = vadd.f32 %v1857, %v2280
        %2282 = vmatprep.mubr.bf16.mxu0 %v1798
        %2283 = vmatmul.mubr.bf16.gmra.mrb[0].mxu0 %v1797
        %v2284 = vpop.f32.mrb[0].mxu0
        %v2285 = vadd.f32 %v1853, %v2284
        %v2286 = vpop.f32.mrb[0].mxu0
        %v2287 = vadd.f32 %v1857, %v2286
        %v2288 = vpop.f32.mrb[0].mxu0
        %v2289 = vadd.f32 %v1853, %v2288
        %v2290 = vpop.f32.mrb[0].mxu0
        %v2291 = vadd.f32 %v1857, %v2290
        %2292 = vmatprep.mubr.bf16.mxu0 %v1800
        %2293 = vmatmul.mubr.bf16.gmra.mrb[0].mxu0 %v1799
        %v2294 = vpop.f32.mrb[0].mxu0
        %v2295 = vadd.f32 %v1853, %v2294
        %v2296 = vpop.f32.mrb[0].mxu0
        %v2297 = vadd.f32 %v1857, %v2296
        %v2298 = vpop.f32.mrb[0].mxu0
        %v2299 = vadd.f32 %v1853, %v2298
        %v2300 = vpop.f32.mrb[0].mxu0
        %v2301 = vadd.f32 %v1857, %v2300
        %2302 = vmatprep.mubr.bf16.mxu0 %v1802
        %2303 = vmatmul.mubr.bf16.gmra.mrb[0].mxu0 %v1801
        %v2304 = vpop.f32.mrb[0].mxu0
        %v2305 = vadd.f32 %v1853, %v2304
        %v2306 = vpop.f32.mrb[0].mxu0
        %v2307 = vadd.f32 %v1857, %v2306
        %v2308 = vpop.f32.mrb[0].mxu0
        %v2309 = vadd.f32 %v1853, %v2308
        %v2310 = vpop.f32.mrb[0].mxu0
        %v2311 = vadd.f32 %v1857, %v2310
        %2312 = vmatprep.mubr.bf16.mxu0 %v1804
        %2313 = vmatmul.mubr.bf16.gmra.mrb[0].mxu0 %v1803
        %v2314 = vpop.f32.mrb[0].mxu0
        %v2315 = vadd.f32 %v1853, %v2314
        %v2316 = vpop.f32.mrb[0].mxu0
        %v2317 = vadd.f32 %v1857, %v2316
        %v2318 = vpop.f32.mrb[0].mxu0
        %v2319 = vadd.f32 %v1853, %v2318
        %v2320 = vpop.f32.mrb[0].mxu0
        %v2321 = vadd.f32 %v1857, %v2320
        %2322 = vmatprep.mubr.bf16.mxu0 %v1806
        %2323 = vmatmul.mubr.bf16.gmra.mrb[0].mxu0 %v1805
        %v2324 = vpop.f32.mrb[0].mxu0
        %v2325 = vadd.f32 %v1853, %v2324
        %v2326 = vpop.f32.mrb[0].mxu0
        %v2327 = vadd.f32 %v1857, %v2326
        %v2328 = vpop.f32.mrb[0].mxu0
        %v2329 = vadd.f32 %v1853, %v2328
        %v2330 = vpop.f32.mrb[0].mxu0
        %v2331 = vadd.f32 %v1857, %v2330
        %2332 = vmatprep.mubr.bf16.mxu0 %v1808
        %2333 = vmatmul.mubr.bf16.gmra.mrb[0].mxu0 %v1807
        %v2334 = vpop.f32.mrb[0].mxu0
        %v2335 = vadd.f32 %v1853, %v2334
        %v2336 = vpop.f32.mrb[0].mxu0
        %v2337 = vadd.f32 %v1857, %v2336
        %v2338 = vpop.f32.mrb[0].mxu0
        %v2339 = vadd.f32 %v1853, %v2338
        %v2340 = vpop.f32.mrb[0].mxu0
        %v2341 = vadd.f32 %v1857, %v2340
        %2342 = vmatprep.mubr.bf16.mxu0 %v1810
        %2343 = vmatmul.mubr.bf16.gmra.mrb[0].mxu0 %v1809
        %v2344 = vpop.f32.mrb[0].mxu0
        %v2345 = vadd.f32 %v1853, %v2344
        %v2346 = vpop.f32.mrb[0].mxu0
        %v2347 = vadd.f32 %v1857, %v2346
        %v2348 = vpop.f32.mrb[0].mxu0
        %v2349 = vadd.f32 %v1853, %v2348
        %v2350 = vpop.f32.mrb[0].mxu0
        %v2351 = vadd.f32 %v1857, %v2350
        %2352 = vmatprep.mubr.bf16.mxu0 %v1812
        %2353 = vmatmul.mubr.bf16.gmra.mrb[0].mxu0 %v1811
        %v2354 = vpop.f32.mrb[0].mxu0
        %v2355 = vadd.f32 %v1853, %v2354
        %v2356 = vpop.f32.mrb[0].mxu0
        %v2357 = vadd.f32 %v1857, %v2356
        %v2358 = vpop.f32.mrb[0].mxu0
        %v2359 = vadd.f32 %v1853, %v2358
        %v2360 = vpop.f32.mrb[0].mxu0
        %v2361 = vadd.f32 %v1857, %v2360
        %2362 = vmatprep.mubr.bf16.mxu0 %v1814
        %2363 = vmatmul.mubr.bf16.gmra.mrb[0].mxu0 %v1813
        %v2364 = vpop.f32.mrb[0].mxu0
        %v2365 = vadd.f32 %v1853, %v2364
        %v2366 = vpop.f32.mrb[0].mxu0
        %v2367 = vadd.f32 %v1857, %v2366
        %v2368 = vpop.f32.mrb[0].mxu0
        %v2369 = vadd.f32 %v1853, %v2368
        %v2370 = vpop.f32.mrb[0].mxu0
        %v2371 = vadd.f32 %v1857, %v2370
        %2372 = vdwg.mxu0
        %v2373 = vmax.f32 %v2055, 0.0
        %v2374 = vmax.f32 %v2057, 0.0
        %v2375 = vmax.f32 %v2059, 0.0
        %v2376 = vmax.f32 %v2061, 0.0
        %v2377 = vmax.f32 %v2065, 0.0
        %v2378 = vmax.f32 %v2067, 0.0
        %v2379 = vmax.f32 %v2069, 0.0
        %v2380 = vmax.f32 %v2071, 0.0
        %v2381 = vmax.f32 %v2075, 0.0
        %v2382 = vmax.f32 %v2077, 0.0
        %v2383 = vmax.f32 %v2079, 0.0
        %v2384 = vmax.f32 %v2081, 0.0
        %v2385 = vmax.f32 %v2085, 0.0
        %v2386 = vmax.f32 %v2087, 0.0
        %v2387 = vmax.f32 %v2089, 0.0
        %v2388 = vmax.f32 %v2091, 0.0
        %v2389 = vmax.f32 %v2095, 0.0
        %v2390 = vmax.f32 %v2097, 0.0
        %v2391 = vmax.f32 %v2099, 0.0
        %v2392 = vmax.f32 %v2101, 0.0
        %v2393 = vmax.f32 %v2105, 0.0
        %v2394 = vmax.f32 %v2107, 0.0
        %v2395 = vmax.f32 %v2109, 0.0
        %v2396 = vmax.f32 %v2111, 0.0
        %v2397 = vmax.f32 %v2115, 0.0
        %v2398 = vmax.f32 %v2117, 0.0
        %v2399 = vmax.f32 %v2119, 0.0
        %v2400 = vmax.f32 %v2121, 0.0
        %v2401 = vmax.f32 %v2125, 0.0
        %v2402 = vmax.f32 %v2127, 0.0
        %v2403 = vmax.f32 %v2129, 0.0
        %v2404 = vmax.f32 %v2131, 0.0
        %v2405 = vmax.f32 %v2135, 0.0
        %v2406 = vmax.f32 %v2137, 0.0
        %v2407 = vmax.f32 %v2139, 0.0
        %v2408 = vmax.f32 %v2141, 0.0
        %v2409 = vmax.f32 %v2145, 0.0
        %v2410 = vmax.f32 %v2147, 0.0
        %v2411 = vmax.f32 %v2149, 0.0
        %v2412 = vmax.f32 %v2151, 0.0
        %v2413 = vmax.f32 %v2155, 0.0
        %v2414 = vmax.f32 %v2157, 0.0
        %v2415 = vmax.f32 %v2159, 0.0
        %v2416 = vmax.f32 %v2161, 0.0
        %v2417 = vmax.f32 %v2165, 0.0
        %v2418 = vmax.f32 %v2167, 0.0
        %v2419 = vmax.f32 %v2169, 0.0
        %v2420 = vmax.f32 %v2171, 0.0
        %v2421 = vmax.f32 %v2175, 0.0
        %v2422 = vmax.f32 %v2177, 0.0
        %v2423 = vmax.f32 %v2179, 0.0
        %v2424 = vmax.f32 %v2181, 0.0
        %v2425 = vmax.f32 %v2185, 0.0
        %v2426 = vmax.f32 %v2187, 0.0
        %v2427 = vmax.f32 %v2189, 0.0
        %v2428 = vmax.f32 %v2191, 0.0
        %v2429 = vmax.f32 %v2195, 0.0
        %v2430 = vmax.f32 %v2197, 0.0
        %v2431 = vmax.f32 %v2199, 0.0
        %v2432 = vmax.f32 %v2201, 0.0
        %v2433 = vmax.f32 %v2205, 0.0
        %v2434 = vmax.f32 %v2207, 0.0
        %v2435 = vmax.f32 %v2209, 0.0
        %v2436 = vmax.f32 %v2211, 0.0
        %v2437 = vmax.f32 %v2215, 0.0
        %v2438 = vmax.f32 %v2217, 0.0
        %v2439 = vmax.f32 %v2219, 0.0
        %v2440 = vmax.f32 %v2221, 0.0
        %v2441 = vmax.f32 %v2225, 0.0
        %v2442 = vmax.f32 %v2227, 0.0
        %v2443 = vmax.f32 %v2229, 0.0
        %v2444 = vmax.f32 %v2231, 0.0
        %v2445 = vmax.f32 %v2235, 0.0
        %v2446 = vmax.f32 %v2237, 0.0
        %v2447 = vmax.f32 %v2239, 0.0
        %v2448 = vmax.f32 %v2241, 0.0
        %v2449 = vmax.f32 %v2245, 0.0
        %v2450 = vmax.f32 %v2247, 0.0
        %v2451 = vmax.f32 %v2249, 0.0
        %v2452 = vmax.f32 %v2251, 0.0
        %v2453 = vmax.f32 %v2255, 0.0
        %v2454 = vmax.f32 %v2257, 0.0
        %v2455 = vmax.f32 %v2259, 0.0
        %v2456 = vmax.f32 %v2261, 0.0
        %v2457 = vmax.f32 %v2265, 0.0
        %v2458 = vmax.f32 %v2267, 0.0
        %v2459 = vmax.f32 %v2269, 0.0
        %v2460 = vmax.f32 %v2271, 0.0
        %v2461 = vmax.f32 %v2275, 0.0
        %v2462 = vmax.f32 %v2277, 0.0
        %v2463 = vmax.f32 %v2279, 0.0
        %v2464 = vmax.f32 %v2281, 0.0
        %v2465 = vmax.f32 %v2285, 0.0
        %v2466 = vmax.f32 %v2287, 0.0
        %v2467 = vmax.f32 %v2289, 0.0
        %v2468 = vmax.f32 %v2291, 0.0
        %v2469 = vmax.f32 %v2295, 0.0
        %v2470 = vmax.f32 %v2297, 0.0
        %v2471 = vmax.f32 %v2299, 0.0
        %v2472 = vmax.f32 %v2301, 0.0
        %v2473 = vmax.f32 %v2305, 0.0
        %v2474 = vmax.f32 %v2307, 0.0
        %v2475 = vmax.f32 %v2309, 0.0
        %v2476 = vmax.f32 %v2311, 0.0
        %v2477 = vmax.f32 %v2315, 0.0
        %v2478 = vmax.f32 %v2317, 0.0
        %v2479 = vmax.f32 %v2319, 0.0
        %v2480 = vmax.f32 %v2321, 0.0
        %v2481 = vmax.f32 %v2325, 0.0
        %v2482 = vmax.f32 %v2327, 0.0
        %v2483 = vmax.f32 %v2329, 0.0
        %v2484 = vmax.f32 %v2331, 0.0
        %v2485 = vmax.f32 %v2335, 0.0
        %v2486 = vmax.f32 %v2337, 0.0
        %v2487 = vmax.f32 %v2339, 0.0
        %v2488 = vmax.f32 %v2341, 0.0
        %v2489 = vmax.f32 %v2345, 0.0
        %v2490 = vmax.f32 %v2347, 0.0
        %v2491 = vmax.f32 %v2349, 0.0
        %v2492 = vmax.f32 %v2351, 0.0
        %v2493 = vmax.f32 %v2355, 0.0
        %v2494 = vmax.f32 %v2357, 0.0
        %v2495 = vmax.f32 %v2359, 0.0
        %v2496 = vmax.f32 %v2361, 0.0
        %v2497 = vmax.f32 %v2365, 0.0
        %v2498 = vmax.f32 %v2367, 0.0
        %v2499 = vmax.f32 %v2369, 0.0
        %v2500 = vmax.f32 %v2371, 0.0
        %v2501 = vpack.c.bf16 %v2375, %v2373
        %v2502 = vpack.c.bf16 %v2376, %v2374
        %v2503 = vpack.c.bf16 %v2379, %v2377
        %v2504 = vpack.c.bf16 %v2380, %v2378
        %v2505 = vpack.c.bf16 %v2383, %v2381
        %v2506 = vpack.c.bf16 %v2384, %v2382
        %v2507 = vpack.c.bf16 %v2387, %v2385
        %v2508 = vpack.c.bf16 %v2388, %v2386
        %v2509 = vpack.c.bf16 %v2391, %v2389
        %v2510 = vpack.c.bf16 %v2392, %v2390
        %v2511 = vpack.c.bf16 %v2395, %v2393
        %v2512 = vpack.c.bf16 %v2396, %v2394
        %v2513 = vpack.c.bf16 %v2399, %v2397
        %v2514 = vpack.c.bf16 %v2400, %v2398
        %v2515 = vpack.c.bf16 %v2403, %v2401
        %v2516 = vpack.c.bf16 %v2404, %v2402
        %v2517 = vpack.c.bf16 %v2407, %v2405
        %v2518 = vpack.c.bf16 %v2408, %v2406
        %v2519 = vpack.c.bf16 %v2411, %v2409
        %v2520 = vpack.c.bf16 %v2412, %v2410
        %v2521 = vpack.c.bf16 %v2415, %v2413
        %v2522 = vpack.c.bf16 %v2416, %v2414
        %v2523 = vpack.c.bf16 %v2419, %v2417
        %v2524 = vpack.c.bf16 %v2420, %v2418
        %v2525 = vpack.c.bf16 %v2423, %v2421
        %v2526 = vpack.c.bf16 %v2424, %v2422
        %v2527 = vpack.c.bf16 %v2427, %v2425
        %v2528 = vpack.c.bf16 %v2428, %v2426
        %v2529 = vpack.c.bf16 %v2431, %v2429
        %v2530 = vpack.c.bf16 %v2432, %v2430
        %v2531 = vpack.c.bf16 %v2435, %v2433
        %v2532 = vpack.c.bf16 %v2436, %v2434
        %v2533 = vpack.c.bf16 %v2439, %v2437
        %v2534 = vpack.c.bf16 %v2440, %v2438
        %v2535 = vpack.c.bf16 %v2443, %v2441
        %v2536 = vpack.c.bf16 %v2444, %v2442
        %v2537 = vpack.c.bf16 %v2447, %v2445
        %v2538 = vpack.c.bf16 %v2448, %v2446
        %v2539 = vpack.c.bf16 %v2451, %v2449
        %v2540 = vpack.c.bf16 %v2452, %v2450
        %v2541 = vpack.c.bf16 %v2455, %v2453
        %v2542 = vpack.c.bf16 %v2456, %v2454
        %v2543 = vpack.c.bf16 %v2459, %v2457
        %v2544 = vpack.c.bf16 %v2460, %v2458
        %v2545 = vpack.c.bf16 %v2463, %v2461
        %v2546 = vpack.c.bf16 %v2464, %v2462
        %v2547 = vpack.c.bf16 %v2467, %v2465
        %v2548 = vpack.c.bf16 %v2468, %v2466
        %v2549 = vpack.c.bf16 %v2471, %v2469
        %v2550 = vpack.c.bf16 %v2472, %v2470
        %v2551 = vpack.c.bf16 %v2475, %v2473
        %v2552 = vpack.c.bf16 %v2476, %v2474
        %v2553 = vpack.c.bf16 %v2479, %v2477
        %v2554 = vpack.c.bf16 %v2480, %v2478
        %v2555 = vpack.c.bf16 %v2483, %v2481
        %v2556 = vpack.c.bf16 %v2484, %v2482
        %v2557 = vpack.c.bf16 %v2487, %v2485
        %v2558 = vpack.c.bf16 %v2488, %v2486
        %v2559 = vpack.c.bf16 %v2491, %v2489
        %v2560 = vpack.c.bf16 %v2492, %v2490
        %v2561 = vpack.c.bf16 %v2495, %v2493
        %v2562 = vpack.c.bf16 %v2496, %v2494
        %v2563 = vpack.c.bf16 %v2499, %v2497
        %v2564 = vpack.c.bf16 %v2500, %v2498
        %s2565 = scalar_lea.vmem [#allocation7], 256
        %v2566 = vld [vmem:[%s2565] sm:$0xff]
        %v2567 = vld [vmem:[%s2565 + $0x8] sm:$0xff]
        %v2568 = vld [vmem:[%s2565 + $0x10] sm:$0xff]
        %v2569 = vld [vmem:[%s2565 + $0x18] sm:$0xff]
        %v2570 = vld [vmem:[%s2565 + $0x20] sm:$0xff]
        %v2571 = vld [vmem:[%s2565 + $0x28] sm:$0xff]
        %v2572 = vld [vmem:[%s2565 + $0x30] sm:$0xff]
        %v2573 = vld [vmem:[%s2565 + $0x38] sm:$0xff]
        %v2574 = vld [vmem:[%s2565 + $0x40] sm:$0xff]
        %v2575 = vld [vmem:[%s2565 + $0x48] sm:$0xff]
        %v2576 = vld [vmem:[%s2565 + $0x50] sm:$0xff]
        %v2577 = vld [vmem:[%s2565 + $0x58] sm:$0xff]
        %v2578 = vld [vmem:[%s2565 + $0x60] sm:$0xff]
        %v2579 = vld [vmem:[%s2565 + $0x68] sm:$0xff]
        %v2580 = vld [vmem:[%s2565 + $0x70] sm:$0xff]
        %v2581 = vld [vmem:[%s2565 + $0x78] sm:$0xff]
        %v2582 = vld [vmem:[%s2565 + $0x80] sm:$0xff]
        %v2583 = vld [vmem:[%s2565 + $0x88] sm:$0xff]
        %v2584 = vld [vmem:[%s2565 + $0x90] sm:$0xff]
        %v2585 = vld [vmem:[%s2565 + $0x98] sm:$0xff]
        %v2586 = vld [vmem:[%s2565 + $0xa0] sm:$0xff]
        %v2587 = vld [vmem:[%s2565 + $0xa8] sm:$0xff]
        %v2588 = vld [vmem:[%s2565 + $0xb0] sm:$0xff]
        %v2589 = vld [vmem:[%s2565 + $0xb8] sm:$0xff]
        %v2590 = vld [vmem:[%s2565 + $0xc0] sm:$0xff]
        %v2591 = vld [vmem:[%s2565 + $0xc8] sm:$0xff]
        %v2592 = vld [vmem:[%s2565 + $0xd0] sm:$0xff]
        %v2593 = vld [vmem:[%s2565 + $0xd8] sm:$0xff]
        %v2594 = vld [vmem:[%s2565 + $0xe0] sm:$0xff]
        %v2595 = vld [vmem:[%s2565 + $0xe8] sm:$0xff]
        %v2596 = vld [vmem:[%s2565 + $0xf0] sm:$0xff]
        %v2597 = vld [vmem:[%s2565 + $0xf8] sm:$0xff]
        %s2598 = scalar_lea.vmem [#allocation8], 2
        %v2599 = vld [vmem:[%s2598] ss:$8 sm:$0x3]
        %v2601 = vlaneseq
        %v2602 = vshrl.u32 %v2601, 7
        %v2603 = vsub.s32 0, %v2602
        %v2604 = vrot.slane %v2599, %v2603
        %v2605 = vlaneseq
        %v2606 = vshrl.u32 %v2605, 7
        %v2607 = vsub.s32 1, %v2606
        %v2608 = vrot.slane %v2599, %v2607
        %v2643 = vunpack.c.l.b16 %v2566
        %v2644 = vunpack.c.h.b16 %v2566
        %v2645 = vunpack.c.l.b16 %v2567
        %v2646 = vunpack.c.h.b16 %v2567
        %v2647 = vunpack.c.l.b16 %v2568
        %v2648 = vunpack.c.h.b16 %v2568
        %v2649 = vunpack.c.l.b16 %v2569
        %v2650 = vunpack.c.h.b16 %v2569
        %v2651 = vunpack.c.l.b16 %v2570
        %v2652 = vunpack.c.h.b16 %v2570
        %v2653 = vunpack.c.l.b16 %v2571
        %v2654 = vunpack.c.h.b16 %v2571
        %v2655 = vunpack.c.l.b16 %v2572
        %v2656 = vunpack.c.h.b16 %v2572
        %v2657 = vunpack.c.l.b16 %v2573
        %v2658 = vunpack.c.h.b16 %v2573
        %v2659 = vunpack.c.l.b16 %v2574
        %v2660 = vunpack.c.h.b16 %v2574
        %v2661 = vunpack.c.l.b16 %v2575
        %v2662 = vunpack.c.h.b16 %v2575
        %v2663 = vunpack.c.l.b16 %v2576
        %v2664 = vunpack.c.h.b16 %v2576
        %v2665 = vunpack.c.l.b16 %v2577
        %v2666 = vunpack.c.h.b16 %v2577
        %v2667 = vunpack.c.l.b16 %v2578
        %v2668 = vunpack.c.h.b16 %v2578
        %v2669 = vunpack.c.l.b16 %v2579
        %v2670 = vunpack.c.h.b16 %v2579
        %v2671 = vunpack.c.l.b16 %v2580
        %v2672 = vunpack.c.h.b16 %v2580
        %v2673 = vunpack.c.l.b16 %v2581
        %v2674 = vunpack.c.h.b16 %v2581
        %v2675 = vunpack.c.l.b16 %v2582
        %v2676 = vunpack.c.h.b16 %v2582
        %v2677 = vunpack.c.l.b16 %v2583
        %v2678 = vunpack.c.h.b16 %v2583
        %v2679 = vunpack.c.l.b16 %v2584
        %v2680 = vunpack.c.h.b16 %v2584
        %v2681 = vunpack.c.l.b16 %v2585
        %v2682 = vunpack.c.h.b16 %v2585
        %v2683 = vunpack.c.l.b16 %v2586
        %v2684 = vunpack.c.h.b16 %v2586
        %v2685 = vunpack.c.l.b16 %v2587
        %v2686 = vunpack.c.h.b16 %v2587
        %v2687 = vunpack.c.l.b16 %v2588
        %v2688 = vunpack.c.h.b16 %v2588
        %v2689 = vunpack.c.l.b16 %v2589
        %v2690 = vunpack.c.h.b16 %v2589
        %v2691 = vunpack.c.l.b16 %v2590
        %v2692 = vunpack.c.h.b16 %v2590
        %v2693 = vunpack.c.l.b16 %v2591
        %v2694 = vunpack.c.h.b16 %v2591
        %v2695 = vunpack.c.l.b16 %v2592
        %v2696 = vunpack.c.h.b16 %v2592
        %v2697 = vunpack.c.l.b16 %v2593
        %v2698 = vunpack.c.h.b16 %v2593
        %v2699 = vunpack.c.l.b16 %v2594
        %v2700 = vunpack.c.h.b16 %v2594
        %v2701 = vunpack.c.l.b16 %v2595
        %v2702 = vunpack.c.h.b16 %v2595
        %v2703 = vunpack.c.l.b16 %v2596
        %v2704 = vunpack.c.h.b16 %v2596
        %v2705 = vunpack.c.l.b16 %v2597
        %v2706 = vunpack.c.h.b16 %v2597
        %v2707 = vpack.c.b16 %v2645, %v2643
        %v2708 = vpack.c.b16 %v2646, %v2644
        %v2709 = vpack.c.b16 %v2649, %v2647
        %v2710 = vpack.c.b16 %v2650, %v2648
        %v2711 = vpack.c.b16 %v2653, %v2651
        %v2712 = vpack.c.b16 %v2654, %v2652
        %v2713 = vpack.c.b16 %v2657, %v2655
        %v2714 = vpack.c.b16 %v2658, %v2656
        %v2715 = vpack.c.b16 %v2661, %v2659
        %v2716 = vpack.c.b16 %v2662, %v2660
        %v2717 = vpack.c.b16 %v2665, %v2663
        %v2718 = vpack.c.b16 %v2666, %v2664
        %v2719 = vpack.c.b16 %v2669, %v2667
        %v2720 = vpack.c.b16 %v2670, %v2668
        %v2721 = vpack.c.b16 %v2673, %v2671
        %v2722 = vpack.c.b16 %v2674, %v2672
        %v2723 = vpack.c.b16 %v2677, %v2675
        %v2724 = vpack.c.b16 %v2678, %v2676
        %v2725 = vpack.c.b16 %v2681, %v2679
        %v2726 = vpack.c.b16 %v2682, %v2680
        %v2727 = vpack.c.b16 %v2685, %v2683
        %v2728 = vpack.c.b16 %v2686, %v2684
        %v2729 = vpack.c.b16 %v2689, %v2687
        %v2730 = vpack.c.b16 %v2690, %v2688
        %v2731 = vpack.c.b16 %v2693, %v2691
        %v2732 = vpack.c.b16 %v2694, %v2692
        %v2733 = vpack.c.b16 %v2697, %v2695
        %v2734 = vpack.c.b16 %v2698, %v2696
        %v2735 = vpack.c.b16 %v2701, %v2699
        %v2736 = vpack.c.b16 %v2702, %v2700
        %v2737 = vpack.c.b16 %v2705, %v2703
        %v2738 = vpack.c.b16 %v2706, %v2704
        %2771 = vmatprep.subr.bf16.mxu0 %v2708
        %2772 = vmatpush1.bf16.msra.mxu0 %v2707
        %2773 = vmatprep.subr.bf16.mxu0 %v2710
        %2774 = vmatpush1.bf16.msra.mxu0 %v2709
        %2775 = vmatprep.subr.bf16.mxu0 %v2712
        %2776 = vmatpush1.bf16.msra.mxu0 %v2711
        %2777 = vmatprep.subr.bf16.mxu0 %v2714
        %2778 = vmatpush1.bf16.msra.mxu0 %v2713
        %2779 = vmatprep.subr.bf16.mxu0 %v2716
        %2780 = vmatpush1.bf16.msra.mxu0 %v2715
        %2781 = vmatprep.subr.bf16.mxu0 %v2718
        %2782 = vmatpush1.bf16.msra.mxu0 %v2717
        %2783 = vmatprep.subr.bf16.mxu0 %v2720
        %2784 = vmatpush1.bf16.msra.mxu0 %v2719
        %2785 = vmatprep.subr.bf16.mxu0 %v2722
        %2786 = vmatpush1.bf16.msra.mxu0 %v2721
        %2787 = vmatprep.subr.bf16.mxu0 %v2724
        %2788 = vmatpush1.bf16.msra.mxu0 %v2723
        %2789 = vmatprep.subr.bf16.mxu0 %v2726
        %2790 = vmatpush1.bf16.msra.mxu0 %v2725
        %2791 = vmatprep.subr.bf16.mxu0 %v2728
        %2792 = vmatpush1.bf16.msra.mxu0 %v2727
        %2793 = vmatprep.subr.bf16.mxu0 %v2730
        %2794 = vmatpush1.bf16.msra.mxu0 %v2729
        %2795 = vmatprep.subr.bf16.mxu0 %v2732
        %2796 = vmatpush1.bf16.msra.mxu0 %v2731
        %2797 = vmatprep.subr.bf16.mxu0 %v2734
        %2798 = vmatpush1.bf16.msra.mxu0 %v2733
        %2799 = vmatprep.subr.bf16.mxu0 %v2736
        %2800 = vmatpush1.bf16.msra.mxu0 %v2735
        %2801 = vmatprep.subr.bf16.mxu0 %v2738
        %2802 = vmatpush1.bf16.msra.mxu0 %v2737
        %2803 = vmatprep.mubr.bf16.mxu0 %v2502
        %2804 = vmatmul.mubr.bf16.gmra.mrb[0].mxu0 %v2501
        %v2805 = vpop.f32.mrb[0].mxu0
        %v2806 = vadd.f32 %v2604, %v2805
        %v2807 = vpop.f32.mrb[0].mxu0
        %v2808 = vadd.f32 %v2608, %v2807
        %v2809 = vpop.f32.mrb[0].mxu0
        %v2810 = vadd.f32 %v2604, %v2809
        %v2811 = vpop.f32.mrb[0].mxu0
        %v2812 = vadd.f32 %v2608, %v2811
        %2813 = vmatprep.mubr.bf16.mxu0 %v2504
        %2814 = vmatmul.mubr.bf16.gmra.mrb[0].mxu0 %v2503
        %v2815 = vpop.f32.mrb[0].mxu0
        %v2816 = vadd.f32 %v2604, %v2815
        %v2817 = vpop.f32.mrb[0].mxu0
        %v2818 = vadd.f32 %v2608, %v2817
        %v2819 = vpop.f32.mrb[0].mxu0
        %v2820 = vadd.f32 %v2604, %v2819
        %v2821 = vpop.f32.mrb[0].mxu0
        %v2822 = vadd.f32 %v2608, %v2821
        %2823 = vmatprep.mubr.bf16.mxu0 %v2506
        %2824 = vmatmul.mubr.bf16.gmra.mrb[0].mxu0 %v2505
        %v2825 = vpop.f32.mrb[0].mxu0
        %v2826 = vadd.f32 %v2604, %v2825
        %v2827 = vpop.f32.mrb[0].mxu0
        %v2828 = vadd.f32 %v2608, %v2827
        %v2829 = vpop.f32.mrb[0].mxu0
        %v2830 = vadd.f32 %v2604, %v2829
        %v2831 = vpop.f32.mrb[0].mxu0
        %v2832 = vadd.f32 %v2608, %v2831
        %2833 = vmatprep.mubr.bf16.mxu0 %v2508
        %2834 = vmatmul.mubr.bf16.gmra.mrb[0].mxu0 %v2507
        %v2835 = vpop.f32.mrb[0].mxu0
        %v2836 = vadd.f32 %v2604, %v2835
        %v2837 = vpop.f32.mrb[0].mxu0
        %v2838 = vadd.f32 %v2608, %v2837
        %v2839 = vpop.f32.mrb[0].mxu0
        %v2840 = vadd.f32 %v2604, %v2839
        %v2841 = vpop.f32.mrb[0].mxu0
        %v2842 = vadd.f32 %v2608, %v2841
        %2843 = vmatprep.mubr.bf16.mxu0 %v2510
        %2844 = vmatmul.mubr.bf16.gmra.mrb[0].mxu0 %v2509
        %v2845 = vpop.f32.mrb[0].mxu0
        %v2846 = vadd.f32 %v2604, %v2845
        %v2847 = vpop.f32.mrb[0].mxu0
        %v2848 = vadd.f32 %v2608, %v2847
        %v2849 = vpop.f32.mrb[0].mxu0
        %v2850 = vadd.f32 %v2604, %v2849
        %v2851 = vpop.f32.mrb[0].mxu0
        %v2852 = vadd.f32 %v2608, %v2851
        %2853 = vmatprep.mubr.bf16.mxu0 %v2512
        %2854 = vmatmul.mubr.bf16.gmra.mrb[0].mxu0 %v2511
        %v2855 = vpop.f32.mrb[0].mxu0
        %v2856 = vadd.f32 %v2604, %v2855
        %v2857 = vpop.f32.mrb[0].mxu0
        %v2858 = vadd.f32 %v2608, %v2857
        %v2859 = vpop.f32.mrb[0].mxu0
        %v2860 = vadd.f32 %v2604, %v2859
        %v2861 = vpop.f32.mrb[0].mxu0
        %v2862 = vadd.f32 %v2608, %v2861
        %2863 = vmatprep.mubr.bf16.mxu0 %v2514
        %2864 = vmatmul.mubr.bf16.gmra.mrb[0].mxu0 %v2513
        %v2865 = vpop.f32.mrb[0].mxu0
        %v2866 = vadd.f32 %v2604, %v2865
        %v2867 = vpop.f32.mrb[0].mxu0
        %v2868 = vadd.f32 %v2608, %v2867
        %v2869 = vpop.f32.mrb[0].mxu0
        %v2870 = vadd.f32 %v2604, %v2869
        %v2871 = vpop.f32.mrb[0].mxu0
        %v2872 = vadd.f32 %v2608, %v2871
        %2873 = vmatprep.mubr.bf16.mxu0 %v2516
        %2874 = vmatmul.mubr.bf16.gmra.mrb[0].mxu0 %v2515
        %v2875 = vpop.f32.mrb[0].mxu0
        %v2876 = vadd.f32 %v2604, %v2875
        %v2877 = vpop.f32.mrb[0].mxu0
        %v2878 = vadd.f32 %v2608, %v2877
        %v2879 = vpop.f32.mrb[0].mxu0
        %v2880 = vadd.f32 %v2604, %v2879
        %v2881 = vpop.f32.mrb[0].mxu0
        %v2882 = vadd.f32 %v2608, %v2881
        %2883 = vmatprep.mubr.bf16.mxu0 %v2518
        %2884 = vmatmul.mubr.bf16.gmra.mrb[0].mxu0 %v2517
        %v2885 = vpop.f32.mrb[0].mxu0
        %v2886 = vadd.f32 %v2604, %v2885
        %v2887 = vpop.f32.mrb[0].mxu0
        %v2888 = vadd.f32 %v2608, %v2887
        %v2889 = vpop.f32.mrb[0].mxu0
        %v2890 = vadd.f32 %v2604, %v2889
        %v2891 = vpop.f32.mrb[0].mxu0
        %v2892 = vadd.f32 %v2608, %v2891
        %2893 = vmatprep.mubr.bf16.mxu0 %v2520
        %2894 = vmatmul.mubr.bf16.gmra.mrb[0].mxu0 %v2519
        %v2895 = vpop.f32.mrb[0].mxu0
        %v2896 = vadd.f32 %v2604, %v2895
        %v2897 = vpop.f32.mrb[0].mxu0
        %v2898 = vadd.f32 %v2608, %v2897
        %v2899 = vpop.f32.mrb[0].mxu0
        %v2900 = vadd.f32 %v2604, %v2899
        %v2901 = vpop.f32.mrb[0].mxu0
        %v2902 = vadd.f32 %v2608, %v2901
        %2903 = vmatprep.mubr.bf16.mxu0 %v2522
        %2904 = vmatmul.mubr.bf16.gmra.mrb[0].mxu0 %v2521
        %v2905 = vpop.f32.mrb[0].mxu0
        %v2906 = vadd.f32 %v2604, %v2905
        %v2907 = vpop.f32.mrb[0].mxu0
        %v2908 = vadd.f32 %v2608, %v2907
        %v2909 = vpop.f32.mrb[0].mxu0
        %v2910 = vadd.f32 %v2604, %v2909
        %v2911 = vpop.f32.mrb[0].mxu0
        %v2912 = vadd.f32 %v2608, %v2911
        %2913 = vmatprep.mubr.bf16.mxu0 %v2524
        %2914 = vmatmul.mubr.bf16.gmra.mrb[0].mxu0 %v2523
        %v2915 = vpop.f32.mrb[0].mxu0
        %v2916 = vadd.f32 %v2604, %v2915
        %v2917 = vpop.f32.mrb[0].mxu0
        %v2918 = vadd.f32 %v2608, %v2917
        %v2919 = vpop.f32.mrb[0].mxu0
        %v2920 = vadd.f32 %v2604, %v2919
        %v2921 = vpop.f32.mrb[0].mxu0
        %v2922 = vadd.f32 %v2608, %v2921
        %2923 = vmatprep.mubr.bf16.mxu0 %v2526
        %2924 = vmatmul.mubr.bf16.gmra.mrb[0].mxu0 %v2525
        %v2925 = vpop.f32.mrb[0].mxu0
        %v2926 = vadd.f32 %v2604, %v2925
        %v2927 = vpop.f32.mrb[0].mxu0
        %v2928 = vadd.f32 %v2608, %v2927
        %v2929 = vpop.f32.mrb[0].mxu0
        %v2930 = vadd.f32 %v2604, %v2929
        %v2931 = vpop.f32.mrb[0].mxu0
        %v2932 = vadd.f32 %v2608, %v2931
        %2933 = vmatprep.mubr.bf16.mxu0 %v2528
        %2934 = vmatmul.mubr.bf16.gmra.mrb[0].mxu0 %v2527
        %v2935 = vpop.f32.mrb[0].mxu0
        %v2936 = vadd.f32 %v2604, %v2935
        %v2937 = vpop.f32.mrb[0].mxu0
        %v2938 = vadd.f32 %v2608, %v2937
        %v2939 = vpop.f32.mrb[0].mxu0
        %v2940 = vadd.f32 %v2604, %v2939
        %v2941 = vpop.f32.mrb[0].mxu0
        %v2942 = vadd.f32 %v2608, %v2941
        %2943 = vmatprep.mubr.bf16.mxu0 %v2530
        %2944 = vmatmul.mubr.bf16.gmra.mrb[0].mxu0 %v2529
        %v2945 = vpop.f32.mrb[0].mxu0
        %v2946 = vadd.f32 %v2604, %v2945
        %v2947 = vpop.f32.mrb[0].mxu0
        %v2948 = vadd.f32 %v2608, %v2947
        %v2949 = vpop.f32.mrb[0].mxu0
        %v2950 = vadd.f32 %v2604, %v2949
        %v2951 = vpop.f32.mrb[0].mxu0
        %v2952 = vadd.f32 %v2608, %v2951
        %2953 = vmatprep.mubr.bf16.mxu0 %v2532
        %2954 = vmatmul.mubr.bf16.gmra.mrb[0].mxu0 %v2531
        %v2955 = vpop.f32.mrb[0].mxu0
        %v2956 = vadd.f32 %v2604, %v2955
        %v2957 = vpop.f32.mrb[0].mxu0
        %v2958 = vadd.f32 %v2608, %v2957
        %v2959 = vpop.f32.mrb[0].mxu0
        %v2960 = vadd.f32 %v2604, %v2959
        %v2961 = vpop.f32.mrb[0].mxu0
        %v2962 = vadd.f32 %v2608, %v2961
        %2963 = vmatprep.mubr.bf16.mxu0 %v2534
        %2964 = vmatmul.mubr.bf16.gmra.mrb[0].mxu0 %v2533
        %v2965 = vpop.f32.mrb[0].mxu0
        %v2966 = vadd.f32 %v2604, %v2965
        %v2967 = vpop.f32.mrb[0].mxu0
        %v2968 = vadd.f32 %v2608, %v2967
        %v2969 = vpop.f32.mrb[0].mxu0
        %v2970 = vadd.f32 %v2604, %v2969
        %v2971 = vpop.f32.mrb[0].mxu0
        %v2972 = vadd.f32 %v2608, %v2971
        %2973 = vmatprep.mubr.bf16.mxu0 %v2536
        %2974 = vmatmul.mubr.bf16.gmra.mrb[0].mxu0 %v2535
        %v2975 = vpop.f32.mrb[0].mxu0
        %v2976 = vadd.f32 %v2604, %v2975
        %v2977 = vpop.f32.mrb[0].mxu0
        %v2978 = vadd.f32 %v2608, %v2977
        %v2979 = vpop.f32.mrb[0].mxu0
        %v2980 = vadd.f32 %v2604, %v2979
        %v2981 = vpop.f32.mrb[0].mxu0
        %v2982 = vadd.f32 %v2608, %v2981
        %2983 = vmatprep.mubr.bf16.mxu0 %v2538
        %2984 = vmatmul.mubr.bf16.gmra.mrb[0].mxu0 %v2537
        %v2985 = vpop.f32.mrb[0].mxu0
        %v2986 = vadd.f32 %v2604, %v2985
        %v2987 = vpop.f32.mrb[0].mxu0
        %v2988 = vadd.f32 %v2608, %v2987
        %v2989 = vpop.f32.mrb[0].mxu0
        %v2990 = vadd.f32 %v2604, %v2989
        %v2991 = vpop.f32.mrb[0].mxu0
        %v2992 = vadd.f32 %v2608, %v2991
        %2993 = vmatprep.mubr.bf16.mxu0 %v2540
        %2994 = vmatmul.mubr.bf16.gmra.mrb[0].mxu0 %v2539
        %v2995 = vpop.f32.mrb[0].mxu0
        %v2996 = vadd.f32 %v2604, %v2995
        %v2997 = vpop.f32.mrb[0].mxu0
        %v2998 = vadd.f32 %v2608, %v2997
        %v2999 = vpop.f32.mrb[0].mxu0
        %v3000 = vadd.f32 %v2604, %v2999
        %v3001 = vpop.f32.mrb[0].mxu0
        %v3002 = vadd.f32 %v2608, %v3001
        %3003 = vmatprep.mubr.bf16.mxu0 %v2542
        %3004 = vmatmul.mubr.bf16.gmra.mrb[0].mxu0 %v2541
        %v3005 = vpop.f32.mrb[0].mxu0
        %v3006 = vadd.f32 %v2604, %v3005
        %v3007 = vpop.f32.mrb[0].mxu0
        %v3008 = vadd.f32 %v2608, %v3007
        %v3009 = vpop.f32.mrb[0].mxu0
        %v3010 = vadd.f32 %v2604, %v3009
        %v3011 = vpop.f32.mrb[0].mxu0
        %v3012 = vadd.f32 %v2608, %v3011
        %3013 = vmatprep.mubr.bf16.mxu0 %v2544
        %3014 = vmatmul.mubr.bf16.gmra.mrb[0].mxu0 %v2543
        %v3015 = vpop.f32.mrb[0].mxu0
        %v3016 = vadd.f32 %v2604, %v3015
        %v3017 = vpop.f32.mrb[0].mxu0
        %v3018 = vadd.f32 %v2608, %v3017
        %v3019 = vpop.f32.mrb[0].mxu0
        %v3020 = vadd.f32 %v2604, %v3019
        %v3021 = vpop.f32.mrb[0].mxu0
        %v3022 = vadd.f32 %v2608, %v3021
        %3023 = vmatprep.mubr.bf16.mxu0 %v2546
        %3024 = vmatmul.mubr.bf16.gmra.mrb[0].mxu0 %v2545
        %v3025 = vpop.f32.mrb[0].mxu0
        %v3026 = vadd.f32 %v2604, %v3025
        %v3027 = vpop.f32.mrb[0].mxu0
        %v3028 = vadd.f32 %v2608, %v3027
        %v3029 = vpop.f32.mrb[0].mxu0
        %v3030 = vadd.f32 %v2604, %v3029
        %v3031 = vpop.f32.mrb[0].mxu0
        %v3032 = vadd.f32 %v2608, %v3031
        %3033 = vmatprep.mubr.bf16.mxu0 %v2548
        %3034 = vmatmul.mubr.bf16.gmra.mrb[0].mxu0 %v2547
        %v3035 = vpop.f32.mrb[0].mxu0
        %v3036 = vadd.f32 %v2604, %v3035
        %v3037 = vpop.f32.mrb[0].mxu0
        %v3038 = vadd.f32 %v2608, %v3037
        %v3039 = vpop.f32.mrb[0].mxu0
        %v3040 = vadd.f32 %v2604, %v3039
        %v3041 = vpop.f32.mrb[0].mxu0
        %v3042 = vadd.f32 %v2608, %v3041
        %3043 = vmatprep.mubr.bf16.mxu0 %v2550
        %3044 = vmatmul.mubr.bf16.gmra.mrb[0].mxu0 %v2549
        %v3045 = vpop.f32.mrb[0].mxu0
        %v3046 = vadd.f32 %v2604, %v3045
        %v3047 = vpop.f32.mrb[0].mxu0
        %v3048 = vadd.f32 %v2608, %v3047
        %v3049 = vpop.f32.mrb[0].mxu0
        %v3050 = vadd.f32 %v2604, %v3049
        %v3051 = vpop.f32.mrb[0].mxu0
        %v3052 = vadd.f32 %v2608, %v3051
        %3053 = vmatprep.mubr.bf16.mxu0 %v2552
        %3054 = vmatmul.mubr.bf16.gmra.mrb[0].mxu0 %v2551
        %v3055 = vpop.f32.mrb[0].mxu0
        %v3056 = vadd.f32 %v2604, %v3055
        %v3057 = vpop.f32.mrb[0].mxu0
        %v3058 = vadd.f32 %v2608, %v3057
        %v3059 = vpop.f32.mrb[0].mxu0
        %v3060 = vadd.f32 %v2604, %v3059
        %v3061 = vpop.f32.mrb[0].mxu0
        %v3062 = vadd.f32 %v2608, %v3061
        %3063 = vmatprep.mubr.bf16.mxu0 %v2554
        %3064 = vmatmul.mubr.bf16.gmra.mrb[0].mxu0 %v2553
        %v3065 = vpop.f32.mrb[0].mxu0
        %v3066 = vadd.f32 %v2604, %v3065
        %v3067 = vpop.f32.mrb[0].mxu0
        %v3068 = vadd.f32 %v2608, %v3067
        %v3069 = vpop.f32.mrb[0].mxu0
        %v3070 = vadd.f32 %v2604, %v3069
        %v3071 = vpop.f32.mrb[0].mxu0
        %v3072 = vadd.f32 %v2608, %v3071
        %3073 = vmatprep.mubr.bf16.mxu0 %v2556
        %3074 = vmatmul.mubr.bf16.gmra.mrb[0].mxu0 %v2555
        %v3075 = vpop.f32.mrb[0].mxu0
        %v3076 = vadd.f32 %v2604, %v3075
        %v3077 = vpop.f32.mrb[0].mxu0
        %v3078 = vadd.f32 %v2608, %v3077
        %v3079 = vpop.f32.mrb[0].mxu0
        %v3080 = vadd.f32 %v2604, %v3079
        %v3081 = vpop.f32.mrb[0].mxu0
        %v3082 = vadd.f32 %v2608, %v3081
        %3083 = vmatprep.mubr.bf16.mxu0 %v2558
        %3084 = vmatmul.mubr.bf16.gmra.mrb[0].mxu0 %v2557
        %v3085 = vpop.f32.mrb[0].mxu0
        %v3086 = vadd.f32 %v2604, %v3085
        %v3087 = vpop.f32.mrb[0].mxu0
        %v3088 = vadd.f32 %v2608, %v3087
        %v3089 = vpop.f32.mrb[0].mxu0
        %v3090 = vadd.f32 %v2604, %v3089
        %v3091 = vpop.f32.mrb[0].mxu0
        %v3092 = vadd.f32 %v2608, %v3091
        %3093 = vmatprep.mubr.bf16.mxu0 %v2560
        %3094 = vmatmul.mubr.bf16.gmra.mrb[0].mxu0 %v2559
        %v3095 = vpop.f32.mrb[0].mxu0
        %v3096 = vadd.f32 %v2604, %v3095
        %v3097 = vpop.f32.mrb[0].mxu0
        %v3098 = vadd.f32 %v2608, %v3097
        %v3099 = vpop.f32.mrb[0].mxu0
        %v3100 = vadd.f32 %v2604, %v3099
        %v3101 = vpop.f32.mrb[0].mxu0
        %v3102 = vadd.f32 %v2608, %v3101
        %3103 = vmatprep.mubr.bf16.mxu0 %v2562
        %3104 = vmatmul.mubr.bf16.gmra.mrb[0].mxu0 %v2561
        %v3105 = vpop.f32.mrb[0].mxu0
        %v3106 = vadd.f32 %v2604, %v3105
        %v3107 = vpop.f32.mrb[0].mxu0
        %v3108 = vadd.f32 %v2608, %v3107
        %v3109 = vpop.f32.mrb[0].mxu0
        %v3110 = vadd.f32 %v2604, %v3109
        %v3111 = vpop.f32.mrb[0].mxu0
        %v3112 = vadd.f32 %v2608, %v3111
        %3113 = vmatprep.mubr.bf16.mxu0 %v2564
        %3114 = vmatmul.mubr.bf16.gmra.mrb[0].mxu0 %v2563
        %v3115 = vpop.f32.mrb[0].mxu0
        %v3116 = vadd.f32 %v2604, %v3115
        %v3117 = vpop.f32.mrb[0].mxu0
        %v3118 = vadd.f32 %v2608, %v3117
        %v3119 = vpop.f32.mrb[0].mxu0
        %v3120 = vadd.f32 %v2604, %v3119
        %v3121 = vpop.f32.mrb[0].mxu0
        %v3122 = vadd.f32 %v2608, %v3121
        %3123 = vdwg.mxu0
        %v3124 = vmax.f32 %v2806, 0.0
        %v3125 = vmax.f32 %v2808, 0.0
        %v3126 = vmax.f32 %v2810, 0.0
        %v3127 = vmax.f32 %v2812, 0.0
        %v3128 = vmax.f32 %v2816, 0.0
        %v3129 = vmax.f32 %v2818, 0.0
        %v3130 = vmax.f32 %v2820, 0.0
        %v3131 = vmax.f32 %v2822, 0.0
        %v3132 = vmax.f32 %v2826, 0.0
        %v3133 = vmax.f32 %v2828, 0.0
        %v3134 = vmax.f32 %v2830, 0.0
        %v3135 = vmax.f32 %v2832, 0.0
        %v3136 = vmax.f32 %v2836, 0.0
        %v3137 = vmax.f32 %v2838, 0.0
        %v3138 = vmax.f32 %v2840, 0.0
        %v3139 = vmax.f32 %v2842, 0.0
        %v3140 = vmax.f32 %v2846, 0.0
        %v3141 = vmax.f32 %v2848, 0.0
        %v3142 = vmax.f32 %v2850, 0.0
        %v3143 = vmax.f32 %v2852, 0.0
        %v3144 = vmax.f32 %v2856, 0.0
        %v3145 = vmax.f32 %v2858, 0.0
        %v3146 = vmax.f32 %v2860, 0.0
        %v3147 = vmax.f32 %v2862, 0.0
        %v3148 = vmax.f32 %v2866, 0.0
        %v3149 = vmax.f32 %v2868, 0.0
        %v3150 = vmax.f32 %v2870, 0.0
        %v3151 = vmax.f32 %v2872, 0.0
        %v3152 = vmax.f32 %v2876, 0.0
        %v3153 = vmax.f32 %v2878, 0.0
        %v3154 = vmax.f32 %v2880, 0.0
        %v3155 = vmax.f32 %v2882, 0.0
        %v3156 = vmax.f32 %v2886, 0.0
        %v3157 = vmax.f32 %v2888, 0.0
        %v3158 = vmax.f32 %v2890, 0.0
        %v3159 = vmax.f32 %v2892, 0.0
        %v3160 = vmax.f32 %v2896, 0.0
        %v3161 = vmax.f32 %v2898, 0.0
        %v3162 = vmax.f32 %v2900, 0.0
        %v3163 = vmax.f32 %v2902, 0.0
        %v3164 = vmax.f32 %v2906, 0.0
        %v3165 = vmax.f32 %v2908, 0.0
        %v3166 = vmax.f32 %v2910, 0.0
        %v3167 = vmax.f32 %v2912, 0.0
        %v3168 = vmax.f32 %v2916, 0.0
        %v3169 = vmax.f32 %v2918, 0.0
        %v3170 = vmax.f32 %v2920, 0.0
        %v3171 = vmax.f32 %v2922, 0.0
        %v3172 = vmax.f32 %v2926, 0.0
        %v3173 = vmax.f32 %v2928, 0.0
        %v3174 = vmax.f32 %v2930, 0.0
        %v3175 = vmax.f32 %v2932, 0.0
        %v3176 = vmax.f32 %v2936, 0.0
        %v3177 = vmax.f32 %v2938, 0.0
        %v3178 = vmax.f32 %v2940, 0.0
        %v3179 = vmax.f32 %v2942, 0.0
        %v3180 = vmax.f32 %v2946, 0.0
        %v3181 = vmax.f32 %v2948, 0.0
        %v3182 = vmax.f32 %v2950, 0.0
        %v3183 = vmax.f32 %v2952, 0.0
        %v3184 = vmax.f32 %v2956, 0.0
        %v3185 = vmax.f32 %v2958, 0.0
        %v3186 = vmax.f32 %v2960, 0.0
        %v3187 = vmax.f32 %v2962, 0.0
        %v3188 = vmax.f32 %v2966, 0.0
        %v3189 = vmax.f32 %v2968, 0.0
        %v3190 = vmax.f32 %v2970, 0.0
        %v3191 = vmax.f32 %v2972, 0.0
        %v3192 = vmax.f32 %v2976, 0.0
        %v3193 = vmax.f32 %v2978, 0.0
        %v3194 = vmax.f32 %v2980, 0.0
        %v3195 = vmax.f32 %v2982, 0.0
        %v3196 = vmax.f32 %v2986, 0.0
        %v3197 = vmax.f32 %v2988, 0.0
        %v3198 = vmax.f32 %v2990, 0.0
        %v3199 = vmax.f32 %v2992, 0.0
        %v3200 = vmax.f32 %v2996, 0.0
        %v3201 = vmax.f32 %v2998, 0.0
        %v3202 = vmax.f32 %v3000, 0.0
        %v3203 = vmax.f32 %v3002, 0.0
        %v3204 = vmax.f32 %v3006, 0.0
        %v3205 = vmax.f32 %v3008, 0.0
        %v3206 = vmax.f32 %v3010, 0.0
        %v3207 = vmax.f32 %v3012, 0.0
        %v3208 = vmax.f32 %v3016, 0.0
        %v3209 = vmax.f32 %v3018, 0.0
        %v3210 = vmax.f32 %v3020, 0.0
        %v3211 = vmax.f32 %v3022, 0.0
        %v3212 = vmax.f32 %v3026, 0.0
        %v3213 = vmax.f32 %v3028, 0.0
        %v3214 = vmax.f32 %v3030, 0.0
        %v3215 = vmax.f32 %v3032, 0.0
        %v3216 = vmax.f32 %v3036, 0.0
        %v3217 = vmax.f32 %v3038, 0.0
        %v3218 = vmax.f32 %v3040, 0.0
        %v3219 = vmax.f32 %v3042, 0.0
        %v3220 = vmax.f32 %v3046, 0.0
        %v3221 = vmax.f32 %v3048, 0.0
        %v3222 = vmax.f32 %v3050, 0.0
        %v3223 = vmax.f32 %v3052, 0.0
        %v3224 = vmax.f32 %v3056, 0.0
        %v3225 = vmax.f32 %v3058, 0.0
        %v3226 = vmax.f32 %v3060, 0.0
        %v3227 = vmax.f32 %v3062, 0.0
        %v3228 = vmax.f32 %v3066, 0.0
        %v3229 = vmax.f32 %v3068, 0.0
        %v3230 = vmax.f32 %v3070, 0.0
        %v3231 = vmax.f32 %v3072, 0.0
        %v3232 = vmax.f32 %v3076, 0.0
        %v3233 = vmax.f32 %v3078, 0.0
        %v3234 = vmax.f32 %v3080, 0.0
        %v3235 = vmax.f32 %v3082, 0.0
        %v3236 = vmax.f32 %v3086, 0.0
        %v3237 = vmax.f32 %v3088, 0.0
        %v3238 = vmax.f32 %v3090, 0.0
        %v3239 = vmax.f32 %v3092, 0.0
        %v3240 = vmax.f32 %v3096, 0.0
        %v3241 = vmax.f32 %v3098, 0.0
        %v3242 = vmax.f32 %v3100, 0.0
        %v3243 = vmax.f32 %v3102, 0.0
        %v3244 = vmax.f32 %v3106, 0.0
        %v3245 = vmax.f32 %v3108, 0.0
        %v3246 = vmax.f32 %v3110, 0.0
        %v3247 = vmax.f32 %v3112, 0.0
        %v3248 = vmax.f32 %v3116, 0.0
        %v3249 = vmax.f32 %v3118, 0.0
        %v3250 = vmax.f32 %v3120, 0.0
        %v3251 = vmax.f32 %v3122, 0.0
        %v3252 = vpack.c.bf16 %v3126, %v3124
        %v3253 = vpack.c.bf16 %v3127, %v3125
        %v3254 = vpack.c.bf16 %v3130, %v3128
        %v3255 = vpack.c.bf16 %v3131, %v3129
        %v3256 = vpack.c.bf16 %v3134, %v3132
        %v3257 = vpack.c.bf16 %v3135, %v3133
        %v3258 = vpack.c.bf16 %v3138, %v3136
        %v3259 = vpack.c.bf16 %v3139, %v3137
        %v3260 = vpack.c.bf16 %v3142, %v3140
        %v3261 = vpack.c.bf16 %v3143, %v3141
        %v3262 = vpack.c.bf16 %v3146, %v3144
        %v3263 = vpack.c.bf16 %v3147, %v3145
        %v3264 = vpack.c.bf16 %v3150, %v3148
        %v3265 = vpack.c.bf16 %v3151, %v3149
        %v3266 = vpack.c.bf16 %v3154, %v3152
        %v3267 = vpack.c.bf16 %v3155, %v3153
        %v3268 = vpack.c.bf16 %v3158, %v3156
        %v3269 = vpack.c.bf16 %v3159, %v3157
        %v3270 = vpack.c.bf16 %v3162, %v3160
        %v3271 = vpack.c.bf16 %v3163, %v3161
        %v3272 = vpack.c.bf16 %v3166, %v3164
        %v3273 = vpack.c.bf16 %v3167, %v3165
        %v3274 = vpack.c.bf16 %v3170, %v3168
        %v3275 = vpack.c.bf16 %v3171, %v3169
        %v3276 = vpack.c.bf16 %v3174, %v3172
        %v3277 = vpack.c.bf16 %v3175, %v3173
        %v3278 = vpack.c.bf16 %v3178, %v3176
        %v3279 = vpack.c.bf16 %v3179, %v3177
        %v3280 = vpack.c.bf16 %v3182, %v3180
        %v3281 = vpack.c.bf16 %v3183, %v3181
        %v3282 = vpack.c.bf16 %v3186, %v3184
        %v3283 = vpack.c.bf16 %v3187, %v3185
        %v3284 = vpack.c.bf16 %v3190, %v3188
        %v3285 = vpack.c.bf16 %v3191, %v3189
        %v3286 = vpack.c.bf16 %v3194, %v3192
        %v3287 = vpack.c.bf16 %v3195, %v3193
        %v3288 = vpack.c.bf16 %v3198, %v3196
        %v3289 = vpack.c.bf16 %v3199, %v3197
        %v3290 = vpack.c.bf16 %v3202, %v3200
        %v3291 = vpack.c.bf16 %v3203, %v3201
        %v3292 = vpack.c.bf16 %v3206, %v3204
        %v3293 = vpack.c.bf16 %v3207, %v3205
        %v3294 = vpack.c.bf16 %v3210, %v3208
        %v3295 = vpack.c.bf16 %v3211, %v3209
        %v3296 = vpack.c.bf16 %v3214, %v3212
        %v3297 = vpack.c.bf16 %v3215, %v3213
        %v3298 = vpack.c.bf16 %v3218, %v3216
        %v3299 = vpack.c.bf16 %v3219, %v3217
        %v3300 = vpack.c.bf16 %v3222, %v3220
        %v3301 = vpack.c.bf16 %v3223, %v3221
        %v3302 = vpack.c.bf16 %v3226, %v3224
        %v3303 = vpack.c.bf16 %v3227, %v3225
        %v3304 = vpack.c.bf16 %v3230, %v3228
        %v3305 = vpack.c.bf16 %v3231, %v3229
        %v3306 = vpack.c.bf16 %v3234, %v3232
        %v3307 = vpack.c.bf16 %v3235, %v3233
        %v3308 = vpack.c.bf16 %v3238, %v3236
        %v3309 = vpack.c.bf16 %v3239, %v3237
        %v3310 = vpack.c.bf16 %v3242, %v3240
        %v3311 = vpack.c.bf16 %v3243, %v3241
        %v3312 = vpack.c.bf16 %v3246, %v3244
        %v3313 = vpack.c.bf16 %v3247, %v3245
        %v3314 = vpack.c.bf16 %v3250, %v3248
        %v3315 = vpack.c.bf16 %v3251, %v3249
        %s3316 = scalar_lea.vmem [#allocation7], 512
        %v3317 = vld [vmem:[%s3316] sm:$0xff]
        %v3318 = vld [vmem:[%s3316 + $0x8] sm:$0xff]
        %v3319 = vld [vmem:[%s3316 + $0x10] sm:$0xff]
        %v3320 = vld [vmem:[%s3316 + $0x18] sm:$0xff]
        %v3321 = vld [vmem:[%s3316 + $0x20] sm:$0xff]
        %v3322 = vld [vmem:[%s3316 + $0x28] sm:$0xff]
        %v3323 = vld [vmem:[%s3316 + $0x30] sm:$0xff]
        %v3324 = vld [vmem:[%s3316 + $0x38] sm:$0xff]
        %v3325 = vld [vmem:[%s3316 + $0x40] sm:$0xff]
        %v3326 = vld [vmem:[%s3316 + $0x48] sm:$0xff]
        %v3327 = vld [vmem:[%s3316 + $0x50] sm:$0xff]
        %v3328 = vld [vmem:[%s3316 + $0x58] sm:$0xff]
        %v3329 = vld [vmem:[%s3316 + $0x60] sm:$0xff]
        %v3330 = vld [vmem:[%s3316 + $0x68] sm:$0xff]
        %v3331 = vld [vmem:[%s3316 + $0x70] sm:$0xff]
        %v3332 = vld [vmem:[%s3316 + $0x78] sm:$0xff]
        %v3333 = vld [vmem:[%s3316 + $0x80] sm:$0xff]
        %v3334 = vld [vmem:[%s3316 + $0x88] sm:$0xff]
        %v3335 = vld [vmem:[%s3316 + $0x90] sm:$0xff]
        %v3336 = vld [vmem:[%s3316 + $0x98] sm:$0xff]
        %v3337 = vld [vmem:[%s3316 + $0xa0] sm:$0xff]
        %v3338 = vld [vmem:[%s3316 + $0xa8] sm:$0xff]
        %v3339 = vld [vmem:[%s3316 + $0xb0] sm:$0xff]
        %v3340 = vld [vmem:[%s3316 + $0xb8] sm:$0xff]
        %v3341 = vld [vmem:[%s3316 + $0xc0] sm:$0xff]
        %v3342 = vld [vmem:[%s3316 + $0xc8] sm:$0xff]
        %v3343 = vld [vmem:[%s3316 + $0xd0] sm:$0xff]
        %v3344 = vld [vmem:[%s3316 + $0xd8] sm:$0xff]
        %v3345 = vld [vmem:[%s3316 + $0xe0] sm:$0xff]
        %v3346 = vld [vmem:[%s3316 + $0xe8] sm:$0xff]
        %v3347 = vld [vmem:[%s3316 + $0xf0] sm:$0xff]
        %v3348 = vld [vmem:[%s3316 + $0xf8] sm:$0xff]
        %s3349 = scalar_lea.vmem [#allocation8], 3
        %v3350 = vld [vmem:[%s3349] ss:$8 sm:$0x3]
        %v3352 = vlaneseq
        %v3353 = vshrl.u32 %v3352, 7
        %v3354 = vsub.s32 0, %v3353
        %v3355 = vrot.slane %v3350, %v3354
        %v3356 = vlaneseq
        %v3357 = vshrl.u32 %v3356, 7
        %v3358 = vsub.s32 1, %v3357
        %v3359 = vrot.slane %v3350, %v3358
        %v3394 = vunpack.c.l.b16 %v3317
        %v3395 = vunpack.c.h.b16 %v3317
        %v3396 = vunpack.c.l.b16 %v3318
        %v3397 = vunpack.c.h.b16 %v3318
        %v3398 = vunpack.c.l.b16 %v3319
        %v3399 = vunpack.c.h.b16 %v3319
        %v3400 = vunpack.c.l.b16 %v3320
        %v3401 = vunpack.c.h.b16 %v3320
        %v3402 = vunpack.c.l.b16 %v3321
        %v3403 = vunpack.c.h.b16 %v3321
        %v3404 = vunpack.c.l.b16 %v3322
        %v3405 = vunpack.c.h.b16 %v3322
        %v3406 = vunpack.c.l.b16 %v3323
        %v3407 = vunpack.c.h.b16 %v3323
        %v3408 = vunpack.c.l.b16 %v3324
        %v3409 = vunpack.c.h.b16 %v3324
        %v3410 = vunpack.c.l.b16 %v3325
        %v3411 = vunpack.c.h.b16 %v3325
        %v3412 = vunpack.c.l.b16 %v3326
        %v3413 = vunpack.c.h.b16 %v3326
        %v3414 = vunpack.c.l.b16 %v3327
        %v3415 = vunpack.c.h.b16 %v3327
        %v3416 = vunpack.c.l.b16 %v3328
        %v3417 = vunpack.c.h.b16 %v3328
        %v3418 = vunpack.c.l.b16 %v3329
        %v3419 = vunpack.c.h.b16 %v3329
        %v3420 = vunpack.c.l.b16 %v3330
        %v3421 = vunpack.c.h.b16 %v3330
        %v3422 = vunpack.c.l.b16 %v3331
        %v3423 = vunpack.c.h.b16 %v3331
        %v3424 = vunpack.c.l.b16 %v3332
        %v3425 = vunpack.c.h.b16 %v3332
        %v3426 = vunpack.c.l.b16 %v3333
        %v3427 = vunpack.c.h.b16 %v3333
        %v3428 = vunpack.c.l.b16 %v3334
        %v3429 = vunpack.c.h.b16 %v3334
        %v3430 = vunpack.c.l.b16 %v3335
        %v3431 = vunpack.c.h.b16 %v3335
        %v3432 = vunpack.c.l.b16 %v3336
        %v3433 = vunpack.c.h.b16 %v3336
        %v3434 = vunpack.c.l.b16 %v3337
        %v3435 = vunpack.c.h.b16 %v3337
        %v3436 = vunpack.c.l.b16 %v3338
        %v3437 = vunpack.c.h.b16 %v3338
        %v3438 = vunpack.c.l.b16 %v3339
        %v3439 = vunpack.c.h.b16 %v3339
        %v3440 = vunpack.c.l.b16 %v3340
        %v3441 = vunpack.c.h.b16 %v3340
        %v3442 = vunpack.c.l.b16 %v3341
        %v3443 = vunpack.c.h.b16 %v3341
        %v3444 = vunpack.c.l.b16 %v3342
        %v3445 = vunpack.c.h.b16 %v3342
        %v3446 = vunpack.c.l.b16 %v3343
        %v3447 = vunpack.c.h.b16 %v3343
        %v3448 = vunpack.c.l.b16 %v3344
        %v3449 = vunpack.c.h.b16 %v3344
        %v3450 = vunpack.c.l.b16 %v3345
        %v3451 = vunpack.c.h.b16 %v3345
        %v3452 = vunpack.c.l.b16 %v3346
        %v3453 = vunpack.c.h.b16 %v3346
        %v3454 = vunpack.c.l.b16 %v3347
        %v3455 = vunpack.c.h.b16 %v3347
        %v3456 = vunpack.c.l.b16 %v3348
        %v3457 = vunpack.c.h.b16 %v3348
        %v3458 = vpack.c.b16 %v3396, %v3394
        %v3459 = vpack.c.b16 %v3397, %v3395
        %v3460 = vpack.c.b16 %v3400, %v3398
        %v3461 = vpack.c.b16 %v3401, %v3399
        %v3462 = vpack.c.b16 %v3404, %v3402
        %v3463 = vpack.c.b16 %v3405, %v3403
        %v3464 = vpack.c.b16 %v3408, %v3406
        %v3465 = vpack.c.b16 %v3409, %v3407
        %v3466 = vpack.c.b16 %v3412, %v3410
        %v3467 = vpack.c.b16 %v3413, %v3411
        %v3468 = vpack.c.b16 %v3416, %v3414
        %v3469 = vpack.c.b16 %v3417, %v3415
        %v3470 = vpack.c.b16 %v3420, %v3418
        %v3471 = vpack.c.b16 %v3421, %v3419
        %v3472 = vpack.c.b16 %v3424, %v3422
        %v3473 = vpack.c.b16 %v3425, %v3423
        %v3474 = vpack.c.b16 %v3428, %v3426
        %v3475 = vpack.c.b16 %v3429, %v3427
        %v3476 = vpack.c.b16 %v3432, %v3430
        %v3477 = vpack.c.b16 %v3433, %v3431
        %v3478 = vpack.c.b16 %v3436, %v3434
        %v3479 = vpack.c.b16 %v3437, %v3435
        %v3480 = vpack.c.b16 %v3440, %v3438
        %v3481 = vpack.c.b16 %v3441, %v3439
        %v3482 = vpack.c.b16 %v3444, %v3442
        %v3483 = vpack.c.b16 %v3445, %v3443
        %v3484 = vpack.c.b16 %v3448, %v3446
        %v3485 = vpack.c.b16 %v3449, %v3447
        %v3486 = vpack.c.b16 %v3452, %v3450
        %v3487 = vpack.c.b16 %v3453, %v3451
        %v3488 = vpack.c.b16 %v3456, %v3454
        %v3489 = vpack.c.b16 %v3457, %v3455
        %3522 = vmatprep.subr.bf16.mxu0 %v3459
        %3523 = vmatpush1.bf16.msra.mxu0 %v3458
        %3524 = vmatprep.subr.bf16.mxu0 %v3461
        %3525 = vmatpush1.bf16.msra.mxu0 %v3460
        %3526 = vmatprep.subr.bf16.mxu0 %v3463
        %3527 = vmatpush1.bf16.msra.mxu0 %v3462
        %3528 = vmatprep.subr.bf16.mxu0 %v3465
        %3529 = vmatpush1.bf16.msra.mxu0 %v3464
        %3530 = vmatprep.subr.bf16.mxu0 %v3467
        %3531 = vmatpush1.bf16.msra.mxu0 %v3466
        %3532 = vmatprep.subr.bf16.mxu0 %v3469
        %3533 = vmatpush1.bf16.msra.mxu0 %v3468
        %3534 = vmatprep.subr.bf16.mxu0 %v3471
        %3535 = vmatpush1.bf16.msra.mxu0 %v3470
        %3536 = vmatprep.subr.bf16.mxu0 %v3473
        %3537 = vmatpush1.bf16.msra.mxu0 %v3472
        %3538 = vmatprep.subr.bf16.mxu0 %v3475
        %3539 = vmatpush1.bf16.msra.mxu0 %v3474
        %3540 = vmatprep.subr.bf16.mxu0 %v3477
        %3541 = vmatpush1.bf16.msra.mxu0 %v3476
        %3542 = vmatprep.subr.bf16.mxu0 %v3479
        %3543 = vmatpush1.bf16.msra.mxu0 %v3478
        %3544 = vmatprep.subr.bf16.mxu0 %v3481
        %3545 = vmatpush1.bf16.msra.mxu0 %v3480
        %3546 = vmatprep.subr.bf16.mxu0 %v3483
        %3547 = vmatpush1.bf16.msra.mxu0 %v3482
        %3548 = vmatprep.subr.bf16.mxu0 %v3485
        %3549 = vmatpush1.bf16.msra.mxu0 %v3484
        %3550 = vmatprep.subr.bf16.mxu0 %v3487
        %3551 = vmatpush1.bf16.msra.mxu0 %v3486
        %3552 = vmatprep.subr.bf16.mxu0 %v3489
        %3553 = vmatpush1.bf16.msra.mxu0 %v3488
        %3554 = vmatprep.mubr.bf16.mxu0 %v3253
        %3555 = vmatmul.mubr.bf16.gmra.mrb[0].mxu0 %v3252
        %v3556 = vpop.f32.mrb[0].mxu0
        %v3557 = vadd.f32 %v3355, %v3556
        %v3558 = vpop.f32.mrb[0].mxu0
        %v3559 = vadd.f32 %v3359, %v3558
        %v3560 = vpop.f32.mrb[0].mxu0
        %v3561 = vadd.f32 %v3355, %v3560
        %v3562 = vpop.f32.mrb[0].mxu0
        %v3563 = vadd.f32 %v3359, %v3562
        %3564 = vmatprep.mubr.bf16.mxu0 %v3255
        %3565 = vmatmul.mubr.bf16.gmra.mrb[0].mxu0 %v3254
        %v3566 = vpop.f32.mrb[0].mxu0
        %v3567 = vadd.f32 %v3355, %v3566
        %v3568 = vpop.f32.mrb[0].mxu0
        %v3569 = vadd.f32 %v3359, %v3568
        %v3570 = vpop.f32.mrb[0].mxu0
        %v3571 = vadd.f32 %v3355, %v3570
        %v3572 = vpop.f32.mrb[0].mxu0
        %v3573 = vadd.f32 %v3359, %v3572
        %3574 = vmatprep.mubr.bf16.mxu0 %v3257
        %3575 = vmatmul.mubr.bf16.gmra.mrb[0].mxu0 %v3256
        %v3576 = vpop.f32.mrb[0].mxu0
        %v3577 = vadd.f32 %v3355, %v3576
        %v3578 = vpop.f32.mrb[0].mxu0
        %v3579 = vadd.f32 %v3359, %v3578
        %v3580 = vpop.f32.mrb[0].mxu0
        %v3581 = vadd.f32 %v3355, %v3580
        %v3582 = vpop.f32.mrb[0].mxu0
        %v3583 = vadd.f32 %v3359, %v3582
        %3584 = vmatprep.mubr.bf16.mxu0 %v3259
        %3585 = vmatmul.mubr.bf16.gmra.mrb[0].mxu0 %v3258
        %v3586 = vpop.f32.mrb[0].mxu0
        %v3587 = vadd.f32 %v3355, %v3586
        %v3588 = vpop.f32.mrb[0].mxu0
        %v3589 = vadd.f32 %v3359, %v3588
        %v3590 = vpop.f32.mrb[0].mxu0
        %v3591 = vadd.f32 %v3355, %v3590
        %v3592 = vpop.f32.mrb[0].mxu0
        %v3593 = vadd.f32 %v3359, %v3592
        %3594 = vmatprep.mubr.bf16.mxu0 %v3261
        %3595 = vmatmul.mubr.bf16.gmra.mrb[0].mxu0 %v3260
        %v3596 = vpop.f32.mrb[0].mxu0
        %v3597 = vadd.f32 %v3355, %v3596
        %v3598 = vpop.f32.mrb[0].mxu0
        %v3599 = vadd.f32 %v3359, %v3598
        %v3600 = vpop.f32.mrb[0].mxu0
        %v3601 = vadd.f32 %v3355, %v3600
        %v3602 = vpop.f32.mrb[0].mxu0
        %v3603 = vadd.f32 %v3359, %v3602
        %3604 = vmatprep.mubr.bf16.mxu0 %v3263
        %3605 = vmatmul.mubr.bf16.gmra.mrb[0].mxu0 %v3262
        %v3606 = vpop.f32.mrb[0].mxu0
        %v3607 = vadd.f32 %v3355, %v3606
        %v3608 = vpop.f32.mrb[0].mxu0
        %v3609 = vadd.f32 %v3359, %v3608
        %v3610 = vpop.f32.mrb[0].mxu0
        %v3611 = vadd.f32 %v3355, %v3610
        %v3612 = vpop.f32.mrb[0].mxu0
        %v3613 = vadd.f32 %v3359, %v3612
        %3614 = vmatprep.mubr.bf16.mxu0 %v3265
        %3615 = vmatmul.mubr.bf16.gmra.mrb[0].mxu0 %v3264
        %v3616 = vpop.f32.mrb[0].mxu0
        %v3617 = vadd.f32 %v3355, %v3616
        %v3618 = vpop.f32.mrb[0].mxu0
        %v3619 = vadd.f32 %v3359, %v3618
        %v3620 = vpop.f32.mrb[0].mxu0
        %v3621 = vadd.f32 %v3355, %v3620
        %v3622 = vpop.f32.mrb[0].mxu0
        %v3623 = vadd.f32 %v3359, %v3622
        %3624 = vmatprep.mubr.bf16.mxu0 %v3267
        %3625 = vmatmul.mubr.bf16.gmra.mrb[0].mxu0 %v3266
        %v3626 = vpop.f32.mrb[0].mxu0
        %v3627 = vadd.f32 %v3355, %v3626
        %v3628 = vpop.f32.mrb[0].mxu0
        %v3629 = vadd.f32 %v3359, %v3628
        %v3630 = vpop.f32.mrb[0].mxu0
        %v3631 = vadd.f32 %v3355, %v3630
        %v3632 = vpop.f32.mrb[0].mxu0
        %v3633 = vadd.f32 %v3359, %v3632
        %3634 = vmatprep.mubr.bf16.mxu0 %v3269
        %3635 = vmatmul.mubr.bf16.gmra.mrb[0].mxu0 %v3268
        %v3636 = vpop.f32.mrb[0].mxu0
        %v3637 = vadd.f32 %v3355, %v3636
        %v3638 = vpop.f32.mrb[0].mxu0
        %v3639 = vadd.f32 %v3359, %v3638
        %v3640 = vpop.f32.mrb[0].mxu0
        %v3641 = vadd.f32 %v3355, %v3640
        %v3642 = vpop.f32.mrb[0].mxu0
        %v3643 = vadd.f32 %v3359, %v3642
        %3644 = vmatprep.mubr.bf16.mxu0 %v3271
        %3645 = vmatmul.mubr.bf16.gmra.mrb[0].mxu0 %v3270
        %v3646 = vpop.f32.mrb[0].mxu0
        %v3647 = vadd.f32 %v3355, %v3646
        %v3648 = vpop.f32.mrb[0].mxu0
        %v3649 = vadd.f32 %v3359, %v3648
        %v3650 = vpop.f32.mrb[0].mxu0
        %v3651 = vadd.f32 %v3355, %v3650
        %v3652 = vpop.f32.mrb[0].mxu0
        %v3653 = vadd.f32 %v3359, %v3652
        %3654 = vmatprep.mubr.bf16.mxu0 %v3273
        %3655 = vmatmul.mubr.bf16.gmra.mrb[0].mxu0 %v3272
        %v3656 = vpop.f32.mrb[0].mxu0
        %v3657 = vadd.f32 %v3355, %v3656
        %v3658 = vpop.f32.mrb[0].mxu0
        %v3659 = vadd.f32 %v3359, %v3658
        %v3660 = vpop.f32.mrb[0].mxu0
        %v3661 = vadd.f32 %v3355, %v3660
        %v3662 = vpop.f32.mrb[0].mxu0
        %v3663 = vadd.f32 %v3359, %v3662
        %3664 = vmatprep.mubr.bf16.mxu0 %v3275
        %3665 = vmatmul.mubr.bf16.gmra.mrb[0].mxu0 %v3274
        %v3666 = vpop.f32.mrb[0].mxu0
        %v3667 = vadd.f32 %v3355, %v3666
        %v3668 = vpop.f32.mrb[0].mxu0
        %v3669 = vadd.f32 %v3359, %v3668
        %v3670 = vpop.f32.mrb[0].mxu0
        %v3671 = vadd.f32 %v3355, %v3670
        %v3672 = vpop.f32.mrb[0].mxu0
        %v3673 = vadd.f32 %v3359, %v3672
        %3674 = vmatprep.mubr.bf16.mxu0 %v3277
        %3675 = vmatmul.mubr.bf16.gmra.mrb[0].mxu0 %v3276
        %v3676 = vpop.f32.mrb[0].mxu0
        %v3677 = vadd.f32 %v3355, %v3676
        %v3678 = vpop.f32.mrb[0].mxu0
        %v3679 = vadd.f32 %v3359, %v3678
        %v3680 = vpop.f32.mrb[0].mxu0
        %v3681 = vadd.f32 %v3355, %v3680
        %v3682 = vpop.f32.mrb[0].mxu0
        %v3683 = vadd.f32 %v3359, %v3682
        %3684 = vmatprep.mubr.bf16.mxu0 %v3279
        %3685 = vmatmul.mubr.bf16.gmra.mrb[0].mxu0 %v3278
        %v3686 = vpop.f32.mrb[0].mxu0
        %v3687 = vadd.f32 %v3355, %v3686
        %v3688 = vpop.f32.mrb[0].mxu0
        %v3689 = vadd.f32 %v3359, %v3688
        %v3690 = vpop.f32.mrb[0].mxu0
        %v3691 = vadd.f32 %v3355, %v3690
        %v3692 = vpop.f32.mrb[0].mxu0
        %v3693 = vadd.f32 %v3359, %v3692
        %3694 = vmatprep.mubr.bf16.mxu0 %v3281
        %3695 = vmatmul.mubr.bf16.gmra.mrb[0].mxu0 %v3280
        %v3696 = vpop.f32.mrb[0].mxu0
        %v3697 = vadd.f32 %v3355, %v3696
        %v3698 = vpop.f32.mrb[0].mxu0
        %v3699 = vadd.f32 %v3359, %v3698
        %v3700 = vpop.f32.mrb[0].mxu0
        %v3701 = vadd.f32 %v3355, %v3700
        %v3702 = vpop.f32.mrb[0].mxu0
        %v3703 = vadd.f32 %v3359, %v3702
        %3704 = vmatprep.mubr.bf16.mxu0 %v3283
        %3705 = vmatmul.mubr.bf16.gmra.mrb[0].mxu0 %v3282
        %v3706 = vpop.f32.mrb[0].mxu0
        %v3707 = vadd.f32 %v3355, %v3706
        %v3708 = vpop.f32.mrb[0].mxu0
        %v3709 = vadd.f32 %v3359, %v3708
        %v3710 = vpop.f32.mrb[0].mxu0
        %v3711 = vadd.f32 %v3355, %v3710
        %v3712 = vpop.f32.mrb[0].mxu0
        %v3713 = vadd.f32 %v3359, %v3712
        %3714 = vmatprep.mubr.bf16.mxu0 %v3285
        %3715 = vmatmul.mubr.bf16.gmra.mrb[0].mxu0 %v3284
        %v3716 = vpop.f32.mrb[0].mxu0
        %v3717 = vadd.f32 %v3355, %v3716
        %v3718 = vpop.f32.mrb[0].mxu0
        %v3719 = vadd.f32 %v3359, %v3718
        %v3720 = vpop.f32.mrb[0].mxu0
        %v3721 = vadd.f32 %v3355, %v3720
        %v3722 = vpop.f32.mrb[0].mxu0
        %v3723 = vadd.f32 %v3359, %v3722
        %3724 = vmatprep.mubr.bf16.mxu0 %v3287
        %3725 = vmatmul.mubr.bf16.gmra.mrb[0].mxu0 %v3286
        %v3726 = vpop.f32.mrb[0].mxu0
        %v3727 = vadd.f32 %v3355, %v3726
        %v3728 = vpop.f32.mrb[0].mxu0
        %v3729 = vadd.f32 %v3359, %v3728
        %v3730 = vpop.f32.mrb[0].mxu0
        %v3731 = vadd.f32 %v3355, %v3730
        %v3732 = vpop.f32.mrb[0].mxu0
        %v3733 = vadd.f32 %v3359, %v3732
        %3734 = vmatprep.mubr.bf16.mxu0 %v3289
        %3735 = vmatmul.mubr.bf16.gmra.mrb[0].mxu0 %v3288
        %v3736 = vpop.f32.mrb[0].mxu0
        %v3737 = vadd.f32 %v3355, %v3736
        %v3738 = vpop.f32.mrb[0].mxu0
        %v3739 = vadd.f32 %v3359, %v3738
        %v3740 = vpop.f32.mrb[0].mxu0
        %v3741 = vadd.f32 %v3355, %v3740
        %v3742 = vpop.f32.mrb[0].mxu0
        %v3743 = vadd.f32 %v3359, %v3742
        %3744 = vmatprep.mubr.bf16.mxu0 %v3291
        %3745 = vmatmul.mubr.bf16.gmra.mrb[0].mxu0 %v3290
        %v3746 = vpop.f32.mrb[0].mxu0
        %v3747 = vadd.f32 %v3355, %v3746
        %v3748 = vpop.f32.mrb[0].mxu0
        %v3749 = vadd.f32 %v3359, %v3748
        %v3750 = vpop.f32.mrb[0].mxu0
        %v3751 = vadd.f32 %v3355, %v3750
        %v3752 = vpop.f32.mrb[0].mxu0
        %v3753 = vadd.f32 %v3359, %v3752
        %3754 = vmatprep.mubr.bf16.mxu0 %v3293
        %3755 = vmatmul.mubr.bf16.gmra.mrb[0].mxu0 %v3292
        %v3756 = vpop.f32.mrb[0].mxu0
        %v3757 = vadd.f32 %v3355, %v3756
        %v3758 = vpop.f32.mrb[0].mxu0
        %v3759 = vadd.f32 %v3359, %v3758
        %v3760 = vpop.f32.mrb[0].mxu0
        %v3761 = vadd.f32 %v3355, %v3760
        %v3762 = vpop.f32.mrb[0].mxu0
        %v3763 = vadd.f32 %v3359, %v3762
        %3764 = vmatprep.mubr.bf16.mxu0 %v3295
        %3765 = vmatmul.mubr.bf16.gmra.mrb[0].mxu0 %v3294
        %v3766 = vpop.f32.mrb[0].mxu0
        %v3767 = vadd.f32 %v3355, %v3766
        %v3768 = vpop.f32.mrb[0].mxu0
        %v3769 = vadd.f32 %v3359, %v3768
        %v3770 = vpop.f32.mrb[0].mxu0
        %v3771 = vadd.f32 %v3355, %v3770
        %v3772 = vpop.f32.mrb[0].mxu0
        %v3773 = vadd.f32 %v3359, %v3772
        %3774 = vmatprep.mubr.bf16.mxu0 %v3297
        %3775 = vmatmul.mubr.bf16.gmra.mrb[0].mxu0 %v3296
        %v3776 = vpop.f32.mrb[0].mxu0
        %v3777 = vadd.f32 %v3355, %v3776
        %v3778 = vpop.f32.mrb[0].mxu0
        %v3779 = vadd.f32 %v3359, %v3778
        %v3780 = vpop.f32.mrb[0].mxu0
        %v3781 = vadd.f32 %v3355, %v3780
        %v3782 = vpop.f32.mrb[0].mxu0
        %v3783 = vadd.f32 %v3359, %v3782
        %3784 = vmatprep.mubr.bf16.mxu0 %v3299
        %3785 = vmatmul.mubr.bf16.gmra.mrb[0].mxu0 %v3298
        %v3786 = vpop.f32.mrb[0].mxu0
        %v3787 = vadd.f32 %v3355, %v3786
        %v3788 = vpop.f32.mrb[0].mxu0
        %v3789 = vadd.f32 %v3359, %v3788
        %v3790 = vpop.f32.mrb[0].mxu0
        %v3791 = vadd.f32 %v3355, %v3790
        %v3792 = vpop.f32.mrb[0].mxu0
        %v3793 = vadd.f32 %v3359, %v3792
        %3794 = vmatprep.mubr.bf16.mxu0 %v3301
        %3795 = vmatmul.mubr.bf16.gmra.mrb[0].mxu0 %v3300
        %v3796 = vpop.f32.mrb[0].mxu0
        %v3797 = vadd.f32 %v3355, %v3796
        %v3798 = vpop.f32.mrb[0].mxu0
        %v3799 = vadd.f32 %v3359, %v3798
        %v3800 = vpop.f32.mrb[0].mxu0
        %v3801 = vadd.f32 %v3355, %v3800
        %v3802 = vpop.f32.mrb[0].mxu0
        %v3803 = vadd.f32 %v3359, %v3802
        %3804 = vmatprep.mubr.bf16.mxu0 %v3303
        %3805 = vmatmul.mubr.bf16.gmra.mrb[0].mxu0 %v3302
        %v3806 = vpop.f32.mrb[0].mxu0
        %v3807 = vadd.f32 %v3355, %v3806
        %v3808 = vpop.f32.mrb[0].mxu0
        %v3809 = vadd.f32 %v3359, %v3808
        %v3810 = vpop.f32.mrb[0].mxu0
        %v3811 = vadd.f32 %v3355, %v3810
        %v3812 = vpop.f32.mrb[0].mxu0
        %v3813 = vadd.f32 %v3359, %v3812
        %3814 = vmatprep.mubr.bf16.mxu0 %v3305
        %3815 = vmatmul.mubr.bf16.gmra.mrb[0].mxu0 %v3304
        %v3816 = vpop.f32.mrb[0].mxu0
        %v3817 = vadd.f32 %v3355, %v3816
        %v3818 = vpop.f32.mrb[0].mxu0
        %v3819 = vadd.f32 %v3359, %v3818
        %v3820 = vpop.f32.mrb[0].mxu0
        %v3821 = vadd.f32 %v3355, %v3820
        %v3822 = vpop.f32.mrb[0].mxu0
        %v3823 = vadd.f32 %v3359, %v3822
        %3824 = vmatprep.mubr.bf16.mxu0 %v3307
        %3825 = vmatmul.mubr.bf16.gmra.mrb[0].mxu0 %v3306
        %v3826 = vpop.f32.mrb[0].mxu0
        %v3827 = vadd.f32 %v3355, %v3826
        %v3828 = vpop.f32.mrb[0].mxu0
        %v3829 = vadd.f32 %v3359, %v3828
        %v3830 = vpop.f32.mrb[0].mxu0
        %v3831 = vadd.f32 %v3355, %v3830
        %v3832 = vpop.f32.mrb[0].mxu0
        %v3833 = vadd.f32 %v3359, %v3832
        %3834 = vmatprep.mubr.bf16.mxu0 %v3309
        %3835 = vmatmul.mubr.bf16.gmra.mrb[0].mxu0 %v3308
        %v3836 = vpop.f32.mrb[0].mxu0
        %v3837 = vadd.f32 %v3355, %v3836
        %v3838 = vpop.f32.mrb[0].mxu0
        %v3839 = vadd.f32 %v3359, %v3838
        %v3840 = vpop.f32.mrb[0].mxu0
        %v3841 = vadd.f32 %v3355, %v3840
        %v3842 = vpop.f32.mrb[0].mxu0
        %v3843 = vadd.f32 %v3359, %v3842
        %3844 = vmatprep.mubr.bf16.mxu0 %v3311
        %3845 = vmatmul.mubr.bf16.gmra.mrb[0].mxu0 %v3310
        %v3846 = vpop.f32.mrb[0].mxu0
        %v3847 = vadd.f32 %v3355, %v3846
        %v3848 = vpop.f32.mrb[0].mxu0
        %v3849 = vadd.f32 %v3359, %v3848
        %v3850 = vpop.f32.mrb[0].mxu0
        %v3851 = vadd.f32 %v3355, %v3850
        %v3852 = vpop.f32.mrb[0].mxu0
        %v3853 = vadd.f32 %v3359, %v3852
        %3854 = vmatprep.mubr.bf16.mxu0 %v3313
        %3855 = vmatmul.mubr.bf16.gmra.mrb[0].mxu0 %v3312
        %v3856 = vpop.f32.mrb[0].mxu0
        %v3857 = vadd.f32 %v3355, %v3856
        %v3858 = vpop.f32.mrb[0].mxu0
        %v3859 = vadd.f32 %v3359, %v3858
        %v3860 = vpop.f32.mrb[0].mxu0
        %v3861 = vadd.f32 %v3355, %v3860
        %v3862 = vpop.f32.mrb[0].mxu0
        %v3863 = vadd.f32 %v3359, %v3862
        %3864 = vmatprep.mubr.bf16.mxu0 %v3315
        %3865 = vmatmul.mubr.bf16.gmra.mrb[0].mxu0 %v3314
        %v3866 = vpop.f32.mrb[0].mxu0
        %v3867 = vadd.f32 %v3355, %v3866
        %v3868 = vpop.f32.mrb[0].mxu0
        %v3869 = vadd.f32 %v3359, %v3868
        %v3870 = vpop.f32.mrb[0].mxu0
        %v3871 = vadd.f32 %v3355, %v3870
        %v3872 = vpop.f32.mrb[0].mxu0
        %v3873 = vadd.f32 %v3359, %v3872
        %3874 = vdwg.mxu0
        %v3875 = vmax.f32 %v3557, 0.0
        %v3876 = vmax.f32 %v3559, 0.0
        %v3877 = vmax.f32 %v3561, 0.0
        %v3878 = vmax.f32 %v3563, 0.0
        %v3879 = vmax.f32 %v3567, 0.0
        %v3880 = vmax.f32 %v3569, 0.0
        %v3881 = vmax.f32 %v3571, 0.0
        %v3882 = vmax.f32 %v3573, 0.0
        %v3883 = vmax.f32 %v3577, 0.0
        %v3884 = vmax.f32 %v3579, 0.0
        %v3885 = vmax.f32 %v3581, 0.0
        %v3886 = vmax.f32 %v3583, 0.0
        %v3887 = vmax.f32 %v3587, 0.0
        %v3888 = vmax.f32 %v3589, 0.0
        %v3889 = vmax.f32 %v3591, 0.0
        %v3890 = vmax.f32 %v3593, 0.0
        %v3891 = vmax.f32 %v3597, 0.0
        %v3892 = vmax.f32 %v3599, 0.0
        %v3893 = vmax.f32 %v3601, 0.0
        %v3894 = vmax.f32 %v3603, 0.0
        %v3895 = vmax.f32 %v3607, 0.0
        %v3896 = vmax.f32 %v3609, 0.0
        %v3897 = vmax.f32 %v3611, 0.0
        %v3898 = vmax.f32 %v3613, 0.0
        %v3899 = vmax.f32 %v3617, 0.0
        %v3900 = vmax.f32 %v3619, 0.0
        %v3901 = vmax.f32 %v3621, 0.0
        %v3902 = vmax.f32 %v3623, 0.0
        %v3903 = vmax.f32 %v3627, 0.0
        %v3904 = vmax.f32 %v3629, 0.0
        %v3905 = vmax.f32 %v3631, 0.0
        %v3906 = vmax.f32 %v3633, 0.0
        %v3907 = vmax.f32 %v3637, 0.0
        %v3908 = vmax.f32 %v3639, 0.0
        %v3909 = vmax.f32 %v3641, 0.0
        %v3910 = vmax.f32 %v3643, 0.0
        %v3911 = vmax.f32 %v3647, 0.0
        %v3912 = vmax.f32 %v3649, 0.0
        %v3913 = vmax.f32 %v3651, 0.0
        %v3914 = vmax.f32 %v3653, 0.0
        %v3915 = vmax.f32 %v3657, 0.0
        %v3916 = vmax.f32 %v3659, 0.0
        %v3917 = vmax.f32 %v3661, 0.0
        %v3918 = vmax.f32 %v3663, 0.0
        %v3919 = vmax.f32 %v3667, 0.0
        %v3920 = vmax.f32 %v3669, 0.0
        %v3921 = vmax.f32 %v3671, 0.0
        %v3922 = vmax.f32 %v3673, 0.0
        %v3923 = vmax.f32 %v3677, 0.0
        %v3924 = vmax.f32 %v3679, 0.0
        %v3925 = vmax.f32 %v3681, 0.0
        %v3926 = vmax.f32 %v3683, 0.0
        %v3927 = vmax.f32 %v3687, 0.0
        %v3928 = vmax.f32 %v3689, 0.0
        %v3929 = vmax.f32 %v3691, 0.0
        %v3930 = vmax.f32 %v3693, 0.0
        %v3931 = vmax.f32 %v3697, 0.0
        %v3932 = vmax.f32 %v3699, 0.0
        %v3933 = vmax.f32 %v3701, 0.0
        %v3934 = vmax.f32 %v3703, 0.0
        %v3935 = vmax.f32 %v3707, 0.0
        %v3936 = vmax.f32 %v3709, 0.0
        %v3937 = vmax.f32 %v3711, 0.0
        %v3938 = vmax.f32 %v3713, 0.0
        %v3939 = vmax.f32 %v3717, 0.0
        %v3940 = vmax.f32 %v3719, 0.0
        %v3941 = vmax.f32 %v3721, 0.0
        %v3942 = vmax.f32 %v3723, 0.0
        %v3943 = vmax.f32 %v3727, 0.0
        %v3944 = vmax.f32 %v3729, 0.0
        %v3945 = vmax.f32 %v3731, 0.0
        %v3946 = vmax.f32 %v3733, 0.0
        %v3947 = vmax.f32 %v3737, 0.0
        %v3948 = vmax.f32 %v3739, 0.0
        %v3949 = vmax.f32 %v3741, 0.0
        %v3950 = vmax.f32 %v3743, 0.0
        %v3951 = vmax.f32 %v3747, 0.0
        %v3952 = vmax.f32 %v3749, 0.0
        %v3953 = vmax.f32 %v3751, 0.0
        %v3954 = vmax.f32 %v3753, 0.0
        %v3955 = vmax.f32 %v3757, 0.0
        %v3956 = vmax.f32 %v3759, 0.0
        %v3957 = vmax.f32 %v3761, 0.0
        %v3958 = vmax.f32 %v3763, 0.0
        %v3959 = vmax.f32 %v3767, 0.0
        %v3960 = vmax.f32 %v3769, 0.0
        %v3961 = vmax.f32 %v3771, 0.0
        %v3962 = vmax.f32 %v3773, 0.0
        %v3963 = vmax.f32 %v3777, 0.0
        %v3964 = vmax.f32 %v3779, 0.0
        %v3965 = vmax.f32 %v3781, 0.0
        %v3966 = vmax.f32 %v3783, 0.0
        %v3967 = vmax.f32 %v3787, 0.0
        %v3968 = vmax.f32 %v3789, 0.0
        %v3969 = vmax.f32 %v3791, 0.0
        %v3970 = vmax.f32 %v3793, 0.0
        %v3971 = vmax.f32 %v3797, 0.0
        %v3972 = vmax.f32 %v3799, 0.0
        %v3973 = vmax.f32 %v3801, 0.0
        %v3974 = vmax.f32 %v3803, 0.0
        %v3975 = vmax.f32 %v3807, 0.0
        %v3976 = vmax.f32 %v3809, 0.0
        %v3977 = vmax.f32 %v3811, 0.0
        %v3978 = vmax.f32 %v3813, 0.0
        %v3979 = vmax.f32 %v3817, 0.0
        %v3980 = vmax.f32 %v3819, 0.0
        %v3981 = vmax.f32 %v3821, 0.0
        %v3982 = vmax.f32 %v3823, 0.0
        %v3983 = vmax.f32 %v3827, 0.0
        %v3984 = vmax.f32 %v3829, 0.0
        %v3985 = vmax.f32 %v3831, 0.0
        %v3986 = vmax.f32 %v3833, 0.0
        %v3987 = vmax.f32 %v3837, 0.0
        %v3988 = vmax.f32 %v3839, 0.0
        %v3989 = vmax.f32 %v3841, 0.0
        %v3990 = vmax.f32 %v3843, 0.0
        %v3991 = vmax.f32 %v3847, 0.0
        %v3992 = vmax.f32 %v3849, 0.0
        %v3993 = vmax.f32 %v3851, 0.0
        %v3994 = vmax.f32 %v3853, 0.0
        %v3995 = vmax.f32 %v3857, 0.0
        %v3996 = vmax.f32 %v3859, 0.0
        %v3997 = vmax.f32 %v3861, 0.0
        %v3998 = vmax.f32 %v3863, 0.0
        %v3999 = vmax.f32 %v3867, 0.0
        %v4000 = vmax.f32 %v3869, 0.0
        %v4001 = vmax.f32 %v3871, 0.0
        %v4002 = vmax.f32 %v3873, 0.0
        %v4003 = vpack.c.bf16 %v3877, %v3875
        %v4004 = vpack.c.bf16 %v3878, %v3876
        %v4005 = vpack.c.bf16 %v3881, %v3879
        %v4006 = vpack.c.bf16 %v3882, %v3880
        %v4007 = vpack.c.bf16 %v3885, %v3883
        %v4008 = vpack.c.bf16 %v3886, %v3884
        %v4009 = vpack.c.bf16 %v3889, %v3887
        %v4010 = vpack.c.bf16 %v3890, %v3888
        %v4011 = vpack.c.bf16 %v3893, %v3891
        %v4012 = vpack.c.bf16 %v3894, %v3892
        %v4013 = vpack.c.bf16 %v3897, %v3895
        %v4014 = vpack.c.bf16 %v3898, %v3896
        %v4015 = vpack.c.bf16 %v3901, %v3899
        %v4016 = vpack.c.bf16 %v3902, %v3900
        %v4017 = vpack.c.bf16 %v3905, %v3903
        %v4018 = vpack.c.bf16 %v3906, %v3904
        %v4019 = vpack.c.bf16 %v3909, %v3907
        %v4020 = vpack.c.bf16 %v3910, %v3908
        %v4021 = vpack.c.bf16 %v3913, %v3911
        %v4022 = vpack.c.bf16 %v3914, %v3912
        %v4023 = vpack.c.bf16 %v3917, %v3915
        %v4024 = vpack.c.bf16 %v3918, %v3916
        %v4025 = vpack.c.bf16 %v3921, %v3919
        %v4026 = vpack.c.bf16 %v3922, %v3920
        %v4027 = vpack.c.bf16 %v3925, %v3923
        %v4028 = vpack.c.bf16 %v3926, %v3924
        %v4029 = vpack.c.bf16 %v3929, %v3927
        %v4030 = vpack.c.bf16 %v3930, %v3928
        %v4031 = vpack.c.bf16 %v3933, %v3931
        %v4032 = vpack.c.bf16 %v3934, %v3932
        %v4033 = vpack.c.bf16 %v3937, %v3935
        %v4034 = vpack.c.bf16 %v3938, %v3936
        %v4035 = vpack.c.bf16 %v3941, %v3939
        %v4036 = vpack.c.bf16 %v3942, %v3940
        %v4037 = vpack.c.bf16 %v3945, %v3943
        %v4038 = vpack.c.bf16 %v3946, %v3944
        %v4039 = vpack.c.bf16 %v3949, %v3947
        %v4040 = vpack.c.bf16 %v3950, %v3948
        %v4041 = vpack.c.bf16 %v3953, %v3951
        %v4042 = vpack.c.bf16 %v3954, %v3952
        %v4043 = vpack.c.bf16 %v3957, %v3955
        %v4044 = vpack.c.bf16 %v3958, %v3956
        %v4045 = vpack.c.bf16 %v3961, %v3959
        %v4046 = vpack.c.bf16 %v3962, %v3960
        %v4047 = vpack.c.bf16 %v3965, %v3963
        %v4048 = vpack.c.bf16 %v3966, %v3964
        %v4049 = vpack.c.bf16 %v3969, %v3967
        %v4050 = vpack.c.bf16 %v3970, %v3968
        %v4051 = vpack.c.bf16 %v3973, %v3971
        %v4052 = vpack.c.bf16 %v3974, %v3972
        %v4053 = vpack.c.bf16 %v3977, %v3975
        %v4054 = vpack.c.bf16 %v3978, %v3976
        %v4055 = vpack.c.bf16 %v3981, %v3979
        %v4056 = vpack.c.bf16 %v3982, %v3980
        %v4057 = vpack.c.bf16 %v3985, %v3983
        %v4058 = vpack.c.bf16 %v3986, %v3984
        %v4059 = vpack.c.bf16 %v3989, %v3987
        %v4060 = vpack.c.bf16 %v3990, %v3988
        %v4061 = vpack.c.bf16 %v3993, %v3991
        %v4062 = vpack.c.bf16 %v3994, %v3992
        %v4063 = vpack.c.bf16 %v3997, %v3995
        %v4064 = vpack.c.bf16 %v3998, %v3996
        %v4065 = vpack.c.bf16 %v4001, %v3999
        %v4066 = vpack.c.bf16 %v4002, %v4000
        %s4067 = scalar_lea.vmem [#allocation7], 768
        %v4068 = vld [vmem:[%s4067] sm:$0xff]
        %v4069 = vld [vmem:[%s4067 + $0x8] sm:$0xff]
        %v4070 = vld [vmem:[%s4067 + $0x10] sm:$0xff]
        %v4071 = vld [vmem:[%s4067 + $0x18] sm:$0xff]
        %v4072 = vld [vmem:[%s4067 + $0x20] sm:$0xff]
        %v4073 = vld [vmem:[%s4067 + $0x28] sm:$0xff]
        %v4074 = vld [vmem:[%s4067 + $0x30] sm:$0xff]
        %v4075 = vld [vmem:[%s4067 + $0x38] sm:$0xff]
        %v4076 = vld [vmem:[%s4067 + $0x40] sm:$0xff]
        %v4077 = vld [vmem:[%s4067 + $0x48] sm:$0xff]
        %v4078 = vld [vmem:[%s4067 + $0x50] sm:$0xff]
        %v4079 = vld [vmem:[%s4067 + $0x58] sm:$0xff]
        %v4080 = vld [vmem:[%s4067 + $0x60] sm:$0xff]
        %v4081 = vld [vmem:[%s4067 + $0x68] sm:$0xff]
        %v4082 = vld [vmem:[%s4067 + $0x70] sm:$0xff]
        %v4083 = vld [vmem:[%s4067 + $0x78] sm:$0xff]
        %v4084 = vld [vmem:[%s4067 + $0x80] sm:$0xff]
        %v4085 = vld [vmem:[%s4067 + $0x88] sm:$0xff]
        %v4086 = vld [vmem:[%s4067 + $0x90] sm:$0xff]
        %v4087 = vld [vmem:[%s4067 + $0x98] sm:$0xff]
        %v4088 = vld [vmem:[%s4067 + $0xa0] sm:$0xff]
        %v4089 = vld [vmem:[%s4067 + $0xa8] sm:$0xff]
        %v4090 = vld [vmem:[%s4067 + $0xb0] sm:$0xff]
        %v4091 = vld [vmem:[%s4067 + $0xb8] sm:$0xff]
        %v4092 = vld [vmem:[%s4067 + $0xc0] sm:$0xff]
        %v4093 = vld [vmem:[%s4067 + $0xc8] sm:$0xff]
        %v4094 = vld [vmem:[%s4067 + $0xd0] sm:$0xff]
        %v4095 = vld [vmem:[%s4067 + $0xd8] sm:$0xff]
        %v4096 = vld [vmem:[%s4067 + $0xe0] sm:$0xff]
        %v4097 = vld [vmem:[%s4067 + $0xe8] sm:$0xff]
        %v4098 = vld [vmem:[%s4067 + $0xf0] sm:$0xff]
        %v4099 = vld [vmem:[%s4067 + $0xf8] sm:$0xff]
        %s4100 = scalar_lea.vmem [#allocation8], 4
        %v4101 = vld [vmem:[%s4100] ss:$8 sm:$0x3]
        %v4103 = vlaneseq
        %v4104 = vshrl.u32 %v4103, 7
        %v4105 = vsub.s32 0, %v4104
        %v4106 = vrot.slane %v4101, %v4105
        %v4107 = vlaneseq
        %v4108 = vshrl.u32 %v4107, 7
        %v4109 = vsub.s32 1, %v4108
        %v4110 = vrot.slane %v4101, %v4109
        %v4145 = vunpack.c.l.b16 %v4068
        %v4146 = vunpack.c.h.b16 %v4068
        %v4147 = vunpack.c.l.b16 %v4069
        %v4148 = vunpack.c.h.b16 %v4069
        %v4149 = vunpack.c.l.b16 %v4070
        %v4150 = vunpack.c.h.b16 %v4070
        %v4151 = vunpack.c.l.b16 %v4071
        %v4152 = vunpack.c.h.b16 %v4071
        %v4153 = vunpack.c.l.b16 %v4072
        %v4154 = vunpack.c.h.b16 %v4072
        %v4155 = vunpack.c.l.b16 %v4073
        %v4156 = vunpack.c.h.b16 %v4073
        %v4157 = vunpack.c.l.b16 %v4074
        %v4158 = vunpack.c.h.b16 %v4074
        %v4159 = vunpack.c.l.b16 %v4075
        %v4160 = vunpack.c.h.b16 %v4075
        %v4161 = vunpack.c.l.b16 %v4076
        %v4162 = vunpack.c.h.b16 %v4076
        %v4163 = vunpack.c.l.b16 %v4077
        %v4164 = vunpack.c.h.b16 %v4077
        %v4165 = vunpack.c.l.b16 %v4078
        %v4166 = vunpack.c.h.b16 %v4078
        %v4167 = vunpack.c.l.b16 %v4079
        %v4168 = vunpack.c.h.b16 %v4079
        %v4169 = vunpack.c.l.b16 %v4080
        %v4170 = vunpack.c.h.b16 %v4080
        %v4171 = vunpack.c.l.b16 %v4081
        %v4172 = vunpack.c.h.b16 %v4081
        %v4173 = vunpack.c.l.b16 %v4082
        %v4174 = vunpack.c.h.b16 %v4082
        %v4175 = vunpack.c.l.b16 %v4083
        %v4176 = vunpack.c.h.b16 %v4083
        %v4177 = vunpack.c.l.b16 %v4084
        %v4178 = vunpack.c.h.b16 %v4084
        %v4179 = vunpack.c.l.b16 %v4085
        %v4180 = vunpack.c.h.b16 %v4085
        %v4181 = vunpack.c.l.b16 %v4086
        %v4182 = vunpack.c.h.b16 %v4086
        %v4183 = vunpack.c.l.b16 %v4087
        %v4184 = vunpack.c.h.b16 %v4087
        %v4185 = vunpack.c.l.b16 %v4088
        %v4186 = vunpack.c.h.b16 %v4088
        %v4187 = vunpack.c.l.b16 %v4089
        %v4188 = vunpack.c.h.b16 %v4089
        %v4189 = vunpack.c.l.b16 %v4090
        %v4190 = vunpack.c.h.b16 %v4090
        %v4191 = vunpack.c.l.b16 %v4091
        %v4192 = vunpack.c.h.b16 %v4091
        %v4193 = vunpack.c.l.b16 %v4092
        %v4194 = vunpack.c.h.b16 %v4092
        %v4195 = vunpack.c.l.b16 %v4093
        %v4196 = vunpack.c.h.b16 %v4093
        %v4197 = vunpack.c.l.b16 %v4094
        %v4198 = vunpack.c.h.b16 %v4094
        %v4199 = vunpack.c.l.b16 %v4095
        %v4200 = vunpack.c.h.b16 %v4095
        %v4201 = vunpack.c.l.b16 %v4096
        %v4202 = vunpack.c.h.b16 %v4096
        %v4203 = vunpack.c.l.b16 %v4097
        %v4204 = vunpack.c.h.b16 %v4097
        %v4205 = vunpack.c.l.b16 %v4098
        %v4206 = vunpack.c.h.b16 %v4098
        %v4207 = vunpack.c.l.b16 %v4099
        %v4208 = vunpack.c.h.b16 %v4099
        %v4209 = vpack.c.b16 %v4147, %v4145
        %v4210 = vpack.c.b16 %v4148, %v4146
        %v4211 = vpack.c.b16 %v4151, %v4149
        %v4212 = vpack.c.b16 %v4152, %v4150
        %v4213 = vpack.c.b16 %v4155, %v4153
        %v4214 = vpack.c.b16 %v4156, %v4154
        %v4215 = vpack.c.b16 %v4159, %v4157
        %v4216 = vpack.c.b16 %v4160, %v4158
        %v4217 = vpack.c.b16 %v4163, %v4161
        %v4218 = vpack.c.b16 %v4164, %v4162
        %v4219 = vpack.c.b16 %v4167, %v4165
        %v4220 = vpack.c.b16 %v4168, %v4166
        %v4221 = vpack.c.b16 %v4171, %v4169
        %v4222 = vpack.c.b16 %v4172, %v4170
        %v4223 = vpack.c.b16 %v4175, %v4173
        %v4224 = vpack.c.b16 %v4176, %v4174
        %v4225 = vpack.c.b16 %v4179, %v4177
        %v4226 = vpack.c.b16 %v4180, %v4178
        %v4227 = vpack.c.b16 %v4183, %v4181
        %v4228 = vpack.c.b16 %v4184, %v4182
        %v4229 = vpack.c.b16 %v4187, %v4185
        %v4230 = vpack.c.b16 %v4188, %v4186
        %v4231 = vpack.c.b16 %v4191, %v4189
        %v4232 = vpack.c.b16 %v4192, %v4190
        %v4233 = vpack.c.b16 %v4195, %v4193
        %v4234 = vpack.c.b16 %v4196, %v4194
        %v4235 = vpack.c.b16 %v4199, %v4197
        %v4236 = vpack.c.b16 %v4200, %v4198
        %v4237 = vpack.c.b16 %v4203, %v4201
        %v4238 = vpack.c.b16 %v4204, %v4202
        %v4239 = vpack.c.b16 %v4207, %v4205
        %v4240 = vpack.c.b16 %v4208, %v4206
        %4273 = vmatprep.subr.bf16.mxu0 %v4210
        %4274 = vmatpush1.bf16.msra.mxu0 %v4209
        %4275 = vmatprep.subr.bf16.mxu0 %v4212
        %4276 = vmatpush1.bf16.msra.mxu0 %v4211
        %4277 = vmatprep.subr.bf16.mxu0 %v4214
        %4278 = vmatpush1.bf16.msra.mxu0 %v4213
        %4279 = vmatprep.subr.bf16.mxu0 %v4216
        %4280 = vmatpush1.bf16.msra.mxu0 %v4215
        %4281 = vmatprep.subr.bf16.mxu0 %v4218
        %4282 = vmatpush1.bf16.msra.mxu0 %v4217
        %4283 = vmatprep.subr.bf16.mxu0 %v4220
        %4284 = vmatpush1.bf16.msra.mxu0 %v4219
        %4285 = vmatprep.subr.bf16.mxu0 %v4222
        %4286 = vmatpush1.bf16.msra.mxu0 %v4221
        %4287 = vmatprep.subr.bf16.mxu0 %v4224
        %4288 = vmatpush1.bf16.msra.mxu0 %v4223
        %4289 = vmatprep.subr.bf16.mxu0 %v4226
        %4290 = vmatpush1.bf16.msra.mxu0 %v4225
        %4291 = vmatprep.subr.bf16.mxu0 %v4228
        %4292 = vmatpush1.bf16.msra.mxu0 %v4227
        %4293 = vmatprep.subr.bf16.mxu0 %v4230
        %4294 = vmatpush1.bf16.msra.mxu0 %v4229
        %4295 = vmatprep.subr.bf16.mxu0 %v4232
        %4296 = vmatpush1.bf16.msra.mxu0 %v4231
        %4297 = vmatprep.subr.bf16.mxu0 %v4234
        %4298 = vmatpush1.bf16.msra.mxu0 %v4233
        %4299 = vmatprep.subr.bf16.mxu0 %v4236
        %4300 = vmatpush1.bf16.msra.mxu0 %v4235
        %4301 = vmatprep.subr.bf16.mxu0 %v4238
        %4302 = vmatpush1.bf16.msra.mxu0 %v4237
        %4303 = vmatprep.subr.bf16.mxu0 %v4240
        %4304 = vmatpush1.bf16.msra.mxu0 %v4239
        %4305 = vmatprep.mubr.bf16.mxu0 %v4004
        %4306 = vmatmul.mubr.bf16.gmra.mrb[0].mxu0 %v4003
        %v4307 = vpop.f32.mrb[0].mxu0
        %v4308 = vadd.f32 %v4106, %v4307
        %v4309 = vpop.f32.mrb[0].mxu0
        %v4310 = vadd.f32 %v4110, %v4309
        %v4311 = vpop.f32.mrb[0].mxu0
        %v4312 = vadd.f32 %v4106, %v4311
        %v4313 = vpop.f32.mrb[0].mxu0
        %v4314 = vadd.f32 %v4110, %v4313
        %4315 = vmatprep.mubr.bf16.mxu0 %v4006
        %4316 = vmatmul.mubr.bf16.gmra.mrb[0].mxu0 %v4005
        %v4317 = vpop.f32.mrb[0].mxu0
        %v4318 = vadd.f32 %v4106, %v4317
        %v4319 = vpop.f32.mrb[0].mxu0
        %v4320 = vadd.f32 %v4110, %v4319
        %v4321 = vpop.f32.mrb[0].mxu0
        %v4322 = vadd.f32 %v4106, %v4321
        %v4323 = vpop.f32.mrb[0].mxu0
        %v4324 = vadd.f32 %v4110, %v4323
        %4325 = vmatprep.mubr.bf16.mxu0 %v4008
        %4326 = vmatmul.mubr.bf16.gmra.mrb[0].mxu0 %v4007
        %v4327 = vpop.f32.mrb[0].mxu0
        %v4328 = vadd.f32 %v4106, %v4327
        %v4329 = vpop.f32.mrb[0].mxu0
        %v4330 = vadd.f32 %v4110, %v4329
        %v4331 = vpop.f32.mrb[0].mxu0
        %v4332 = vadd.f32 %v4106, %v4331
        %v4333 = vpop.f32.mrb[0].mxu0
        %v4334 = vadd.f32 %v4110, %v4333
        %4335 = vmatprep.mubr.bf16.mxu0 %v4010
        %4336 = vmatmul.mubr.bf16.gmra.mrb[0].mxu0 %v4009
        %v4337 = vpop.f32.mrb[0].mxu0
        %v4338 = vadd.f32 %v4106, %v4337
        %v4339 = vpop.f32.mrb[0].mxu0
        %v4340 = vadd.f32 %v4110, %v4339
        %v4341 = vpop.f32.mrb[0].mxu0
        %v4342 = vadd.f32 %v4106, %v4341
        %v4343 = vpop.f32.mrb[0].mxu0
        %v4344 = vadd.f32 %v4110, %v4343
        %4345 = vmatprep.mubr.bf16.mxu0 %v4012
        %4346 = vmatmul.mubr.bf16.gmra.mrb[0].mxu0 %v4011
        %v4347 = vpop.f32.mrb[0].mxu0
        %v4348 = vadd.f32 %v4106, %v4347
        %v4349 = vpop.f32.mrb[0].mxu0
        %v4350 = vadd.f32 %v4110, %v4349
        %v4351 = vpop.f32.mrb[0].mxu0
        %v4352 = vadd.f32 %v4106, %v4351
        %v4353 = vpop.f32.mrb[0].mxu0
        %v4354 = vadd.f32 %v4110, %v4353
        %4355 = vmatprep.mubr.bf16.mxu0 %v4014
        %4356 = vmatmul.mubr.bf16.gmra.mrb[0].mxu0 %v4013
        %v4357 = vpop.f32.mrb[0].mxu0
        %v4358 = vadd.f32 %v4106, %v4357
        %v4359 = vpop.f32.mrb[0].mxu0
        %v4360 = vadd.f32 %v4110, %v4359
        %v4361 = vpop.f32.mrb[0].mxu0
        %v4362 = vadd.f32 %v4106, %v4361
        %v4363 = vpop.f32.mrb[0].mxu0
        %v4364 = vadd.f32 %v4110, %v4363
        %4365 = vmatprep.mubr.bf16.mxu0 %v4016
        %4366 = vmatmul.mubr.bf16.gmra.mrb[0].mxu0 %v4015
        %v4367 = vpop.f32.mrb[0].mxu0
        %v4368 = vadd.f32 %v4106, %v4367
        %v4369 = vpop.f32.mrb[0].mxu0
        %v4370 = vadd.f32 %v4110, %v4369
        %v4371 = vpop.f32.mrb[0].mxu0
        %v4372 = vadd.f32 %v4106, %v4371
        %v4373 = vpop.f32.mrb[0].mxu0
        %v4374 = vadd.f32 %v4110, %v4373
        %4375 = vmatprep.mubr.bf16.mxu0 %v4018
        %4376 = vmatmul.mubr.bf16.gmra.mrb[0].mxu0 %v4017
        %v4377 = vpop.f32.mrb[0].mxu0
        %v4378 = vadd.f32 %v4106, %v4377
        %v4379 = vpop.f32.mrb[0].mxu0
        %v4380 = vadd.f32 %v4110, %v4379
        %v4381 = vpop.f32.mrb[0].mxu0
        %v4382 = vadd.f32 %v4106, %v4381
        %v4383 = vpop.f32.mrb[0].mxu0
        %v4384 = vadd.f32 %v4110, %v4383
        %4385 = vmatprep.mubr.bf16.mxu0 %v4020
        %4386 = vmatmul.mubr.bf16.gmra.mrb[0].mxu0 %v4019
        %v4387 = vpop.f32.mrb[0].mxu0
        %v4388 = vadd.f32 %v4106, %v4387
        %v4389 = vpop.f32.mrb[0].mxu0
        %v4390 = vadd.f32 %v4110, %v4389
        %v4391 = vpop.f32.mrb[0].mxu0
        %v4392 = vadd.f32 %v4106, %v4391
        %v4393 = vpop.f32.mrb[0].mxu0
        %v4394 = vadd.f32 %v4110, %v4393
        %4395 = vmatprep.mubr.bf16.mxu0 %v4022
        %4396 = vmatmul.mubr.bf16.gmra.mrb[0].mxu0 %v4021
        %v4397 = vpop.f32.mrb[0].mxu0
        %v4398 = vadd.f32 %v4106, %v4397
        %v4399 = vpop.f32.mrb[0].mxu0
        %v4400 = vadd.f32 %v4110, %v4399
        %v4401 = vpop.f32.mrb[0].mxu0
        %v4402 = vadd.f32 %v4106, %v4401
        %v4403 = vpop.f32.mrb[0].mxu0
        %v4404 = vadd.f32 %v4110, %v4403
        %4405 = vmatprep.mubr.bf16.mxu0 %v4024
        %4406 = vmatmul.mubr.bf16.gmra.mrb[0].mxu0 %v4023
        %v4407 = vpop.f32.mrb[0].mxu0
        %v4408 = vadd.f32 %v4106, %v4407
        %v4409 = vpop.f32.mrb[0].mxu0
        %v4410 = vadd.f32 %v4110, %v4409
        %v4411 = vpop.f32.mrb[0].mxu0
        %v4412 = vadd.f32 %v4106, %v4411
        %v4413 = vpop.f32.mrb[0].mxu0
        %v4414 = vadd.f32 %v4110, %v4413
        %4415 = vmatprep.mubr.bf16.mxu0 %v4026
        %4416 = vmatmul.mubr.bf16.gmra.mrb[0].mxu0 %v4025
        %v4417 = vpop.f32.mrb[0].mxu0
        %v4418 = vadd.f32 %v4106, %v4417
        %v4419 = vpop.f32.mrb[0].mxu0
        %v4420 = vadd.f32 %v4110, %v4419
        %v4421 = vpop.f32.mrb[0].mxu0
        %v4422 = vadd.f32 %v4106, %v4421
        %v4423 = vpop.f32.mrb[0].mxu0
        %v4424 = vadd.f32 %v4110, %v4423
        %4425 = vmatprep.mubr.bf16.mxu0 %v4028
        %4426 = vmatmul.mubr.bf16.gmra.mrb[0].mxu0 %v4027
        %v4427 = vpop.f32.mrb[0].mxu0
        %v4428 = vadd.f32 %v4106, %v4427
        %v4429 = vpop.f32.mrb[0].mxu0
        %v4430 = vadd.f32 %v4110, %v4429
        %v4431 = vpop.f32.mrb[0].mxu0
        %v4432 = vadd.f32 %v4106, %v4431
        %v4433 = vpop.f32.mrb[0].mxu0
        %v4434 = vadd.f32 %v4110, %v4433
        %4435 = vmatprep.mubr.bf16.mxu0 %v4030
        %4436 = vmatmul.mubr.bf16.gmra.mrb[0].mxu0 %v4029
        %v4437 = vpop.f32.mrb[0].mxu0
        %v4438 = vadd.f32 %v4106, %v4437
        %v4439 = vpop.f32.mrb[0].mxu0
        %v4440 = vadd.f32 %v4110, %v4439
        %v4441 = vpop.f32.mrb[0].mxu0
        %v4442 = vadd.f32 %v4106, %v4441
        %v4443 = vpop.f32.mrb[0].mxu0
        %v4444 = vadd.f32 %v4110, %v4443
        %4445 = vmatprep.mubr.bf16.mxu0 %v4032
        %4446 = vmatmul.mubr.bf16.gmra.mrb[0].mxu0 %v4031
        %v4447 = vpop.f32.mrb[0].mxu0
        %v4448 = vadd.f32 %v4106, %v4447
        %v4449 = vpop.f32.mrb[0].mxu0
        %v4450 = vadd.f32 %v4110, %v4449
        %v4451 = vpop.f32.mrb[0].mxu0
        %v4452 = vadd.f32 %v4106, %v4451
        %v4453 = vpop.f32.mrb[0].mxu0
        %v4454 = vadd.f32 %v4110, %v4453
        %4455 = vmatprep.mubr.bf16.mxu0 %v4034
        %4456 = vmatmul.mubr.bf16.gmra.mrb[0].mxu0 %v4033
        %v4457 = vpop.f32.mrb[0].mxu0
        %v4458 = vadd.f32 %v4106, %v4457
        %v4459 = vpop.f32.mrb[0].mxu0
        %v4460 = vadd.f32 %v4110, %v4459
        %v4461 = vpop.f32.mrb[0].mxu0
        %v4462 = vadd.f32 %v4106, %v4461
        %v4463 = vpop.f32.mrb[0].mxu0
        %v4464 = vadd.f32 %v4110, %v4463
        %4465 = vmatprep.mubr.bf16.mxu0 %v4036
        %4466 = vmatmul.mubr.bf16.gmra.mrb[0].mxu0 %v4035
        %v4467 = vpop.f32.mrb[0].mxu0
        %v4468 = vadd.f32 %v4106, %v4467
        %v4469 = vpop.f32.mrb[0].mxu0
        %v4470 = vadd.f32 %v4110, %v4469
        %v4471 = vpop.f32.mrb[0].mxu0
        %v4472 = vadd.f32 %v4106, %v4471
        %v4473 = vpop.f32.mrb[0].mxu0
        %v4474 = vadd.f32 %v4110, %v4473
        %4475 = vmatprep.mubr.bf16.mxu0 %v4038
        %4476 = vmatmul.mubr.bf16.gmra.mrb[0].mxu0 %v4037
        %v4477 = vpop.f32.mrb[0].mxu0
        %v4478 = vadd.f32 %v4106, %v4477
        %v4479 = vpop.f32.mrb[0].mxu0
        %v4480 = vadd.f32 %v4110, %v4479
        %v4481 = vpop.f32.mrb[0].mxu0
        %v4482 = vadd.f32 %v4106, %v4481
        %v4483 = vpop.f32.mrb[0].mxu0
        %v4484 = vadd.f32 %v4110, %v4483
        %4485 = vmatprep.mubr.bf16.mxu0 %v4040
        %4486 = vmatmul.mubr.bf16.gmra.mrb[0].mxu0 %v4039
        %v4487 = vpop.f32.mrb[0].mxu0
        %v4488 = vadd.f32 %v4106, %v4487
        %v4489 = vpop.f32.mrb[0].mxu0
        %v4490 = vadd.f32 %v4110, %v4489
        %v4491 = vpop.f32.mrb[0].mxu0
        %v4492 = vadd.f32 %v4106, %v4491
        %v4493 = vpop.f32.mrb[0].mxu0
        %v4494 = vadd.f32 %v4110, %v4493
        %4495 = vmatprep.mubr.bf16.mxu0 %v4042
        %4496 = vmatmul.mubr.bf16.gmra.mrb[0].mxu0 %v4041
        %v4497 = vpop.f32.mrb[0].mxu0
        %v4498 = vadd.f32 %v4106, %v4497
        %v4499 = vpop.f32.mrb[0].mxu0
        %v4500 = vadd.f32 %v4110, %v4499
        %v4501 = vpop.f32.mrb[0].mxu0
        %v4502 = vadd.f32 %v4106, %v4501
        %v4503 = vpop.f32.mrb[0].mxu0
        %v4504 = vadd.f32 %v4110, %v4503
        %4505 = vmatprep.mubr.bf16.mxu0 %v4044
        %4506 = vmatmul.mubr.bf16.gmra.mrb[0].mxu0 %v4043
        %v4507 = vpop.f32.mrb[0].mxu0
        %v4508 = vadd.f32 %v4106, %v4507
        %v4509 = vpop.f32.mrb[0].mxu0
        %v4510 = vadd.f32 %v4110, %v4509
        %v4511 = vpop.f32.mrb[0].mxu0
        %v4512 = vadd.f32 %v4106, %v4511
        %v4513 = vpop.f32.mrb[0].mxu0
        %v4514 = vadd.f32 %v4110, %v4513
        %4515 = vmatprep.mubr.bf16.mxu0 %v4046
        %4516 = vmatmul.mubr.bf16.gmra.mrb[0].mxu0 %v4045
        %v4517 = vpop.f32.mrb[0].mxu0
        %v4518 = vadd.f32 %v4106, %v4517
        %v4519 = vpop.f32.mrb[0].mxu0
        %v4520 = vadd.f32 %v4110, %v4519
        %v4521 = vpop.f32.mrb[0].mxu0
        %v4522 = vadd.f32 %v4106, %v4521
        %v4523 = vpop.f32.mrb[0].mxu0
        %v4524 = vadd.f32 %v4110, %v4523
        %4525 = vmatprep.mubr.bf16.mxu0 %v4048
        %4526 = vmatmul.mubr.bf16.gmra.mrb[0].mxu0 %v4047
        %v4527 = vpop.f32.mrb[0].mxu0
        %v4528 = vadd.f32 %v4106, %v4527
        %v4529 = vpop.f32.mrb[0].mxu0
        %v4530 = vadd.f32 %v4110, %v4529
        %v4531 = vpop.f32.mrb[0].mxu0
        %v4532 = vadd.f32 %v4106, %v4531
        %v4533 = vpop.f32.mrb[0].mxu0
        %v4534 = vadd.f32 %v4110, %v4533
        %4535 = vmatprep.mubr.bf16.mxu0 %v4050
        %4536 = vmatmul.mubr.bf16.gmra.mrb[0].mxu0 %v4049
        %v4537 = vpop.f32.mrb[0].mxu0
        %v4538 = vadd.f32 %v4106, %v4537
        %v4539 = vpop.f32.mrb[0].mxu0
        %v4540 = vadd.f32 %v4110, %v4539
        %v4541 = vpop.f32.mrb[0].mxu0
        %v4542 = vadd.f32 %v4106, %v4541
        %v4543 = vpop.f32.mrb[0].mxu0
        %v4544 = vadd.f32 %v4110, %v4543
        %4545 = vmatprep.mubr.bf16.mxu0 %v4052
        %4546 = vmatmul.mubr.bf16.gmra.mrb[0].mxu0 %v4051
        %v4547 = vpop.f32.mrb[0].mxu0
        %v4548 = vadd.f32 %v4106, %v4547
        %v4549 = vpop.f32.mrb[0].mxu0
        %v4550 = vadd.f32 %v4110, %v4549
        %v4551 = vpop.f32.mrb[0].mxu0
        %v4552 = vadd.f32 %v4106, %v4551
        %v4553 = vpop.f32.mrb[0].mxu0
        %v4554 = vadd.f32 %v4110, %v4553
        %4555 = vmatprep.mubr.bf16.mxu0 %v4054
        %4556 = vmatmul.mubr.bf16.gmra.mrb[0].mxu0 %v4053
        %v4557 = vpop.f32.mrb[0].mxu0
        %v4558 = vadd.f32 %v4106, %v4557
        %v4559 = vpop.f32.mrb[0].mxu0
        %v4560 = vadd.f32 %v4110, %v4559
        %v4561 = vpop.f32.mrb[0].mxu0
        %v4562 = vadd.f32 %v4106, %v4561
        %v4563 = vpop.f32.mrb[0].mxu0
        %v4564 = vadd.f32 %v4110, %v4563
        %4565 = vmatprep.mubr.bf16.mxu0 %v4056
        %4566 = vmatmul.mubr.bf16.gmra.mrb[0].mxu0 %v4055
        %v4567 = vpop.f32.mrb[0].mxu0
        %v4568 = vadd.f32 %v4106, %v4567
        %v4569 = vpop.f32.mrb[0].mxu0
        %v4570 = vadd.f32 %v4110, %v4569
        %v4571 = vpop.f32.mrb[0].mxu0
        %v4572 = vadd.f32 %v4106, %v4571
        %v4573 = vpop.f32.mrb[0].mxu0
        %v4574 = vadd.f32 %v4110, %v4573
        %4575 = vmatprep.mubr.bf16.mxu0 %v4058
        %4576 = vmatmul.mubr.bf16.gmra.mrb[0].mxu0 %v4057
        %v4577 = vpop.f32.mrb[0].mxu0
        %v4578 = vadd.f32 %v4106, %v4577
        %v4579 = vpop.f32.mrb[0].mxu0
        %v4580 = vadd.f32 %v4110, %v4579
        %v4581 = vpop.f32.mrb[0].mxu0
        %v4582 = vadd.f32 %v4106, %v4581
        %v4583 = vpop.f32.mrb[0].mxu0
        %v4584 = vadd.f32 %v4110, %v4583
        %4585 = vmatprep.mubr.bf16.mxu0 %v4060
        %4586 = vmatmul.mubr.bf16.gmra.mrb[0].mxu0 %v4059
        %v4587 = vpop.f32.mrb[0].mxu0
        %v4588 = vadd.f32 %v4106, %v4587
        %v4589 = vpop.f32.mrb[0].mxu0
        %v4590 = vadd.f32 %v4110, %v4589
        %v4591 = vpop.f32.mrb[0].mxu0
        %v4592 = vadd.f32 %v4106, %v4591
        %v4593 = vpop.f32.mrb[0].mxu0
        %v4594 = vadd.f32 %v4110, %v4593
        %4595 = vmatprep.mubr.bf16.mxu0 %v4062
        %4596 = vmatmul.mubr.bf16.gmra.mrb[0].mxu0 %v4061
        %v4597 = vpop.f32.mrb[0].mxu0
        %v4598 = vadd.f32 %v4106, %v4597
        %v4599 = vpop.f32.mrb[0].mxu0
        %v4600 = vadd.f32 %v4110, %v4599
        %v4601 = vpop.f32.mrb[0].mxu0
        %v4602 = vadd.f32 %v4106, %v4601
        %v4603 = vpop.f32.mrb[0].mxu0
        %v4604 = vadd.f32 %v4110, %v4603
        %4605 = vmatprep.mubr.bf16.mxu0 %v4064
        %4606 = vmatmul.mubr.bf16.gmra.mrb[0].mxu0 %v4063
        %v4607 = vpop.f32.mrb[0].mxu0
        %v4608 = vadd.f32 %v4106, %v4607
        %v4609 = vpop.f32.mrb[0].mxu0
        %v4610 = vadd.f32 %v4110, %v4609
        %v4611 = vpop.f32.mrb[0].mxu0
        %v4612 = vadd.f32 %v4106, %v4611
        %v4613 = vpop.f32.mrb[0].mxu0
        %v4614 = vadd.f32 %v4110, %v4613
        %4615 = vmatprep.mubr.bf16.mxu0 %v4066
        %4616 = vmatmul.mubr.bf16.gmra.mrb[0].mxu0 %v4065
        %v4617 = vpop.f32.mrb[0].mxu0
        %v4618 = vadd.f32 %v4106, %v4617
        %v4619 = vpop.f32.mrb[0].mxu0
        %v4620 = vadd.f32 %v4110, %v4619
        %v4621 = vpop.f32.mrb[0].mxu0
        %v4622 = vadd.f32 %v4106, %v4621
        %v4623 = vpop.f32.mrb[0].mxu0
        %v4624 = vadd.f32 %v4110, %v4623
        %4625 = vdwg.mxu0
        %v4626 = vmax.f32 %v4308, 0.0
        %v4627 = vmax.f32 %v4310, 0.0
        %v4628 = vmax.f32 %v4312, 0.0
        %v4629 = vmax.f32 %v4314, 0.0
        %v4630 = vmax.f32 %v4318, 0.0
        %v4631 = vmax.f32 %v4320, 0.0
        %v4632 = vmax.f32 %v4322, 0.0
        %v4633 = vmax.f32 %v4324, 0.0
        %v4634 = vmax.f32 %v4328, 0.0
        %v4635 = vmax.f32 %v4330, 0.0
        %v4636 = vmax.f32 %v4332, 0.0
        %v4637 = vmax.f32 %v4334, 0.0
        %v4638 = vmax.f32 %v4338, 0.0
        %v4639 = vmax.f32 %v4340, 0.0
        %v4640 = vmax.f32 %v4342, 0.0
        %v4641 = vmax.f32 %v4344, 0.0
        %v4642 = vmax.f32 %v4348, 0.0
        %v4643 = vmax.f32 %v4350, 0.0
        %v4644 = vmax.f32 %v4352, 0.0
        %v4645 = vmax.f32 %v4354, 0.0
        %v4646 = vmax.f32 %v4358, 0.0
        %v4647 = vmax.f32 %v4360, 0.0
        %v4648 = vmax.f32 %v4362, 0.0
        %v4649 = vmax.f32 %v4364, 0.0
        %v4650 = vmax.f32 %v4368, 0.0
        %v4651 = vmax.f32 %v4370, 0.0
        %v4652 = vmax.f32 %v4372, 0.0
        %v4653 = vmax.f32 %v4374, 0.0
        %v4654 = vmax.f32 %v4378, 0.0
        %v4655 = vmax.f32 %v4380, 0.0
        %v4656 = vmax.f32 %v4382, 0.0
        %v4657 = vmax.f32 %v4384, 0.0
        %v4658 = vmax.f32 %v4388, 0.0
        %v4659 = vmax.f32 %v4390, 0.0
        %v4660 = vmax.f32 %v4392, 0.0
        %v4661 = vmax.f32 %v4394, 0.0
        %v4662 = vmax.f32 %v4398, 0.0
        %v4663 = vmax.f32 %v4400, 0.0
        %v4664 = vmax.f32 %v4402, 0.0
        %v4665 = vmax.f32 %v4404, 0.0
        %v4666 = vmax.f32 %v4408, 0.0
        %v4667 = vmax.f32 %v4410, 0.0
        %v4668 = vmax.f32 %v4412, 0.0
        %v4669 = vmax.f32 %v4414, 0.0
        %v4670 = vmax.f32 %v4418, 0.0
        %v4671 = vmax.f32 %v4420, 0.0
        %v4672 = vmax.f32 %v4422, 0.0
        %v4673 = vmax.f32 %v4424, 0.0
        %v4674 = vmax.f32 %v4428, 0.0
        %v4675 = vmax.f32 %v4430, 0.0
        %v4676 = vmax.f32 %v4432, 0.0
        %v4677 = vmax.f32 %v4434, 0.0
        %v4678 = vmax.f32 %v4438, 0.0
        %v4679 = vmax.f32 %v4440, 0.0
        %v4680 = vmax.f32 %v4442, 0.0
        %v4681 = vmax.f32 %v4444, 0.0
        %v4682 = vmax.f32 %v4448, 0.0
        %v4683 = vmax.f32 %v4450, 0.0
        %v4684 = vmax.f32 %v4452, 0.0
        %v4685 = vmax.f32 %v4454, 0.0
        %v4686 = vmax.f32 %v4458, 0.0
        %v4687 = vmax.f32 %v4460, 0.0
        %v4688 = vmax.f32 %v4462, 0.0
        %v4689 = vmax.f32 %v4464, 0.0
        %v4690 = vmax.f32 %v4468, 0.0
        %v4691 = vmax.f32 %v4470, 0.0
        %v4692 = vmax.f32 %v4472, 0.0
        %v4693 = vmax.f32 %v4474, 0.0
        %v4694 = vmax.f32 %v4478, 0.0
        %v4695 = vmax.f32 %v4480, 0.0
        %v4696 = vmax.f32 %v4482, 0.0
        %v4697 = vmax.f32 %v4484, 0.0
        %v4698 = vmax.f32 %v4488, 0.0
        %v4699 = vmax.f32 %v4490, 0.0
        %v4700 = vmax.f32 %v4492, 0.0
        %v4701 = vmax.f32 %v4494, 0.0
        %v4702 = vmax.f32 %v4498, 0.0
        %v4703 = vmax.f32 %v4500, 0.0
        %v4704 = vmax.f32 %v4502, 0.0
        %v4705 = vmax.f32 %v4504, 0.0
        %v4706 = vmax.f32 %v4508, 0.0
        %v4707 = vmax.f32 %v4510, 0.0
        %v4708 = vmax.f32 %v4512, 0.0
        %v4709 = vmax.f32 %v4514, 0.0
        %v4710 = vmax.f32 %v4518, 0.0
        %v4711 = vmax.f32 %v4520, 0.0
        %v4712 = vmax.f32 %v4522, 0.0
        %v4713 = vmax.f32 %v4524, 0.0
        %v4714 = vmax.f32 %v4528, 0.0
        %v4715 = vmax.f32 %v4530, 0.0
        %v4716 = vmax.f32 %v4532, 0.0
        %v4717 = vmax.f32 %v4534, 0.0
        %v4718 = vmax.f32 %v4538, 0.0
        %v4719 = vmax.f32 %v4540, 0.0
        %v4720 = vmax.f32 %v4542, 0.0
        %v4721 = vmax.f32 %v4544, 0.0
        %v4722 = vmax.f32 %v4548, 0.0
        %v4723 = vmax.f32 %v4550, 0.0
        %v4724 = vmax.f32 %v4552, 0.0
        %v4725 = vmax.f32 %v4554, 0.0
        %v4726 = vmax.f32 %v4558, 0.0
        %v4727 = vmax.f32 %v4560, 0.0
        %v4728 = vmax.f32 %v4562, 0.0
        %v4729 = vmax.f32 %v4564, 0.0
        %v4730 = vmax.f32 %v4568, 0.0
        %v4731 = vmax.f32 %v4570, 0.0
        %v4732 = vmax.f32 %v4572, 0.0
        %v4733 = vmax.f32 %v4574, 0.0
        %v4734 = vmax.f32 %v4578, 0.0
        %v4735 = vmax.f32 %v4580, 0.0
        %v4736 = vmax.f32 %v4582, 0.0
        %v4737 = vmax.f32 %v4584, 0.0
        %v4738 = vmax.f32 %v4588, 0.0
        %v4739 = vmax.f32 %v4590, 0.0
        %v4740 = vmax.f32 %v4592, 0.0
        %v4741 = vmax.f32 %v4594, 0.0
        %v4742 = vmax.f32 %v4598, 0.0
        %v4743 = vmax.f32 %v4600, 0.0
        %v4744 = vmax.f32 %v4602, 0.0
        %v4745 = vmax.f32 %v4604, 0.0
        %v4746 = vmax.f32 %v4608, 0.0
        %v4747 = vmax.f32 %v4610, 0.0
        %v4748 = vmax.f32 %v4612, 0.0
        %v4749 = vmax.f32 %v4614, 0.0
        %v4750 = vmax.f32 %v4618, 0.0
        %v4751 = vmax.f32 %v4620, 0.0
        %v4752 = vmax.f32 %v4622, 0.0
        %v4753 = vmax.f32 %v4624, 0.0
        %v4754 = vpack.c.bf16 %v4628, %v4626
        %v4755 = vpack.c.bf16 %v4629, %v4627
        %v4756 = vpack.c.bf16 %v4632, %v4630
        %v4757 = vpack.c.bf16 %v4633, %v4631
        %v4758 = vpack.c.bf16 %v4636, %v4634
        %v4759 = vpack.c.bf16 %v4637, %v4635
        %v4760 = vpack.c.bf16 %v4640, %v4638
        %v4761 = vpack.c.bf16 %v4641, %v4639
        %v4762 = vpack.c.bf16 %v4644, %v4642
        %v4763 = vpack.c.bf16 %v4645, %v4643
        %v4764 = vpack.c.bf16 %v4648, %v4646
        %v4765 = vpack.c.bf16 %v4649, %v4647
        %v4766 = vpack.c.bf16 %v4652, %v4650
        %v4767 = vpack.c.bf16 %v4653, %v4651
        %v4768 = vpack.c.bf16 %v4656, %v4654
        %v4769 = vpack.c.bf16 %v4657, %v4655
        %v4770 = vpack.c.bf16 %v4660, %v4658
        %v4771 = vpack.c.bf16 %v4661, %v4659
        %v4772 = vpack.c.bf16 %v4664, %v4662
        %v4773 = vpack.c.bf16 %v4665, %v4663
        %v4774 = vpack.c.bf16 %v4668, %v4666
        %v4775 = vpack.c.bf16 %v4669, %v4667
        %v4776 = vpack.c.bf16 %v4672, %v4670
        %v4777 = vpack.c.bf16 %v4673, %v4671
        %v4778 = vpack.c.bf16 %v4676, %v4674
        %v4779 = vpack.c.bf16 %v4677, %v4675
        %v4780 = vpack.c.bf16 %v4680, %v4678
        %v4781 = vpack.c.bf16 %v4681, %v4679
        %v4782 = vpack.c.bf16 %v4684, %v4682
        %v4783 = vpack.c.bf16 %v4685, %v4683
        %v4784 = vpack.c.bf16 %v4688, %v4686
        %v4785 = vpack.c.bf16 %v4689, %v4687
        %v4786 = vpack.c.bf16 %v4692, %v4690
        %v4787 = vpack.c.bf16 %v4693, %v4691
        %v4788 = vpack.c.bf16 %v4696, %v4694
        %v4789 = vpack.c.bf16 %v4697, %v4695
        %v4790 = vpack.c.bf16 %v4700, %v4698
        %v4791 = vpack.c.bf16 %v4701, %v4699
        %v4792 = vpack.c.bf16 %v4704, %v4702
        %v4793 = vpack.c.bf16 %v4705, %v4703
        %v4794 = vpack.c.bf16 %v4708, %v4706
        %v4795 = vpack.c.bf16 %v4709, %v4707
        %v4796 = vpack.c.bf16 %v4712, %v4710
        %v4797 = vpack.c.bf16 %v4713, %v4711
        %v4798 = vpack.c.bf16 %v4716, %v4714
        %v4799 = vpack.c.bf16 %v4717, %v4715
        %v4800 = vpack.c.bf16 %v4720, %v4718
        %v4801 = vpack.c.bf16 %v4721, %v4719
        %v4802 = vpack.c.bf16 %v4724, %v4722
        %v4803 = vpack.c.bf16 %v4725, %v4723
        %v4804 = vpack.c.bf16 %v4728, %v4726
        %v4805 = vpack.c.bf16 %v4729, %v4727
        %v4806 = vpack.c.bf16 %v4732, %v4730
        %v4807 = vpack.c.bf16 %v4733, %v4731
        %v4808 = vpack.c.bf16 %v4736, %v4734
        %v4809 = vpack.c.bf16 %v4737, %v4735
        %v4810 = vpack.c.bf16 %v4740, %v4738
        %v4811 = vpack.c.bf16 %v4741, %v4739
        %v4812 = vpack.c.bf16 %v4744, %v4742
        %v4813 = vpack.c.bf16 %v4745, %v4743
        %v4814 = vpack.c.bf16 %v4748, %v4746
        %v4815 = vpack.c.bf16 %v4749, %v4747
        %v4816 = vpack.c.bf16 %v4752, %v4750
        %v4817 = vpack.c.bf16 %v4753, %v4751
        %s4818 = scalar_lea.vmem [#allocation7], 1024
        %v4819 = vld [vmem:[%s4818] sm:$0xff]
        %v4820 = vld [vmem:[%s4818 + $0x8] sm:$0xff]
        %v4821 = vld [vmem:[%s4818 + $0x10] sm:$0xff]
        %v4822 = vld [vmem:[%s4818 + $0x18] sm:$0xff]
        %v4823 = vld [vmem:[%s4818 + $0x20] sm:$0xff]
        %v4824 = vld [vmem:[%s4818 + $0x28] sm:$0xff]
        %v4825 = vld [vmem:[%s4818 + $0x30] sm:$0xff]
        %v4826 = vld [vmem:[%s4818 + $0x38] sm:$0xff]
        %v4827 = vld [vmem:[%s4818 + $0x40] sm:$0xff]
        %v4828 = vld [vmem:[%s4818 + $0x48] sm:$0xff]
        %v4829 = vld [vmem:[%s4818 + $0x50] sm:$0xff]
        %v4830 = vld [vmem:[%s4818 + $0x58] sm:$0xff]
        %v4831 = vld [vmem:[%s4818 + $0x60] sm:$0xff]
        %v4832 = vld [vmem:[%s4818 + $0x68] sm:$0xff]
        %v4833 = vld [vmem:[%s4818 + $0x70] sm:$0xff]
        %v4834 = vld [vmem:[%s4818 + $0x78] sm:$0xff]
        %v4835 = vld [vmem:[%s4818 + $0x80] sm:$0xff]
        %v4836 = vld [vmem:[%s4818 + $0x88] sm:$0xff]
        %v4837 = vld [vmem:[%s4818 + $0x90] sm:$0xff]
        %v4838 = vld [vmem:[%s4818 + $0x98] sm:$0xff]
        %v4839 = vld [vmem:[%s4818 + $0xa0] sm:$0xff]
        %v4840 = vld [vmem:[%s4818 + $0xa8] sm:$0xff]
        %v4841 = vld [vmem:[%s4818 + $0xb0] sm:$0xff]
        %v4842 = vld [vmem:[%s4818 + $0xb8] sm:$0xff]
        %v4843 = vld [vmem:[%s4818 + $0xc0] sm:$0xff]
        %v4844 = vld [vmem:[%s4818 + $0xc8] sm:$0xff]
        %v4845 = vld [vmem:[%s4818 + $0xd0] sm:$0xff]
        %v4846 = vld [vmem:[%s4818 + $0xd8] sm:$0xff]
        %v4847 = vld [vmem:[%s4818 + $0xe0] sm:$0xff]
        %v4848 = vld [vmem:[%s4818 + $0xe8] sm:$0xff]
        %v4849 = vld [vmem:[%s4818 + $0xf0] sm:$0xff]
        %v4850 = vld [vmem:[%s4818 + $0xf8] sm:$0xff]
        %s4851 = scalar_lea.vmem [#allocation8], 5
        %v4852 = vld [vmem:[%s4851] ss:$8 sm:$0x3]
        %v4854 = vlaneseq
        %v4855 = vshrl.u32 %v4854, 7
        %v4856 = vsub.s32 0, %v4855
        %v4857 = vrot.slane %v4852, %v4856
        %v4858 = vlaneseq
        %v4859 = vshrl.u32 %v4858, 7
        %v4860 = vsub.s32 1, %v4859
        %v4861 = vrot.slane %v4852, %v4860
        %v4896 = vunpack.c.l.b16 %v4819
        %v4897 = vunpack.c.h.b16 %v4819
        %v4898 = vunpack.c.l.b16 %v4820
        %v4899 = vunpack.c.h.b16 %v4820
        %v4900 = vunpack.c.l.b16 %v4821
        %v4901 = vunpack.c.h.b16 %v4821
        %v4902 = vunpack.c.l.b16 %v4822
        %v4903 = vunpack.c.h.b16 %v4822
        %v4904 = vunpack.c.l.b16 %v4823
        %v4905 = vunpack.c.h.b16 %v4823
        %v4906 = vunpack.c.l.b16 %v4824
        %v4907 = vunpack.c.h.b16 %v4824
        %v4908 = vunpack.c.l.b16 %v4825
        %v4909 = vunpack.c.h.b16 %v4825
        %v4910 = vunpack.c.l.b16 %v4826
        %v4911 = vunpack.c.h.b16 %v4826
        %v4912 = vunpack.c.l.b16 %v4827
        %v4913 = vunpack.c.h.b16 %v4827
        %v4914 = vunpack.c.l.b16 %v4828
        %v4915 = vunpack.c.h.b16 %v4828
        %v4916 = vunpack.c.l.b16 %v4829
        %v4917 = vunpack.c.h.b16 %v4829
        %v4918 = vunpack.c.l.b16 %v4830
        %v4919 = vunpack.c.h.b16 %v4830
        %v4920 = vunpack.c.l.b16 %v4831
        %v4921 = vunpack.c.h.b16 %v4831
        %v4922 = vunpack.c.l.b16 %v4832
        %v4923 = vunpack.c.h.b16 %v4832
        %v4924 = vunpack.c.l.b16 %v4833
        %v4925 = vunpack.c.h.b16 %v4833
        %v4926 = vunpack.c.l.b16 %v4834
        %v4927 = vunpack.c.h.b16 %v4834
        %v4928 = vunpack.c.l.b16 %v4835
        %v4929 = vunpack.c.h.b16 %v4835
        %v4930 = vunpack.c.l.b16 %v4836
        %v4931 = vunpack.c.h.b16 %v4836
        %v4932 = vunpack.c.l.b16 %v4837
        %v4933 = vunpack.c.h.b16 %v4837
        %v4934 = vunpack.c.l.b16 %v4838
        %v4935 = vunpack.c.h.b16 %v4838
        %v4936 = vunpack.c.l.b16 %v4839
        %v4937 = vunpack.c.h.b16 %v4839
        %v4938 = vunpack.c.l.b16 %v4840
        %v4939 = vunpack.c.h.b16 %v4840
        %v4940 = vunpack.c.l.b16 %v4841
        %v4941 = vunpack.c.h.b16 %v4841
        %v4942 = vunpack.c.l.b16 %v4842
        %v4943 = vunpack.c.h.b16 %v4842
        %v4944 = vunpack.c.l.b16 %v4843
        %v4945 = vunpack.c.h.b16 %v4843
        %v4946 = vunpack.c.l.b16 %v4844
        %v4947 = vunpack.c.h.b16 %v4844
        %v4948 = vunpack.c.l.b16 %v4845
        %v4949 = vunpack.c.h.b16 %v4845
        %v4950 = vunpack.c.l.b16 %v4846
        %v4951 = vunpack.c.h.b16 %v4846
        %v4952 = vunpack.c.l.b16 %v4847
        %v4953 = vunpack.c.h.b16 %v4847
        %v4954 = vunpack.c.l.b16 %v4848
        %v4955 = vunpack.c.h.b16 %v4848
        %v4956 = vunpack.c.l.b16 %v4849
        %v4957 = vunpack.c.h.b16 %v4849
        %v4958 = vunpack.c.l.b16 %v4850
        %v4959 = vunpack.c.h.b16 %v4850
        %v4960 = vpack.c.b16 %v4898, %v4896
        %v4961 = vpack.c.b16 %v4899, %v4897
        %v4962 = vpack.c.b16 %v4902, %v4900
        %v4963 = vpack.c.b16 %v4903, %v4901
        %v4964 = vpack.c.b16 %v4906, %v4904
        %v4965 = vpack.c.b16 %v4907, %v4905
        %v4966 = vpack.c.b16 %v4910, %v4908
        %v4967 = vpack.c.b16 %v4911, %v4909
        %v4968 = vpack.c.b16 %v4914, %v4912
        %v4969 = vpack.c.b16 %v4915, %v4913
        %v4970 = vpack.c.b16 %v4918, %v4916
        %v4971 = vpack.c.b16 %v4919, %v4917
        %v4972 = vpack.c.b16 %v4922, %v4920
        %v4973 = vpack.c.b16 %v4923, %v4921
        %v4974 = vpack.c.b16 %v4926, %v4924
        %v4975 = vpack.c.b16 %v4927, %v4925
        %v4976 = vpack.c.b16 %v4930, %v4928
        %v4977 = vpack.c.b16 %v4931, %v4929
        %v4978 = vpack.c.b16 %v4934, %v4932
        %v4979 = vpack.c.b16 %v4935, %v4933
        %v4980 = vpack.c.b16 %v4938, %v4936
        %v4981 = vpack.c.b16 %v4939, %v4937
        %v4982 = vpack.c.b16 %v4942, %v4940
        %v4983 = vpack.c.b16 %v4943, %v4941
        %v4984 = vpack.c.b16 %v4946, %v4944
        %v4985 = vpack.c.b16 %v4947, %v4945
        %v4986 = vpack.c.b16 %v4950, %v4948
        %v4987 = vpack.c.b16 %v4951, %v4949
        %v4988 = vpack.c.b16 %v4954, %v4952
        %v4989 = vpack.c.b16 %v4955, %v4953
        %v4990 = vpack.c.b16 %v4958, %v4956
        %v4991 = vpack.c.b16 %v4959, %v4957
        %5024 = vmatprep.subr.bf16.mxu0 %v4961
        %5025 = vmatpush1.bf16.msra.mxu0 %v4960
        %5026 = vmatprep.subr.bf16.mxu0 %v4963
        %5027 = vmatpush1.bf16.msra.mxu0 %v4962
        %5028 = vmatprep.subr.bf16.mxu0 %v4965
        %5029 = vmatpush1.bf16.msra.mxu0 %v4964
        %5030 = vmatprep.subr.bf16.mxu0 %v4967
        %5031 = vmatpush1.bf16.msra.mxu0 %v4966
        %5032 = vmatprep.subr.bf16.mxu0 %v4969
        %5033 = vmatpush1.bf16.msra.mxu0 %v4968
        %5034 = vmatprep.subr.bf16.mxu0 %v4971
        %5035 = vmatpush1.bf16.msra.mxu0 %v4970
        %5036 = vmatprep.subr.bf16.mxu0 %v4973
        %5037 = vmatpush1.bf16.msra.mxu0 %v4972
        %5038 = vmatprep.subr.bf16.mxu0 %v4975
        %5039 = vmatpush1.bf16.msra.mxu0 %v4974
        %5040 = vmatprep.subr.bf16.mxu0 %v4977
        %5041 = vmatpush1.bf16.msra.mxu0 %v4976
        %5042 = vmatprep.subr.bf16.mxu0 %v4979
        %5043 = vmatpush1.bf16.msra.mxu0 %v4978
        %5044 = vmatprep.subr.bf16.mxu0 %v4981
        %5045 = vmatpush1.bf16.msra.mxu0 %v4980
        %5046 = vmatprep.subr.bf16.mxu0 %v4983
        %5047 = vmatpush1.bf16.msra.mxu0 %v4982
        %5048 = vmatprep.subr.bf16.mxu0 %v4985
        %5049 = vmatpush1.bf16.msra.mxu0 %v4984
        %5050 = vmatprep.subr.bf16.mxu0 %v4987
        %5051 = vmatpush1.bf16.msra.mxu0 %v4986
        %5052 = vmatprep.subr.bf16.mxu0 %v4989
        %5053 = vmatpush1.bf16.msra.mxu0 %v4988
        %5054 = vmatprep.subr.bf16.mxu0 %v4991
        %5055 = vmatpush1.bf16.msra.mxu0 %v4990
        %5056 = vmatprep.mubr.bf16.mxu0 %v4755
        %5057 = vmatmul.mubr.bf16.gmra.mrb[0].mxu0 %v4754
        %v5058 = vpop.f32.mrb[0].mxu0
        %v5059 = vadd.f32 %v4857, %v5058
        %v5060 = vpop.f32.mrb[0].mxu0
        %v5061 = vadd.f32 %v4861, %v5060
        %v5062 = vpop.f32.mrb[0].mxu0
        %v5063 = vadd.f32 %v4857, %v5062
        %v5064 = vpop.f32.mrb[0].mxu0
        %v5065 = vadd.f32 %v4861, %v5064
        %5066 = vmatprep.mubr.bf16.mxu0 %v4757
        %5067 = vmatmul.mubr.bf16.gmra.mrb[0].mxu0 %v4756
        %v5068 = vpop.f32.mrb[0].mxu0
        %v5069 = vadd.f32 %v4857, %v5068
        %v5070 = vpop.f32.mrb[0].mxu0
        %v5071 = vadd.f32 %v4861, %v5070
        %v5072 = vpop.f32.mrb[0].mxu0
        %v5073 = vadd.f32 %v4857, %v5072
        %v5074 = vpop.f32.mrb[0].mxu0
        %v5075 = vadd.f32 %v4861, %v5074
        %5076 = vmatprep.mubr.bf16.mxu0 %v4759
        %5077 = vmatmul.mubr.bf16.gmra.mrb[0].mxu0 %v4758
        %v5078 = vpop.f32.mrb[0].mxu0
        %v5079 = vadd.f32 %v4857, %v5078
        %v5080 = vpop.f32.mrb[0].mxu0
        %v5081 = vadd.f32 %v4861, %v5080
        %v5082 = vpop.f32.mrb[0].mxu0
        %v5083 = vadd.f32 %v4857, %v5082
        %v5084 = vpop.f32.mrb[0].mxu0
        %v5085 = vadd.f32 %v4861, %v5084
        %5086 = vmatprep.mubr.bf16.mxu0 %v4761
        %5087 = vmatmul.mubr.bf16.gmra.mrb[0].mxu0 %v4760
        %v5088 = vpop.f32.mrb[0].mxu0
        %v5089 = vadd.f32 %v4857, %v5088
        %v5090 = vpop.f32.mrb[0].mxu0
        %v5091 = vadd.f32 %v4861, %v5090
        %v5092 = vpop.f32.mrb[0].mxu0
        %v5093 = vadd.f32 %v4857, %v5092
        %v5094 = vpop.f32.mrb[0].mxu0
        %v5095 = vadd.f32 %v4861, %v5094
        %5096 = vmatprep.mubr.bf16.mxu0 %v4763
        %5097 = vmatmul.mubr.bf16.gmra.mrb[0].mxu0 %v4762
        %v5098 = vpop.f32.mrb[0].mxu0
        %v5099 = vadd.f32 %v4857, %v5098
        %v5100 = vpop.f32.mrb[0].mxu0
        %v5101 = vadd.f32 %v4861, %v5100
        %v5102 = vpop.f32.mrb[0].mxu0
        %v5103 = vadd.f32 %v4857, %v5102
        %v5104 = vpop.f32.mrb[0].mxu0
        %v5105 = vadd.f32 %v4861, %v5104
        %5106 = vmatprep.mubr.bf16.mxu0 %v4765
        %5107 = vmatmul.mubr.bf16.gmra.mrb[0].mxu0 %v4764
        %v5108 = vpop.f32.mrb[0].mxu0
        %v5109 = vadd.f32 %v4857, %v5108
        %v5110 = vpop.f32.mrb[0].mxu0
        %v5111 = vadd.f32 %v4861, %v5110
        %v5112 = vpop.f32.mrb[0].mxu0
        %v5113 = vadd.f32 %v4857, %v5112
        %v5114 = vpop.f32.mrb[0].mxu0
        %v5115 = vadd.f32 %v4861, %v5114
        %5116 = vmatprep.mubr.bf16.mxu0 %v4767
        %5117 = vmatmul.mubr.bf16.gmra.mrb[0].mxu0 %v4766
        %v5118 = vpop.f32.mrb[0].mxu0
        %v5119 = vadd.f32 %v4857, %v5118
        %v5120 = vpop.f32.mrb[0].mxu0
        %v5121 = vadd.f32 %v4861, %v5120
        %v5122 = vpop.f32.mrb[0].mxu0
        %v5123 = vadd.f32 %v4857, %v5122
        %v5124 = vpop.f32.mrb[0].mxu0
        %v5125 = vadd.f32 %v4861, %v5124
        %5126 = vmatprep.mubr.bf16.mxu0 %v4769
        %5127 = vmatmul.mubr.bf16.gmra.mrb[0].mxu0 %v4768
        %v5128 = vpop.f32.mrb[0].mxu0
        %v5129 = vadd.f32 %v4857, %v5128
        %v5130 = vpop.f32.mrb[0].mxu0
        %v5131 = vadd.f32 %v4861, %v5130
        %v5132 = vpop.f32.mrb[0].mxu0
        %v5133 = vadd.f32 %v4857, %v5132
        %v5134 = vpop.f32.mrb[0].mxu0
        %v5135 = vadd.f32 %v4861, %v5134
        %5136 = vmatprep.mubr.bf16.mxu0 %v4771
        %5137 = vmatmul.mubr.bf16.gmra.mrb[0].mxu0 %v4770
        %v5138 = vpop.f32.mrb[0].mxu0
        %v5139 = vadd.f32 %v4857, %v5138
        %v5140 = vpop.f32.mrb[0].mxu0
        %v5141 = vadd.f32 %v4861, %v5140
        %v5142 = vpop.f32.mrb[0].mxu0
        %v5143 = vadd.f32 %v4857, %v5142
        %v5144 = vpop.f32.mrb[0].mxu0
        %v5145 = vadd.f32 %v4861, %v5144
        %5146 = vmatprep.mubr.bf16.mxu0 %v4773
        %5147 = vmatmul.mubr.bf16.gmra.mrb[0].mxu0 %v4772
        %v5148 = vpop.f32.mrb[0].mxu0
        %v5149 = vadd.f32 %v4857, %v5148
        %v5150 = vpop.f32.mrb[0].mxu0
        %v5151 = vadd.f32 %v4861, %v5150
        %v5152 = vpop.f32.mrb[0].mxu0
        %v5153 = vadd.f32 %v4857, %v5152
        %v5154 = vpop.f32.mrb[0].mxu0
        %v5155 = vadd.f32 %v4861, %v5154
        %5156 = vmatprep.mubr.bf16.mxu0 %v4775
        %5157 = vmatmul.mubr.bf16.gmra.mrb[0].mxu0 %v4774
        %v5158 = vpop.f32.mrb[0].mxu0
        %v5159 = vadd.f32 %v4857, %v5158
        %v5160 = vpop.f32.mrb[0].mxu0
        %v5161 = vadd.f32 %v4861, %v5160
        %v5162 = vpop.f32.mrb[0].mxu0
        %v5163 = vadd.f32 %v4857, %v5162
        %v5164 = vpop.f32.mrb[0].mxu0
        %v5165 = vadd.f32 %v4861, %v5164
        %5166 = vmatprep.mubr.bf16.mxu0 %v4777
        %5167 = vmatmul.mubr.bf16.gmra.mrb[0].mxu0 %v4776
        %v5168 = vpop.f32.mrb[0].mxu0
        %v5169 = vadd.f32 %v4857, %v5168
        %v5170 = vpop.f32.mrb[0].mxu0
        %v5171 = vadd.f32 %v4861, %v5170
        %v5172 = vpop.f32.mrb[0].mxu0
        %v5173 = vadd.f32 %v4857, %v5172
        %v5174 = vpop.f32.mrb[0].mxu0
        %v5175 = vadd.f32 %v4861, %v5174
        %5176 = vmatprep.mubr.bf16.mxu0 %v4779
        %5177 = vmatmul.mubr.bf16.gmra.mrb[0].mxu0 %v4778
        %v5178 = vpop.f32.mrb[0].mxu0
        %v5179 = vadd.f32 %v4857, %v5178
        %v5180 = vpop.f32.mrb[0].mxu0
        %v5181 = vadd.f32 %v4861, %v5180
        %v5182 = vpop.f32.mrb[0].mxu0
        %v5183 = vadd.f32 %v4857, %v5182
        %v5184 = vpop.f32.mrb[0].mxu0
        %v5185 = vadd.f32 %v4861, %v5184
        %5186 = vmatprep.mubr.bf16.mxu0 %v4781
        %5187 = vmatmul.mubr.bf16.gmra.mrb[0].mxu0 %v4780
        %v5188 = vpop.f32.mrb[0].mxu0
        %v5189 = vadd.f32 %v4857, %v5188
        %v5190 = vpop.f32.mrb[0].mxu0
        %v5191 = vadd.f32 %v4861, %v5190
        %v5192 = vpop.f32.mrb[0].mxu0
        %v5193 = vadd.f32 %v4857, %v5192
        %v5194 = vpop.f32.mrb[0].mxu0
        %v5195 = vadd.f32 %v4861, %v5194
        %5196 = vmatprep.mubr.bf16.mxu0 %v4783
        %5197 = vmatmul.mubr.bf16.gmra.mrb[0].mxu0 %v4782
        %v5198 = vpop.f32.mrb[0].mxu0
        %v5199 = vadd.f32 %v4857, %v5198
        %v5200 = vpop.f32.mrb[0].mxu0
        %v5201 = vadd.f32 %v4861, %v5200
        %v5202 = vpop.f32.mrb[0].mxu0
        %v5203 = vadd.f32 %v4857, %v5202
        %v5204 = vpop.f32.mrb[0].mxu0
        %v5205 = vadd.f32 %v4861, %v5204
        %5206 = vmatprep.mubr.bf16.mxu0 %v4785
        %5207 = vmatmul.mubr.bf16.gmra.mrb[0].mxu0 %v4784
        %v5208 = vpop.f32.mrb[0].mxu0
        %v5209 = vadd.f32 %v4857, %v5208
        %v5210 = vpop.f32.mrb[0].mxu0
        %v5211 = vadd.f32 %v4861, %v5210
        %v5212 = vpop.f32.mrb[0].mxu0
        %v5213 = vadd.f32 %v4857, %v5212
        %v5214 = vpop.f32.mrb[0].mxu0
        %v5215 = vadd.f32 %v4861, %v5214
        %5216 = vmatprep.mubr.bf16.mxu0 %v4787
        %5217 = vmatmul.mubr.bf16.gmra.mrb[0].mxu0 %v4786
        %v5218 = vpop.f32.mrb[0].mxu0
        %v5219 = vadd.f32 %v4857, %v5218
        %v5220 = vpop.f32.mrb[0].mxu0
        %v5221 = vadd.f32 %v4861, %v5220
        %v5222 = vpop.f32.mrb[0].mxu0
        %v5223 = vadd.f32 %v4857, %v5222
        %v5224 = vpop.f32.mrb[0].mxu0
        %v5225 = vadd.f32 %v4861, %v5224
        %5226 = vmatprep.mubr.bf16.mxu0 %v4789
        %5227 = vmatmul.mubr.bf16.gmra.mrb[0].mxu0 %v4788
        %v5228 = vpop.f32.mrb[0].mxu0
        %v5229 = vadd.f32 %v4857, %v5228
        %v5230 = vpop.f32.mrb[0].mxu0
        %v5231 = vadd.f32 %v4861, %v5230
        %v5232 = vpop.f32.mrb[0].mxu0
        %v5233 = vadd.f32 %v4857, %v5232
        %v5234 = vpop.f32.mrb[0].mxu0
        %v5235 = vadd.f32 %v4861, %v5234
        %5236 = vmatprep.mubr.bf16.mxu0 %v4791
        %5237 = vmatmul.mubr.bf16.gmra.mrb[0].mxu0 %v4790
        %v5238 = vpop.f32.mrb[0].mxu0
        %v5239 = vadd.f32 %v4857, %v5238
        %v5240 = vpop.f32.mrb[0].mxu0
        %v5241 = vadd.f32 %v4861, %v5240
        %v5242 = vpop.f32.mrb[0].mxu0
        %v5243 = vadd.f32 %v4857, %v5242
        %v5244 = vpop.f32.mrb[0].mxu0
        %v5245 = vadd.f32 %v4861, %v5244
        %5246 = vmatprep.mubr.bf16.mxu0 %v4793
        %5247 = vmatmul.mubr.bf16.gmra.mrb[0].mxu0 %v4792
        %v5248 = vpop.f32.mrb[0].mxu0
        %v5249 = vadd.f32 %v4857, %v5248
        %v5250 = vpop.f32.mrb[0].mxu0
        %v5251 = vadd.f32 %v4861, %v5250
        %v5252 = vpop.f32.mrb[0].mxu0
        %v5253 = vadd.f32 %v4857, %v5252
        %v5254 = vpop.f32.mrb[0].mxu0
        %v5255 = vadd.f32 %v4861, %v5254
        %5256 = vmatprep.mubr.bf16.mxu0 %v4795
        %5257 = vmatmul.mubr.bf16.gmra.mrb[0].mxu0 %v4794
        %v5258 = vpop.f32.mrb[0].mxu0
        %v5259 = vadd.f32 %v4857, %v5258
        %v5260 = vpop.f32.mrb[0].mxu0
        %v5261 = vadd.f32 %v4861, %v5260
        %v5262 = vpop.f32.mrb[0].mxu0
        %v5263 = vadd.f32 %v4857, %v5262
        %v5264 = vpop.f32.mrb[0].mxu0
        %v5265 = vadd.f32 %v4861, %v5264
        %5266 = vmatprep.mubr.bf16.mxu0 %v4797
        %5267 = vmatmul.mubr.bf16.gmra.mrb[0].mxu0 %v4796
        %v5268 = vpop.f32.mrb[0].mxu0
        %v5269 = vadd.f32 %v4857, %v5268
        %v5270 = vpop.f32.mrb[0].mxu0
        %v5271 = vadd.f32 %v4861, %v5270
        %v5272 = vpop.f32.mrb[0].mxu0
        %v5273 = vadd.f32 %v4857, %v5272
        %v5274 = vpop.f32.mrb[0].mxu0
        %v5275 = vadd.f32 %v4861, %v5274
        %5276 = vmatprep.mubr.bf16.mxu0 %v4799
        %5277 = vmatmul.mubr.bf16.gmra.mrb[0].mxu0 %v4798
        %v5278 = vpop.f32.mrb[0].mxu0
        %v5279 = vadd.f32 %v4857, %v5278
        %v5280 = vpop.f32.mrb[0].mxu0
        %v5281 = vadd.f32 %v4861, %v5280
        %v5282 = vpop.f32.mrb[0].mxu0
        %v5283 = vadd.f32 %v4857, %v5282
        %v5284 = vpop.f32.mrb[0].mxu0
        %v5285 = vadd.f32 %v4861, %v5284
        %5286 = vmatprep.mubr.bf16.mxu0 %v4801
        %5287 = vmatmul.mubr.bf16.gmra.mrb[0].mxu0 %v4800
        %v5288 = vpop.f32.mrb[0].mxu0
        %v5289 = vadd.f32 %v4857, %v5288
        %v5290 = vpop.f32.mrb[0].mxu0
        %v5291 = vadd.f32 %v4861, %v5290
        %v5292 = vpop.f32.mrb[0].mxu0
        %v5293 = vadd.f32 %v4857, %v5292
        %v5294 = vpop.f32.mrb[0].mxu0
        %v5295 = vadd.f32 %v4861, %v5294
        %5296 = vmatprep.mubr.bf16.mxu0 %v4803
        %5297 = vmatmul.mubr.bf16.gmra.mrb[0].mxu0 %v4802
        %v5298 = vpop.f32.mrb[0].mxu0
        %v5299 = vadd.f32 %v4857, %v5298
        %v5300 = vpop.f32.mrb[0].mxu0
        %v5301 = vadd.f32 %v4861, %v5300
        %v5302 = vpop.f32.mrb[0].mxu0
        %v5303 = vadd.f32 %v4857, %v5302
        %v5304 = vpop.f32.mrb[0].mxu0
        %v5305 = vadd.f32 %v4861, %v5304
        %5306 = vmatprep.mubr.bf16.mxu0 %v4805
        %5307 = vmatmul.mubr.bf16.gmra.mrb[0].mxu0 %v4804
        %v5308 = vpop.f32.mrb[0].mxu0
        %v5309 = vadd.f32 %v4857, %v5308
        %v5310 = vpop.f32.mrb[0].mxu0
        %v5311 = vadd.f32 %v4861, %v5310
        %v5312 = vpop.f32.mrb[0].mxu0
        %v5313 = vadd.f32 %v4857, %v5312
        %v5314 = vpop.f32.mrb[0].mxu0
        %v5315 = vadd.f32 %v4861, %v5314
        %5316 = vmatprep.mubr.bf16.mxu0 %v4807
        %5317 = vmatmul.mubr.bf16.gmra.mrb[0].mxu0 %v4806
        %v5318 = vpop.f32.mrb[0].mxu0
        %v5319 = vadd.f32 %v4857, %v5318
        %v5320 = vpop.f32.mrb[0].mxu0
        %v5321 = vadd.f32 %v4861, %v5320
        %v5322 = vpop.f32.mrb[0].mxu0
        %v5323 = vadd.f32 %v4857, %v5322
        %v5324 = vpop.f32.mrb[0].mxu0
        %v5325 = vadd.f32 %v4861, %v5324
        %5326 = vmatprep.mubr.bf16.mxu0 %v4809
        %5327 = vmatmul.mubr.bf16.gmra.mrb[0].mxu0 %v4808
        %v5328 = vpop.f32.mrb[0].mxu0
        %v5329 = vadd.f32 %v4857, %v5328
        %v5330 = vpop.f32.mrb[0].mxu0
        %v5331 = vadd.f32 %v4861, %v5330
        %v5332 = vpop.f32.mrb[0].mxu0
        %v5333 = vadd.f32 %v4857, %v5332
        %v5334 = vpop.f32.mrb[0].mxu0
        %v5335 = vadd.f32 %v4861, %v5334
        %5336 = vmatprep.mubr.bf16.mxu0 %v4811
        %5337 = vmatmul.mubr.bf16.gmra.mrb[0].mxu0 %v4810
        %v5338 = vpop.f32.mrb[0].mxu0
        %v5339 = vadd.f32 %v4857, %v5338
        %v5340 = vpop.f32.mrb[0].mxu0
        %v5341 = vadd.f32 %v4861, %v5340
        %v5342 = vpop.f32.mrb[0].mxu0
        %v5343 = vadd.f32 %v4857, %v5342
        %v5344 = vpop.f32.mrb[0].mxu0
        %v5345 = vadd.f32 %v4861, %v5344
        %5346 = vmatprep.mubr.bf16.mxu0 %v4813
        %5347 = vmatmul.mubr.bf16.gmra.mrb[0].mxu0 %v4812
        %v5348 = vpop.f32.mrb[0].mxu0
        %v5349 = vadd.f32 %v4857, %v5348
        %v5350 = vpop.f32.mrb[0].mxu0
        %v5351 = vadd.f32 %v4861, %v5350
        %v5352 = vpop.f32.mrb[0].mxu0
        %v5353 = vadd.f32 %v4857, %v5352
        %v5354 = vpop.f32.mrb[0].mxu0
        %v5355 = vadd.f32 %v4861, %v5354
        %5356 = vmatprep.mubr.bf16.mxu0 %v4815
        %5357 = vmatmul.mubr.bf16.gmra.mrb[0].mxu0 %v4814
        %v5358 = vpop.f32.mrb[0].mxu0
        %v5359 = vadd.f32 %v4857, %v5358
        %v5360 = vpop.f32.mrb[0].mxu0
        %v5361 = vadd.f32 %v4861, %v5360
        %v5362 = vpop.f32.mrb[0].mxu0
        %v5363 = vadd.f32 %v4857, %v5362
        %v5364 = vpop.f32.mrb[0].mxu0
        %v5365 = vadd.f32 %v4861, %v5364
        %5366 = vmatprep.mubr.bf16.mxu0 %v4817
        %5367 = vmatmul.mubr.bf16.gmra.mrb[0].mxu0 %v4816
        %v5368 = vpop.f32.mrb[0].mxu0
        %v5369 = vadd.f32 %v4857, %v5368
        %v5370 = vpop.f32.mrb[0].mxu0
        %v5371 = vadd.f32 %v4861, %v5370
        %v5372 = vpop.f32.mrb[0].mxu0
        %v5373 = vadd.f32 %v4857, %v5372
        %v5374 = vpop.f32.mrb[0].mxu0
        %v5375 = vadd.f32 %v4861, %v5374
        %5376 = vdwg.mxu0
        %v5377 = vadd.f32 %v5059, %v1165
        %v5378 = vadd.f32 %v5061, %v1167
        %v5379 = vadd.f32 %v5063, %v1169
        %v5380 = vadd.f32 %v5065, %v1171
        %v5381 = vadd.f32 %v5069, %v1175
        %v5382 = vadd.f32 %v5071, %v1177
        %v5383 = vadd.f32 %v5073, %v1179
        %v5384 = vadd.f32 %v5075, %v1181
        %v5385 = vadd.f32 %v5079, %v1185
        %v5386 = vadd.f32 %v5081, %v1187
        %v5387 = vadd.f32 %v5083, %v1189
        %v5388 = vadd.f32 %v5085, %v1191
        %v5389 = vadd.f32 %v5089, %v1195
        %v5390 = vadd.f32 %v5091, %v1197
        %v5391 = vadd.f32 %v5093, %v1199
        %v5392 = vadd.f32 %v5095, %v1201
        %v5393 = vadd.f32 %v5099, %v1205
        %v5394 = vadd.f32 %v5101, %v1207
        %v5395 = vadd.f32 %v5103, %v1209
        %v5396 = vadd.f32 %v5105, %v1211
        %v5397 = vadd.f32 %v5109, %v1215
        %v5398 = vadd.f32 %v5111, %v1217
        %v5399 = vadd.f32 %v5113, %v1219
        %v5400 = vadd.f32 %v5115, %v1221
        %v5401 = vadd.f32 %v5119, %v1225
        %v5402 = vadd.f32 %v5121, %v1227
        %v5403 = vadd.f32 %v5123, %v1229
        %v5404 = vadd.f32 %v5125, %v1231
        %v5405 = vadd.f32 %v5129, %v1235
        %v5406 = vadd.f32 %v5131, %v1237
        %v5407 = vadd.f32 %v5133, %v1239
        %v5408 = vadd.f32 %v5135, %v1241
        %v5409 = vadd.f32 %v5139, %v1245
        %v5410 = vadd.f32 %v5141, %v1247
        %v5411 = vadd.f32 %v5143, %v1249
        %v5412 = vadd.f32 %v5145, %v1251
        %v5413 = vadd.f32 %v5149, %v1255
        %v5414 = vadd.f32 %v5151, %v1257
        %v5415 = vadd.f32 %v5153, %v1259
        %v5416 = vadd.f32 %v5155, %v1261
        %v5417 = vadd.f32 %v5159, %v1265
        %v5418 = vadd.f32 %v5161, %v1267
        %v5419 = vadd.f32 %v5163, %v1269
        %v5420 = vadd.f32 %v5165, %v1271
        %v5421 = vadd.f32 %v5169, %v1275
        %v5422 = vadd.f32 %v5171, %v1277
        %v5423 = vadd.f32 %v5173, %v1279
        %v5424 = vadd.f32 %v5175, %v1281
        %v5425 = vadd.f32 %v5179, %v1285
        %v5426 = vadd.f32 %v5181, %v1287
        %v5427 = vadd.f32 %v5183, %v1289
        %v5428 = vadd.f32 %v5185, %v1291
        %v5429 = vadd.f32 %v5189, %v1295
        %v5430 = vadd.f32 %v5191, %v1297
        %v5431 = vadd.f32 %v5193, %v1299
        %v5432 = vadd.f32 %v5195, %v1301
        %v5433 = vadd.f32 %v5199, %v1305
        %v5434 = vadd.f32 %v5201, %v1307
        %v5435 = vadd.f32 %v5203, %v1309
        %v5436 = vadd.f32 %v5205, %v1311
        %v5437 = vadd.f32 %v5209, %v1315
        %v5438 = vadd.f32 %v5211, %v1317
        %v5439 = vadd.f32 %v5213, %v1319
        %v5440 = vadd.f32 %v5215, %v1321
        %v5441 = vadd.f32 %v5219, %v1325
        %v5442 = vadd.f32 %v5221, %v1327
        %v5443 = vadd.f32 %v5223, %v1329
        %v5444 = vadd.f32 %v5225, %v1331
        %v5445 = vadd.f32 %v5229, %v1335
        %v5446 = vadd.f32 %v5231, %v1337
        %v5447 = vadd.f32 %v5233, %v1339
        %v5448 = vadd.f32 %v5235, %v1341
        %v5449 = vadd.f32 %v5239, %v1345
        %v5450 = vadd.f32 %v5241, %v1347
        %v5451 = vadd.f32 %v5243, %v1349
        %v5452 = vadd.f32 %v5245, %v1351
        %v5453 = vadd.f32 %v5249, %v1355
        %v5454 = vadd.f32 %v5251, %v1357
        %v5455 = vadd.f32 %v5253, %v1359
        %v5456 = vadd.f32 %v5255, %v1361
        %v5457 = vadd.f32 %v5259, %v1365
        %v5458 = vadd.f32 %v5261, %v1367
        %v5459 = vadd.f32 %v5263, %v1369
        %v5460 = vadd.f32 %v5265, %v1371
        %v5461 = vadd.f32 %v5269, %v1375
        %v5462 = vadd.f32 %v5271, %v1377
        %v5463 = vadd.f32 %v5273, %v1379
        %v5464 = vadd.f32 %v5275, %v1381
        %v5465 = vadd.f32 %v5279, %v1385
        %v5466 = vadd.f32 %v5281, %v1387
        %v5467 = vadd.f32 %v5283, %v1389
        %v5468 = vadd.f32 %v5285, %v1391
        %v5469 = vadd.f32 %v5289, %v1395
        %v5470 = vadd.f32 %v5291, %v1397
        %v5471 = vadd.f32 %v5293, %v1399
        %v5472 = vadd.f32 %v5295, %v1401
        %v5473 = vadd.f32 %v5299, %v1405
        %v5474 = vadd.f32 %v5301, %v1407
        %v5475 = vadd.f32 %v5303, %v1409
        %v5476 = vadd.f32 %v5305, %v1411
        %v5477 = vadd.f32 %v5309, %v1415
        %v5478 = vadd.f32 %v5311, %v1417
        %v5479 = vadd.f32 %v5313, %v1419
        %v5480 = vadd.f32 %v5315, %v1421
        %v5481 = vadd.f32 %v5319, %v1425
        %v5482 = vadd.f32 %v5321, %v1427
        %v5483 = vadd.f32 %v5323, %v1429
        %v5484 = vadd.f32 %v5325, %v1431
        %v5485 = vadd.f32 %v5329, %v1435
        %v5486 = vadd.f32 %v5331, %v1437
        %v5487 = vadd.f32 %v5333, %v1439
        %v5488 = vadd.f32 %v5335, %v1441
        %v5489 = vadd.f32 %v5339, %v1445
        %v5490 = vadd.f32 %v5341, %v1447
        %v5491 = vadd.f32 %v5343, %v1449
        %v5492 = vadd.f32 %v5345, %v1451
        %v5493 = vadd.f32 %v5349, %v1455
        %v5494 = vadd.f32 %v5351, %v1457
        %v5495 = vadd.f32 %v5353, %v1459
        %v5496 = vadd.f32 %v5355, %v1461
        %v5497 = vadd.f32 %v5359, %v1465
        %v5498 = vadd.f32 %v5361, %v1467
        %v5499 = vadd.f32 %v5363, %v1469
        %v5500 = vadd.f32 %v5365, %v1471
        %v5501 = vadd.f32 %v5369, %v1475
        %v5502 = vadd.f32 %v5371, %v1477
        %v5503 = vadd.f32 %v5373, %v1479
        %v5504 = vadd.f32 %v5375, %v1481
        %v5505 = vmax.f32 %v5377, 0.0
        %v5506 = vmax.f32 %v5378, 0.0
        %v5507 = vmax.f32 %v5379, 0.0
        %v5508 = vmax.f32 %v5380, 0.0
        %v5509 = vmax.f32 %v5381, 0.0
        %v5510 = vmax.f32 %v5382, 0.0
        %v5511 = vmax.f32 %v5383, 0.0
        %v5512 = vmax.f32 %v5384, 0.0
        %v5513 = vmax.f32 %v5385, 0.0
        %v5514 = vmax.f32 %v5386, 0.0
        %v5515 = vmax.f32 %v5387, 0.0
        %v5516 = vmax.f32 %v5388, 0.0
        %v5517 = vmax.f32 %v5389, 0.0
        %v5518 = vmax.f32 %v5390, 0.0
        %v5519 = vmax.f32 %v5391, 0.0
        %v5520 = vmax.f32 %v5392, 0.0
        %v5521 = vmax.f32 %v5393, 0.0
        %v5522 = vmax.f32 %v5394, 0.0
        %v5523 = vmax.f32 %v5395, 0.0
        %v5524 = vmax.f32 %v5396, 0.0
        %v5525 = vmax.f32 %v5397, 0.0
        %v5526 = vmax.f32 %v5398, 0.0
        %v5527 = vmax.f32 %v5399, 0.0
        %v5528 = vmax.f32 %v5400, 0.0
        %v5529 = vmax.f32 %v5401, 0.0
        %v5530 = vmax.f32 %v5402, 0.0
        %v5531 = vmax.f32 %v5403, 0.0
        %v5532 = vmax.f32 %v5404, 0.0
        %v5533 = vmax.f32 %v5405, 0.0
        %v5534 = vmax.f32 %v5406, 0.0
        %v5535 = vmax.f32 %v5407, 0.0
        %v5536 = vmax.f32 %v5408, 0.0
        %v5537 = vmax.f32 %v5409, 0.0
        %v5538 = vmax.f32 %v5410, 0.0
        %v5539 = vmax.f32 %v5411, 0.0
        %v5540 = vmax.f32 %v5412, 0.0
        %v5541 = vmax.f32 %v5413, 0.0
        %v5542 = vmax.f32 %v5414, 0.0
        %v5543 = vmax.f32 %v5415, 0.0
        %v5544 = vmax.f32 %v5416, 0.0
        %v5545 = vmax.f32 %v5417, 0.0
        %v5546 = vmax.f32 %v5418, 0.0
        %v5547 = vmax.f32 %v5419, 0.0
        %v5548 = vmax.f32 %v5420, 0.0
        %v5549 = vmax.f32 %v5421, 0.0
        %v5550 = vmax.f32 %v5422, 0.0
        %v5551 = vmax.f32 %v5423, 0.0
        %v5552 = vmax.f32 %v5424, 0.0
        %v5553 = vmax.f32 %v5425, 0.0
        %v5554 = vmax.f32 %v5426, 0.0
        %v5555 = vmax.f32 %v5427, 0.0
        %v5556 = vmax.f32 %v5428, 0.0
        %v5557 = vmax.f32 %v5429, 0.0
        %v5558 = vmax.f32 %v5430, 0.0
        %v5559 = vmax.f32 %v5431, 0.0
        %v5560 = vmax.f32 %v5432, 0.0
        %v5561 = vmax.f32 %v5433, 0.0
        %v5562 = vmax.f32 %v5434, 0.0
        %v5563 = vmax.f32 %v5435, 0.0
        %v5564 = vmax.f32 %v5436, 0.0
        %v5565 = vmax.f32 %v5437, 0.0
        %v5566 = vmax.f32 %v5438, 0.0
        %v5567 = vmax.f32 %v5439, 0.0
        %v5568 = vmax.f32 %v5440, 0.0
        %v5569 = vmax.f32 %v5441, 0.0
        %v5570 = vmax.f32 %v5442, 0.0
        %v5571 = vmax.f32 %v5443, 0.0
        %v5572 = vmax.f32 %v5444, 0.0
        %v5573 = vmax.f32 %v5445, 0.0
        %v5574 = vmax.f32 %v5446, 0.0
        %v5575 = vmax.f32 %v5447, 0.0
        %v5576 = vmax.f32 %v5448, 0.0
        %v5577 = vmax.f32 %v5449, 0.0
        %v5578 = vmax.f32 %v5450, 0.0
        %v5579 = vmax.f32 %v5451, 0.0
        %v5580 = vmax.f32 %v5452, 0.0
        %v5581 = vmax.f32 %v5453, 0.0
        %v5582 = vmax.f32 %v5454, 0.0
        %v5583 = vmax.f32 %v5455, 0.0
        %v5584 = vmax.f32 %v5456, 0.0
        %v5585 = vmax.f32 %v5457, 0.0
        %v5586 = vmax.f32 %v5458, 0.0
        %v5587 = vmax.f32 %v5459, 0.0
        %v5588 = vmax.f32 %v5460, 0.0
        %v5589 = vmax.f32 %v5461, 0.0
        %v5590 = vmax.f32 %v5462, 0.0
        %v5591 = vmax.f32 %v5463, 0.0
        %v5592 = vmax.f32 %v5464, 0.0
        %v5593 = vmax.f32 %v5465, 0.0
        %v5594 = vmax.f32 %v5466, 0.0
        %v5595 = vmax.f32 %v5467, 0.0
        %v5596 = vmax.f32 %v5468, 0.0
        %v5597 = vmax.f32 %v5469, 0.0
        %v5598 = vmax.f32 %v5470, 0.0
        %v5599 = vmax.f32 %v5471, 0.0
        %v5600 = vmax.f32 %v5472, 0.0
        %v5601 = vmax.f32 %v5473, 0.0
        %v5602 = vmax.f32 %v5474, 0.0
        %v5603 = vmax.f32 %v5475, 0.0
        %v5604 = vmax.f32 %v5476, 0.0
        %v5605 = vmax.f32 %v5477, 0.0
        %v5606 = vmax.f32 %v5478, 0.0
        %v5607 = vmax.f32 %v5479, 0.0
        %v5608 = vmax.f32 %v5480, 0.0
        %v5609 = vmax.f32 %v5481, 0.0
        %v5610 = vmax.f32 %v5482, 0.0
        %v5611 = vmax.f32 %v5483, 0.0
        %v5612 = vmax.f32 %v5484, 0.0
        %v5613 = vmax.f32 %v5485, 0.0
        %v5614 = vmax.f32 %v5486, 0.0
        %v5615 = vmax.f32 %v5487, 0.0
        %v5616 = vmax.f32 %v5488, 0.0
        %v5617 = vmax.f32 %v5489, 0.0
        %v5618 = vmax.f32 %v5490, 0.0
        %v5619 = vmax.f32 %v5491, 0.0
        %v5620 = vmax.f32 %v5492, 0.0
        %v5621 = vmax.f32 %v5493, 0.0
        %v5622 = vmax.f32 %v5494, 0.0
        %v5623 = vmax.f32 %v5495, 0.0
        %v5624 = vmax.f32 %v5496, 0.0
        %v5625 = vmax.f32 %v5497, 0.0
        %v5626 = vmax.f32 %v5498, 0.0
        %v5627 = vmax.f32 %v5499, 0.0
        %v5628 = vmax.f32 %v5500, 0.0
        %v5629 = vmax.f32 %v5501, 0.0
        %v5630 = vmax.f32 %v5502, 0.0
        %v5631 = vmax.f32 %v5503, 0.0
        %v5632 = vmax.f32 %v5504, 0.0
        %v5633 = vpack.c.bf16 %v5507, %v5505
        %v5634 = vpack.c.bf16 %v5508, %v5506
        %v5635 = vpack.c.bf16 %v5511, %v5509
        %v5636 = vpack.c.bf16 %v5512, %v5510
        %v5637 = vpack.c.bf16 %v5515, %v5513
        %v5638 = vpack.c.bf16 %v5516, %v5514
        %v5639 = vpack.c.bf16 %v5519, %v5517
        %v5640 = vpack.c.bf16 %v5520, %v5518
        %v5641 = vpack.c.bf16 %v5523, %v5521
        %v5642 = vpack.c.bf16 %v5524, %v5522
        %v5643 = vpack.c.bf16 %v5527, %v5525
        %v5644 = vpack.c.bf16 %v5528, %v5526
        %v5645 = vpack.c.bf16 %v5531, %v5529
        %v5646 = vpack.c.bf16 %v5532, %v5530
        %v5647 = vpack.c.bf16 %v5535, %v5533
        %v5648 = vpack.c.bf16 %v5536, %v5534
        %v5649 = vpack.c.bf16 %v5539, %v5537
        %v5650 = vpack.c.bf16 %v5540, %v5538
        %v5651 = vpack.c.bf16 %v5543, %v5541
        %v5652 = vpack.c.bf16 %v5544, %v5542
        %v5653 = vpack.c.bf16 %v5547, %v5545
        %v5654 = vpack.c.bf16 %v5548, %v5546
        %v5655 = vpack.c.bf16 %v5551, %v5549
        %v5656 = vpack.c.bf16 %v5552, %v5550
        %v5657 = vpack.c.bf16 %v5555, %v5553
        %v5658 = vpack.c.bf16 %v5556, %v5554
        %v5659 = vpack.c.bf16 %v5559, %v5557
        %v5660 = vpack.c.bf16 %v5560, %v5558
        %v5661 = vpack.c.bf16 %v5563, %v5561
        %v5662 = vpack.c.bf16 %v5564, %v5562
        %v5663 = vpack.c.bf16 %v5567, %v5565
        %v5664 = vpack.c.bf16 %v5568, %v5566
        %v5665 = vpack.c.bf16 %v5571, %v5569
        %v5666 = vpack.c.bf16 %v5572, %v5570
        %v5667 = vpack.c.bf16 %v5575, %v5573
        %v5668 = vpack.c.bf16 %v5576, %v5574
        %v5669 = vpack.c.bf16 %v5579, %v5577
        %v5670 = vpack.c.bf16 %v5580, %v5578
        %v5671 = vpack.c.bf16 %v5583, %v5581
        %v5672 = vpack.c.bf16 %v5584, %v5582
        %v5673 = vpack.c.bf16 %v5587, %v5585
        %v5674 = vpack.c.bf16 %v5588, %v5586
        %v5675 = vpack.c.bf16 %v5591, %v5589
        %v5676 = vpack.c.bf16 %v5592, %v5590
        %v5677 = vpack.c.bf16 %v5595, %v5593
        %v5678 = vpack.c.bf16 %v5596, %v5594
        %v5679 = vpack.c.bf16 %v5599, %v5597
        %v5680 = vpack.c.bf16 %v5600, %v5598
        %v5681 = vpack.c.bf16 %v5603, %v5601
        %v5682 = vpack.c.bf16 %v5604, %v5602
        %v5683 = vpack.c.bf16 %v5607, %v5605
        %v5684 = vpack.c.bf16 %v5608, %v5606
        %v5685 = vpack.c.bf16 %v5611, %v5609
        %v5686 = vpack.c.bf16 %v5612, %v5610
        %v5687 = vpack.c.bf16 %v5615, %v5613
        %v5688 = vpack.c.bf16 %v5616, %v5614
        %v5689 = vpack.c.bf16 %v5619, %v5617
        %v5690 = vpack.c.bf16 %v5620, %v5618
        %v5691 = vpack.c.bf16 %v5623, %v5621
        %v5692 = vpack.c.bf16 %v5624, %v5622
        %v5693 = vpack.c.bf16 %v5627, %v5625
        %v5694 = vpack.c.bf16 %v5628, %v5626
        %v5695 = vpack.c.bf16 %v5631, %v5629
        %v5696 = vpack.c.bf16 %v5632, %v5630
        %s5697 = scalar_lea.vmem [#allocation7], 1280
        %v5698 = vld [vmem:[%s5697] sm:$0xff]
        %v5699 = vld [vmem:[%s5697 + $0x8] sm:$0xff]
        %v5700 = vld [vmem:[%s5697 + $0x10] sm:$0xff]
        %v5701 = vld [vmem:[%s5697 + $0x18] sm:$0xff]
        %v5702 = vld [vmem:[%s5697 + $0x20] sm:$0xff]
        %v5703 = vld [vmem:[%s5697 + $0x28] sm:$0xff]
        %v5704 = vld [vmem:[%s5697 + $0x30] sm:$0xff]
        %v5705 = vld [vmem:[%s5697 + $0x38] sm:$0xff]
        %v5706 = vld [vmem:[%s5697 + $0x40] sm:$0xff]
        %v5707 = vld [vmem:[%s5697 + $0x48] sm:$0xff]
        %v5708 = vld [vmem:[%s5697 + $0x50] sm:$0xff]
        %v5709 = vld [vmem:[%s5697 + $0x58] sm:$0xff]
        %v5710 = vld [vmem:[%s5697 + $0x60] sm:$0xff]
        %v5711 = vld [vmem:[%s5697 + $0x68] sm:$0xff]
        %v5712 = vld [vmem:[%s5697 + $0x70] sm:$0xff]
        %v5713 = vld [vmem:[%s5697 + $0x78] sm:$0xff]
        %v5714 = vld [vmem:[%s5697 + $0x80] sm:$0xff]
        %v5715 = vld [vmem:[%s5697 + $0x88] sm:$0xff]
        %v5716 = vld [vmem:[%s5697 + $0x90] sm:$0xff]
        %v5717 = vld [vmem:[%s5697 + $0x98] sm:$0xff]
        %v5718 = vld [vmem:[%s5697 + $0xa0] sm:$0xff]
        %v5719 = vld [vmem:[%s5697 + $0xa8] sm:$0xff]
        %v5720 = vld [vmem:[%s5697 + $0xb0] sm:$0xff]
        %v5721 = vld [vmem:[%s5697 + $0xb8] sm:$0xff]
        %v5722 = vld [vmem:[%s5697 + $0xc0] sm:$0xff]
        %v5723 = vld [vmem:[%s5697 + $0xc8] sm:$0xff]
        %v5724 = vld [vmem:[%s5697 + $0xd0] sm:$0xff]
        %v5725 = vld [vmem:[%s5697 + $0xd8] sm:$0xff]
        %v5726 = vld [vmem:[%s5697 + $0xe0] sm:$0xff]
        %v5727 = vld [vmem:[%s5697 + $0xe8] sm:$0xff]
        %v5728 = vld [vmem:[%s5697 + $0xf0] sm:$0xff]
        %v5729 = vld [vmem:[%s5697 + $0xf8] sm:$0xff]
        %s5730 = scalar_lea.vmem [#allocation8], 6
        %v5731 = vld [vmem:[%s5730] ss:$8 sm:$0x3]
        %v5733 = vlaneseq
        %v5734 = vshrl.u32 %v5733, 7
        %v5735 = vsub.s32 0, %v5734
        %v5736 = vrot.slane %v5731, %v5735
        %v5737 = vlaneseq
        %v5738 = vshrl.u32 %v5737, 7
        %v5739 = vsub.s32 1, %v5738
        %v5740 = vrot.slane %v5731, %v5739
        %v5775 = vunpack.c.l.b16 %v5698
        %v5776 = vunpack.c.h.b16 %v5698
        %v5777 = vunpack.c.l.b16 %v5699
        %v5778 = vunpack.c.h.b16 %v5699
        %v5779 = vunpack.c.l.b16 %v5700
        %v5780 = vunpack.c.h.b16 %v5700
        %v5781 = vunpack.c.l.b16 %v5701
        %v5782 = vunpack.c.h.b16 %v5701
        %v5783 = vunpack.c.l.b16 %v5702
        %v5784 = vunpack.c.h.b16 %v5702
        %v5785 = vunpack.c.l.b16 %v5703
        %v5786 = vunpack.c.h.b16 %v5703
        %v5787 = vunpack.c.l.b16 %v5704
        %v5788 = vunpack.c.h.b16 %v5704
        %v5789 = vunpack.c.l.b16 %v5705
        %v5790 = vunpack.c.h.b16 %v5705
        %v5791 = vunpack.c.l.b16 %v5706
        %v5792 = vunpack.c.h.b16 %v5706
        %v5793 = vunpack.c.l.b16 %v5707
        %v5794 = vunpack.c.h.b16 %v5707
        %v5795 = vunpack.c.l.b16 %v5708
        %v5796 = vunpack.c.h.b16 %v5708
        %v5797 = vunpack.c.l.b16 %v5709
        %v5798 = vunpack.c.h.b16 %v5709
        %v5799 = vunpack.c.l.b16 %v5710
        %v5800 = vunpack.c.h.b16 %v5710
        %v5801 = vunpack.c.l.b16 %v5711
        %v5802 = vunpack.c.h.b16 %v5711
        %v5803 = vunpack.c.l.b16 %v5712
        %v5804 = vunpack.c.h.b16 %v5712
        %v5805 = vunpack.c.l.b16 %v5713
        %v5806 = vunpack.c.h.b16 %v5713
        %v5807 = vunpack.c.l.b16 %v5714
        %v5808 = vunpack.c.h.b16 %v5714
        %v5809 = vunpack.c.l.b16 %v5715
        %v5810 = vunpack.c.h.b16 %v5715
        %v5811 = vunpack.c.l.b16 %v5716
        %v5812 = vunpack.c.h.b16 %v5716
        %v5813 = vunpack.c.l.b16 %v5717
        %v5814 = vunpack.c.h.b16 %v5717
        %v5815 = vunpack.c.l.b16 %v5718
        %v5816 = vunpack.c.h.b16 %v5718
        %v5817 = vunpack.c.l.b16 %v5719
        %v5818 = vunpack.c.h.b16 %v5719
        %v5819 = vunpack.c.l.b16 %v5720
        %v5820 = vunpack.c.h.b16 %v5720
        %v5821 = vunpack.c.l.b16 %v5721
        %v5822 = vunpack.c.h.b16 %v5721
        %v5823 = vunpack.c.l.b16 %v5722
        %v5824 = vunpack.c.h.b16 %v5722
        %v5825 = vunpack.c.l.b16 %v5723
        %v5826 = vunpack.c.h.b16 %v5723
        %v5827 = vunpack.c.l.b16 %v5724
        %v5828 = vunpack.c.h.b16 %v5724
        %v5829 = vunpack.c.l.b16 %v5725
        %v5830 = vunpack.c.h.b16 %v5725
        %v5831 = vunpack.c.l.b16 %v5726
        %v5832 = vunpack.c.h.b16 %v5726
        %v5833 = vunpack.c.l.b16 %v5727
        %v5834 = vunpack.c.h.b16 %v5727
        %v5835 = vunpack.c.l.b16 %v5728
        %v5836 = vunpack.c.h.b16 %v5728
        %v5837 = vunpack.c.l.b16 %v5729
        %v5838 = vunpack.c.h.b16 %v5729
        %v5839 = vpack.c.b16 %v5777, %v5775
        %v5840 = vpack.c.b16 %v5778, %v5776
        %v5841 = vpack.c.b16 %v5781, %v5779
        %v5842 = vpack.c.b16 %v5782, %v5780
        %v5843 = vpack.c.b16 %v5785, %v5783
        %v5844 = vpack.c.b16 %v5786, %v5784
        %v5845 = vpack.c.b16 %v5789, %v5787
        %v5846 = vpack.c.b16 %v5790, %v5788
        %v5847 = vpack.c.b16 %v5793, %v5791
        %v5848 = vpack.c.b16 %v5794, %v5792
        %v5849 = vpack.c.b16 %v5797, %v5795
        %v5850 = vpack.c.b16 %v5798, %v5796
        %v5851 = vpack.c.b16 %v5801, %v5799
        %v5852 = vpack.c.b16 %v5802, %v5800
        %v5853 = vpack.c.b16 %v5805, %v5803
        %v5854 = vpack.c.b16 %v5806, %v5804
        %v5855 = vpack.c.b16 %v5809, %v5807
        %v5856 = vpack.c.b16 %v5810, %v5808
        %v5857 = vpack.c.b16 %v5813, %v5811
        %v5858 = vpack.c.b16 %v5814, %v5812
        %v5859 = vpack.c.b16 %v5817, %v5815
        %v5860 = vpack.c.b16 %v5818, %v5816
        %v5861 = vpack.c.b16 %v5821, %v5819
        %v5862 = vpack.c.b16 %v5822, %v5820
        %v5863 = vpack.c.b16 %v5825, %v5823
        %v5864 = vpack.c.b16 %v5826, %v5824
        %v5865 = vpack.c.b16 %v5829, %v5827
        %v5866 = vpack.c.b16 %v5830, %v5828
        %v5867 = vpack.c.b16 %v5833, %v5831
        %v5868 = vpack.c.b16 %v5834, %v5832
        %v5869 = vpack.c.b16 %v5837, %v5835
        %v5870 = vpack.c.b16 %v5838, %v5836
        %5903 = vmatprep.subr.bf16.mxu0 %v5840
        %5904 = vmatpush1.bf16.msra.mxu0 %v5839
        %5905 = vmatprep.subr.bf16.mxu0 %v5842
        %5906 = vmatpush1.bf16.msra.mxu0 %v5841
        %5907 = vmatprep.subr.bf16.mxu0 %v5844
        %5908 = vmatpush1.bf16.msra.mxu0 %v5843
        %5909 = vmatprep.subr.bf16.mxu0 %v5846
        %5910 = vmatpush1.bf16.msra.mxu0 %v5845
        %5911 = vmatprep.subr.bf16.mxu0 %v5848
        %5912 = vmatpush1.bf16.msra.mxu0 %v5847
        %5913 = vmatprep.subr.bf16.mxu0 %v5850
        %5914 = vmatpush1.bf16.msra.mxu0 %v5849
        %5915 = vmatprep.subr.bf16.mxu0 %v5852
        %5916 = vmatpush1.bf16.msra.mxu0 %v5851
        %5917 = vmatprep.subr.bf16.mxu0 %v5854
        %5918 = vmatpush1.bf16.msra.mxu0 %v5853
        %5919 = vmatprep.subr.bf16.mxu0 %v5856
        %5920 = vmatpush1.bf16.msra.mxu0 %v5855
        %5921 = vmatprep.subr.bf16.mxu0 %v5858
        %5922 = vmatpush1.bf16.msra.mxu0 %v5857
        %5923 = vmatprep.subr.bf16.mxu0 %v5860
        %5924 = vmatpush1.bf16.msra.mxu0 %v5859
        %5925 = vmatprep.subr.bf16.mxu0 %v5862
        %5926 = vmatpush1.bf16.msra.mxu0 %v5861
        %5927 = vmatprep.subr.bf16.mxu0 %v5864
        %5928 = vmatpush1.bf16.msra.mxu0 %v5863
        %5929 = vmatprep.subr.bf16.mxu0 %v5866
        %5930 = vmatpush1.bf16.msra.mxu0 %v5865
        %5931 = vmatprep.subr.bf16.mxu0 %v5868
        %5932 = vmatpush1.bf16.msra.mxu0 %v5867
        %5933 = vmatprep.subr.bf16.mxu0 %v5870
        %5934 = vmatpush1.bf16.msra.mxu0 %v5869
        %5935 = vmatprep.mubr.bf16.mxu0 %v5634
        %5936 = vmatmul.mubr.bf16.gmra.mrb[0].mxu0 %v5633
        %v5937 = vpop.f32.mrb[0].mxu0
        %v5938 = vadd.f32 %v5736, %v5937
        %v5939 = vpop.f32.mrb[0].mxu0
        %v5940 = vadd.f32 %v5740, %v5939
        %v5941 = vpop.f32.mrb[0].mxu0
        %v5942 = vadd.f32 %v5736, %v5941
        %v5943 = vpop.f32.mrb[0].mxu0
        %v5944 = vadd.f32 %v5740, %v5943
        %5945 = vmatprep.mubr.bf16.mxu0 %v5636
        %5946 = vmatmul.mubr.bf16.gmra.mrb[0].mxu0 %v5635
        %v5947 = vpop.f32.mrb[0].mxu0
        %v5948 = vadd.f32 %v5736, %v5947
        %v5949 = vpop.f32.mrb[0].mxu0
        %v5950 = vadd.f32 %v5740, %v5949
        %v5951 = vpop.f32.mrb[0].mxu0
        %v5952 = vadd.f32 %v5736, %v5951
        %v5953 = vpop.f32.mrb[0].mxu0
        %v5954 = vadd.f32 %v5740, %v5953
        %5955 = vmatprep.mubr.bf16.mxu0 %v5638
        %5956 = vmatmul.mubr.bf16.gmra.mrb[0].mxu0 %v5637
        %v5957 = vpop.f32.mrb[0].mxu0
        %v5958 = vadd.f32 %v5736, %v5957
        %v5959 = vpop.f32.mrb[0].mxu0
        %v5960 = vadd.f32 %v5740, %v5959
        %v5961 = vpop.f32.mrb[0].mxu0
        %v5962 = vadd.f32 %v5736, %v5961
        %v5963 = vpop.f32.mrb[0].mxu0
        %v5964 = vadd.f32 %v5740, %v5963
        %5965 = vmatprep.mubr.bf16.mxu0 %v5640
        %5966 = vmatmul.mubr.bf16.gmra.mrb[0].mxu0 %v5639
        %v5967 = vpop.f32.mrb[0].mxu0
        %v5968 = vadd.f32 %v5736, %v5967
        %v5969 = vpop.f32.mrb[0].mxu0
        %v5970 = vadd.f32 %v5740, %v5969
        %v5971 = vpop.f32.mrb[0].mxu0
        %v5972 = vadd.f32 %v5736, %v5971
        %v5973 = vpop.f32.mrb[0].mxu0
        %v5974 = vadd.f32 %v5740, %v5973
        %5975 = vmatprep.mubr.bf16.mxu0 %v5642
        %5976 = vmatmul.mubr.bf16.gmra.mrb[0].mxu0 %v5641
        %v5977 = vpop.f32.mrb[0].mxu0
        %v5978 = vadd.f32 %v5736, %v5977
        %v5979 = vpop.f32.mrb[0].mxu0
        %v5980 = vadd.f32 %v5740, %v5979
        %v5981 = vpop.f32.mrb[0].mxu0
        %v5982 = vadd.f32 %v5736, %v5981
        %v5983 = vpop.f32.mrb[0].mxu0
        %v5984 = vadd.f32 %v5740, %v5983
        %5985 = vmatprep.mubr.bf16.mxu0 %v5644
        %5986 = vmatmul.mubr.bf16.gmra.mrb[0].mxu0 %v5643
        %v5987 = vpop.f32.mrb[0].mxu0
        %v5988 = vadd.f32 %v5736, %v5987
        %v5989 = vpop.f32.mrb[0].mxu0
        %v5990 = vadd.f32 %v5740, %v5989
        %v5991 = vpop.f32.mrb[0].mxu0
        %v5992 = vadd.f32 %v5736, %v5991
        %v5993 = vpop.f32.mrb[0].mxu0
        %v5994 = vadd.f32 %v5740, %v5993
        %5995 = vmatprep.mubr.bf16.mxu0 %v5646
        %5996 = vmatmul.mubr.bf16.gmra.mrb[0].mxu0 %v5645
        %v5997 = vpop.f32.mrb[0].mxu0
        %v5998 = vadd.f32 %v5736, %v5997
        %v5999 = vpop.f32.mrb[0].mxu0
        %v6000 = vadd.f32 %v5740, %v5999
        %v6001 = vpop.f32.mrb[0].mxu0
        %v6002 = vadd.f32 %v5736, %v6001
        %v6003 = vpop.f32.mrb[0].mxu0
        %v6004 = vadd.f32 %v5740, %v6003
        %6005 = vmatprep.mubr.bf16.mxu0 %v5648
        %6006 = vmatmul.mubr.bf16.gmra.mrb[0].mxu0 %v5647
        %v6007 = vpop.f32.mrb[0].mxu0
        %v6008 = vadd.f32 %v5736, %v6007
        %v6009 = vpop.f32.mrb[0].mxu0
        %v6010 = vadd.f32 %v5740, %v6009
        %v6011 = vpop.f32.mrb[0].mxu0
        %v6012 = vadd.f32 %v5736, %v6011
        %v6013 = vpop.f32.mrb[0].mxu0
        %v6014 = vadd.f32 %v5740, %v6013
        %6015 = vmatprep.mubr.bf16.mxu0 %v5650
        %6016 = vmatmul.mubr.bf16.gmra.mrb[0].mxu0 %v5649
        %v6017 = vpop.f32.mrb[0].mxu0
        %v6018 = vadd.f32 %v5736, %v6017
        %v6019 = vpop.f32.mrb[0].mxu0
        %v6020 = vadd.f32 %v5740, %v6019
        %v6021 = vpop.f32.mrb[0].mxu0
        %v6022 = vadd.f32 %v5736, %v6021
        %v6023 = vpop.f32.mrb[0].mxu0
        %v6024 = vadd.f32 %v5740, %v6023
        %6025 = vmatprep.mubr.bf16.mxu0 %v5652
        %6026 = vmatmul.mubr.bf16.gmra.mrb[0].mxu0 %v5651
        %v6027 = vpop.f32.mrb[0].mxu0
        %v6028 = vadd.f32 %v5736, %v6027
        %v6029 = vpop.f32.mrb[0].mxu0
        %v6030 = vadd.f32 %v5740, %v6029
        %v6031 = vpop.f32.mrb[0].mxu0
        %v6032 = vadd.f32 %v5736, %v6031
        %v6033 = vpop.f32.mrb[0].mxu0
        %v6034 = vadd.f32 %v5740, %v6033
        %6035 = vmatprep.mubr.bf16.mxu0 %v5654
        %6036 = vmatmul.mubr.bf16.gmra.mrb[0].mxu0 %v5653
        %v6037 = vpop.f32.mrb[0].mxu0
        %v6038 = vadd.f32 %v5736, %v6037
        %v6039 = vpop.f32.mrb[0].mxu0
        %v6040 = vadd.f32 %v5740, %v6039
        %v6041 = vpop.f32.mrb[0].mxu0
        %v6042 = vadd.f32 %v5736, %v6041
        %v6043 = vpop.f32.mrb[0].mxu0
        %v6044 = vadd.f32 %v5740, %v6043
        %6045 = vmatprep.mubr.bf16.mxu0 %v5656
        %6046 = vmatmul.mubr.bf16.gmra.mrb[0].mxu0 %v5655
        %v6047 = vpop.f32.mrb[0].mxu0
        %v6048 = vadd.f32 %v5736, %v6047
        %v6049 = vpop.f32.mrb[0].mxu0
        %v6050 = vadd.f32 %v5740, %v6049
        %v6051 = vpop.f32.mrb[0].mxu0
        %v6052 = vadd.f32 %v5736, %v6051
        %v6053 = vpop.f32.mrb[0].mxu0
        %v6054 = vadd.f32 %v5740, %v6053
        %6055 = vmatprep.mubr.bf16.mxu0 %v5658
        %6056 = vmatmul.mubr.bf16.gmra.mrb[0].mxu0 %v5657
        %v6057 = vpop.f32.mrb[0].mxu0
        %v6058 = vadd.f32 %v5736, %v6057
        %v6059 = vpop.f32.mrb[0].mxu0
        %v6060 = vadd.f32 %v5740, %v6059
        %v6061 = vpop.f32.mrb[0].mxu0
        %v6062 = vadd.f32 %v5736, %v6061
        %v6063 = vpop.f32.mrb[0].mxu0
        %v6064 = vadd.f32 %v5740, %v6063
        %6065 = vmatprep.mubr.bf16.mxu0 %v5660
        %6066 = vmatmul.mubr.bf16.gmra.mrb[0].mxu0 %v5659
        %v6067 = vpop.f32.mrb[0].mxu0
        %v6068 = vadd.f32 %v5736, %v6067
        %v6069 = vpop.f32.mrb[0].mxu0
        %v6070 = vadd.f32 %v5740, %v6069
        %v6071 = vpop.f32.mrb[0].mxu0
        %v6072 = vadd.f32 %v5736, %v6071
        %v6073 = vpop.f32.mrb[0].mxu0
        %v6074 = vadd.f32 %v5740, %v6073
        %6075 = vmatprep.mubr.bf16.mxu0 %v5662
        %6076 = vmatmul.mubr.bf16.gmra.mrb[0].mxu0 %v5661
        %v6077 = vpop.f32.mrb[0].mxu0
        %v6078 = vadd.f32 %v5736, %v6077
        %v6079 = vpop.f32.mrb[0].mxu0
        %v6080 = vadd.f32 %v5740, %v6079
        %v6081 = vpop.f32.mrb[0].mxu0
        %v6082 = vadd.f32 %v5736, %v6081
        %v6083 = vpop.f32.mrb[0].mxu0
        %v6084 = vadd.f32 %v5740, %v6083
        %6085 = vmatprep.mubr.bf16.mxu0 %v5664
        %6086 = vmatmul.mubr.bf16.gmra.mrb[0].mxu0 %v5663
        %v6087 = vpop.f32.mrb[0].mxu0
        %v6088 = vadd.f32 %v5736, %v6087
        %v6089 = vpop.f32.mrb[0].mxu0
        %v6090 = vadd.f32 %v5740, %v6089
        %v6091 = vpop.f32.mrb[0].mxu0
        %v6092 = vadd.f32 %v5736, %v6091
        %v6093 = vpop.f32.mrb[0].mxu0
        %v6094 = vadd.f32 %v5740, %v6093
        %6095 = vmatprep.mubr.bf16.mxu0 %v5666
        %6096 = vmatmul.mubr.bf16.gmra.mrb[0].mxu0 %v5665
        %v6097 = vpop.f32.mrb[0].mxu0
        %v6098 = vadd.f32 %v5736, %v6097
        %v6099 = vpop.f32.mrb[0].mxu0
        %v6100 = vadd.f32 %v5740, %v6099
        %v6101 = vpop.f32.mrb[0].mxu0
        %v6102 = vadd.f32 %v5736, %v6101
        %v6103 = vpop.f32.mrb[0].mxu0
        %v6104 = vadd.f32 %v5740, %v6103
        %6105 = vmatprep.mubr.bf16.mxu0 %v5668
        %6106 = vmatmul.mubr.bf16.gmra.mrb[0].mxu0 %v5667
        %v6107 = vpop.f32.mrb[0].mxu0
        %v6108 = vadd.f32 %v5736, %v6107
        %v6109 = vpop.f32.mrb[0].mxu0
        %v6110 = vadd.f32 %v5740, %v6109
        %v6111 = vpop.f32.mrb[0].mxu0
        %v6112 = vadd.f32 %v5736, %v6111
        %v6113 = vpop.f32.mrb[0].mxu0
        %v6114 = vadd.f32 %v5740, %v6113
        %6115 = vmatprep.mubr.bf16.mxu0 %v5670
        %6116 = vmatmul.mubr.bf16.gmra.mrb[0].mxu0 %v5669
        %v6117 = vpop.f32.mrb[0].mxu0
        %v6118 = vadd.f32 %v5736, %v6117
        %v6119 = vpop.f32.mrb[0].mxu0
        %v6120 = vadd.f32 %v5740, %v6119
        %v6121 = vpop.f32.mrb[0].mxu0
        %v6122 = vadd.f32 %v5736, %v6121
        %v6123 = vpop.f32.mrb[0].mxu0
        %v6124 = vadd.f32 %v5740, %v6123
        %6125 = vmatprep.mubr.bf16.mxu0 %v5672
        %6126 = vmatmul.mubr.bf16.gmra.mrb[0].mxu0 %v5671
        %v6127 = vpop.f32.mrb[0].mxu0
        %v6128 = vadd.f32 %v5736, %v6127
        %v6129 = vpop.f32.mrb[0].mxu0
        %v6130 = vadd.f32 %v5740, %v6129
        %v6131 = vpop.f32.mrb[0].mxu0
        %v6132 = vadd.f32 %v5736, %v6131
        %v6133 = vpop.f32.mrb[0].mxu0
        %v6134 = vadd.f32 %v5740, %v6133
        %6135 = vmatprep.mubr.bf16.mxu0 %v5674
        %6136 = vmatmul.mubr.bf16.gmra.mrb[0].mxu0 %v5673
        %v6137 = vpop.f32.mrb[0].mxu0
        %v6138 = vadd.f32 %v5736, %v6137
        %v6139 = vpop.f32.mrb[0].mxu0
        %v6140 = vadd.f32 %v5740, %v6139
        %v6141 = vpop.f32.mrb[0].mxu0
        %v6142 = vadd.f32 %v5736, %v6141
        %v6143 = vpop.f32.mrb[0].mxu0
        %v6144 = vadd.f32 %v5740, %v6143
        %6145 = vmatprep.mubr.bf16.mxu0 %v5676
        %6146 = vmatmul.mubr.bf16.gmra.mrb[0].mxu0 %v5675
        %v6147 = vpop.f32.mrb[0].mxu0
        %v6148 = vadd.f32 %v5736, %v6147
        %v6149 = vpop.f32.mrb[0].mxu0
        %v6150 = vadd.f32 %v5740, %v6149
        %v6151 = vpop.f32.mrb[0].mxu0
        %v6152 = vadd.f32 %v5736, %v6151
        %v6153 = vpop.f32.mrb[0].mxu0
        %v6154 = vadd.f32 %v5740, %v6153
        %6155 = vmatprep.mubr.bf16.mxu0 %v5678
        %6156 = vmatmul.mubr.bf16.gmra.mrb[0].mxu0 %v5677
        %v6157 = vpop.f32.mrb[0].mxu0
        %v6158 = vadd.f32 %v5736, %v6157
        %v6159 = vpop.f32.mrb[0].mxu0
        %v6160 = vadd.f32 %v5740, %v6159
        %v6161 = vpop.f32.mrb[0].mxu0
        %v6162 = vadd.f32 %v5736, %v6161
        %v6163 = vpop.f32.mrb[0].mxu0
        %v6164 = vadd.f32 %v5740, %v6163
        %6165 = vmatprep.mubr.bf16.mxu0 %v5680
        %6166 = vmatmul.mubr.bf16.gmra.mrb[0].mxu0 %v5679
        %v6167 = vpop.f32.mrb[0].mxu0
        %v6168 = vadd.f32 %v5736, %v6167
        %v6169 = vpop.f32.mrb[0].mxu0
        %v6170 = vadd.f32 %v5740, %v6169
        %v6171 = vpop.f32.mrb[0].mxu0
        %v6172 = vadd.f32 %v5736, %v6171
        %v6173 = vpop.f32.mrb[0].mxu0
        %v6174 = vadd.f32 %v5740, %v6173
        %6175 = vmatprep.mubr.bf16.mxu0 %v5682
        %6176 = vmatmul.mubr.bf16.gmra.mrb[0].mxu0 %v5681
        %v6177 = vpop.f32.mrb[0].mxu0
        %v6178 = vadd.f32 %v5736, %v6177
        %v6179 = vpop.f32.mrb[0].mxu0
        %v6180 = vadd.f32 %v5740, %v6179
        %v6181 = vpop.f32.mrb[0].mxu0
        %v6182 = vadd.f32 %v5736, %v6181
        %v6183 = vpop.f32.mrb[0].mxu0
        %v6184 = vadd.f32 %v5740, %v6183
        %6185 = vmatprep.mubr.bf16.mxu0 %v5684
        %6186 = vmatmul.mubr.bf16.gmra.mrb[0].mxu0 %v5683
        %v6187 = vpop.f32.mrb[0].mxu0
        %v6188 = vadd.f32 %v5736, %v6187
        %v6189 = vpop.f32.mrb[0].mxu0
        %v6190 = vadd.f32 %v5740, %v6189
        %v6191 = vpop.f32.mrb[0].mxu0
        %v6192 = vadd.f32 %v5736, %v6191
        %v6193 = vpop.f32.mrb[0].mxu0
        %v6194 = vadd.f32 %v5740, %v6193
        %6195 = vmatprep.mubr.bf16.mxu0 %v5686
        %6196 = vmatmul.mubr.bf16.gmra.mrb[0].mxu0 %v5685
        %v6197 = vpop.f32.mrb[0].mxu0
        %v6198 = vadd.f32 %v5736, %v6197
        %v6199 = vpop.f32.mrb[0].mxu0
        %v6200 = vadd.f32 %v5740, %v6199
        %v6201 = vpop.f32.mrb[0].mxu0
        %v6202 = vadd.f32 %v5736, %v6201
        %v6203 = vpop.f32.mrb[0].mxu0
        %v6204 = vadd.f32 %v5740, %v6203
        %6205 = vmatprep.mubr.bf16.mxu0 %v5688
        %6206 = vmatmul.mubr.bf16.gmra.mrb[0].mxu0 %v5687
        %v6207 = vpop.f32.mrb[0].mxu0
        %v6208 = vadd.f32 %v5736, %v6207
        %v6209 = vpop.f32.mrb[0].mxu0
        %v6210 = vadd.f32 %v5740, %v6209
        %v6211 = vpop.f32.mrb[0].mxu0
        %v6212 = vadd.f32 %v5736, %v6211
        %v6213 = vpop.f32.mrb[0].mxu0
        %v6214 = vadd.f32 %v5740, %v6213
        %6215 = vmatprep.mubr.bf16.mxu0 %v5690
        %6216 = vmatmul.mubr.bf16.gmra.mrb[0].mxu0 %v5689
        %v6217 = vpop.f32.mrb[0].mxu0
        %v6218 = vadd.f32 %v5736, %v6217
        %v6219 = vpop.f32.mrb[0].mxu0
        %v6220 = vadd.f32 %v5740, %v6219
        %v6221 = vpop.f32.mrb[0].mxu0
        %v6222 = vadd.f32 %v5736, %v6221
        %v6223 = vpop.f32.mrb[0].mxu0
        %v6224 = vadd.f32 %v5740, %v6223
        %6225 = vmatprep.mubr.bf16.mxu0 %v5692
        %6226 = vmatmul.mubr.bf16.gmra.mrb[0].mxu0 %v5691
        %v6227 = vpop.f32.mrb[0].mxu0
        %v6228 = vadd.f32 %v5736, %v6227
        %v6229 = vpop.f32.mrb[0].mxu0
        %v6230 = vadd.f32 %v5740, %v6229
        %v6231 = vpop.f32.mrb[0].mxu0
        %v6232 = vadd.f32 %v5736, %v6231
        %v6233 = vpop.f32.mrb[0].mxu0
        %v6234 = vadd.f32 %v5740, %v6233
        %6235 = vmatprep.mubr.bf16.mxu0 %v5694
        %6236 = vmatmul.mubr.bf16.gmra.mrb[0].mxu0 %v5693
        %v6237 = vpop.f32.mrb[0].mxu0
        %v6238 = vadd.f32 %v5736, %v6237
        %v6239 = vpop.f32.mrb[0].mxu0
        %v6240 = vadd.f32 %v5740, %v6239
        %v6241 = vpop.f32.mrb[0].mxu0
        %v6242 = vadd.f32 %v5736, %v6241
        %v6243 = vpop.f32.mrb[0].mxu0
        %v6244 = vadd.f32 %v5740, %v6243
        %6245 = vmatprep.mubr.bf16.mxu0 %v5696
        %6246 = vmatmul.mubr.bf16.gmra.mrb[0].mxu0 %v5695
        %v6247 = vpop.f32.mrb[0].mxu0
        %v6248 = vadd.f32 %v5736, %v6247
        %v6249 = vpop.f32.mrb[0].mxu0
        %v6250 = vadd.f32 %v5740, %v6249
        %v6251 = vpop.f32.mrb[0].mxu0
        %v6252 = vadd.f32 %v5736, %v6251
        %v6253 = vpop.f32.mrb[0].mxu0
        %v6254 = vadd.f32 %v5740, %v6253
        %6255 = vdwg.mxu0
        %v6256 = vmax.f32 %v5938, 0.0
        %v6257 = vmax.f32 %v5940, 0.0
        %v6258 = vmax.f32 %v5942, 0.0
        %v6259 = vmax.f32 %v5944, 0.0
        %v6260 = vmax.f32 %v5948, 0.0
        %v6261 = vmax.f32 %v5950, 0.0
        %v6262 = vmax.f32 %v5952, 0.0
        %v6263 = vmax.f32 %v5954, 0.0
        %v6264 = vmax.f32 %v5958, 0.0
        %v6265 = vmax.f32 %v5960, 0.0
        %v6266 = vmax.f32 %v5962, 0.0
        %v6267 = vmax.f32 %v5964, 0.0
        %v6268 = vmax.f32 %v5968, 0.0
        %v6269 = vmax.f32 %v5970, 0.0
        %v6270 = vmax.f32 %v5972, 0.0
        %v6271 = vmax.f32 %v5974, 0.0
        %v6272 = vmax.f32 %v5978, 0.0
        %v6273 = vmax.f32 %v5980, 0.0
        %v6274 = vmax.f32 %v5982, 0.0
        %v6275 = vmax.f32 %v5984, 0.0
        %v6276 = vmax.f32 %v5988, 0.0
        %v6277 = vmax.f32 %v5990, 0.0
        %v6278 = vmax.f32 %v5992, 0.0
        %v6279 = vmax.f32 %v5994, 0.0
        %v6280 = vmax.f32 %v5998, 0.0
        %v6281 = vmax.f32 %v6000, 0.0
        %v6282 = vmax.f32 %v6002, 0.0
        %v6283 = vmax.f32 %v6004, 0.0
        %v6284 = vmax.f32 %v6008, 0.0
        %v6285 = vmax.f32 %v6010, 0.0
        %v6286 = vmax.f32 %v6012, 0.0
        %v6287 = vmax.f32 %v6014, 0.0
        %v6288 = vmax.f32 %v6018, 0.0
        %v6289 = vmax.f32 %v6020, 0.0
        %v6290 = vmax.f32 %v6022, 0.0
        %v6291 = vmax.f32 %v6024, 0.0
        %v6292 = vmax.f32 %v6028, 0.0
        %v6293 = vmax.f32 %v6030, 0.0
        %v6294 = vmax.f32 %v6032, 0.0
        %v6295 = vmax.f32 %v6034, 0.0
        %v6296 = vmax.f32 %v6038, 0.0
        %v6297 = vmax.f32 %v6040, 0.0
        %v6298 = vmax.f32 %v6042, 0.0
        %v6299 = vmax.f32 %v6044, 0.0
        %v6300 = vmax.f32 %v6048, 0.0
        %v6301 = vmax.f32 %v6050, 0.0
        %v6302 = vmax.f32 %v6052, 0.0
        %v6303 = vmax.f32 %v6054, 0.0
        %v6304 = vmax.f32 %v6058, 0.0
        %v6305 = vmax.f32 %v6060, 0.0
        %v6306 = vmax.f32 %v6062, 0.0
        %v6307 = vmax.f32 %v6064, 0.0
        %v6308 = vmax.f32 %v6068, 0.0
        %v6309 = vmax.f32 %v6070, 0.0
        %v6310 = vmax.f32 %v6072, 0.0
        %v6311 = vmax.f32 %v6074, 0.0
        %v6312 = vmax.f32 %v6078, 0.0
        %v6313 = vmax.f32 %v6080, 0.0
        %v6314 = vmax.f32 %v6082, 0.0
        %v6315 = vmax.f32 %v6084, 0.0
        %v6316 = vmax.f32 %v6088, 0.0
        %v6317 = vmax.f32 %v6090, 0.0
        %v6318 = vmax.f32 %v6092, 0.0
        %v6319 = vmax.f32 %v6094, 0.0
        %v6320 = vmax.f32 %v6098, 0.0
        %v6321 = vmax.f32 %v6100, 0.0
        %v6322 = vmax.f32 %v6102, 0.0
        %v6323 = vmax.f32 %v6104, 0.0
        %v6324 = vmax.f32 %v6108, 0.0
        %v6325 = vmax.f32 %v6110, 0.0
        %v6326 = vmax.f32 %v6112, 0.0
        %v6327 = vmax.f32 %v6114, 0.0
        %v6328 = vmax.f32 %v6118, 0.0
        %v6329 = vmax.f32 %v6120, 0.0
        %v6330 = vmax.f32 %v6122, 0.0
        %v6331 = vmax.f32 %v6124, 0.0
        %v6332 = vmax.f32 %v6128, 0.0
        %v6333 = vmax.f32 %v6130, 0.0
        %v6334 = vmax.f32 %v6132, 0.0
        %v6335 = vmax.f32 %v6134, 0.0
        %v6336 = vmax.f32 %v6138, 0.0
        %v6337 = vmax.f32 %v6140, 0.0
        %v6338 = vmax.f32 %v6142, 0.0
        %v6339 = vmax.f32 %v6144, 0.0
        %v6340 = vmax.f32 %v6148, 0.0
        %v6341 = vmax.f32 %v6150, 0.0
        %v6342 = vmax.f32 %v6152, 0.0
        %v6343 = vmax.f32 %v6154, 0.0
        %v6344 = vmax.f32 %v6158, 0.0
        %v6345 = vmax.f32 %v6160, 0.0
        %v6346 = vmax.f32 %v6162, 0.0
        %v6347 = vmax.f32 %v6164, 0.0
        %v6348 = vmax.f32 %v6168, 0.0
        %v6349 = vmax.f32 %v6170, 0.0
        %v6350 = vmax.f32 %v6172, 0.0
        %v6351 = vmax.f32 %v6174, 0.0
        %v6352 = vmax.f32 %v6178, 0.0
        %v6353 = vmax.f32 %v6180, 0.0
        %v6354 = vmax.f32 %v6182, 0.0
        %v6355 = vmax.f32 %v6184, 0.0
        %v6356 = vmax.f32 %v6188, 0.0
        %v6357 = vmax.f32 %v6190, 0.0
        %v6358 = vmax.f32 %v6192, 0.0
        %v6359 = vmax.f32 %v6194, 0.0
        %v6360 = vmax.f32 %v6198, 0.0
        %v6361 = vmax.f32 %v6200, 0.0
        %v6362 = vmax.f32 %v6202, 0.0
        %v6363 = vmax.f32 %v6204, 0.0
        %v6364 = vmax.f32 %v6208, 0.0
        %v6365 = vmax.f32 %v6210, 0.0
        %v6366 = vmax.f32 %v6212, 0.0
        %v6367 = vmax.f32 %v6214, 0.0
        %v6368 = vmax.f32 %v6218, 0.0
        %v6369 = vmax.f32 %v6220, 0.0
        %v6370 = vmax.f32 %v6222, 0.0
        %v6371 = vmax.f32 %v6224, 0.0
        %v6372 = vmax.f32 %v6228, 0.0
        %v6373 = vmax.f32 %v6230, 0.0
        %v6374 = vmax.f32 %v6232, 0.0
        %v6375 = vmax.f32 %v6234, 0.0
        %v6376 = vmax.f32 %v6238, 0.0
        %v6377 = vmax.f32 %v6240, 0.0
        %v6378 = vmax.f32 %v6242, 0.0
        %v6379 = vmax.f32 %v6244, 0.0
        %v6380 = vmax.f32 %v6248, 0.0
        %v6381 = vmax.f32 %v6250, 0.0
        %v6382 = vmax.f32 %v6252, 0.0
        %v6383 = vmax.f32 %v6254, 0.0
        %v6384 = vpack.c.bf16 %v6258, %v6256
        %v6385 = vpack.c.bf16 %v6259, %v6257
        %v6386 = vpack.c.bf16 %v6262, %v6260
        %v6387 = vpack.c.bf16 %v6263, %v6261
        %v6388 = vpack.c.bf16 %v6266, %v6264
        %v6389 = vpack.c.bf16 %v6267, %v6265
        %v6390 = vpack.c.bf16 %v6270, %v6268
        %v6391 = vpack.c.bf16 %v6271, %v6269
        %v6392 = vpack.c.bf16 %v6274, %v6272
        %v6393 = vpack.c.bf16 %v6275, %v6273
        %v6394 = vpack.c.bf16 %v6278, %v6276
        %v6395 = vpack.c.bf16 %v6279, %v6277
        %v6396 = vpack.c.bf16 %v6282, %v6280
        %v6397 = vpack.c.bf16 %v6283, %v6281
        %v6398 = vpack.c.bf16 %v6286, %v6284
        %v6399 = vpack.c.bf16 %v6287, %v6285
        %v6400 = vpack.c.bf16 %v6290, %v6288
        %v6401 = vpack.c.bf16 %v6291, %v6289
        %v6402 = vpack.c.bf16 %v6294, %v6292
        %v6403 = vpack.c.bf16 %v6295, %v6293
        %v6404 = vpack.c.bf16 %v6298, %v6296
        %v6405 = vpack.c.bf16 %v6299, %v6297
        %v6406 = vpack.c.bf16 %v6302, %v6300
        %v6407 = vpack.c.bf16 %v6303, %v6301
        %v6408 = vpack.c.bf16 %v6306, %v6304
        %v6409 = vpack.c.bf16 %v6307, %v6305
        %v6410 = vpack.c.bf16 %v6310, %v6308
        %v6411 = vpack.c.bf16 %v6311, %v6309
        %v6412 = vpack.c.bf16 %v6314, %v6312
        %v6413 = vpack.c.bf16 %v6315, %v6313
        %v6414 = vpack.c.bf16 %v6318, %v6316
        %v6415 = vpack.c.bf16 %v6319, %v6317
        %v6416 = vpack.c.bf16 %v6322, %v6320
        %v6417 = vpack.c.bf16 %v6323, %v6321
        %v6418 = vpack.c.bf16 %v6326, %v6324
        %v6419 = vpack.c.bf16 %v6327, %v6325
        %v6420 = vpack.c.bf16 %v6330, %v6328
        %v6421 = vpack.c.bf16 %v6331, %v6329
        %v6422 = vpack.c.bf16 %v6334, %v6332
        %v6423 = vpack.c.bf16 %v6335, %v6333
        %v6424 = vpack.c.bf16 %v6338, %v6336
        %v6425 = vpack.c.bf16 %v6339, %v6337
        %v6426 = vpack.c.bf16 %v6342, %v6340
        %v6427 = vpack.c.bf16 %v6343, %v6341
        %v6428 = vpack.c.bf16 %v6346, %v6344
        %v6429 = vpack.c.bf16 %v6347, %v6345
        %v6430 = vpack.c.bf16 %v6350, %v6348
        %v6431 = vpack.c.bf16 %v6351, %v6349
        %v6432 = vpack.c.bf16 %v6354, %v6352
        %v6433 = vpack.c.bf16 %v6355, %v6353
        %v6434 = vpack.c.bf16 %v6358, %v6356
        %v6435 = vpack.c.bf16 %v6359, %v6357
        %v6436 = vpack.c.bf16 %v6362, %v6360
        %v6437 = vpack.c.bf16 %v6363, %v6361
        %v6438 = vpack.c.bf16 %v6366, %v6364
        %v6439 = vpack.c.bf16 %v6367, %v6365
        %v6440 = vpack.c.bf16 %v6370, %v6368
        %v6441 = vpack.c.bf16 %v6371, %v6369
        %v6442 = vpack.c.bf16 %v6374, %v6372
        %v6443 = vpack.c.bf16 %v6375, %v6373
        %v6444 = vpack.c.bf16 %v6378, %v6376
        %v6445 = vpack.c.bf16 %v6379, %v6377
        %v6446 = vpack.c.bf16 %v6382, %v6380
        %v6447 = vpack.c.bf16 %v6383, %v6381
        %s6448 = scalar_lea.vmem [#allocation7], 1536
        %v6449 = vld [vmem:[%s6448] sm:$0xff]
        %v6450 = vld [vmem:[%s6448 + $0x8] sm:$0xff]
        %v6451 = vld [vmem:[%s6448 + $0x10] sm:$0xff]
        %v6452 = vld [vmem:[%s6448 + $0x18] sm:$0xff]
        %v6453 = vld [vmem:[%s6448 + $0x20] sm:$0xff]
        %v6454 = vld [vmem:[%s6448 + $0x28] sm:$0xff]
        %v6455 = vld [vmem:[%s6448 + $0x30] sm:$0xff]
        %v6456 = vld [vmem:[%s6448 + $0x38] sm:$0xff]
        %v6457 = vld [vmem:[%s6448 + $0x40] sm:$0xff]
        %v6458 = vld [vmem:[%s6448 + $0x48] sm:$0xff]
        %v6459 = vld [vmem:[%s6448 + $0x50] sm:$0xff]
        %v6460 = vld [vmem:[%s6448 + $0x58] sm:$0xff]
        %v6461 = vld [vmem:[%s6448 + $0x60] sm:$0xff]
        %v6462 = vld [vmem:[%s6448 + $0x68] sm:$0xff]
        %v6463 = vld [vmem:[%s6448 + $0x70] sm:$0xff]
        %v6464 = vld [vmem:[%s6448 + $0x78] sm:$0xff]
        %v6465 = vld [vmem:[%s6448 + $0x80] sm:$0xff]
        %v6466 = vld [vmem:[%s6448 + $0x88] sm:$0xff]
        %v6467 = vld [vmem:[%s6448 + $0x90] sm:$0xff]
        %v6468 = vld [vmem:[%s6448 + $0x98] sm:$0xff]
        %v6469 = vld [vmem:[%s6448 + $0xa0] sm:$0xff]
        %v6470 = vld [vmem:[%s6448 + $0xa8] sm:$0xff]
        %v6471 = vld [vmem:[%s6448 + $0xb0] sm:$0xff]
        %v6472 = vld [vmem:[%s6448 + $0xb8] sm:$0xff]
        %v6473 = vld [vmem:[%s6448 + $0xc0] sm:$0xff]
        %v6474 = vld [vmem:[%s6448 + $0xc8] sm:$0xff]
        %v6475 = vld [vmem:[%s6448 + $0xd0] sm:$0xff]
        %v6476 = vld [vmem:[%s6448 + $0xd8] sm:$0xff]
        %v6477 = vld [vmem:[%s6448 + $0xe0] sm:$0xff]
        %v6478 = vld [vmem:[%s6448 + $0xe8] sm:$0xff]
        %v6479 = vld [vmem:[%s6448 + $0xf0] sm:$0xff]
        %v6480 = vld [vmem:[%s6448 + $0xf8] sm:$0xff]
        %s6481 = scalar_lea.vmem [#allocation8], 7
        %v6482 = vld [vmem:[%s6481] ss:$8 sm:$0x3]
        %v6484 = vlaneseq
        %v6485 = vshrl.u32 %v6484, 7
        %v6486 = vsub.s32 0, %v6485
        %v6487 = vrot.slane %v6482, %v6486
        %v6488 = vlaneseq
        %v6489 = vshrl.u32 %v6488, 7
        %v6490 = vsub.s32 1, %v6489
        %v6491 = vrot.slane %v6482, %v6490
        %v6526 = vunpack.c.l.b16 %v6449
        %v6527 = vunpack.c.h.b16 %v6449
        %v6528 = vunpack.c.l.b16 %v6450
        %v6529 = vunpack.c.h.b16 %v6450
        %v6530 = vunpack.c.l.b16 %v6451
        %v6531 = vunpack.c.h.b16 %v6451
        %v6532 = vunpack.c.l.b16 %v6452
        %v6533 = vunpack.c.h.b16 %v6452
        %v6534 = vunpack.c.l.b16 %v6453
        %v6535 = vunpack.c.h.b16 %v6453
        %v6536 = vunpack.c.l.b16 %v6454
        %v6537 = vunpack.c.h.b16 %v6454
        %v6538 = vunpack.c.l.b16 %v6455
        %v6539 = vunpack.c.h.b16 %v6455
        %v6540 = vunpack.c.l.b16 %v6456
        %v6541 = vunpack.c.h.b16 %v6456
        %v6542 = vunpack.c.l.b16 %v6457
        %v6543 = vunpack.c.h.b16 %v6457
        %v6544 = vunpack.c.l.b16 %v6458
        %v6545 = vunpack.c.h.b16 %v6458
        %v6546 = vunpack.c.l.b16 %v6459
        %v6547 = vunpack.c.h.b16 %v6459
        %v6548 = vunpack.c.l.b16 %v6460
        %v6549 = vunpack.c.h.b16 %v6460
        %v6550 = vunpack.c.l.b16 %v6461
        %v6551 = vunpack.c.h.b16 %v6461
        %v6552 = vunpack.c.l.b16 %v6462
        %v6553 = vunpack.c.h.b16 %v6462
        %v6554 = vunpack.c.l.b16 %v6463
        %v6555 = vunpack.c.h.b16 %v6463
        %v6556 = vunpack.c.l.b16 %v6464
        %v6557 = vunpack.c.h.b16 %v6464
        %v6558 = vunpack.c.l.b16 %v6465
        %v6559 = vunpack.c.h.b16 %v6465
        %v6560 = vunpack.c.l.b16 %v6466
        %v6561 = vunpack.c.h.b16 %v6466
        %v6562 = vunpack.c.l.b16 %v6467
        %v6563 = vunpack.c.h.b16 %v6467
        %v6564 = vunpack.c.l.b16 %v6468
        %v6565 = vunpack.c.h.b16 %v6468
        %v6566 = vunpack.c.l.b16 %v6469
        %v6567 = vunpack.c.h.b16 %v6469
        %v6568 = vunpack.c.l.b16 %v6470
        %v6569 = vunpack.c.h.b16 %v6470
        %v6570 = vunpack.c.l.b16 %v6471
        %v6571 = vunpack.c.h.b16 %v6471
        %v6572 = vunpack.c.l.b16 %v6472
        %v6573 = vunpack.c.h.b16 %v6472
        %v6574 = vunpack.c.l.b16 %v6473
        %v6575 = vunpack.c.h.b16 %v6473
        %v6576 = vunpack.c.l.b16 %v6474
        %v6577 = vunpack.c.h.b16 %v6474
        %v6578 = vunpack.c.l.b16 %v6475
        %v6579 = vunpack.c.h.b16 %v6475
        %v6580 = vunpack.c.l.b16 %v6476
        %v6581 = vunpack.c.h.b16 %v6476
        %v6582 = vunpack.c.l.b16 %v6477
        %v6583 = vunpack.c.h.b16 %v6477
        %v6584 = vunpack.c.l.b16 %v6478
        %v6585 = vunpack.c.h.b16 %v6478
        %v6586 = vunpack.c.l.b16 %v6479
        %v6587 = vunpack.c.h.b16 %v6479
        %v6588 = vunpack.c.l.b16 %v6480
        %v6589 = vunpack.c.h.b16 %v6480
        %v6590 = vpack.c.b16 %v6528, %v6526
        %v6591 = vpack.c.b16 %v6529, %v6527
        %v6592 = vpack.c.b16 %v6532, %v6530
        %v6593 = vpack.c.b16 %v6533, %v6531
        %v6594 = vpack.c.b16 %v6536, %v6534
        %v6595 = vpack.c.b16 %v6537, %v6535
        %v6596 = vpack.c.b16 %v6540, %v6538
        %v6597 = vpack.c.b16 %v6541, %v6539
        %v6598 = vpack.c.b16 %v6544, %v6542
        %v6599 = vpack.c.b16 %v6545, %v6543
        %v6600 = vpack.c.b16 %v6548, %v6546
        %v6601 = vpack.c.b16 %v6549, %v6547
        %v6602 = vpack.c.b16 %v6552, %v6550
        %v6603 = vpack.c.b16 %v6553, %v6551
        %v6604 = vpack.c.b16 %v6556, %v6554
        %v6605 = vpack.c.b16 %v6557, %v6555
        %v6606 = vpack.c.b16 %v6560, %v6558
        %v6607 = vpack.c.b16 %v6561, %v6559
        %v6608 = vpack.c.b16 %v6564, %v6562
        %v6609 = vpack.c.b16 %v6565, %v6563
        %v6610 = vpack.c.b16 %v6568, %v6566
        %v6611 = vpack.c.b16 %v6569, %v6567
        %v6612 = vpack.c.b16 %v6572, %v6570
        %v6613 = vpack.c.b16 %v6573, %v6571
        %v6614 = vpack.c.b16 %v6576, %v6574
        %v6615 = vpack.c.b16 %v6577, %v6575
        %v6616 = vpack.c.b16 %v6580, %v6578
        %v6617 = vpack.c.b16 %v6581, %v6579
        %v6618 = vpack.c.b16 %v6584, %v6582
        %v6619 = vpack.c.b16 %v6585, %v6583
        %v6620 = vpack.c.b16 %v6588, %v6586
        %v6621 = vpack.c.b16 %v6589, %v6587
        %6654 = vmatprep.subr.bf16.mxu0 %v6591
        %6655 = vmatpush1.bf16.msra.mxu0 %v6590
        %6656 = vmatprep.subr.bf16.mxu0 %v6593
        %6657 = vmatpush1.bf16.msra.mxu0 %v6592
        %6658 = vmatprep.subr.bf16.mxu0 %v6595
        %6659 = vmatpush1.bf16.msra.mxu0 %v6594
        %6660 = vmatprep.subr.bf16.mxu0 %v6597
        %6661 = vmatpush1.bf16.msra.mxu0 %v6596
        %6662 = vmatprep.subr.bf16.mxu0 %v6599
        %6663 = vmatpush1.bf16.msra.mxu0 %v6598
        %6664 = vmatprep.subr.bf16.mxu0 %v6601
        %6665 = vmatpush1.bf16.msra.mxu0 %v6600
        %6666 = vmatprep.subr.bf16.mxu0 %v6603
        %6667 = vmatpush1.bf16.msra.mxu0 %v6602
        %6668 = vmatprep.subr.bf16.mxu0 %v6605
        %6669 = vmatpush1.bf16.msra.mxu0 %v6604
        %6670 = vmatprep.subr.bf16.mxu0 %v6607
        %6671 = vmatpush1.bf16.msra.mxu0 %v6606
        %6672 = vmatprep.subr.bf16.mxu0 %v6609
        %6673 = vmatpush1.bf16.msra.mxu0 %v6608
        %6674 = vmatprep.subr.bf16.mxu0 %v6611
        %6675 = vmatpush1.bf16.msra.mxu0 %v6610
        %6676 = vmatprep.subr.bf16.mxu0 %v6613
        %6677 = vmatpush1.bf16.msra.mxu0 %v6612
        %6678 = vmatprep.subr.bf16.mxu0 %v6615
        %6679 = vmatpush1.bf16.msra.mxu0 %v6614
        %6680 = vmatprep.subr.bf16.mxu0 %v6617
        %6681 = vmatpush1.bf16.msra.mxu0 %v6616
        %6682 = vmatprep.subr.bf16.mxu0 %v6619
        %6683 = vmatpush1.bf16.msra.mxu0 %v6618
        %6684 = vmatprep.subr.bf16.mxu0 %v6621
        %6685 = vmatpush1.bf16.msra.mxu0 %v6620
        %6686 = vmatprep.mubr.bf16.mxu0 %v6385
        %6687 = vmatmul.mubr.bf16.gmra.mrb[0].mxu0 %v6384
        %v6688 = vpop.f32.mrb[0].mxu0
        %v6689 = vadd.f32 %v6487, %v6688
        %v6690 = vpop.f32.mrb[0].mxu0
        %v6691 = vadd.f32 %v6491, %v6690
        %v6692 = vpop.f32.mrb[0].mxu0
        %v6693 = vadd.f32 %v6487, %v6692
        %v6694 = vpop.f32.mrb[0].mxu0
        %v6695 = vadd.f32 %v6491, %v6694
        %6696 = vmatprep.mubr.bf16.mxu0 %v6387
        %6697 = vmatmul.mubr.bf16.gmra.mrb[0].mxu0 %v6386
        %v6698 = vpop.f32.mrb[0].mxu0
        %v6699 = vadd.f32 %v6487, %v6698
        %v6700 = vpop.f32.mrb[0].mxu0
        %v6701 = vadd.f32 %v6491, %v6700
        %v6702 = vpop.f32.mrb[0].mxu0
        %v6703 = vadd.f32 %v6487, %v6702
        %v6704 = vpop.f32.mrb[0].mxu0
        %v6705 = vadd.f32 %v6491, %v6704
        %6706 = vmatprep.mubr.bf16.mxu0 %v6389
        %6707 = vmatmul.mubr.bf16.gmra.mrb[0].mxu0 %v6388
        %v6708 = vpop.f32.mrb[0].mxu0
        %v6709 = vadd.f32 %v6487, %v6708
        %v6710 = vpop.f32.mrb[0].mxu0
        %v6711 = vadd.f32 %v6491, %v6710
        %v6712 = vpop.f32.mrb[0].mxu0
        %v6713 = vadd.f32 %v6487, %v6712
        %v6714 = vpop.f32.mrb[0].mxu0
        %v6715 = vadd.f32 %v6491, %v6714
        %6716 = vmatprep.mubr.bf16.mxu0 %v6391
        %6717 = vmatmul.mubr.bf16.gmra.mrb[0].mxu0 %v6390
        %v6718 = vpop.f32.mrb[0].mxu0
        %v6719 = vadd.f32 %v6487, %v6718
        %v6720 = vpop.f32.mrb[0].mxu0
        %v6721 = vadd.f32 %v6491, %v6720
        %v6722 = vpop.f32.mrb[0].mxu0
        %v6723 = vadd.f32 %v6487, %v6722
        %v6724 = vpop.f32.mrb[0].mxu0
        %v6725 = vadd.f32 %v6491, %v6724
        %6726 = vmatprep.mubr.bf16.mxu0 %v6393
        %6727 = vmatmul.mubr.bf16.gmra.mrb[0].mxu0 %v6392
        %v6728 = vpop.f32.mrb[0].mxu0
        %v6729 = vadd.f32 %v6487, %v6728
        %v6730 = vpop.f32.mrb[0].mxu0
        %v6731 = vadd.f32 %v6491, %v6730
        %v6732 = vpop.f32.mrb[0].mxu0
        %v6733 = vadd.f32 %v6487, %v6732
        %v6734 = vpop.f32.mrb[0].mxu0
        %v6735 = vadd.f32 %v6491, %v6734
        %6736 = vmatprep.mubr.bf16.mxu0 %v6395
        %6737 = vmatmul.mubr.bf16.gmra.mrb[0].mxu0 %v6394
        %v6738 = vpop.f32.mrb[0].mxu0
        %v6739 = vadd.f32 %v6487, %v6738
        %v6740 = vpop.f32.mrb[0].mxu0
        %v6741 = vadd.f32 %v6491, %v6740
        %v6742 = vpop.f32.mrb[0].mxu0
        %v6743 = vadd.f32 %v6487, %v6742
        %v6744 = vpop.f32.mrb[0].mxu0
        %v6745 = vadd.f32 %v6491, %v6744
        %6746 = vmatprep.mubr.bf16.mxu0 %v6397
        %6747 = vmatmul.mubr.bf16.gmra.mrb[0].mxu0 %v6396
        %v6748 = vpop.f32.mrb[0].mxu0
        %v6749 = vadd.f32 %v6487, %v6748
        %v6750 = vpop.f32.mrb[0].mxu0
        %v6751 = vadd.f32 %v6491, %v6750
        %v6752 = vpop.f32.mrb[0].mxu0
        %v6753 = vadd.f32 %v6487, %v6752
        %v6754 = vpop.f32.mrb[0].mxu0
        %v6755 = vadd.f32 %v6491, %v6754
        %6756 = vmatprep.mubr.bf16.mxu0 %v6399
        %6757 = vmatmul.mubr.bf16.gmra.mrb[0].mxu0 %v6398
        %v6758 = vpop.f32.mrb[0].mxu0
        %v6759 = vadd.f32 %v6487, %v6758
        %v6760 = vpop.f32.mrb[0].mxu0
        %v6761 = vadd.f32 %v6491, %v6760
        %v6762 = vpop.f32.mrb[0].mxu0
        %v6763 = vadd.f32 %v6487, %v6762
        %v6764 = vpop.f32.mrb[0].mxu0
        %v6765 = vadd.f32 %v6491, %v6764
        %6766 = vmatprep.mubr.bf16.mxu0 %v6401
        %6767 = vmatmul.mubr.bf16.gmra.mrb[0].mxu0 %v6400
        %v6768 = vpop.f32.mrb[0].mxu0
        %v6769 = vadd.f32 %v6487, %v6768
        %v6770 = vpop.f32.mrb[0].mxu0
        %v6771 = vadd.f32 %v6491, %v6770
        %v6772 = vpop.f32.mrb[0].mxu0
        %v6773 = vadd.f32 %v6487, %v6772
        %v6774 = vpop.f32.mrb[0].mxu0
        %v6775 = vadd.f32 %v6491, %v6774
        %6776 = vmatprep.mubr.bf16.mxu0 %v6403
        %6777 = vmatmul.mubr.bf16.gmra.mrb[0].mxu0 %v6402
        %v6778 = vpop.f32.mrb[0].mxu0
        %v6779 = vadd.f32 %v6487, %v6778
        %v6780 = vpop.f32.mrb[0].mxu0
        %v6781 = vadd.f32 %v6491, %v6780
        %v6782 = vpop.f32.mrb[0].mxu0
        %v6783 = vadd.f32 %v6487, %v6782
        %v6784 = vpop.f32.mrb[0].mxu0
        %v6785 = vadd.f32 %v6491, %v6784
        %6786 = vmatprep.mubr.bf16.mxu0 %v6405
        %6787 = vmatmul.mubr.bf16.gmra.mrb[0].mxu0 %v6404
        %v6788 = vpop.f32.mrb[0].mxu0
        %v6789 = vadd.f32 %v6487, %v6788
        %v6790 = vpop.f32.mrb[0].mxu0
        %v6791 = vadd.f32 %v6491, %v6790
        %v6792 = vpop.f32.mrb[0].mxu0
        %v6793 = vadd.f32 %v6487, %v6792
        %v6794 = vpop.f32.mrb[0].mxu0
        %v6795 = vadd.f32 %v6491, %v6794
        %6796 = vmatprep.mubr.bf16.mxu0 %v6407
        %6797 = vmatmul.mubr.bf16.gmra.mrb[0].mxu0 %v6406
        %v6798 = vpop.f32.mrb[0].mxu0
        %v6799 = vadd.f32 %v6487, %v6798
        %v6800 = vpop.f32.mrb[0].mxu0
        %v6801 = vadd.f32 %v6491, %v6800
        %v6802 = vpop.f32.mrb[0].mxu0
        %v6803 = vadd.f32 %v6487, %v6802
        %v6804 = vpop.f32.mrb[0].mxu0
        %v6805 = vadd.f32 %v6491, %v6804
        %6806 = vmatprep.mubr.bf16.mxu0 %v6409
        %6807 = vmatmul.mubr.bf16.gmra.mrb[0].mxu0 %v6408
        %v6808 = vpop.f32.mrb[0].mxu0
        %v6809 = vadd.f32 %v6487, %v6808
        %v6810 = vpop.f32.mrb[0].mxu0
        %v6811 = vadd.f32 %v6491, %v6810
        %v6812 = vpop.f32.mrb[0].mxu0
        %v6813 = vadd.f32 %v6487, %v6812
        %v6814 = vpop.f32.mrb[0].mxu0
        %v6815 = vadd.f32 %v6491, %v6814
        %6816 = vmatprep.mubr.bf16.mxu0 %v6411
        %6817 = vmatmul.mubr.bf16.gmra.mrb[0].mxu0 %v6410
        %v6818 = vpop.f32.mrb[0].mxu0
        %v6819 = vadd.f32 %v6487, %v6818
        %v6820 = vpop.f32.mrb[0].mxu0
        %v6821 = vadd.f32 %v6491, %v6820
        %v6822 = vpop.f32.mrb[0].mxu0
        %v6823 = vadd.f32 %v6487, %v6822
        %v6824 = vpop.f32.mrb[0].mxu0
        %v6825 = vadd.f32 %v6491, %v6824
        %6826 = vmatprep.mubr.bf16.mxu0 %v6413
        %6827 = vmatmul.mubr.bf16.gmra.mrb[0].mxu0 %v6412
        %v6828 = vpop.f32.mrb[0].mxu0
        %v6829 = vadd.f32 %v6487, %v6828
        %v6830 = vpop.f32.mrb[0].mxu0
        %v6831 = vadd.f32 %v6491, %v6830
        %v6832 = vpop.f32.mrb[0].mxu0
        %v6833 = vadd.f32 %v6487, %v6832
        %v6834 = vpop.f32.mrb[0].mxu0
        %v6835 = vadd.f32 %v6491, %v6834
        %6836 = vmatprep.mubr.bf16.mxu0 %v6415
        %6837 = vmatmul.mubr.bf16.gmra.mrb[0].mxu0 %v6414
        %v6838 = vpop.f32.mrb[0].mxu0
        %v6839 = vadd.f32 %v6487, %v6838
        %v6840 = vpop.f32.mrb[0].mxu0
        %v6841 = vadd.f32 %v6491, %v6840
        %v6842 = vpop.f32.mrb[0].mxu0
        %v6843 = vadd.f32 %v6487, %v6842
        %v6844 = vpop.f32.mrb[0].mxu0
        %v6845 = vadd.f32 %v6491, %v6844
        %6846 = vmatprep.mubr.bf16.mxu0 %v6417
        %6847 = vmatmul.mubr.bf16.gmra.mrb[0].mxu0 %v6416
        %v6848 = vpop.f32.mrb[0].mxu0
        %v6849 = vadd.f32 %v6487, %v6848
        %v6850 = vpop.f32.mrb[0].mxu0
        %v6851 = vadd.f32 %v6491, %v6850
        %v6852 = vpop.f32.mrb[0].mxu0
        %v6853 = vadd.f32 %v6487, %v6852
        %v6854 = vpop.f32.mrb[0].mxu0
        %v6855 = vadd.f32 %v6491, %v6854
        %6856 = vmatprep.mubr.bf16.mxu0 %v6419
        %6857 = vmatmul.mubr.bf16.gmra.mrb[0].mxu0 %v6418
        %v6858 = vpop.f32.mrb[0].mxu0
        %v6859 = vadd.f32 %v6487, %v6858
        %v6860 = vpop.f32.mrb[0].mxu0
        %v6861 = vadd.f32 %v6491, %v6860
        %v6862 = vpop.f32.mrb[0].mxu0
        %v6863 = vadd.f32 %v6487, %v6862
        %v6864 = vpop.f32.mrb[0].mxu0
        %v6865 = vadd.f32 %v6491, %v6864
        %6866 = vmatprep.mubr.bf16.mxu0 %v6421
        %6867 = vmatmul.mubr.bf16.gmra.mrb[0].mxu0 %v6420
        %v6868 = vpop.f32.mrb[0].mxu0
        %v6869 = vadd.f32 %v6487, %v6868
        %v6870 = vpop.f32.mrb[0].mxu0
        %v6871 = vadd.f32 %v6491, %v6870
        %v6872 = vpop.f32.mrb[0].mxu0
        %v6873 = vadd.f32 %v6487, %v6872
        %v6874 = vpop.f32.mrb[0].mxu0
        %v6875 = vadd.f32 %v6491, %v6874
        %6876 = vmatprep.mubr.bf16.mxu0 %v6423
        %6877 = vmatmul.mubr.bf16.gmra.mrb[0].mxu0 %v6422
        %v6878 = vpop.f32.mrb[0].mxu0
        %v6879 = vadd.f32 %v6487, %v6878
        %v6880 = vpop.f32.mrb[0].mxu0
        %v6881 = vadd.f32 %v6491, %v6880
        %v6882 = vpop.f32.mrb[0].mxu0
        %v6883 = vadd.f32 %v6487, %v6882
        %v6884 = vpop.f32.mrb[0].mxu0
        %v6885 = vadd.f32 %v6491, %v6884
        %6886 = vmatprep.mubr.bf16.mxu0 %v6425
        %6887 = vmatmul.mubr.bf16.gmra.mrb[0].mxu0 %v6424
        %v6888 = vpop.f32.mrb[0].mxu0
        %v6889 = vadd.f32 %v6487, %v6888
        %v6890 = vpop.f32.mrb[0].mxu0
        %v6891 = vadd.f32 %v6491, %v6890
        %v6892 = vpop.f32.mrb[0].mxu0
        %v6893 = vadd.f32 %v6487, %v6892
        %v6894 = vpop.f32.mrb[0].mxu0
        %v6895 = vadd.f32 %v6491, %v6894
        %6896 = vmatprep.mubr.bf16.mxu0 %v6427
        %6897 = vmatmul.mubr.bf16.gmra.mrb[0].mxu0 %v6426
        %v6898 = vpop.f32.mrb[0].mxu0
        %v6899 = vadd.f32 %v6487, %v6898
        %v6900 = vpop.f32.mrb[0].mxu0
        %v6901 = vadd.f32 %v6491, %v6900
        %v6902 = vpop.f32.mrb[0].mxu0
        %v6903 = vadd.f32 %v6487, %v6902
        %v6904 = vpop.f32.mrb[0].mxu0
        %v6905 = vadd.f32 %v6491, %v6904
        %6906 = vmatprep.mubr.bf16.mxu0 %v6429
        %6907 = vmatmul.mubr.bf16.gmra.mrb[0].mxu0 %v6428
        %v6908 = vpop.f32.mrb[0].mxu0
        %v6909 = vadd.f32 %v6487, %v6908
        %v6910 = vpop.f32.mrb[0].mxu0
        %v6911 = vadd.f32 %v6491, %v6910
        %v6912 = vpop.f32.mrb[0].mxu0
        %v6913 = vadd.f32 %v6487, %v6912
        %v6914 = vpop.f32.mrb[0].mxu0
        %v6915 = vadd.f32 %v6491, %v6914
        %6916 = vmatprep.mubr.bf16.mxu0 %v6431
        %6917 = vmatmul.mubr.bf16.gmra.mrb[0].mxu0 %v6430
        %v6918 = vpop.f32.mrb[0].mxu0
        %v6919 = vadd.f32 %v6487, %v6918
        %v6920 = vpop.f32.mrb[0].mxu0
        %v6921 = vadd.f32 %v6491, %v6920
        %v6922 = vpop.f32.mrb[0].mxu0
        %v6923 = vadd.f32 %v6487, %v6922
        %v6924 = vpop.f32.mrb[0].mxu0
        %v6925 = vadd.f32 %v6491, %v6924
        %6926 = vmatprep.mubr.bf16.mxu0 %v6433
        %6927 = vmatmul.mubr.bf16.gmra.mrb[0].mxu0 %v6432
        %v6928 = vpop.f32.mrb[0].mxu0
        %v6929 = vadd.f32 %v6487, %v6928
        %v6930 = vpop.f32.mrb[0].mxu0
        %v6931 = vadd.f32 %v6491, %v6930
        %v6932 = vpop.f32.mrb[0].mxu0
        %v6933 = vadd.f32 %v6487, %v6932
        %v6934 = vpop.f32.mrb[0].mxu0
        %v6935 = vadd.f32 %v6491, %v6934
        %6936 = vmatprep.mubr.bf16.mxu0 %v6435
        %6937 = vmatmul.mubr.bf16.gmra.mrb[0].mxu0 %v6434
        %v6938 = vpop.f32.mrb[0].mxu0
        %v6939 = vadd.f32 %v6487, %v6938
        %v6940 = vpop.f32.mrb[0].mxu0
        %v6941 = vadd.f32 %v6491, %v6940
        %v6942 = vpop.f32.mrb[0].mxu0
        %v6943 = vadd.f32 %v6487, %v6942
        %v6944 = vpop.f32.mrb[0].mxu0
        %v6945 = vadd.f32 %v6491, %v6944
        %6946 = vmatprep.mubr.bf16.mxu0 %v6437
        %6947 = vmatmul.mubr.bf16.gmra.mrb[0].mxu0 %v6436
        %v6948 = vpop.f32.mrb[0].mxu0
        %v6949 = vadd.f32 %v6487, %v6948
        %v6950 = vpop.f32.mrb[0].mxu0
        %v6951 = vadd.f32 %v6491, %v6950
        %v6952 = vpop.f32.mrb[0].mxu0
        %v6953 = vadd.f32 %v6487, %v6952
        %v6954 = vpop.f32.mrb[0].mxu0
        %v6955 = vadd.f32 %v6491, %v6954
        %6956 = vmatprep.mubr.bf16.mxu0 %v6439
        %6957 = vmatmul.mubr.bf16.gmra.mrb[0].mxu0 %v6438
        %v6958 = vpop.f32.mrb[0].mxu0
        %v6959 = vadd.f32 %v6487, %v6958
        %v6960 = vpop.f32.mrb[0].mxu0
        %v6961 = vadd.f32 %v6491, %v6960
        %v6962 = vpop.f32.mrb[0].mxu0
        %v6963 = vadd.f32 %v6487, %v6962
        %v6964 = vpop.f32.mrb[0].mxu0
        %v6965 = vadd.f32 %v6491, %v6964
        %6966 = vmatprep.mubr.bf16.mxu0 %v6441
        %6967 = vmatmul.mubr.bf16.gmra.mrb[0].mxu0 %v6440
        %v6968 = vpop.f32.mrb[0].mxu0
        %v6969 = vadd.f32 %v6487, %v6968
        %v6970 = vpop.f32.mrb[0].mxu0
        %v6971 = vadd.f32 %v6491, %v6970
        %v6972 = vpop.f32.mrb[0].mxu0
        %v6973 = vadd.f32 %v6487, %v6972
        %v6974 = vpop.f32.mrb[0].mxu0
        %v6975 = vadd.f32 %v6491, %v6974
        %6976 = vmatprep.mubr.bf16.mxu0 %v6443
        %6977 = vmatmul.mubr.bf16.gmra.mrb[0].mxu0 %v6442
        %v6978 = vpop.f32.mrb[0].mxu0
        %v6979 = vadd.f32 %v6487, %v6978
        %v6980 = vpop.f32.mrb[0].mxu0
        %v6981 = vadd.f32 %v6491, %v6980
        %v6982 = vpop.f32.mrb[0].mxu0
        %v6983 = vadd.f32 %v6487, %v6982
        %v6984 = vpop.f32.mrb[0].mxu0
        %v6985 = vadd.f32 %v6491, %v6984
        %6986 = vmatprep.mubr.bf16.mxu0 %v6445
        %6987 = vmatmul.mubr.bf16.gmra.mrb[0].mxu0 %v6444
        %v6988 = vpop.f32.mrb[0].mxu0
        %v6989 = vadd.f32 %v6487, %v6988
        %v6990 = vpop.f32.mrb[0].mxu0
        %v6991 = vadd.f32 %v6491, %v6990
        %v6992 = vpop.f32.mrb[0].mxu0
        %v6993 = vadd.f32 %v6487, %v6992
        %v6994 = vpop.f32.mrb[0].mxu0
        %v6995 = vadd.f32 %v6491, %v6994
        %6996 = vmatprep.mubr.bf16.mxu0 %v6447
        %6997 = vmatmul.mubr.bf16.gmra.mrb[0].mxu0 %v6446
        %v6998 = vpop.f32.mrb[0].mxu0
        %v6999 = vadd.f32 %v6487, %v6998
        %v7000 = vpop.f32.mrb[0].mxu0
        %v7001 = vadd.f32 %v6491, %v7000
        %v7002 = vpop.f32.mrb[0].mxu0
        %v7003 = vadd.f32 %v6487, %v7002
        %v7004 = vpop.f32.mrb[0].mxu0
        %v7005 = vadd.f32 %v6491, %v7004
        %7006 = vdwg.mxu0
        %v7007 = vmax.f32 %v6689, 0.0
        %v7008 = vmax.f32 %v6691, 0.0
        %v7009 = vmax.f32 %v6693, 0.0
        %v7010 = vmax.f32 %v6695, 0.0
        %v7011 = vmax.f32 %v6699, 0.0
        %v7012 = vmax.f32 %v6701, 0.0
        %v7013 = vmax.f32 %v6703, 0.0
        %v7014 = vmax.f32 %v6705, 0.0
        %v7015 = vmax.f32 %v6709, 0.0
        %v7016 = vmax.f32 %v6711, 0.0
        %v7017 = vmax.f32 %v6713, 0.0
        %v7018 = vmax.f32 %v6715, 0.0
        %v7019 = vmax.f32 %v6719, 0.0
        %v7020 = vmax.f32 %v6721, 0.0
        %v7021 = vmax.f32 %v6723, 0.0
        %v7022 = vmax.f32 %v6725, 0.0
        %v7023 = vmax.f32 %v6729, 0.0
        %v7024 = vmax.f32 %v6731, 0.0
        %v7025 = vmax.f32 %v6733, 0.0
        %v7026 = vmax.f32 %v6735, 0.0
        %v7027 = vmax.f32 %v6739, 0.0
        %v7028 = vmax.f32 %v6741, 0.0
        %v7029 = vmax.f32 %v6743, 0.0
        %v7030 = vmax.f32 %v6745, 0.0
        %v7031 = vmax.f32 %v6749, 0.0
        %v7032 = vmax.f32 %v6751, 0.0
        %v7033 = vmax.f32 %v6753, 0.0
        %v7034 = vmax.f32 %v6755, 0.0
        %v7035 = vmax.f32 %v6759, 0.0
        %v7036 = vmax.f32 %v6761, 0.0
        %v7037 = vmax.f32 %v6763, 0.0
        %v7038 = vmax.f32 %v6765, 0.0
        %v7039 = vmax.f32 %v6769, 0.0
        %v7040 = vmax.f32 %v6771, 0.0
        %v7041 = vmax.f32 %v6773, 0.0
        %v7042 = vmax.f32 %v6775, 0.0
        %v7043 = vmax.f32 %v6779, 0.0
        %v7044 = vmax.f32 %v6781, 0.0
        %v7045 = vmax.f32 %v6783, 0.0
        %v7046 = vmax.f32 %v6785, 0.0
        %v7047 = vmax.f32 %v6789, 0.0
        %v7048 = vmax.f32 %v6791, 0.0
        %v7049 = vmax.f32 %v6793, 0.0
        %v7050 = vmax.f32 %v6795, 0.0
        %v7051 = vmax.f32 %v6799, 0.0
        %v7052 = vmax.f32 %v6801, 0.0
        %v7053 = vmax.f32 %v6803, 0.0
        %v7054 = vmax.f32 %v6805, 0.0
        %v7055 = vmax.f32 %v6809, 0.0
        %v7056 = vmax.f32 %v6811, 0.0
        %v7057 = vmax.f32 %v6813, 0.0
        %v7058 = vmax.f32 %v6815, 0.0
        %v7059 = vmax.f32 %v6819, 0.0
        %v7060 = vmax.f32 %v6821, 0.0
        %v7061 = vmax.f32 %v6823, 0.0
        %v7062 = vmax.f32 %v6825, 0.0
        %v7063 = vmax.f32 %v6829, 0.0
        %v7064 = vmax.f32 %v6831, 0.0
        %v7065 = vmax.f32 %v6833, 0.0
        %v7066 = vmax.f32 %v6835, 0.0
        %v7067 = vmax.f32 %v6839, 0.0
        %v7068 = vmax.f32 %v6841, 0.0
        %v7069 = vmax.f32 %v6843, 0.0
        %v7070 = vmax.f32 %v6845, 0.0
        %v7071 = vmax.f32 %v6849, 0.0
        %v7072 = vmax.f32 %v6851, 0.0
        %v7073 = vmax.f32 %v6853, 0.0
        %v7074 = vmax.f32 %v6855, 0.0
        %v7075 = vmax.f32 %v6859, 0.0
        %v7076 = vmax.f32 %v6861, 0.0
        %v7077 = vmax.f32 %v6863, 0.0
        %v7078 = vmax.f32 %v6865, 0.0
        %v7079 = vmax.f32 %v6869, 0.0
        %v7080 = vmax.f32 %v6871, 0.0
        %v7081 = vmax.f32 %v6873, 0.0
        %v7082 = vmax.f32 %v6875, 0.0
        %v7083 = vmax.f32 %v6879, 0.0
        %v7084 = vmax.f32 %v6881, 0.0
        %v7085 = vmax.f32 %v6883, 0.0
        %v7086 = vmax.f32 %v6885, 0.0
        %v7087 = vmax.f32 %v6889, 0.0
        %v7088 = vmax.f32 %v6891, 0.0
        %v7089 = vmax.f32 %v6893, 0.0
        %v7090 = vmax.f32 %v6895, 0.0
        %v7091 = vmax.f32 %v6899, 0.0
        %v7092 = vmax.f32 %v6901, 0.0
        %v7093 = vmax.f32 %v6903, 0.0
        %v7094 = vmax.f32 %v6905, 0.0
        %v7095 = vmax.f32 %v6909, 0.0
        %v7096 = vmax.f32 %v6911, 0.0
        %v7097 = vmax.f32 %v6913, 0.0
        %v7098 = vmax.f32 %v6915, 0.0
        %v7099 = vmax.f32 %v6919, 0.0
        %v7100 = vmax.f32 %v6921, 0.0
        %v7101 = vmax.f32 %v6923, 0.0
        %v7102 = vmax.f32 %v6925, 0.0
        %v7103 = vmax.f32 %v6929, 0.0
        %v7104 = vmax.f32 %v6931, 0.0
        %v7105 = vmax.f32 %v6933, 0.0
        %v7106 = vmax.f32 %v6935, 0.0
        %v7107 = vmax.f32 %v6939, 0.0
        %v7108 = vmax.f32 %v6941, 0.0
        %v7109 = vmax.f32 %v6943, 0.0
        %v7110 = vmax.f32 %v6945, 0.0
        %v7111 = vmax.f32 %v6949, 0.0
        %v7112 = vmax.f32 %v6951, 0.0
        %v7113 = vmax.f32 %v6953, 0.0
        %v7114 = vmax.f32 %v6955, 0.0
        %v7115 = vmax.f32 %v6959, 0.0
        %v7116 = vmax.f32 %v6961, 0.0
        %v7117 = vmax.f32 %v6963, 0.0
        %v7118 = vmax.f32 %v6965, 0.0
        %v7119 = vmax.f32 %v6969, 0.0
        %v7120 = vmax.f32 %v6971, 0.0
        %v7121 = vmax.f32 %v6973, 0.0
        %v7122 = vmax.f32 %v6975, 0.0
        %v7123 = vmax.f32 %v6979, 0.0
        %v7124 = vmax.f32 %v6981, 0.0
        %v7125 = vmax.f32 %v6983, 0.0
        %v7126 = vmax.f32 %v6985, 0.0
        %v7127 = vmax.f32 %v6989, 0.0
        %v7128 = vmax.f32 %v6991, 0.0
        %v7129 = vmax.f32 %v6993, 0.0
        %v7130 = vmax.f32 %v6995, 0.0
        %v7131 = vmax.f32 %v6999, 0.0
        %v7132 = vmax.f32 %v7001, 0.0
        %v7133 = vmax.f32 %v7003, 0.0
        %v7134 = vmax.f32 %v7005, 0.0
        %v7135 = vpack.c.bf16 %v7009, %v7007
        %v7136 = vpack.c.bf16 %v7010, %v7008
        %v7137 = vpack.c.bf16 %v7013, %v7011
        %v7138 = vpack.c.bf16 %v7014, %v7012
        %v7139 = vpack.c.bf16 %v7017, %v7015
        %v7140 = vpack.c.bf16 %v7018, %v7016
        %v7141 = vpack.c.bf16 %v7021, %v7019
        %v7142 = vpack.c.bf16 %v7022, %v7020
        %v7143 = vpack.c.bf16 %v7025, %v7023
        %v7144 = vpack.c.bf16 %v7026, %v7024
        %v7145 = vpack.c.bf16 %v7029, %v7027
        %v7146 = vpack.c.bf16 %v7030, %v7028
        %v7147 = vpack.c.bf16 %v7033, %v7031
        %v7148 = vpack.c.bf16 %v7034, %v7032
        %v7149 = vpack.c.bf16 %v7037, %v7035
        %v7150 = vpack.c.bf16 %v7038, %v7036
        %v7151 = vpack.c.bf16 %v7041, %v7039
        %v7152 = vpack.c.bf16 %v7042, %v7040
        %v7153 = vpack.c.bf16 %v7045, %v7043
        %v7154 = vpack.c.bf16 %v7046, %v7044
        %v7155 = vpack.c.bf16 %v7049, %v7047
        %v7156 = vpack.c.bf16 %v7050, %v7048
        %v7157 = vpack.c.bf16 %v7053, %v7051
        %v7158 = vpack.c.bf16 %v7054, %v7052
        %v7159 = vpack.c.bf16 %v7057, %v7055
        %v7160 = vpack.c.bf16 %v7058, %v7056
        %v7161 = vpack.c.bf16 %v7061, %v7059
        %v7162 = vpack.c.bf16 %v7062, %v7060
        %v7163 = vpack.c.bf16 %v7065, %v7063
        %v7164 = vpack.c.bf16 %v7066, %v7064
        %v7165 = vpack.c.bf16 %v7069, %v7067
        %v7166 = vpack.c.bf16 %v7070, %v7068
        %v7167 = vpack.c.bf16 %v7073, %v7071
        %v7168 = vpack.c.bf16 %v7074, %v7072
        %v7169 = vpack.c.bf16 %v7077, %v7075
        %v7170 = vpack.c.bf16 %v7078, %v7076
        %v7171 = vpack.c.bf16 %v7081, %v7079
        %v7172 = vpack.c.bf16 %v7082, %v7080
        %v7173 = vpack.c.bf16 %v7085, %v7083
        %v7174 = vpack.c.bf16 %v7086, %v7084
        %v7175 = vpack.c.bf16 %v7089, %v7087
        %v7176 = vpack.c.bf16 %v7090, %v7088
        %v7177 = vpack.c.bf16 %v7093, %v7091
        %v7178 = vpack.c.bf16 %v7094, %v7092
        %v7179 = vpack.c.bf16 %v7097, %v7095
        %v7180 = vpack.c.bf16 %v7098, %v7096
        %v7181 = vpack.c.bf16 %v7101, %v7099
        %v7182 = vpack.c.bf16 %v7102, %v7100
        %v7183 = vpack.c.bf16 %v7105, %v7103
        %v7184 = vpack.c.bf16 %v7106, %v7104
        %v7185 = vpack.c.bf16 %v7109, %v7107
        %v7186 = vpack.c.bf16 %v7110, %v7108
        %v7187 = vpack.c.bf16 %v7113, %v7111
        %v7188 = vpack.c.bf16 %v7114, %v7112
        %v7189 = vpack.c.bf16 %v7117, %v7115
        %v7190 = vpack.c.bf16 %v7118, %v7116
        %v7191 = vpack.c.bf16 %v7121, %v7119
        %v7192 = vpack.c.bf16 %v7122, %v7120
        %v7193 = vpack.c.bf16 %v7125, %v7123
        %v7194 = vpack.c.bf16 %v7126, %v7124
        %v7195 = vpack.c.bf16 %v7129, %v7127
        %v7196 = vpack.c.bf16 %v7130, %v7128
        %v7197 = vpack.c.bf16 %v7133, %v7131
        %v7198 = vpack.c.bf16 %v7134, %v7132
        %v7199 = vld [vmem:[#allocation10] sm:$0xf]
        %v7200 = vld [vmem:[#allocation10 + $0x4] sm:$0xf]
        %v7201 = vld [vmem:[#allocation10 + $0x8] sm:$0xf]
        %v7202 = vld [vmem:[#allocation10 + $0xc] sm:$0xf]
        %v7203 = vld [vmem:[#allocation10 + $0x10] sm:$0xf]
        %v7204 = vld [vmem:[#allocation10 + $0x14] sm:$0xf]
        %v7205 = vld [vmem:[#allocation10 + $0x18] sm:$0xf]
        %v7206 = vld [vmem:[#allocation10 + $0x1c] sm:$0xf]
        %v7207 = vld [vmem:[#allocation10 + $0x20] sm:$0xf]
        %v7208 = vld [vmem:[#allocation10 + $0x24] sm:$0xf]
        %v7209 = vld [vmem:[#allocation10 + $0x28] sm:$0xf]
        %v7210 = vld [vmem:[#allocation10 + $0x2c] sm:$0xf]
        %v7211 = vld [vmem:[#allocation10 + $0x30] sm:$0xf]
        %v7212 = vld [vmem:[#allocation10 + $0x34] sm:$0xf]
        %v7213 = vld [vmem:[#allocation10 + $0x38] sm:$0xf]
        %v7214 = vld [vmem:[#allocation10 + $0x3c] sm:$0xf]
        %v7215 = vld [vmem:[#allocation10 + $0x40] sm:$0xf]
        %v7216 = vld [vmem:[#allocation10 + $0x44] sm:$0xf]
        %v7217 = vld [vmem:[#allocation10 + $0x48] sm:$0xf]
        %v7218 = vld [vmem:[#allocation10 + $0x4c] sm:$0xf]
        %v7219 = vld [vmem:[#allocation10 + $0x50] sm:$0xf]
        %v7220 = vld [vmem:[#allocation10 + $0x54] sm:$0xf]
        %v7221 = vld [vmem:[#allocation10 + $0x58] sm:$0xf]
        %v7222 = vld [vmem:[#allocation10 + $0x5c] sm:$0xf]
        %v7223 = vld [vmem:[#allocation10 + $0x60] sm:$0xf]
        %v7224 = vld [vmem:[#allocation10 + $0x64] sm:$0xf]
        %v7225 = vld [vmem:[#allocation10 + $0x68] sm:$0xf]
        %v7226 = vld [vmem:[#allocation10 + $0x6c] sm:$0xf]
        %v7227 = vld [vmem:[#allocation10 + $0x70] sm:$0xf]
        %v7228 = vld [vmem:[#allocation10 + $0x74] sm:$0xf]
        %v7229 = vld [vmem:[#allocation10 + $0x78] sm:$0xf]
        %v7230 = vld [vmem:[#allocation10 + $0x7c] sm:$0xf]
        %v7231 = vld [vmem:[%s5] sm:$0x1]
        %v7233 = vlaneseq
        %v7234 = vshrl.u32 %v7233, 7
        %v7235 = vsub.s32 0, %v7234
        %v7236 = vrot.slane %v7231, %v7235
        %v7270 = vunpack.c.l.b16 %v7199
        %v7271 = vunpack.c.l.b16 %v7200
        %v7272 = vunpack.c.l.b16 %v7201
        %v7273 = vunpack.c.l.b16 %v7202
        %v7274 = vunpack.c.l.b16 %v7203
        %v7275 = vunpack.c.l.b16 %v7204
        %v7276 = vunpack.c.l.b16 %v7205
        %v7277 = vunpack.c.l.b16 %v7206
        %v7278 = vunpack.c.l.b16 %v7207
        %v7279 = vunpack.c.l.b16 %v7208
        %v7280 = vunpack.c.l.b16 %v7209
        %v7281 = vunpack.c.l.b16 %v7210
        %v7282 = vunpack.c.l.b16 %v7211
        %v7283 = vunpack.c.l.b16 %v7212
        %v7284 = vunpack.c.l.b16 %v7213
        %v7285 = vunpack.c.l.b16 %v7214
        %v7286 = vunpack.c.l.b16 %v7215
        %v7287 = vunpack.c.l.b16 %v7216
        %v7288 = vunpack.c.l.b16 %v7217
        %v7289 = vunpack.c.l.b16 %v7218
        %v7290 = vunpack.c.l.b16 %v7219
        %v7291 = vunpack.c.l.b16 %v7220
        %v7292 = vunpack.c.l.b16 %v7221
        %v7293 = vunpack.c.l.b16 %v7222
        %v7294 = vunpack.c.l.b16 %v7223
        %v7295 = vunpack.c.l.b16 %v7224
        %v7296 = vunpack.c.l.b16 %v7225
        %v7297 = vunpack.c.l.b16 %v7226
        %v7298 = vunpack.c.l.b16 %v7227
        %v7299 = vunpack.c.l.b16 %v7228
        %v7300 = vunpack.c.l.b16 %v7229
        %v7301 = vunpack.c.l.b16 %v7230
        %v7302 = vpack.c.b16 %v7271, %v7270
        %v7303 = vpack.c.b16 %v7273, %v7272
        %v7304 = vpack.c.b16 %v7275, %v7274
        %v7305 = vpack.c.b16 %v7277, %v7276
        %v7306 = vpack.c.b16 %v7279, %v7278
        %v7307 = vpack.c.b16 %v7281, %v7280
        %v7308 = vpack.c.b16 %v7283, %v7282
        %v7309 = vpack.c.b16 %v7285, %v7284
        %v7310 = vpack.c.b16 %v7287, %v7286
        %v7311 = vpack.c.b16 %v7289, %v7288
        %v7312 = vpack.c.b16 %v7291, %v7290
        %v7313 = vpack.c.b16 %v7293, %v7292
        %v7314 = vpack.c.b16 %v7295, %v7294
        %v7315 = vpack.c.b16 %v7297, %v7296
        %v7316 = vpack.c.b16 %v7299, %v7298
        %v7317 = vpack.c.b16 %v7301, %v7300
        %7334 = vmatprep.subr.bf16.mxu0 0
        %7335 = vmatpush1.bf16.msra.mxu0 %v7302
        %7336 = vmatprep.subr.bf16.mxu0 0
        %7337 = vmatpush1.bf16.msra.mxu0 %v7303
        %7338 = vmatprep.subr.bf16.mxu0 0
        %7339 = vmatpush1.bf16.msra.mxu0 %v7304
        %7340 = vmatprep.subr.bf16.mxu0 0
        %7341 = vmatpush1.bf16.msra.mxu0 %v7305
        %7342 = vmatprep.subr.bf16.mxu0 0
        %7343 = vmatpush1.bf16.msra.mxu0 %v7306
        %7344 = vmatprep.subr.bf16.mxu0 0
        %7345 = vmatpush1.bf16.msra.mxu0 %v7307
        %7346 = vmatprep.subr.bf16.mxu0 0
        %7347 = vmatpush1.bf16.msra.mxu0 %v7308
        %7348 = vmatprep.subr.bf16.mxu0 0
        %7349 = vmatpush1.bf16.msra.mxu0 %v7309
        %7350 = vmatprep.subr.bf16.mxu0 0
        %7351 = vmatpush1.bf16.msra.mxu0 %v7310
        %7352 = vmatprep.subr.bf16.mxu0 0
        %7353 = vmatpush1.bf16.msra.mxu0 %v7311
        %7354 = vmatprep.subr.bf16.mxu0 0
        %7355 = vmatpush1.bf16.msra.mxu0 %v7312
        %7356 = vmatprep.subr.bf16.mxu0 0
        %7357 = vmatpush1.bf16.msra.mxu0 %v7313
        %7358 = vmatprep.subr.bf16.mxu0 0
        %7359 = vmatpush1.bf16.msra.mxu0 %v7314
        %7360 = vmatprep.subr.bf16.mxu0 0
        %7361 = vmatpush1.bf16.msra.mxu0 %v7315
        %7362 = vmatprep.subr.bf16.mxu0 0
        %7363 = vmatpush1.bf16.msra.mxu0 %v7316
        %7364 = vmatprep.subr.bf16.mxu0 0
        %7365 = vmatpush1.bf16.msra.mxu0 %v7317
        %7366 = vmatprep.mubr.bf16.mxu0 %v7136
        %7367 = vmatmul.mubr.bf16.gmra.mrb[0].mxu0 %v7135
        %v7368 = vpop.f32.mrb[0].mxu0
        %v7369 = vadd.f32 %v7236, %v7368
        %v7370 = vpop.f32.mrb[0].mxu0
        %v7371 = vpop.f32.mrb[0].mxu0
        %v7372 = vadd.f32 %v7236, %v7371
        %v7373 = vpop.f32.mrb[0].mxu0
        %7374 = vmatprep.mubr.bf16.mxu0 %v7138
        %7375 = vmatmul.mubr.bf16.gmra.mrb[0].mxu0 %v7137
        %v7376 = vpop.f32.mrb[0].mxu0
        %v7377 = vadd.f32 %v7236, %v7376
        %v7378 = vpop.f32.mrb[0].mxu0
        %v7379 = vpop.f32.mrb[0].mxu0
        %v7380 = vadd.f32 %v7236, %v7379
        %v7381 = vpop.f32.mrb[0].mxu0
        %7382 = vmatprep.mubr.bf16.mxu0 %v7140
        %7383 = vmatmul.mubr.bf16.gmra.mrb[0].mxu0 %v7139
        %v7384 = vpop.f32.mrb[0].mxu0
        %v7385 = vadd.f32 %v7236, %v7384
        %v7386 = vpop.f32.mrb[0].mxu0
        %v7387 = vpop.f32.mrb[0].mxu0
        %v7388 = vadd.f32 %v7236, %v7387
        %v7389 = vpop.f32.mrb[0].mxu0
        %7390 = vmatprep.mubr.bf16.mxu0 %v7142
        %7391 = vmatmul.mubr.bf16.gmra.mrb[0].mxu0 %v7141
        %v7392 = vpop.f32.mrb[0].mxu0
        %v7393 = vadd.f32 %v7236, %v7392
        %v7394 = vpop.f32.mrb[0].mxu0
        %v7395 = vpop.f32.mrb[0].mxu0
        %v7396 = vadd.f32 %v7236, %v7395
        %v7397 = vpop.f32.mrb[0].mxu0
        %7398 = vmatprep.mubr.bf16.mxu0 %v7144
        %7399 = vmatmul.mubr.bf16.gmra.mrb[0].mxu0 %v7143
        %v7400 = vpop.f32.mrb[0].mxu0
        %v7401 = vadd.f32 %v7236, %v7400
        %v7402 = vpop.f32.mrb[0].mxu0
        %v7403 = vpop.f32.mrb[0].mxu0
        %v7404 = vadd.f32 %v7236, %v7403
        %v7405 = vpop.f32.mrb[0].mxu0
        %7406 = vmatprep.mubr.bf16.mxu0 %v7146
        %7407 = vmatmul.mubr.bf16.gmra.mrb[0].mxu0 %v7145
        %v7408 = vpop.f32.mrb[0].mxu0
        %v7409 = vadd.f32 %v7236, %v7408
        %v7410 = vpop.f32.mrb[0].mxu0
        %v7411 = vpop.f32.mrb[0].mxu0
        %v7412 = vadd.f32 %v7236, %v7411
        %v7413 = vpop.f32.mrb[0].mxu0
        %7414 = vmatprep.mubr.bf16.mxu0 %v7148
        %7415 = vmatmul.mubr.bf16.gmra.mrb[0].mxu0 %v7147
        %v7416 = vpop.f32.mrb[0].mxu0
        %v7417 = vadd.f32 %v7236, %v7416
        %v7418 = vpop.f32.mrb[0].mxu0
        %v7419 = vpop.f32.mrb[0].mxu0
        %v7420 = vadd.f32 %v7236, %v7419
        %v7421 = vpop.f32.mrb[0].mxu0
        %7422 = vmatprep.mubr.bf16.mxu0 %v7150
        %7423 = vmatmul.mubr.bf16.gmra.mrb[0].mxu0 %v7149
        %v7424 = vpop.f32.mrb[0].mxu0
        %v7425 = vadd.f32 %v7236, %v7424
        %v7426 = vpop.f32.mrb[0].mxu0
        %v7427 = vpop.f32.mrb[0].mxu0
        %v7428 = vadd.f32 %v7236, %v7427
        %v7429 = vpop.f32.mrb[0].mxu0
        %7430 = vmatprep.mubr.bf16.mxu0 %v7152
        %7431 = vmatmul.mubr.bf16.gmra.mrb[0].mxu0 %v7151
        %v7432 = vpop.f32.mrb[0].mxu0
        %v7433 = vadd.f32 %v7236, %v7432
        %v7434 = vpop.f32.mrb[0].mxu0
        %v7435 = vpop.f32.mrb[0].mxu0
        %v7436 = vadd.f32 %v7236, %v7435
        %v7437 = vpop.f32.mrb[0].mxu0
        %7438 = vmatprep.mubr.bf16.mxu0 %v7154
        %7439 = vmatmul.mubr.bf16.gmra.mrb[0].mxu0 %v7153
        %v7440 = vpop.f32.mrb[0].mxu0
        %v7441 = vadd.f32 %v7236, %v7440
        %v7442 = vpop.f32.mrb[0].mxu0
        %v7443 = vpop.f32.mrb[0].mxu0
        %v7444 = vadd.f32 %v7236, %v7443
        %v7445 = vpop.f32.mrb[0].mxu0
        %7446 = vmatprep.mubr.bf16.mxu0 %v7156
        %7447 = vmatmul.mubr.bf16.gmra.mrb[0].mxu0 %v7155
        %v7448 = vpop.f32.mrb[0].mxu0
        %v7449 = vadd.f32 %v7236, %v7448
        %v7450 = vpop.f32.mrb[0].mxu0
        %v7451 = vpop.f32.mrb[0].mxu0
        %v7452 = vadd.f32 %v7236, %v7451
        %v7453 = vpop.f32.mrb[0].mxu0
        %7454 = vmatprep.mubr.bf16.mxu0 %v7158
        %7455 = vmatmul.mubr.bf16.gmra.mrb[0].mxu0 %v7157
        %v7456 = vpop.f32.mrb[0].mxu0
        %v7457 = vadd.f32 %v7236, %v7456
        %v7458 = vpop.f32.mrb[0].mxu0
        %v7459 = vpop.f32.mrb[0].mxu0
        %v7460 = vadd.f32 %v7236, %v7459
        %v7461 = vpop.f32.mrb[0].mxu0
        %7462 = vmatprep.mubr.bf16.mxu0 %v7160
        %7463 = vmatmul.mubr.bf16.gmra.mrb[0].mxu0 %v7159
        %v7464 = vpop.f32.mrb[0].mxu0
        %v7465 = vadd.f32 %v7236, %v7464
        %v7466 = vpop.f32.mrb[0].mxu0
        %v7467 = vpop.f32.mrb[0].mxu0
        %v7468 = vadd.f32 %v7236, %v7467
        %v7469 = vpop.f32.mrb[0].mxu0
        %7470 = vmatprep.mubr.bf16.mxu0 %v7162
        %7471 = vmatmul.mubr.bf16.gmra.mrb[0].mxu0 %v7161
        %v7472 = vpop.f32.mrb[0].mxu0
        %v7473 = vadd.f32 %v7236, %v7472
        %v7474 = vpop.f32.mrb[0].mxu0
        %v7475 = vpop.f32.mrb[0].mxu0
        %v7476 = vadd.f32 %v7236, %v7475
        %v7477 = vpop.f32.mrb[0].mxu0
        %7478 = vmatprep.mubr.bf16.mxu0 %v7164
        %7479 = vmatmul.mubr.bf16.gmra.mrb[0].mxu0 %v7163
        %v7480 = vpop.f32.mrb[0].mxu0
        %v7481 = vadd.f32 %v7236, %v7480
        %v7482 = vpop.f32.mrb[0].mxu0
        %v7483 = vpop.f32.mrb[0].mxu0
        %v7484 = vadd.f32 %v7236, %v7483
        %v7485 = vpop.f32.mrb[0].mxu0
        %7486 = vmatprep.mubr.bf16.mxu0 %v7166
        %7487 = vmatmul.mubr.bf16.gmra.mrb[0].mxu0 %v7165
        %v7488 = vpop.f32.mrb[0].mxu0
        %v7489 = vadd.f32 %v7236, %v7488
        %v7490 = vpop.f32.mrb[0].mxu0
        %v7491 = vpop.f32.mrb[0].mxu0
        %v7492 = vadd.f32 %v7236, %v7491
        %v7493 = vpop.f32.mrb[0].mxu0
        %7494 = vmatprep.mubr.bf16.mxu0 %v7168
        %7495 = vmatmul.mubr.bf16.gmra.mrb[0].mxu0 %v7167
        %v7496 = vpop.f32.mrb[0].mxu0
        %v7497 = vadd.f32 %v7236, %v7496
        %v7498 = vpop.f32.mrb[0].mxu0
        %v7499 = vpop.f32.mrb[0].mxu0
        %v7500 = vadd.f32 %v7236, %v7499
        %v7501 = vpop.f32.mrb[0].mxu0
        %7502 = vmatprep.mubr.bf16.mxu0 %v7170
        %7503 = vmatmul.mubr.bf16.gmra.mrb[0].mxu0 %v7169
        %v7504 = vpop.f32.mrb[0].mxu0
        %v7505 = vadd.f32 %v7236, %v7504
        %v7506 = vpop.f32.mrb[0].mxu0
        %v7507 = vpop.f32.mrb[0].mxu0
        %v7508 = vadd.f32 %v7236, %v7507
        %v7509 = vpop.f32.mrb[0].mxu0
        %7510 = vmatprep.mubr.bf16.mxu0 %v7172
        %7511 = vmatmul.mubr.bf16.gmra.mrb[0].mxu0 %v7171
        %v7512 = vpop.f32.mrb[0].mxu0
        %v7513 = vadd.f32 %v7236, %v7512
        %v7514 = vpop.f32.mrb[0].mxu0
        %v7515 = vpop.f32.mrb[0].mxu0
        %v7516 = vadd.f32 %v7236, %v7515
        %v7517 = vpop.f32.mrb[0].mxu0
        %7518 = vmatprep.mubr.bf16.mxu0 %v7174
        %7519 = vmatmul.mubr.bf16.gmra.mrb[0].mxu0 %v7173
        %v7520 = vpop.f32.mrb[0].mxu0
        %v7521 = vadd.f32 %v7236, %v7520
        %v7522 = vpop.f32.mrb[0].mxu0
        %v7523 = vpop.f32.mrb[0].mxu0
        %v7524 = vadd.f32 %v7236, %v7523
        %v7525 = vpop.f32.mrb[0].mxu0
        %7526 = vmatprep.mubr.bf16.mxu0 %v7176
        %7527 = vmatmul.mubr.bf16.gmra.mrb[0].mxu0 %v7175
        %v7528 = vpop.f32.mrb[0].mxu0
        %v7529 = vadd.f32 %v7236, %v7528
        %v7530 = vpop.f32.mrb[0].mxu0
        %v7531 = vpop.f32.mrb[0].mxu0
        %v7532 = vadd.f32 %v7236, %v7531
        %v7533 = vpop.f32.mrb[0].mxu0
        %7534 = vmatprep.mubr.bf16.mxu0 %v7178
        %7535 = vmatmul.mubr.bf16.gmra.mrb[0].mxu0 %v7177
        %v7536 = vpop.f32.mrb[0].mxu0
        %v7537 = vadd.f32 %v7236, %v7536
        %v7538 = vpop.f32.mrb[0].mxu0
        %v7539 = vpop.f32.mrb[0].mxu0
        %v7540 = vadd.f32 %v7236, %v7539
        %v7541 = vpop.f32.mrb[0].mxu0
        %7542 = vmatprep.mubr.bf16.mxu0 %v7180
        %7543 = vmatmul.mubr.bf16.gmra.mrb[0].mxu0 %v7179
        %v7544 = vpop.f32.mrb[0].mxu0
        %v7545 = vadd.f32 %v7236, %v7544
        %v7546 = vpop.f32.mrb[0].mxu0
        %v7547 = vpop.f32.mrb[0].mxu0
        %v7548 = vadd.f32 %v7236, %v7547
        %v7549 = vpop.f32.mrb[0].mxu0
        %7550 = vmatprep.mubr.bf16.mxu0 %v7182
        %7551 = vmatmul.mubr.bf16.gmra.mrb[0].mxu0 %v7181
        %v7552 = vpop.f32.mrb[0].mxu0
        %v7553 = vadd.f32 %v7236, %v7552
        %v7554 = vpop.f32.mrb[0].mxu0
        %v7555 = vpop.f32.mrb[0].mxu0
        %v7556 = vadd.f32 %v7236, %v7555
        %v7557 = vpop.f32.mrb[0].mxu0
        %7558 = vmatprep.mubr.bf16.mxu0 %v7184
        %7559 = vmatmul.mubr.bf16.gmra.mrb[0].mxu0 %v7183
        %v7560 = vpop.f32.mrb[0].mxu0
        %v7561 = vadd.f32 %v7236, %v7560
        %v7562 = vpop.f32.mrb[0].mxu0
        %v7563 = vpop.f32.mrb[0].mxu0
        %v7564 = vadd.f32 %v7236, %v7563
        %v7565 = vpop.f32.mrb[0].mxu0
        %7566 = vmatprep.mubr.bf16.mxu0 %v7186
        %7567 = vmatmul.mubr.bf16.gmra.mrb[0].mxu0 %v7185
        %v7568 = vpop.f32.mrb[0].mxu0
        %v7569 = vadd.f32 %v7236, %v7568
        %v7570 = vpop.f32.mrb[0].mxu0
        %v7571 = vpop.f32.mrb[0].mxu0
        %v7572 = vadd.f32 %v7236, %v7571
        %v7573 = vpop.f32.mrb[0].mxu0
        %7574 = vmatprep.mubr.bf16.mxu0 %v7188
        %7575 = vmatmul.mubr.bf16.gmra.mrb[0].mxu0 %v7187
        %v7576 = vpop.f32.mrb[0].mxu0
        %v7577 = vadd.f32 %v7236, %v7576
        %v7578 = vpop.f32.mrb[0].mxu0
        %v7579 = vpop.f32.mrb[0].mxu0
        %v7580 = vadd.f32 %v7236, %v7579
        %v7581 = vpop.f32.mrb[0].mxu0
        %7582 = vmatprep.mubr.bf16.mxu0 %v7190
        %7583 = vmatmul.mubr.bf16.gmra.mrb[0].mxu0 %v7189
        %v7584 = vpop.f32.mrb[0].mxu0
        %v7585 = vadd.f32 %v7236, %v7584
        %v7586 = vpop.f32.mrb[0].mxu0
        %v7587 = vpop.f32.mrb[0].mxu0
        %v7588 = vadd.f32 %v7236, %v7587
        %v7589 = vpop.f32.mrb[0].mxu0
        %7590 = vmatprep.mubr.bf16.mxu0 %v7192
        %7591 = vmatmul.mubr.bf16.gmra.mrb[0].mxu0 %v7191
        %v7592 = vpop.f32.mrb[0].mxu0
        %v7593 = vadd.f32 %v7236, %v7592
        %v7594 = vpop.f32.mrb[0].mxu0
        %v7595 = vpop.f32.mrb[0].mxu0
        %v7596 = vadd.f32 %v7236, %v7595
        %v7597 = vpop.f32.mrb[0].mxu0
        %7598 = vmatprep.mubr.bf16.mxu0 %v7194
        %7599 = vmatmul.mubr.bf16.gmra.mrb[0].mxu0 %v7193
        %v7600 = vpop.f32.mrb[0].mxu0
        %v7601 = vadd.f32 %v7236, %v7600
        %v7602 = vpop.f32.mrb[0].mxu0
        %v7603 = vpop.f32.mrb[0].mxu0
        %v7604 = vadd.f32 %v7236, %v7603
        %v7605 = vpop.f32.mrb[0].mxu0
        %7606 = vmatprep.mubr.bf16.mxu0 %v7196
        %7607 = vmatmul.mubr.bf16.gmra.mrb[0].mxu0 %v7195
        %v7608 = vpop.f32.mrb[0].mxu0
        %v7609 = vadd.f32 %v7236, %v7608
        %v7610 = vpop.f32.mrb[0].mxu0
        %v7611 = vpop.f32.mrb[0].mxu0
        %v7612 = vadd.f32 %v7236, %v7611
        %v7613 = vpop.f32.mrb[0].mxu0
        %7614 = vmatprep.mubr.bf16.mxu0 %v7198
        %7615 = vmatmul.mubr.bf16.gmra.mrb[0].mxu0 %v7197
        %v7616 = vpop.f32.mrb[0].mxu0
        %v7617 = vadd.f32 %v7236, %v7616
        %v7618 = vpop.f32.mrb[0].mxu0
        %v7619 = vpop.f32.mrb[0].mxu0
        %v7620 = vadd.f32 %v7236, %v7619
        %v7621 = vpop.f32.mrb[0].mxu0
        %7622 = vdwg.mxu0
        %v7623 = vpack.c.bf16 %v7372, %v7369
        %v7624 = vpack.c.bf16 %v7380, %v7377
        %v7625 = vpack.c.bf16 %v7388, %v7385
        %v7626 = vpack.c.bf16 %v7396, %v7393
        %v7627 = vpack.c.bf16 %v7404, %v7401
        %v7628 = vpack.c.bf16 %v7412, %v7409
        %v7629 = vpack.c.bf16 %v7420, %v7417
        %v7630 = vpack.c.bf16 %v7428, %v7425
        %v7631 = vpack.c.bf16 %v7436, %v7433
        %v7632 = vpack.c.bf16 %v7444, %v7441
        %v7633 = vpack.c.bf16 %v7452, %v7449
        %v7634 = vpack.c.bf16 %v7460, %v7457
        %v7635 = vpack.c.bf16 %v7468, %v7465
        %v7636 = vpack.c.bf16 %v7476, %v7473
        %v7637 = vpack.c.bf16 %v7484, %v7481
        %v7638 = vpack.c.bf16 %v7492, %v7489
        %v7639 = vpack.c.bf16 %v7500, %v7497
        %v7640 = vpack.c.bf16 %v7508, %v7505
        %v7641 = vpack.c.bf16 %v7516, %v7513
        %v7642 = vpack.c.bf16 %v7524, %v7521
        %v7643 = vpack.c.bf16 %v7532, %v7529
        %v7644 = vpack.c.bf16 %v7540, %v7537
        %v7645 = vpack.c.bf16 %v7548, %v7545
        %v7646 = vpack.c.bf16 %v7556, %v7553
        %v7647 = vpack.c.bf16 %v7564, %v7561
        %v7648 = vpack.c.bf16 %v7572, %v7569
        %v7649 = vpack.c.bf16 %v7580, %v7577
        %v7650 = vpack.c.bf16 %v7588, %v7585
        %v7651 = vpack.c.bf16 %v7596, %v7593
        %v7652 = vpack.c.bf16 %v7604, %v7601
        %v7653 = vpack.c.bf16 %v7612, %v7609
        %v7654 = vpack.c.bf16 %v7620, %v7617
        %v7687 = vunpack.c.l.b16 %v7623
        %v7688 = vunpack.c.h.b16 %v7623
        %v7689 = vunpack.c.l.b16 %v7624
        %v7690 = vunpack.c.h.b16 %v7624
        %v7691 = vunpack.c.l.b16 %v7625
        %v7692 = vunpack.c.h.b16 %v7625
        %v7693 = vunpack.c.l.b16 %v7626
        %v7694 = vunpack.c.h.b16 %v7626
        %v7695 = vunpack.c.l.b16 %v7627
        %v7696 = vunpack.c.h.b16 %v7627
        %v7697 = vunpack.c.l.b16 %v7628
        %v7698 = vunpack.c.h.b16 %v7628
        %v7699 = vunpack.c.l.b16 %v7629
        %v7700 = vunpack.c.h.b16 %v7629
        %v7701 = vunpack.c.l.b16 %v7630
        %v7702 = vunpack.c.h.b16 %v7630
        %v7703 = vunpack.c.l.b16 %v7631
        %v7704 = vunpack.c.h.b16 %v7631
        %v7705 = vunpack.c.l.b16 %v7632
        %v7706 = vunpack.c.h.b16 %v7632
        %v7707 = vunpack.c.l.b16 %v7633
        %v7708 = vunpack.c.h.b16 %v7633
        %v7709 = vunpack.c.l.b16 %v7634
        %v7710 = vunpack.c.h.b16 %v7634
        %v7711 = vunpack.c.l.b16 %v7635
        %v7712 = vunpack.c.h.b16 %v7635
        %v7713 = vunpack.c.l.b16 %v7636
        %v7714 = vunpack.c.h.b16 %v7636
        %v7715 = vunpack.c.l.b16 %v7637
        %v7716 = vunpack.c.h.b16 %v7637
        %v7717 = vunpack.c.l.b16 %v7638
        %v7718 = vunpack.c.h.b16 %v7638
        %v7719 = vunpack.c.l.b16 %v7639
        %v7720 = vunpack.c.h.b16 %v7639
        %v7721 = vunpack.c.l.b16 %v7640
        %v7722 = vunpack.c.h.b16 %v7640
        %v7723 = vunpack.c.l.b16 %v7641
        %v7724 = vunpack.c.h.b16 %v7641
        %v7725 = vunpack.c.l.b16 %v7642
        %v7726 = vunpack.c.h.b16 %v7642
        %v7727 = vunpack.c.l.b16 %v7643
        %v7728 = vunpack.c.h.b16 %v7643
        %v7729 = vunpack.c.l.b16 %v7644
        %v7730 = vunpack.c.h.b16 %v7644
        %v7731 = vunpack.c.l.b16 %v7645
        %v7732 = vunpack.c.h.b16 %v7645
        %v7733 = vunpack.c.l.b16 %v7646
        %v7734 = vunpack.c.h.b16 %v7646
        %v7735 = vunpack.c.l.b16 %v7647
        %v7736 = vunpack.c.h.b16 %v7647
        %v7737 = vunpack.c.l.b16 %v7648
        %v7738 = vunpack.c.h.b16 %v7648
        %v7739 = vunpack.c.l.b16 %v7649
        %v7740 = vunpack.c.h.b16 %v7649
        %v7741 = vunpack.c.l.b16 %v7650
        %v7742 = vunpack.c.h.b16 %v7650
        %v7743 = vunpack.c.l.b16 %v7651
        %v7744 = vunpack.c.h.b16 %v7651
        %v7745 = vunpack.c.l.b16 %v7652
        %v7746 = vunpack.c.h.b16 %v7652
        %v7747 = vunpack.c.l.b16 %v7653
        %v7748 = vunpack.c.h.b16 %v7653
        %v7749 = vunpack.c.l.b16 %v7654
        %v7750 = vunpack.c.h.b16 %v7654
        %v7751 = vpack.c.b16 %v7687, %v7687
        %v7752 = vpack.c.b16 %v7688, %v7688
        %v7753 = vpack.c.b16 %v7689, %v7689
        %v7754 = vpack.c.b16 %v7690, %v7690
        %v7755 = vpack.c.b16 %v7691, %v7691
        %v7756 = vpack.c.b16 %v7692, %v7692
        %v7757 = vpack.c.b16 %v7693, %v7693
        %v7758 = vpack.c.b16 %v7694, %v7694
        %v7759 = vpack.c.b16 %v7695, %v7695
        %v7760 = vpack.c.b16 %v7696, %v7696
        %v7761 = vpack.c.b16 %v7697, %v7697
        %v7762 = vpack.c.b16 %v7698, %v7698
        %v7763 = vpack.c.b16 %v7699, %v7699
        %v7764 = vpack.c.b16 %v7700, %v7700
        %v7765 = vpack.c.b16 %v7701, %v7701
        %v7766 = vpack.c.b16 %v7702, %v7702
        %v7767 = vpack.c.b16 %v7703, %v7703
        %v7768 = vpack.c.b16 %v7704, %v7704
        %v7769 = vpack.c.b16 %v7705, %v7705
        %v7770 = vpack.c.b16 %v7706, %v7706
        %v7771 = vpack.c.b16 %v7707, %v7707
        %v7772 = vpack.c.b16 %v7708, %v7708
        %v7773 = vpack.c.b16 %v7709, %v7709
        %v7774 = vpack.c.b16 %v7710, %v7710
        %v7775 = vpack.c.b16 %v7711, %v7711
        %v7776 = vpack.c.b16 %v7712, %v7712
        %v7777 = vpack.c.b16 %v7713, %v7713
        %v7778 = vpack.c.b16 %v7714, %v7714
        %v7779 = vpack.c.b16 %v7715, %v7715
        %v7780 = vpack.c.b16 %v7716, %v7716
        %v7781 = vpack.c.b16 %v7717, %v7717
        %v7782 = vpack.c.b16 %v7718, %v7718
        %v7783 = vpack.c.b16 %v7719, %v7719
        %v7784 = vpack.c.b16 %v7720, %v7720
        %v7785 = vpack.c.b16 %v7721, %v7721
        %v7786 = vpack.c.b16 %v7722, %v7722
        %v7787 = vpack.c.b16 %v7723, %v7723
        %v7788 = vpack.c.b16 %v7724, %v7724
        %v7789 = vpack.c.b16 %v7725, %v7725
        %v7790 = vpack.c.b16 %v7726, %v7726
        %v7791 = vpack.c.b16 %v7727, %v7727
        %v7792 = vpack.c.b16 %v7728, %v7728
        %v7793 = vpack.c.b16 %v7729, %v7729
        %v7794 = vpack.c.b16 %v7730, %v7730
        %v7795 = vpack.c.b16 %v7731, %v7731
        %v7796 = vpack.c.b16 %v7732, %v7732
        %v7797 = vpack.c.b16 %v7733, %v7733
        %v7798 = vpack.c.b16 %v7734, %v7734
        %v7799 = vpack.c.b16 %v7735, %v7735
        %v7800 = vpack.c.b16 %v7736, %v7736
        %v7801 = vpack.c.b16 %v7737, %v7737
        %v7802 = vpack.c.b16 %v7738, %v7738
        %v7803 = vpack.c.b16 %v7739, %v7739
        %v7804 = vpack.c.b16 %v7740, %v7740
        %v7805 = vpack.c.b16 %v7741, %v7741
        %v7806 = vpack.c.b16 %v7742, %v7742
        %v7807 = vpack.c.b16 %v7743, %v7743
        %v7808 = vpack.c.b16 %v7744, %v7744
        %v7809 = vpack.c.b16 %v7745, %v7745
        %v7810 = vpack.c.b16 %v7746, %v7746
        %v7811 = vpack.c.b16 %v7747, %v7747
        %v7812 = vpack.c.b16 %v7748, %v7748
        %v7813 = vpack.c.b16 %v7749, %v7749
        %v7814 = vpack.c.b16 %v7750, %v7750
        %7879 = vst [vmem:[%s325] sm:$0xf] %v7751
        %7880 = vst [vmem:[%s325 + $0x4] sm:$0xf] %v7752
        %7881 = vst [vmem:[%s325 + $0x8] sm:$0xf] %v7753
        %7882 = vst [vmem:[%s325 + $0xc] sm:$0xf] %v7754
        %7883 = vst [vmem:[%s325 + $0x10] sm:$0xf] %v7755
        %7884 = vst [vmem:[%s325 + $0x14] sm:$0xf] %v7756
        %7885 = vst [vmem:[%s325 + $0x18] sm:$0xf] %v7757
        %7886 = vst [vmem:[%s325 + $0x1c] sm:$0xf] %v7758
        %7887 = vst [vmem:[%s325 + $0x20] sm:$0xf] %v7759
        %7888 = vst [vmem:[%s325 + $0x24] sm:$0xf] %v7760
        %7889 = vst [vmem:[%s325 + $0x28] sm:$0xf] %v7761
        %7890 = vst [vmem:[%s325 + $0x2c] sm:$0xf] %v7762
        %7891 = vst [vmem:[%s325 + $0x30] sm:$0xf] %v7763
        %7892 = vst [vmem:[%s325 + $0x34] sm:$0xf] %v7764
        %7893 = vst [vmem:[%s325 + $0x38] sm:$0xf] %v7765
        %7894 = vst [vmem:[%s325 + $0x3c] sm:$0xf] %v7766
        %7895 = vst [vmem:[%s325 + $0x40] sm:$0xf] %v7767
        %7896 = vst [vmem:[%s325 + $0x44] sm:$0xf] %v7768
        %7897 = vst [vmem:[%s325 + $0x48] sm:$0xf] %v7769
        %7898 = vst [vmem:[%s325 + $0x4c] sm:$0xf] %v7770
        %7899 = vst [vmem:[%s325 + $0x50] sm:$0xf] %v7771
        %7900 = vst [vmem:[%s325 + $0x54] sm:$0xf] %v7772
        %7901 = vst [vmem:[%s325 + $0x58] sm:$0xf] %v7773
        %7902 = vst [vmem:[%s325 + $0x5c] sm:$0xf] %v7774
        %7903 = vst [vmem:[%s325 + $0x60] sm:$0xf] %v7775
        %7904 = vst [vmem:[%s325 + $0x64] sm:$0xf] %v7776
        %7905 = vst [vmem:[%s325 + $0x68] sm:$0xf] %v7777
        %7906 = vst [vmem:[%s325 + $0x6c] sm:$0xf] %v7778
        %7907 = vst [vmem:[%s325 + $0x70] sm:$0xf] %v7779
        %7908 = vst [vmem:[%s325 + $0x74] sm:$0xf] %v7780
        %7909 = vst [vmem:[%s325 + $0x78] sm:$0xf] %v7781
        %7910 = vst [vmem:[%s325 + $0x7c] sm:$0xf] %v7782
        %7911 = vst [vmem:[%s325 + $0x80] sm:$0xf] %v7783
        %7912 = vst [vmem:[%s325 + $0x84] sm:$0xf] %v7784
        %7913 = vst [vmem:[%s325 + $0x88] sm:$0xf] %v7785
        %7914 = vst [vmem:[%s325 + $0x8c] sm:$0xf] %v7786
        %7915 = vst [vmem:[%s325 + $0x90] sm:$0xf] %v7787
        %7916 = vst [vmem:[%s325 + $0x94] sm:$0xf] %v7788
        %7917 = vst [vmem:[%s325 + $0x98] sm:$0xf] %v7789
        %7918 = vst [vmem:[%s325 + $0x9c] sm:$0xf] %v7790
        %7919 = vst [vmem:[%s325 + $0xa0] sm:$0xf] %v7791
        %7920 = vst [vmem:[%s325 + $0xa4] sm:$0xf] %v7792
        %7921 = vst [vmem:[%s325 + $0xa8] sm:$0xf] %v7793
        %7922 = vst [vmem:[%s325 + $0xac] sm:$0xf] %v7794
        %7923 = vst [vmem:[%s325 + $0xb0] sm:$0xf] %v7795
        %7924 = vst [vmem:[%s325 + $0xb4] sm:$0xf] %v7796
        %7925 = vst [vmem:[%s325 + $0xb8] sm:$0xf] %v7797
        %7926 = vst [vmem:[%s325 + $0xbc] sm:$0xf] %v7798
        %7927 = vst [vmem:[%s325 + $0xc0] sm:$0xf] %v7799
        %7928 = vst [vmem:[%s325 + $0xc4] sm:$0xf] %v7800
        %7929 = vst [vmem:[%s325 + $0xc8] sm:$0xf] %v7801
        %7930 = vst [vmem:[%s325 + $0xcc] sm:$0xf] %v7802
        %7931 = vst [vmem:[%s325 + $0xd0] sm:$0xf] %v7803
        %7932 = vst [vmem:[%s325 + $0xd4] sm:$0xf] %v7804
        %7933 = vst [vmem:[%s325 + $0xd8] sm:$0xf] %v7805
        %7934 = vst [vmem:[%s325 + $0xdc] sm:$0xf] %v7806
        %7935 = vst [vmem:[%s325 + $0xe0] sm:$0xf] %v7807
        %7936 = vst [vmem:[%s325 + $0xe4] sm:$0xf] %v7808
        %7937 = vst [vmem:[%s325 + $0xe8] sm:$0xf] %v7809
        %7938 = vst [vmem:[%s325 + $0xec] sm:$0xf] %v7810
        %7939 = vst [vmem:[%s325 + $0xf0] sm:$0xf] %v7811
        %7940 = vst [vmem:[%s325 + $0xf4] sm:$0xf] %v7812
        %7941 = vst [vmem:[%s325 + $0xf8] sm:$0xf] %v7813
        %7942 = vst [vmem:[%s325 + $0xfc] sm:$0xf] %v7814
        %s7943 = sand.u32 %s164, 1
        %s7944 = scalar_lea.sflag [#allocation4], %s7943
        %s7945 = sand.u32 %s164, 1
        %s7946 = smul.addr %s7945, 256
        %s7947 = scalar_lea.vmem [#allocation11], %s7946
        // Predicated region
        $region65: #{tpu_custom_call.1} parent=43 // pred_check
          %p7948 = pneg %p174
        $region66: #{tpu_custom_call.1} parent=43 // pred_check_branch
          %7950 = sbr.rel (%p7948) target = $region68
        $region67: #{tpu_custom_call.1} parent=43 // pred_region
          %s7951 = smul.u32 64, %s25
          %s7953 = ssub.s32 4096, 4096
          %7954 = vsyncadd %s7944, %s7953
          %s7955 = smul.addr %s7951, 64
          %s7956 = scalar_lea.hbm %s6, %s7955
          %s7957 = sshll.u32 %s7947, 4
          %s7958 = int_to_ptr.vmem [resolvable:$true] %s7957
          %7963 = dma.vmem_to_hbm [thread:$0]  %s7958, 4096, %s7956, %s7944, 64, 64, 4
        $region68: #{tpu_custom_call.1} parent=43 // pred_fallthru
          _
      $region44: #{tpu_custom_call.1} parent=5 // pred_fallthru
        _
      %p7964 = scmp.le.s32.totalorder 2, %s20
      // Predicated region
      $region69: #{tpu_custom_call.1} parent=5 // pred_check
        %p7965 = pneg %p7964
      $region70: #{tpu_custom_call.1} parent=5 // pred_check_branch
        %7967 = sbr.rel (%p7965) target = $region72
      $region71: #{tpu_custom_call.1} parent=5 // pred_region
        %s7968 = ssub.s32 %s20, 2
        // Predicated region
        $region73: #{tpu_custom_call.1} parent=71 // pred_check
          %p7969 = pneg %p180
        $region74: #{tpu_custom_call.1} parent=71 // pred_check_branch
          %7971 = sbr.rel (%p7969) target = $region76
        $region75: #{tpu_custom_call.1} parent=71 // pred_region
          %s7972 = sand.u32 %s165, 1
          %s7973 = scalar_lea.sflag [#allocation4], %s7972
          %s7974 = sand.u32 %s165, 1
          %s7975 = smul.addr %s7974, 256
          %s7976 = scalar_lea.vmem [#allocation11], %s7975
          %7977 = dma.done %s7973, 4096
        $region76: #{tpu_custom_call.1} parent=71 // pred_fallthru
          _
      $region72: #{tpu_custom_call.1} parent=5 // pred_fallthru
        _
    $region6: #{tpu_custom_call.1} parent=1 // loop_footer
      %s24 = sadd.s32 1, %s20
    $region7: #{tpu_custom_call.1} parent=1 // loop_footer_branch
      %19 = sbr.rel target = $region3
    $region8: #{tpu_custom_call.1} parent=1 // loop_exit
      _
    %7978 = vsyncpa [#allocation3], 1
    %s7979 = scalar_lea.sflag [#allocation3], 1
    %7980 = vsyncpa %s7979, 1
    %7981 = vsyncpa [#allocation6], 1
    %7982 = vsyncpa [#allocation9], 1
    %7983 = vsyncpa [#allocation4], 1
    %s7984 = scalar_lea.sflag [#allocation4], 1
    %7985 = vsyncpa %s7984, 1

</llo_original>
